<compile_context>
chip_gen: v5e
topology: v5e:2x2
jax: 0.10.0
libtpu: 0.0.40
codegen_flags: <defaults>
</compile_context>

<pallas_src>
import functools

import numpy as np
import jax
import jax.numpy as jnp
from jax import lax
from jax.experimental import pallas as pl
from jax.experimental.pallas import tpu as pltpu


K_REAL = 49   # 7 x 7 image objects
K_PAD = 56    # padded object count (multiple of 8) so every block / matmul dim is aligned


# ---------------------------------------------------------------------------
# helpers
# ---------------------------------------------------------------------------
def _vmem_spec(shape):
    nd = len(shape)
    return pl.BlockSpec(shape, lambda *_: (0,) * nd)


# ---------------------------------------------------------------------------
# fused kernel (single invocation, no grid)
# ---------------------------------------------------------------------------
def topdown_kernel(k_real,
                   qflat_ref, img_ref, imgf_ref, expand_ref,
                   wih_ref, bih_ref, whh_f_ref, whh_b_ref,
                   wproj_ref, bproj_ref,
                   wv_ref, bv_ref, wq_ref, bq_ref, wlin_ref, blin_ref,
                   w1a_hbm, w1b_ref, b1_ref, w2_ref, b2_ref,
                   out_ref,
                   w1a_vmem, dma_sem):
    B, Kp, D = img_ref.shape
    H = D
    T = qflat_ref.shape[0] // B

    # ---- kick off the dominant (3.7 MB) classifier-weight DMA; it overlaps the serial
    # ---- BiLSTM + attention below and is only waited on right before its single use.
    w1a_copy = pltpu.make_async_copy(w1a_hbm, w1a_vmem, dma_sem)
    w1a_copy.start()

    # ---------------- BiLSTM (fused, hoisted input-to-hidden projections) ----------------
    gx = (jnp.dot(qflat_ref[...], wih_ref[...], preferred_element_type=jnp.float32)
          + bih_ref[...])                                    # (T*B, 8H): [fwd gates | bwd gates]

    def cell(gx_t, h, c, whh_ref):
        g = gx_t + jnp.dot(h, whh_ref[...], preferred_element_type=jnp.float32)
        i = jax.nn.sigmoid(g[:, 0 * H:1 * H])
        f = jax.nn.sigmoid(g[:, 1 * H:2 * H])
        gg = jnp.tanh(g[:, 2 * H:3 * H])
        o = jax.nn.sigmoid(g[:, 3 * H:4 * H])
        c_new = f * c + i * gg
        h_new = o * jnp.tanh(c_new)
        return h_new, c_new

    hf = jnp.zeros((B, H), jnp.float32)
    cf = jnp.zeros((B, H), jnp.float32)
    hb = jnp.zeros((B, H), jnp.float32)
    cb = jnp.zeros((B, H), jnp.float32)
    for t in range(T):   # static unroll; whh re-read from VMEM inside cell (no vreg pinning)
        hf, cf = cell(gx[t * B:(t + 1) * B, 0:4 * H], hf, cf, whh_f_ref)
        tb = T - 1 - t
        hb, cb = cell(gx[tb * B:(tb + 1) * B, 4 * H:8 * H], hb, cb, whh_b_ref)

    # torch: h.permute(1,0,2).view(B, 2H) == concat([h_fwd, h_bwd], -1)
    hcat = jnp.concatenate([hf, hb], axis=-1)                # (B, 2H)
    q_emb = (jnp.dot(hcat, wproj_ref[...], preferred_element_type=jnp.float32)
             + bproj_ref[...])                               # (B, H)

    # ---------------- NewAttention (weight-norm Linear == plain Linear) ----------------
    img = img_ref[...]                                       # (B, Kp, D); rows >= k_real are 0
    v_proj = jnp.maximum(
        jnp.dot(img.reshape(B * Kp, D), wv_ref[...],
                preferred_element_type=jnp.float32) + bv_ref[...], 0.0)
    q_proj = jnp.maximum(
        jnp.dot(q_emb, wq_ref[...], preferred_element_type=jnp.float32) + bq_ref[...], 0.0)
    qw = q_proj * wlin_ref[...]                              # wlin folded into the q branch
    logits = (jnp.sum(v_proj.reshape(B, Kp, D) * qw[:, None, :], axis=-1)
              + blin_ref[...])                               # (B, Kp)
    kidx = lax.broadcasted_iota(jnp.int32, (B, Kp), 1)
    logits = jnp.where(kidx < k_real, logits, -1e30)         # mask zero-padded objects
    m = jnp.max(logits, axis=1, keepdims=True)
    e = jnp.exp(logits - m)
    att = e / jnp.sum(e, axis=1, keepdims=True)              # (B, Kp)

    # lane-dense att*img with NO in-kernel minor-dim reshape:
    #   att_wide[b, k*D + d] = att[b, k]   (one tiny matmul against a constant 0/1 matrix)
    att_wide = jnp.dot(att.astype(jnp.bfloat16), expand_ref[...],
                       preferred_element_type=jnp.float32)   # (B, Kp*D)
    v_flat = att_wide * imgf_ref[...]                        # (B, Kp*D) == att*img, k-major

    # ---------------- classifier (eval BatchNorm folded host-side) ----------------
    acc = (jnp.dot(q_emb, w1b_ref[...], preferred_element_type=jnp.float32)
           + b1_ref[...])                                    # q branch + folded BN bias
    w1a_copy.wait()                                          # weight DMA done by now
    acc = acc + jnp.dot(v_flat.astype(jnp.bfloat16), w1a_vmem[...],
                        preferred_element_type=jnp.float32)  # single aligned v-branch matmul
    y = jnp.maximum(acc, 0.0)
    z = (jnp.dot(y.astype(jnp.bfloat16), w2_ref[...],
                 preferred_element_type=jnp.float32) + b2_ref[...])
    out_ref[...] = jnp.maximum(z, 0.0)


# ---------------------------------------------------------------------------
# wrapper
# ---------------------------------------------------------------------------
def topdown_forward(img, q, KP):
    B, K, D = img.shape
    _, T, E = q.shape
    H = D
    H8 = KP["b2"].shape[1]
    Kp = KP["w1a_flat"].shape[0] // D
    KD = Kp * D

    # tiny host-side layout glue: time-major tokens, zero-pad objects K -> Kp, and a
    # k-major flat copy of img (row b, col k*D+d) matching the reordered w1a rows.
    qflat = jnp.transpose(q, (1, 0, 2)).reshape(T * B, E)
    img_p = jnp.pad(img, ((0, 0), (0, Kp - K), (0, 0)))
    imgf = img_p.reshape(B, KD)

    kernel = functools.partial(topdown_kernel, K)

    return pl.pallas_call(
        kernel,
        out_shape=jax.ShapeDtypeStruct((B, H8), jnp.float32),
        in_specs=[
            _vmem_spec((T * B, E)),
            _vmem_spec((B, Kp, D)),
            _vmem_spec((B, KD)),
            _vmem_spec((Kp, KD)),                      # constant 0/1 expander (bf16)
            _vmem_spec((E, 8 * H)), _vmem_spec((1, 8 * H)),
            _vmem_spec((H, 4 * H)), _vmem_spec((H, 4 * H)),
            _vmem_spec((2 * H, H)), _vmem_spec((1, H)),
            _vmem_spec((H, H)), _vmem_spec((1, H)),
            _vmem_spec((H, H)), _vmem_spec((1, H)),
            _vmem_spec((1, H)), _vmem_spec((1, 1)),
            pl.BlockSpec(memory_space=pl.ANY),         # w1a stays in HBM; manual overlapped DMA
            _vmem_spec((H, H8)), _vmem_spec((1, H8)),
            _vmem_spec((H8, H8)), _vmem_spec((1, H8)),
        ],
        out_specs=_vmem_spec((B, H8)),
        scratch_shapes=[
            pltpu.VMEM((KD, H8), jnp.bfloat16),        # landing buffer for the full w1a
            pltpu.SemaphoreType.DMA,
        ],
        compiler_params=pltpu.CompilerParams(vmem_limit_bytes=32 * 1024 * 1024),
    )(qflat, img_p, imgf, KP["expand"],
      KP["wih_cat"], KP["bih_cat"], KP["whh_f"], KP["whh_b"],
      KP["wproj"], KP["bproj"],
      KP["wv"], KP["bv"], KP["wq"], KP["bq"], KP["wlin"], KP["blin"],
      KP["w1a_flat"], KP["w1b"], KP["b1"], KP["w2"], KP["b2"])


topdown_forward_jit = jax.jit(topdown_forward)


# ---------------------------------------------------------------------------
# one-time host-side parameter preparation:
#   * reorder w1a rows (d-major torch flatten -> k-major), pad K 49->56, cast bf16
#   * fold eval-mode BatchNorm into the two classifier Linears
#   * fuse the two LSTM input-to-hidden projections into one (E, 8H) weight
#   * build the constant (Kp, Kp*D) 0/1 expander used to lane-expand the attention weights
# ---------------------------------------------------------------------------
def prepare_params(P, K, K_pad, eps=1e-5):
    H8 = P["b1"].shape[1]
    D = P["wv"].shape[0]
    scale1 = P["g1"] * jax.lax.rsqrt(P["v1"] + eps)          # (1, H8)
    scale2 = P["g2"] * jax.lax.rsqrt(P["v2"] + eps)          # (1, H8)

    # torch flatten order (v_emb.permute(0,2,1).view): classifier input row r = d*K + k.
    # Reorder to k-major (row = k*D + d) and pad K with zero rows.
    w1a_k = (P["w1a"] * scale1).reshape(D, K, H8).transpose(1, 0, 2)   # (K, D, H8)
    w1a_k = jnp.pad(w1a_k, ((0, K_pad - K), (0, 0), (0, 0)))           # (K_pad, D, H8)

    KP = {}
    KP["w1a_flat"] = w1a_k.reshape(K_pad * D, H8).astype(jnp.bfloat16)
    KP["w1b"] = P["w1b"] * scale1
    KP["b1"] = (P["b1"] - P["m1"]) * scale1 + P["be1"]
    KP["w2"] = (P["w2"] * scale2).astype(jnp.bfloat16)
    KP["b2"] = (P["b2"] - P["m2"]) * scale2 + P["be2"]

    # fused BiLSTM input-to-hidden projection: [forward gates | backward gates]
    KP["wih_cat"] = jnp.concatenate([P["wih_f"], P["wih_b"]], axis=1)  # (E, 8H)
    KP["bih_cat"] = jnp.concatenate([P["b_f"], P["b_b"]], axis=1)      # (1, 8H)
    KP["whh_f"] = P["whh_f"]
    KP["whh_b"] = P["whh_b"]

    KP["wproj"] = P["wproj"]
    KP["bproj"] = P["bproj"]
    KP["wv"] = P["wv"]
    KP["bv"] = P["bv"]
    KP["wq"] = P["wq"]
    KP["bq"] = P["bq"]
    KP["wlin"] = P["wlin"]
    KP["blin"] = P["blin"]

    # expander: expand[k, k*D + d] = 1, else 0  (exactly representable in bf16)
    lane_k = np.arange(K_pad * D, dtype=np.int32) // D
    expand = (lane_k[None, :] == np.arange(K_pad, dtype=np.int32)[:, None])
    KP["expand"] = jnp.asarray(expand.astype(np.float32), dtype=jnp.bfloat16)
    return KP


# ---------------------------------------------------------------------------
# deterministic parameter init + numpy reference (torch semantics, f64)
# ---------------------------------------------------------------------------
def make_params(key, E, H, K):
    ks = iter(jax.random.split(key, 32))
    n = lambda shape, s: jax.random.normal(next(ks), shape, jnp.float32) * s
    H8 = 8 * H
    P = {
        "wih_f": n((E, 4 * H), 1.0 / np.sqrt(E)),
        "whh_f": n((H, 4 * H), 1.0 / np.sqrt(H)),
        "b_f":   n((1, 4 * H), 0.02),
        "wih_b": n((E, 4 * H), 1.0 / np.sqrt(E)),
        "whh_b": n((H, 4 * H), 1.0 / np.sqrt(H)),
        "b_b":   n((1, 4 * H), 0.02),
        "wproj": n((2 * H, H), 1.0 / np.sqrt(2 * H)),
        "bproj": n((1, H), 0.02),
        "wv":    n((H, H), 1.0 / np.sqrt(H)),
        "bv":    n((1, H), 0.02),
        "wq":    n((H, H), 1.0 / np.sqrt(H)),
        "bq":    n((1, H), 0.02),
        "wlin":  n((1, H), 1.0 / np.sqrt(H)),
        "blin":  n((1, 1), 0.02),
        "w1a":   n((H * K, H8), 1.0 / np.sqrt(H * K + H)),
        "w1b":   n((H, H8), 1.0 / np.sqrt(H * K + H)),
        "b1":    n((1, H8), 0.02),
        "g1":    1.0 + n((1, H8), 0.1),
        "be1":   n((1, H8), 0.1),
        "m1":    n((1, H8), 0.1),
        "v1":    0.5 + jax.random.uniform(next(ks), (1, H8), jnp.float32),
        "w2":    n((H8, H8), 1.0 / np.sqrt(H8)),
        "b2":    n((1, H8), 0.02),
        "g2":    1.0 + n((1, H8), 0.1),
        "be2":   n((1, H8), 0.1),
        "m2":    n((1, H8), 0.1),
        "v2":    0.5 + jax.random.uniform(next(ks), (1, H8), jnp.float32),
    }
    return P


def reference_numpy(img, q, P):
    img = np.asarray(img, np.float64)
    q = np.asarray(q, np.float64)
    Pn = {k: np.asarray(v, np.float64) for k, v in P.items()}
    B, T, E = q.shape
    H = Pn["whh_f"].shape[0]
    sig = lambda x: 1.0 / (1.0 + np.exp(-x))

    def run_dir(wih, whh, b, xs):
        h = np.zeros((B, H)); c = np.zeros((B, H))
        for x in xs:
            g = x @ wih + h @ whh + b
            i = sig(g[:, :H]); f = sig(g[:, H:2 * H])
            gg = np.tanh(g[:, 2 * H:3 * H]); o = sig(g[:, 3 * H:])
            c = f * c + i * gg
            h = o * np.tanh(c)
        return h

    xs = [q[:, t, :] for t in range(T)]
    h_f = run_dir(Pn["wih_f"], Pn["whh_f"], Pn["b_f"], xs)
    h_b = run_dir(Pn["wih_b"], Pn["whh_b"], Pn["b_b"], xs[::-1])
    hcat = np.concatenate([h_f, h_b], -1)
    q_emb = hcat @ Pn["wproj"] + Pn["bproj"]
    v_proj = np.maximum(img @ Pn["wv"] + Pn["bv"], 0.0)
    q_proj = np.maximum(q_emb @ Pn["wq"] + Pn["bq"], 0.0)
    joint = v_proj * q_proj[:, None, :]
    logits = (joint * Pn["wlin"][0][None, None, :]).sum(-1) + Pn["blin"][0, 0]
    e = np.exp(logits - logits.max(1, keepdims=True))
    att = e / e.sum(1, keepdims=True)
    v_emb = att[:, :, None] * img
    vflat = np.transpose(v_emb, (0, 2, 1)).reshape(B, -1)
    x = np.concatenate([vflat, q_emb], -1)
    eps = 1e-5
    y = x @ np.concatenate([Pn["w1a"], Pn["w1b"]], 0) + Pn["b1"]
    y = Pn["g1"] * (y - Pn["m1"]) / np.sqrt(Pn["v1"] + eps) + Pn["be1"]
    y = np.maximum(y, 0.0)
    z = y @ Pn["w2"] + Pn["b2"]
    z = Pn["g2"] * (z - Pn["m2"]) / np.sqrt(Pn["v2"] + eps) + Pn["be2"]
    return np.maximum(z, 0.0)


# ---------------------------------------------------------------------------
if __name__ == "__main__":
    # small config consistent with the module's forward:
    #   embed_hidden -> 32, mlp_hidden -> 64, 7*7 = 49 objects, seq len 8, batch 2
    B, T, E, H, K = 2, 8, 32, 64, K_REAL

    key = jax.random.PRNGKey(0)
    k_img, k_q, k_p = jax.random.split(key, 3)
    img = jax.random.normal(k_img, (B, K, H), jnp.float32)   # (B, 49, mlp_hidden)
    q = jax.random.normal(k_q, (B, T, E), jnp.float32)       # (B, T, embed_hidden)
    P = make_params(k_p, E, H, K)
    KP = prepare_params(P, K, K_PAD)                         # one-time host weight prep

    logits = jax.block_until_ready(topdown_forward_jit(img, q, KP))
    assert logits.shape == (B, 8 * H), logits.shape
    assert bool(jnp.all(jnp.isfinite(logits)))

    # slightly relaxed tolerance: classifier weights / activations intentionally bf16-quantized
    ref = reference_numpy(img, q, P)
    np.testing.assert_allclose(np.asarray(logits), ref, rtol=2e-2, atol=5e-3)

    print("KERNEL_OK")
</pallas_src>

<mosaic_0001>
module attributes {stable_mosaic.version = 11 : i64} {
  func.func @topdown_kernel(%arg0: memref<16x32xf32, #tpu.memory_space<vmem>>, %arg1: memref<2x56x64xf32, #tpu.memory_space<vmem>>, %arg2: memref<2x3584xf32, #tpu.memory_space<vmem>>, %arg3: memref<56x3584xbf16, #tpu.memory_space<vmem>>, %arg4: memref<32x512xf32, #tpu.memory_space<vmem>>, %arg5: memref<1x512xf32, #tpu.memory_space<vmem>>, %arg6: memref<64x256xf32, #tpu.memory_space<vmem>>, %arg7: memref<64x256xf32, #tpu.memory_space<vmem>>, %arg8: memref<128x64xf32, #tpu.memory_space<vmem>>, %arg9: memref<1x64xf32, #tpu.memory_space<vmem>>, %arg10: memref<64x64xf32, #tpu.memory_space<vmem>>, %arg11: memref<1x64xf32, #tpu.memory_space<vmem>>, %arg12: memref<64x64xf32, #tpu.memory_space<vmem>>, %arg13: memref<1x64xf32, #tpu.memory_space<vmem>>, %arg14: memref<1x64xf32, #tpu.memory_space<vmem>>, %arg15: memref<1x1xf32, #tpu.memory_space<vmem>>, %arg16: memref<3584x512xbf16, #tpu.memory_space<any>>, %arg17: memref<64x512xf32, #tpu.memory_space<vmem>>, %arg18: memref<1x512xf32, #tpu.memory_space<vmem>>, %arg19: memref<512x512xbf16, #tpu.memory_space<vmem>>, %arg20: memref<1x512xf32, #tpu.memory_space<vmem>>, %arg21: memref<2x512xf32, #tpu.memory_space<vmem>>, %arg22: memref<3584x512xbf16, #tpu.memory_space<vmem>>, %arg23: memref<!tpu.dma_semaphore, #tpu.memory_space<semaphore_mem>>) attributes {dimension_semantics = [], scalar_prefetch = 0 : i64, scratch_operands = 2 : i64, tpu.core_type = #tpu.core_type<tc>} {
    tpu.enqueue_dma source(%arg16 : memref<3584x512xbf16, #tpu.memory_space<any>>) target(%arg22 : memref<3584x512xbf16, #tpu.memory_space<vmem>>) target_semaphore(%arg23 : memref<!tpu.dma_semaphore, #tpu.memory_space<semaphore_mem>>)
    %c0 = arith.constant 0 : index
    %c0_0 = arith.constant 0 : index
    %0 = vector.load %arg0[%c0, %c0_0] : memref<16x32xf32, #tpu.memory_space<vmem>>, vector<16x32xf32>
    %c0_1 = arith.constant 0 : index
    %c0_2 = arith.constant 0 : index
    %1 = vector.load %arg4[%c0_1, %c0_2] : memref<32x512xf32, #tpu.memory_space<vmem>>, vector<32x512xf32>
    %cst = arith.constant dense<0.000000e+00> : vector<16x512xf32>
    %2 = tpu.matmul %0, %1, %cst {dimension_numbers = #tpu.dot_dimension_numbers<[1], [0], [0], [1], [0, 0, 1, 1], [], []>} : vector<16x32xf32>, vector<32x512xf32>, vector<16x512xf32> -> vector<16x512xf32>
    %c0_3 = arith.constant 0 : index
    %c0_4 = arith.constant 0 : index
    %3 = vector.load %arg5[%c0_3, %c0_4] : memref<1x512xf32, #tpu.memory_space<vmem>>, vector<1x512xf32>
    %4 = vector.broadcast %3 : vector<1x512xf32> to vector<16x512xf32>
    %5 = arith.addf %2, %4 : vector<16x512xf32>
    %cst_5 = arith.constant 0.000000e+00 : f32
    %6 = vector.broadcast %cst_5 : f32 to vector<2x64xf32>
    %cst_6 = arith.constant 0.000000e+00 : f32
    %7 = vector.broadcast %cst_6 : f32 to vector<2x64xf32>
    %cst_7 = arith.constant 0.000000e+00 : f32
    %8 = vector.broadcast %cst_7 : f32 to vector<2x64xf32>
    %cst_8 = arith.constant 0.000000e+00 : f32
    %9 = vector.broadcast %cst_8 : f32 to vector<2x64xf32>
    %10 = vector.extract_strided_slice %5 {offsets = [0, 0], sizes = [2, 256], strides = [1, 1]} : vector<16x512xf32> to vector<2x256xf32>
    %c0_9 = arith.constant 0 : index
    %c0_10 = arith.constant 0 : index
    %11 = vector.load %arg6[%c0_9, %c0_10] : memref<64x256xf32, #tpu.memory_space<vmem>>, vector<64x256xf32>
    %cst_11 = arith.constant dense<0.000000e+00> : vector<2x256xf32>
    %12 = tpu.matmul %6, %11, %cst_11 {dimension_numbers = #tpu.dot_dimension_numbers<[1], [0], [0], [1], [0, 0, 1, 1], [], []>} : vector<2x64xf32>, vector<64x256xf32>, vector<2x256xf32> -> vector<2x256xf32>
    %13 = arith.addf %10, %12 : vector<2x256xf32>
    %14 = vector.extract_strided_slice %13 {offsets = [0, 0], sizes = [2, 64], strides = [1, 1]} : vector<2x256xf32> to vector<2x64xf32>
    %15 = arith.negf %14 : vector<2x64xf32>
    %16 = math.exp %15 : vector<2x64xf32>
    %cst_12 = arith.constant 1.000000e+00 : f32
    %17 = vector.broadcast %cst_12 : f32 to vector<2x64xf32>
    %18 = arith.addf %17, %16 : vector<2x64xf32>
    %19 = arith.divf %17, %18 : vector<2x64xf32>
    %20 = vector.extract_strided_slice %13 {offsets = [0, 64], sizes = [2, 64], strides = [1, 1]} : vector<2x256xf32> to vector<2x64xf32>
    %21 = arith.negf %20 : vector<2x64xf32>
    %22 = math.exp %21 : vector<2x64xf32>
    %cst_13 = arith.constant 1.000000e+00 : f32
    %23 = vector.broadcast %cst_13 : f32 to vector<2x64xf32>
    %24 = arith.addf %23, %22 : vector<2x64xf32>
    %25 = arith.divf %23, %24 : vector<2x64xf32>
    %26 = vector.extract_strided_slice %13 {offsets = [0, 128], sizes = [2, 64], strides = [1, 1]} : vector<2x256xf32> to vector<2x64xf32>
    %27 = math.tanh %26 : vector<2x64xf32>
    %28 = vector.extract_strided_slice %13 {offsets = [0, 192], sizes = [2, 64], strides = [1, 1]} : vector<2x256xf32> to vector<2x64xf32>
    %29 = arith.negf %28 : vector<2x64xf32>
    %30 = math.exp %29 : vector<2x64xf32>
    %cst_14 = arith.constant 1.000000e+00 : f32
    %31 = vector.broadcast %cst_14 : f32 to vector<2x64xf32>
    %32 = arith.addf %31, %30 : vector<2x64xf32>
    %33 = arith.divf %31, %32 : vector<2x64xf32>
    %34 = arith.mulf %25, %7 : vector<2x64xf32>
    %35 = arith.mulf %19, %27 : vector<2x64xf32>
    %36 = arith.addf %34, %35 : vector<2x64xf32>
    %37 = math.tanh %36 : vector<2x64xf32>
    %38 = arith.mulf %33, %37 : vector<2x64xf32>
    %39 = vector.extract_strided_slice %5 {offsets = [14, 256], sizes = [2, 256], strides = [1, 1]} : vector<16x512xf32> to vector<2x256xf32>
    %c0_15 = arith.constant 0 : index
    %c0_16 = arith.constant 0 : index
    %40 = vector.load %arg7[%c0_15, %c0_16] : memref<64x256xf32, #tpu.memory_space<vmem>>, vector<64x256xf32>
    %cst_17 = arith.constant dense<0.000000e+00> : vector<2x256xf32>
    %41 = tpu.matmul %8, %40, %cst_17 {dimension_numbers = #tpu.dot_dimension_numbers<[1], [0], [0], [1], [0, 0, 1, 1], [], []>} : vector<2x64xf32>, vector<64x256xf32>, vector<2x256xf32> -> vector<2x256xf32>
    %42 = arith.addf %39, %41 : vector<2x256xf32>
    %43 = vector.extract_strided_slice %42 {offsets = [0, 0], sizes = [2, 64], strides = [1, 1]} : vector<2x256xf32> to vector<2x64xf32>
    %44 = arith.negf %43 : vector<2x64xf32>
    %45 = math.exp %44 : vector<2x64xf32>
    %cst_18 = arith.constant 1.000000e+00 : f32
    %46 = vector.broadcast %cst_18 : f32 to vector<2x64xf32>
    %47 = arith.addf %46, %45 : vector<2x64xf32>
    %48 = arith.divf %46, %47 : vector<2x64xf32>
    %49 = vector.extract_strided_slice %42 {offsets = [0, 64], sizes = [2, 64], strides = [1, 1]} : vector<2x256xf32> to vector<2x64xf32>
    %50 = arith.negf %49 : vector<2x64xf32>
    %51 = math.exp %50 : vector<2x64xf32>
    %cst_19 = arith.constant 1.000000e+00 : f32
    %52 = vector.broadcast %cst_19 : f32 to vector<2x64xf32>
    %53 = arith.addf %52, %51 : vector<2x64xf32>
    %54 = arith.divf %52, %53 : vector<2x64xf32>
    %55 = vector.extract_strided_slice %42 {offsets = [0, 128], sizes = [2, 64], strides = [1, 1]} : vector<2x256xf32> to vector<2x64xf32>
    %56 = math.tanh %55 : vector<2x64xf32>
    %57 = vector.extract_strided_slice %42 {offsets = [0, 192], sizes = [2, 64], strides = [1, 1]} : vector<2x256xf32> to vector<2x64xf32>
    %58 = arith.negf %57 : vector<2x64xf32>
    %59 = math.exp %58 : vector<2x64xf32>
    %cst_20 = arith.constant 1.000000e+00 : f32
    %60 = vector.broadcast %cst_20 : f32 to vector<2x64xf32>
    %61 = arith.addf %60, %59 : vector<2x64xf32>
    %62 = arith.divf %60, %61 : vector<2x64xf32>
    %63 = arith.mulf %54, %9 : vector<2x64xf32>
    %64 = arith.mulf %48, %56 : vector<2x64xf32>
    %65 = arith.addf %63, %64 : vector<2x64xf32>
    %66 = math.tanh %65 : vector<2x64xf32>
    %67 = arith.mulf %62, %66 : vector<2x64xf32>
    %68 = vector.extract_strided_slice %5 {offsets = [2, 0], sizes = [2, 256], strides = [1, 1]} : vector<16x512xf32> to vector<2x256xf32>
    %c0_21 = arith.constant 0 : index
    %c0_22 = arith.constant 0 : index
    %69 = vector.load %arg6[%c0_21, %c0_22] : memref<64x256xf32, #tpu.memory_space<vmem>>, vector<64x256xf32>
    %cst_23 = arith.constant dense<0.000000e+00> : vector<2x256xf32>
    %70 = tpu.matmul %38, %69, %cst_23 {dimension_numbers = #tpu.dot_dimension_numbers<[1], [0], [0], [1], [0, 0, 1, 1], [], []>} : vector<2x64xf32>, vector<64x256xf32>, vector<2x256xf32> -> vector<2x256xf32>
    %71 = arith.addf %68, %70 : vector<2x256xf32>
    %72 = vector.extract_strided_slice %71 {offsets = [0, 0], sizes = [2, 64], strides = [1, 1]} : vector<2x256xf32> to vector<2x64xf32>
    %73 = arith.negf %72 : vector<2x64xf32>
    %74 = math.exp %73 : vector<2x64xf32>
    %cst_24 = arith.constant 1.000000e+00 : f32
    %75 = vector.broadcast %cst_24 : f32 to vector<2x64xf32>
    %76 = arith.addf %75, %74 : vector<2x64xf32>
    %77 = arith.divf %75, %76 : vector<2x64xf32>
    %78 = vector.extract_strided_slice %71 {offsets = [0, 64], sizes = [2, 64], strides = [1, 1]} : vector<2x256xf32> to vector<2x64xf32>
    %79 = arith.negf %78 : vector<2x64xf32>
    %80 = math.exp %79 : vector<2x64xf32>
    %cst_25 = arith.constant 1.000000e+00 : f32
    %81 = vector.broadcast %cst_25 : f32 to vector<2x64xf32>
    %82 = arith.addf %81, %80 : vector<2x64xf32>
    %83 = arith.divf %81, %82 : vector<2x64xf32>
    %84 = vector.extract_strided_slice %71 {offsets = [0, 128], sizes = [2, 64], strides = [1, 1]} : vector<2x256xf32> to vector<2x64xf32>
    %85 = math.tanh %84 : vector<2x64xf32>
    %86 = vector.extract_strided_slice %71 {offsets = [0, 192], sizes = [2, 64], strides = [1, 1]} : vector<2x256xf32> to vector<2x64xf32>
    %87 = arith.negf %86 : vector<2x64xf32>
    %88 = math.exp %87 : vector<2x64xf32>
    %cst_26 = arith.constant 1.000000e+00 : f32
    %89 = vector.broadcast %cst_26 : f32 to vector<2x64xf32>
    %90 = arith.addf %89, %88 : vector<2x64xf32>
    %91 = arith.divf %89, %90 : vector<2x64xf32>
    %92 = arith.mulf %83, %36 : vector<2x64xf32>
    %93 = arith.mulf %77, %85 : vector<2x64xf32>
    %94 = arith.addf %92, %93 : vector<2x64xf32>
    %95 = math.tanh %94 : vector<2x64xf32>
    %96 = arith.mulf %91, %95 : vector<2x64xf32>
    %97 = vector.extract_strided_slice %5 {offsets = [12, 256], sizes = [2, 256], strides = [1, 1]} : vector<16x512xf32> to vector<2x256xf32>
    %c0_27 = arith.constant 0 : index
    %c0_28 = arith.constant 0 : index
    %98 = vector.load %arg7[%c0_27, %c0_28] : memref<64x256xf32, #tpu.memory_space<vmem>>, vector<64x256xf32>
    %cst_29 = arith.constant dense<0.000000e+00> : vector<2x256xf32>
    %99 = tpu.matmul %67, %98, %cst_29 {dimension_numbers = #tpu.dot_dimension_numbers<[1], [0], [0], [1], [0, 0, 1, 1], [], []>} : vector<2x64xf32>, vector<64x256xf32>, vector<2x256xf32> -> vector<2x256xf32>
    %100 = arith.addf %97, %99 : vector<2x256xf32>
    %101 = vector.extract_strided_slice %100 {offsets = [0, 0], sizes = [2, 64], strides = [1, 1]} : vector<2x256xf32> to vector<2x64xf32>
    %102 = arith.negf %101 : vector<2x64xf32>
    %103 = math.exp %102 : vector<2x64xf32>
    %cst_30 = arith.constant 1.000000e+00 : f32
    %104 = vector.broadcast %cst_30 : f32 to vector<2x64xf32>
    %105 = arith.addf %104, %103 : vector<2x64xf32>
    %106 = arith.divf %104, %105 : vector<2x64xf32>
    %107 = vector.extract_strided_slice %100 {offsets = [0, 64], sizes = [2, 64], strides = [1, 1]} : vector<2x256xf32> to vector<2x64xf32>
    %108 = arith.negf %107 : vector<2x64xf32>
    %109 = math.exp %108 : vector<2x64xf32>
    %cst_31 = arith.constant 1.000000e+00 : f32
    %110 = vector.broadcast %cst_31 : f32 to vector<2x64xf32>
    %111 = arith.addf %110, %109 : vector<2x64xf32>
    %112 = arith.divf %110, %111 : vector<2x64xf32>
    %113 = vector.extract_strided_slice %100 {offsets = [0, 128], sizes = [2, 64], strides = [1, 1]} : vector<2x256xf32> to vector<2x64xf32>
    %114 = math.tanh %113 : vector<2x64xf32>
    %115 = vector.extract_strided_slice %100 {offsets = [0, 192], sizes = [2, 64], strides = [1, 1]} : vector<2x256xf32> to vector<2x64xf32>
    %116 = arith.negf %115 : vector<2x64xf32>
    %117 = math.exp %116 : vector<2x64xf32>
    %cst_32 = arith.constant 1.000000e+00 : f32
    %118 = vector.broadcast %cst_32 : f32 to vector<2x64xf32>
    %119 = arith.addf %118, %117 : vector<2x64xf32>
    %120 = arith.divf %118, %119 : vector<2x64xf32>
    %121 = arith.mulf %112, %65 : vector<2x64xf32>
    %122 = arith.mulf %106, %114 : vector<2x64xf32>
    %123 = arith.addf %121, %122 : vector<2x64xf32>
    %124 = math.tanh %123 : vector<2x64xf32>
    %125 = arith.mulf %120, %124 : vector<2x64xf32>
    %126 = vector.extract_strided_slice %5 {offsets = [4, 0], sizes = [2, 256], strides = [1, 1]} : vector<16x512xf32> to vector<2x256xf32>
    %c0_33 = arith.constant 0 : index
    %c0_34 = arith.constant 0 : index
    %127 = vector.load %arg6[%c0_33, %c0_34] : memref<64x256xf32, #tpu.memory_space<vmem>>, vector<64x256xf32>
    %cst_35 = arith.constant dense<0.000000e+00> : vector<2x256xf32>
    %128 = tpu.matmul %96, %127, %cst_35 {dimension_numbers = #tpu.dot_dimension_numbers<[1], [0], [0], [1], [0, 0, 1, 1], [], []>} : vector<2x64xf32>, vector<64x256xf32>, vector<2x256xf32> -> vector<2x256xf32>
    %129 = arith.addf %126, %128 : vector<2x256xf32>
    %130 = vector.extract_strided_slice %129 {offsets = [0, 0], sizes = [2, 64], strides = [1, 1]} : vector<2x256xf32> to vector<2x64xf32>
    %131 = arith.negf %130 : vector<2x64xf32>
    %132 = math.exp %131 : vector<2x64xf32>
    %cst_36 = arith.constant 1.000000e+00 : f32
    %133 = vector.broadcast %cst_36 : f32 to vector<2x64xf32>
    %134 = arith.addf %133, %132 : vector<2x64xf32>
    %135 = arith.divf %133, %134 : vector<2x64xf32>
    %136 = vector.extract_strided_slice %129 {offsets = [0, 64], sizes = [2, 64], strides = [1, 1]} : vector<2x256xf32> to vector<2x64xf32>
    %137 = arith.negf %136 : vector<2x64xf32>
    %138 = math.exp %137 : vector<2x64xf32>
    %cst_37 = arith.constant 1.000000e+00 : f32
    %139 = vector.broadcast %cst_37 : f32 to vector<2x64xf32>
    %140 = arith.addf %139, %138 : vector<2x64xf32>
    %141 = arith.divf %139, %140 : vector<2x64xf32>
    %142 = vector.extract_strided_slice %129 {offsets = [0, 128], sizes = [2, 64], strides = [1, 1]} : vector<2x256xf32> to vector<2x64xf32>
    %143 = math.tanh %142 : vector<2x64xf32>
    %144 = vector.extract_strided_slice %129 {offsets = [0, 192], sizes = [2, 64], strides = [1, 1]} : vector<2x256xf32> to vector<2x64xf32>
    %145 = arith.negf %144 : vector<2x64xf32>
    %146 = math.exp %145 : vector<2x64xf32>
    %cst_38 = arith.constant 1.000000e+00 : f32
    %147 = vector.broadcast %cst_38 : f32 to vector<2x64xf32>
    %148 = arith.addf %147, %146 : vector<2x64xf32>
    %149 = arith.divf %147, %148 : vector<2x64xf32>
    %150 = arith.mulf %141, %94 : vector<2x64xf32>
    %151 = arith.mulf %135, %143 : vector<2x64xf32>
    %152 = arith.addf %150, %151 : vector<2x64xf32>
    %153 = math.tanh %152 : vector<2x64xf32>
    %154 = arith.mulf %149, %153 : vector<2x64xf32>
    %155 = vector.extract_strided_slice %5 {offsets = [10, 256], sizes = [2, 256], strides = [1, 1]} : vector<16x512xf32> to vector<2x256xf32>
    %c0_39 = arith.constant 0 : index
    %c0_40 = arith.constant 0 : index
    %156 = vector.load %arg7[%c0_39, %c0_40] : memref<64x256xf32, #tpu.memory_space<vmem>>, vector<64x256xf32>
    %cst_41 = arith.constant dense<0.000000e+00> : vector<2x256xf32>
    %157 = tpu.matmul %125, %156, %cst_41 {dimension_numbers = #tpu.dot_dimension_numbers<[1], [0], [0], [1], [0, 0, 1, 1], [], []>} : vector<2x64xf32>, vector<64x256xf32>, vector<2x256xf32> -> vector<2x256xf32>
    %158 = arith.addf %155, %157 : vector<2x256xf32>
    %159 = vector.extract_strided_slice %158 {offsets = [0, 0], sizes = [2, 64], strides = [1, 1]} : vector<2x256xf32> to vector<2x64xf32>
    %160 = arith.negf %159 : vector<2x64xf32>
    %161 = math.exp %160 : vector<2x64xf32>
    %cst_42 = arith.constant 1.000000e+00 : f32
    %162 = vector.broadcast %cst_42 : f32 to vector<2x64xf32>
    %163 = arith.addf %162, %161 : vector<2x64xf32>
    %164 = arith.divf %162, %163 : vector<2x64xf32>
    %165 = vector.extract_strided_slice %158 {offsets = [0, 64], sizes = [2, 64], strides = [1, 1]} : vector<2x256xf32> to vector<2x64xf32>
    %166 = arith.negf %165 : vector<2x64xf32>
    %167 = math.exp %166 : vector<2x64xf32>
    %cst_43 = arith.constant 1.000000e+00 : f32
    %168 = vector.broadcast %cst_43 : f32 to vector<2x64xf32>
    %169 = arith.addf %168, %167 : vector<2x64xf32>
    %170 = arith.divf %168, %169 : vector<2x64xf32>
    %171 = vector.extract_strided_slice %158 {offsets = [0, 128], sizes = [2, 64], strides = [1, 1]} : vector<2x256xf32> to vector<2x64xf32>
    %172 = math.tanh %171 : vector<2x64xf32>
    %173 = vector.extract_strided_slice %158 {offsets = [0, 192], sizes = [2, 64], strides = [1, 1]} : vector<2x256xf32> to vector<2x64xf32>
    %174 = arith.negf %173 : vector<2x64xf32>
    %175 = math.exp %174 : vector<2x64xf32>
    %cst_44 = arith.constant 1.000000e+00 : f32
    %176 = vector.broadcast %cst_44 : f32 to vector<2x64xf32>
    %177 = arith.addf %176, %175 : vector<2x64xf32>
    %178 = arith.divf %176, %177 : vector<2x64xf32>
    %179 = arith.mulf %170, %123 : vector<2x64xf32>
    %180 = arith.mulf %164, %172 : vector<2x64xf32>
    %181 = arith.addf %179, %180 : vector<2x64xf32>
    %182 = math.tanh %181 : vector<2x64xf32>
    %183 = arith.mulf %178, %182 : vector<2x64xf32>
    %184 = vector.extract_strided_slice %5 {offsets = [6, 0], sizes = [2, 256], strides = [1, 1]} : vector<16x512xf32> to vector<2x256xf32>
    %c0_45 = arith.constant 0 : index
    %c0_46 = arith.constant 0 : index
    %185 = vector.load %arg6[%c0_45, %c0_46] : memref<64x256xf32, #tpu.memory_space<vmem>>, vector<64x256xf32>
    %cst_47 = arith.constant dense<0.000000e+00> : vector<2x256xf32>
    %186 = tpu.matmul %154, %185, %cst_47 {dimension_numbers = #tpu.dot_dimension_numbers<[1], [0], [0], [1], [0, 0, 1, 1], [], []>} : vector<2x64xf32>, vector<64x256xf32>, vector<2x256xf32> -> vector<2x256xf32>
    %187 = arith.addf %184, %186 : vector<2x256xf32>
    %188 = vector.extract_strided_slice %187 {offsets = [0, 0], sizes = [2, 64], strides = [1, 1]} : vector<2x256xf32> to vector<2x64xf32>
    %189 = arith.negf %188 : vector<2x64xf32>
    %190 = math.exp %189 : vector<2x64xf32>
    %cst_48 = arith.constant 1.000000e+00 : f32
    %191 = vector.broadcast %cst_48 : f32 to vector<2x64xf32>
    %192 = arith.addf %191, %190 : vector<2x64xf32>
    %193 = arith.divf %191, %192 : vector<2x64xf32>
    %194 = vector.extract_strided_slice %187 {offsets = [0, 64], sizes = [2, 64], strides = [1, 1]} : vector<2x256xf32> to vector<2x64xf32>
    %195 = arith.negf %194 : vector<2x64xf32>
    %196 = math.exp %195 : vector<2x64xf32>
    %cst_49 = arith.constant 1.000000e+00 : f32
    %197 = vector.broadcast %cst_49 : f32 to vector<2x64xf32>
    %198 = arith.addf %197, %196 : vector<2x64xf32>
    %199 = arith.divf %197, %198 : vector<2x64xf32>
    %200 = vector.extract_strided_slice %187 {offsets = [0, 128], sizes = [2, 64], strides = [1, 1]} : vector<2x256xf32> to vector<2x64xf32>
    %201 = math.tanh %200 : vector<2x64xf32>
    %202 = vector.extract_strided_slice %187 {offsets = [0, 192], sizes = [2, 64], strides = [1, 1]} : vector<2x256xf32> to vector<2x64xf32>
    %203 = arith.negf %202 : vector<2x64xf32>
    %204 = math.exp %203 : vector<2x64xf32>
    %cst_50 = arith.constant 1.000000e+00 : f32
    %205 = vector.broadcast %cst_50 : f32 to vector<2x64xf32>
    %206 = arith.addf %205, %204 : vector<2x64xf32>
    %207 = arith.divf %205, %206 : vector<2x64xf32>
    %208 = arith.mulf %199, %152 : vector<2x64xf32>
    %209 = arith.mulf %193, %201 : vector<2x64xf32>
    %210 = arith.addf %208, %209 : vector<2x64xf32>
    %211 = math.tanh %210 : vector<2x64xf32>
    %212 = arith.mulf %207, %211 : vector<2x64xf32>
    %213 = vector.extract_strided_slice %5 {offsets = [8, 256], sizes = [2, 256], strides = [1, 1]} : vector<16x512xf32> to vector<2x256xf32>
    %c0_51 = arith.constant 0 : index
    %c0_52 = arith.constant 0 : index
    %214 = vector.load %arg7[%c0_51, %c0_52] : memref<64x256xf32, #tpu.memory_space<vmem>>, vector<64x256xf32>
    %cst_53 = arith.constant dense<0.000000e+00> : vector<2x256xf32>
    %215 = tpu.matmul %183, %214, %cst_53 {dimension_numbers = #tpu.dot_dimension_numbers<[1], [0], [0], [1], [0, 0, 1, 1], [], []>} : vector<2x64xf32>, vector<64x256xf32>, vector<2x256xf32> -> vector<2x256xf32>
    %216 = arith.addf %213, %215 : vector<2x256xf32>
    %217 = vector.extract_strided_slice %216 {offsets = [0, 0], sizes = [2, 64], strides = [1, 1]} : vector<2x256xf32> to vector<2x64xf32>
    %218 = arith.negf %217 : vector<2x64xf32>
    %219 = math.exp %218 : vector<2x64xf32>
    %cst_54 = arith.constant 1.000000e+00 : f32
    %220 = vector.broadcast %cst_54 : f32 to vector<2x64xf32>
    %221 = arith.addf %220, %219 : vector<2x64xf32>
    %222 = arith.divf %220, %221 : vector<2x64xf32>
    %223 = vector.extract_strided_slice %216 {offsets = [0, 64], sizes = [2, 64], strides = [1, 1]} : vector<2x256xf32> to vector<2x64xf32>
    %224 = arith.negf %223 : vector<2x64xf32>
    %225 = math.exp %224 : vector<2x64xf32>
    %cst_55 = arith.constant 1.000000e+00 : f32
    %226 = vector.broadcast %cst_55 : f32 to vector<2x64xf32>
    %227 = arith.addf %226, %225 : vector<2x64xf32>
    %228 = arith.divf %226, %227 : vector<2x64xf32>
    %229 = vector.extract_strided_slice %216 {offsets = [0, 128], sizes = [2, 64], strides = [1, 1]} : vector<2x256xf32> to vector<2x64xf32>
    %230 = math.tanh %229 : vector<2x64xf32>
    %231 = vector.extract_strided_slice %216 {offsets = [0, 192], sizes = [2, 64], strides = [1, 1]} : vector<2x256xf32> to vector<2x64xf32>
    %232 = arith.negf %231 : vector<2x64xf32>
    %233 = math.exp %232 : vector<2x64xf32>
    %cst_56 = arith.constant 1.000000e+00 : f32
    %234 = vector.broadcast %cst_56 : f32 to vector<2x64xf32>
    %235 = arith.addf %234, %233 : vector<2x64xf32>
    %236 = arith.divf %234, %235 : vector<2x64xf32>
    %237 = arith.mulf %228, %181 : vector<2x64xf32>
    %238 = arith.mulf %222, %230 : vector<2x64xf32>
    %239 = arith.addf %237, %238 : vector<2x64xf32>
    %240 = math.tanh %239 : vector<2x64xf32>
    %241 = arith.mulf %236, %240 : vector<2x64xf32>
    %242 = vector.extract_strided_slice %5 {offsets = [8, 0], sizes = [2, 256], strides = [1, 1]} : vector<16x512xf32> to vector<2x256xf32>
    %c0_57 = arith.constant 0 : index
    %c0_58 = arith.constant 0 : index
    %243 = vector.load %arg6[%c0_57, %c0_58] : memref<64x256xf32, #tpu.memory_space<vmem>>, vector<64x256xf32>
    %cst_59 = arith.constant dense<0.000000e+00> : vector<2x256xf32>
    %244 = tpu.matmul %212, %243, %cst_59 {dimension_numbers = #tpu.dot_dimension_numbers<[1], [0], [0], [1], [0, 0, 1, 1], [], []>} : vector<2x64xf32>, vector<64x256xf32>, vector<2x256xf32> -> vector<2x256xf32>
    %245 = arith.addf %242, %244 : vector<2x256xf32>
    %246 = vector.extract_strided_slice %245 {offsets = [0, 0], sizes = [2, 64], strides = [1, 1]} : vector<2x256xf32> to vector<2x64xf32>
    %247 = arith.negf %246 : vector<2x64xf32>
    %248 = math.exp %247 : vector<2x64xf32>
    %cst_60 = arith.constant 1.000000e+00 : f32
    %249 = vector.broadcast %cst_60 : f32 to vector<2x64xf32>
    %250 = arith.addf %249, %248 : vector<2x64xf32>
    %251 = arith.divf %249, %250 : vector<2x64xf32>
    %252 = vector.extract_strided_slice %245 {offsets = [0, 64], sizes = [2, 64], strides = [1, 1]} : vector<2x256xf32> to vector<2x64xf32>
    %253 = arith.negf %252 : vector<2x64xf32>
    %254 = math.exp %253 : vector<2x64xf32>
    %cst_61 = arith.constant 1.000000e+00 : f32
    %255 = vector.broadcast %cst_61 : f32 to vector<2x64xf32>
    %256 = arith.addf %255, %254 : vector<2x64xf32>
    %257 = arith.divf %255, %256 : vector<2x64xf32>
    %258 = vector.extract_strided_slice %245 {offsets = [0, 128], sizes = [2, 64], strides = [1, 1]} : vector<2x256xf32> to vector<2x64xf32>
    %259 = math.tanh %258 : vector<2x64xf32>
    %260 = vector.extract_strided_slice %245 {offsets = [0, 192], sizes = [2, 64], strides = [1, 1]} : vector<2x256xf32> to vector<2x64xf32>
    %261 = arith.negf %260 : vector<2x64xf32>
    %262 = math.exp %261 : vector<2x64xf32>
    %cst_62 = arith.constant 1.000000e+00 : f32
    %263 = vector.broadcast %cst_62 : f32 to vector<2x64xf32>
    %264 = arith.addf %263, %262 : vector<2x64xf32>
    %265 = arith.divf %263, %264 : vector<2x64xf32>
    %266 = arith.mulf %257, %210 : vector<2x64xf32>
    %267 = arith.mulf %251, %259 : vector<2x64xf32>
    %268 = arith.addf %266, %267 : vector<2x64xf32>
    %269 = math.tanh %268 : vector<2x64xf32>
    %270 = arith.mulf %265, %269 : vector<2x64xf32>
    %271 = vector.extract_strided_slice %5 {offsets = [6, 256], sizes = [2, 256], strides = [1, 1]} : vector<16x512xf32> to vector<2x256xf32>
    %c0_63 = arith.constant 0 : index
    %c0_64 = arith.constant 0 : index
    %272 = vector.load %arg7[%c0_63, %c0_64] : memref<64x256xf32, #tpu.memory_space<vmem>>, vector<64x256xf32>
    %cst_65 = arith.constant dense<0.000000e+00> : vector<2x256xf32>
    %273 = tpu.matmul %241, %272, %cst_65 {dimension_numbers = #tpu.dot_dimension_numbers<[1], [0], [0], [1], [0, 0, 1, 1], [], []>} : vector<2x64xf32>, vector<64x256xf32>, vector<2x256xf32> -> vector<2x256xf32>
    %274 = arith.addf %271, %273 : vector<2x256xf32>
    %275 = vector.extract_strided_slice %274 {offsets = [0, 0], sizes = [2, 64], strides = [1, 1]} : vector<2x256xf32> to vector<2x64xf32>
    %276 = arith.negf %275 : vector<2x64xf32>
    %277 = math.exp %276 : vector<2x64xf32>
    %cst_66 = arith.constant 1.000000e+00 : f32
    %278 = vector.broadcast %cst_66 : f32 to vector<2x64xf32>
    %279 = arith.addf %278, %277 : vector<2x64xf32>
    %280 = arith.divf %278, %279 : vector<2x64xf32>
    %281 = vector.extract_strided_slice %274 {offsets = [0, 64], sizes = [2, 64], strides = [1, 1]} : vector<2x256xf32> to vector<2x64xf32>
    %282 = arith.negf %281 : vector<2x64xf32>
    %283 = math.exp %282 : vector<2x64xf32>
    %cst_67 = arith.constant 1.000000e+00 : f32
    %284 = vector.broadcast %cst_67 : f32 to vector<2x64xf32>
    %285 = arith.addf %284, %283 : vector<2x64xf32>
    %286 = arith.divf %284, %285 : vector<2x64xf32>
    %287 = vector.extract_strided_slice %274 {offsets = [0, 128], sizes = [2, 64], strides = [1, 1]} : vector<2x256xf32> to vector<2x64xf32>
    %288 = math.tanh %287 : vector<2x64xf32>
    %289 = vector.extract_strided_slice %274 {offsets = [0, 192], sizes = [2, 64], strides = [1, 1]} : vector<2x256xf32> to vector<2x64xf32>
    %290 = arith.negf %289 : vector<2x64xf32>
    %291 = math.exp %290 : vector<2x64xf32>
    %cst_68 = arith.constant 1.000000e+00 : f32
    %292 = vector.broadcast %cst_68 : f32 to vector<2x64xf32>
    %293 = arith.addf %292, %291 : vector<2x64xf32>
    %294 = arith.divf %292, %293 : vector<2x64xf32>
    %295 = arith.mulf %286, %239 : vector<2x64xf32>
    %296 = arith.mulf %280, %288 : vector<2x64xf32>
    %297 = arith.addf %295, %296 : vector<2x64xf32>
    %298 = math.tanh %297 : vector<2x64xf32>
    %299 = arith.mulf %294, %298 : vector<2x64xf32>
    %300 = vector.extract_strided_slice %5 {offsets = [10, 0], sizes = [2, 256], strides = [1, 1]} : vector<16x512xf32> to vector<2x256xf32>
    %c0_69 = arith.constant 0 : index
    %c0_70 = arith.constant 0 : index
    %301 = vector.load %arg6[%c0_69, %c0_70] : memref<64x256xf32, #tpu.memory_space<vmem>>, vector<64x256xf32>
    %cst_71 = arith.constant dense<0.000000e+00> : vector<2x256xf32>
    %302 = tpu.matmul %270, %301, %cst_71 {dimension_numbers = #tpu.dot_dimension_numbers<[1], [0], [0], [1], [0, 0, 1, 1], [], []>} : vector<2x64xf32>, vector<64x256xf32>, vector<2x256xf32> -> vector<2x256xf32>
    %303 = arith.addf %300, %302 : vector<2x256xf32>
    %304 = vector.extract_strided_slice %303 {offsets = [0, 0], sizes = [2, 64], strides = [1, 1]} : vector<2x256xf32> to vector<2x64xf32>
    %305 = arith.negf %304 : vector<2x64xf32>
    %306 = math.exp %305 : vector<2x64xf32>
    %cst_72 = arith.constant 1.000000e+00 : f32
    %307 = vector.broadcast %cst_72 : f32 to vector<2x64xf32>
    %308 = arith.addf %307, %306 : vector<2x64xf32>
    %309 = arith.divf %307, %308 : vector<2x64xf32>
    %310 = vector.extract_strided_slice %303 {offsets = [0, 64], sizes = [2, 64], strides = [1, 1]} : vector<2x256xf32> to vector<2x64xf32>
    %311 = arith.negf %310 : vector<2x64xf32>
    %312 = math.exp %311 : vector<2x64xf32>
    %cst_73 = arith.constant 1.000000e+00 : f32
    %313 = vector.broadcast %cst_73 : f32 to vector<2x64xf32>
    %314 = arith.addf %313, %312 : vector<2x64xf32>
    %315 = arith.divf %313, %314 : vector<2x64xf32>
    %316 = vector.extract_strided_slice %303 {offsets = [0, 128], sizes = [2, 64], strides = [1, 1]} : vector<2x256xf32> to vector<2x64xf32>
    %317 = math.tanh %316 : vector<2x64xf32>
    %318 = vector.extract_strided_slice %303 {offsets = [0, 192], sizes = [2, 64], strides = [1, 1]} : vector<2x256xf32> to vector<2x64xf32>
    %319 = arith.negf %318 : vector<2x64xf32>
    %320 = math.exp %319 : vector<2x64xf32>
    %cst_74 = arith.constant 1.000000e+00 : f32
    %321 = vector.broadcast %cst_74 : f32 to vector<2x64xf32>
    %322 = arith.addf %321, %320 : vector<2x64xf32>
    %323 = arith.divf %321, %322 : vector<2x64xf32>
    %324 = arith.mulf %315, %268 : vector<2x64xf32>
    %325 = arith.mulf %309, %317 : vector<2x64xf32>
    %326 = arith.addf %324, %325 : vector<2x64xf32>
    %327 = math.tanh %326 : vector<2x64xf32>
    %328 = arith.mulf %323, %327 : vector<2x64xf32>
    %329 = vector.extract_strided_slice %5 {offsets = [4, 256], sizes = [2, 256], strides = [1, 1]} : vector<16x512xf32> to vector<2x256xf32>
    %c0_75 = arith.constant 0 : index
    %c0_76 = arith.constant 0 : index
    %330 = vector.load %arg7[%c0_75, %c0_76] : memref<64x256xf32, #tpu.memory_space<vmem>>, vector<64x256xf32>
    %cst_77 = arith.constant dense<0.000000e+00> : vector<2x256xf32>
    %331 = tpu.matmul %299, %330, %cst_77 {dimension_numbers = #tpu.dot_dimension_numbers<[1], [0], [0], [1], [0, 0, 1, 1], [], []>} : vector<2x64xf32>, vector<64x256xf32>, vector<2x256xf32> -> vector<2x256xf32>
    %332 = arith.addf %329, %331 : vector<2x256xf32>
    %333 = vector.extract_strided_slice %332 {offsets = [0, 0], sizes = [2, 64], strides = [1, 1]} : vector<2x256xf32> to vector<2x64xf32>
    %334 = arith.negf %333 : vector<2x64xf32>
    %335 = math.exp %334 : vector<2x64xf32>
    %cst_78 = arith.constant 1.000000e+00 : f32
    %336 = vector.broadcast %cst_78 : f32 to vector<2x64xf32>
    %337 = arith.addf %336, %335 : vector<2x64xf32>
    %338 = arith.divf %336, %337 : vector<2x64xf32>
    %339 = vector.extract_strided_slice %332 {offsets = [0, 64], sizes = [2, 64], strides = [1, 1]} : vector<2x256xf32> to vector<2x64xf32>
    %340 = arith.negf %339 : vector<2x64xf32>
    %341 = math.exp %340 : vector<2x64xf32>
    %cst_79 = arith.constant 1.000000e+00 : f32
    %342 = vector.broadcast %cst_79 : f32 to vector<2x64xf32>
    %343 = arith.addf %342, %341 : vector<2x64xf32>
    %344 = arith.divf %342, %343 : vector<2x64xf32>
    %345 = vector.extract_strided_slice %332 {offsets = [0, 128], sizes = [2, 64], strides = [1, 1]} : vector<2x256xf32> to vector<2x64xf32>
    %346 = math.tanh %345 : vector<2x64xf32>
    %347 = vector.extract_strided_slice %332 {offsets = [0, 192], sizes = [2, 64], strides = [1, 1]} : vector<2x256xf32> to vector<2x64xf32>
    %348 = arith.negf %347 : vector<2x64xf32>
    %349 = math.exp %348 : vector<2x64xf32>
    %cst_80 = arith.constant 1.000000e+00 : f32
    %350 = vector.broadcast %cst_80 : f32 to vector<2x64xf32>
    %351 = arith.addf %350, %349 : vector<2x64xf32>
    %352 = arith.divf %350, %351 : vector<2x64xf32>
    %353 = arith.mulf %344, %297 : vector<2x64xf32>
    %354 = arith.mulf %338, %346 : vector<2x64xf32>
    %355 = arith.addf %353, %354 : vector<2x64xf32>
    %356 = math.tanh %355 : vector<2x64xf32>
    %357 = arith.mulf %352, %356 : vector<2x64xf32>
    %358 = vector.extract_strided_slice %5 {offsets = [12, 0], sizes = [2, 256], strides = [1, 1]} : vector<16x512xf32> to vector<2x256xf32>
    %c0_81 = arith.constant 0 : index
    %c0_82 = arith.constant 0 : index
    %359 = vector.load %arg6[%c0_81, %c0_82] : memref<64x256xf32, #tpu.memory_space<vmem>>, vector<64x256xf32>
    %cst_83 = arith.constant dense<0.000000e+00> : vector<2x256xf32>
    %360 = tpu.matmul %328, %359, %cst_83 {dimension_numbers = #tpu.dot_dimension_numbers<[1], [0], [0], [1], [0, 0, 1, 1], [], []>} : vector<2x64xf32>, vector<64x256xf32>, vector<2x256xf32> -> vector<2x256xf32>
    %361 = arith.addf %358, %360 : vector<2x256xf32>
    %362 = vector.extract_strided_slice %361 {offsets = [0, 0], sizes = [2, 64], strides = [1, 1]} : vector<2x256xf32> to vector<2x64xf32>
    %363 = arith.negf %362 : vector<2x64xf32>
    %364 = math.exp %363 : vector<2x64xf32>
    %cst_84 = arith.constant 1.000000e+00 : f32
    %365 = vector.broadcast %cst_84 : f32 to vector<2x64xf32>
    %366 = arith.addf %365, %364 : vector<2x64xf32>
    %367 = arith.divf %365, %366 : vector<2x64xf32>
    %368 = vector.extract_strided_slice %361 {offsets = [0, 64], sizes = [2, 64], strides = [1, 1]} : vector<2x256xf32> to vector<2x64xf32>
    %369 = arith.negf %368 : vector<2x64xf32>
    %370 = math.exp %369 : vector<2x64xf32>
    %cst_85 = arith.constant 1.000000e+00 : f32
    %371 = vector.broadcast %cst_85 : f32 to vector<2x64xf32>
    %372 = arith.addf %371, %370 : vector<2x64xf32>
    %373 = arith.divf %371, %372 : vector<2x64xf32>
    %374 = vector.extract_strided_slice %361 {offsets = [0, 128], sizes = [2, 64], strides = [1, 1]} : vector<2x256xf32> to vector<2x64xf32>
    %375 = math.tanh %374 : vector<2x64xf32>
    %376 = vector.extract_strided_slice %361 {offsets = [0, 192], sizes = [2, 64], strides = [1, 1]} : vector<2x256xf32> to vector<2x64xf32>
    %377 = arith.negf %376 : vector<2x64xf32>
    %378 = math.exp %377 : vector<2x64xf32>
    %cst_86 = arith.constant 1.000000e+00 : f32
    %379 = vector.broadcast %cst_86 : f32 to vector<2x64xf32>
    %380 = arith.addf %379, %378 : vector<2x64xf32>
    %381 = arith.divf %379, %380 : vector<2x64xf32>
    %382 = arith.mulf %373, %326 : vector<2x64xf32>
    %383 = arith.mulf %367, %375 : vector<2x64xf32>
    %384 = arith.addf %382, %383 : vector<2x64xf32>
    %385 = math.tanh %384 : vector<2x64xf32>
    %386 = arith.mulf %381, %385 : vector<2x64xf32>
    %387 = vector.extract_strided_slice %5 {offsets = [2, 256], sizes = [2, 256], strides = [1, 1]} : vector<16x512xf32> to vector<2x256xf32>
    %c0_87 = arith.constant 0 : index
    %c0_88 = arith.constant 0 : index
    %388 = vector.load %arg7[%c0_87, %c0_88] : memref<64x256xf32, #tpu.memory_space<vmem>>, vector<64x256xf32>
    %cst_89 = arith.constant dense<0.000000e+00> : vector<2x256xf32>
    %389 = tpu.matmul %357, %388, %cst_89 {dimension_numbers = #tpu.dot_dimension_numbers<[1], [0], [0], [1], [0, 0, 1, 1], [], []>} : vector<2x64xf32>, vector<64x256xf32>, vector<2x256xf32> -> vector<2x256xf32>
    %390 = arith.addf %387, %389 : vector<2x256xf32>
    %391 = vector.extract_strided_slice %390 {offsets = [0, 0], sizes = [2, 64], strides = [1, 1]} : vector<2x256xf32> to vector<2x64xf32>
    %392 = arith.negf %391 : vector<2x64xf32>
    %393 = math.exp %392 : vector<2x64xf32>
    %cst_90 = arith.constant 1.000000e+00 : f32
    %394 = vector.broadcast %cst_90 : f32 to vector<2x64xf32>
    %395 = arith.addf %394, %393 : vector<2x64xf32>
    %396 = arith.divf %394, %395 : vector<2x64xf32>
    %397 = vector.extract_strided_slice %390 {offsets = [0, 64], sizes = [2, 64], strides = [1, 1]} : vector<2x256xf32> to vector<2x64xf32>
    %398 = arith.negf %397 : vector<2x64xf32>
    %399 = math.exp %398 : vector<2x64xf32>
    %cst_91 = arith.constant 1.000000e+00 : f32
    %400 = vector.broadcast %cst_91 : f32 to vector<2x64xf32>
    %401 = arith.addf %400, %399 : vector<2x64xf32>
    %402 = arith.divf %400, %401 : vector<2x64xf32>
    %403 = vector.extract_strided_slice %390 {offsets = [0, 128], sizes = [2, 64], strides = [1, 1]} : vector<2x256xf32> to vector<2x64xf32>
    %404 = math.tanh %403 : vector<2x64xf32>
    %405 = vector.extract_strided_slice %390 {offsets = [0, 192], sizes = [2, 64], strides = [1, 1]} : vector<2x256xf32> to vector<2x64xf32>
    %406 = arith.negf %405 : vector<2x64xf32>
    %407 = math.exp %406 : vector<2x64xf32>
    %cst_92 = arith.constant 1.000000e+00 : f32
    %408 = vector.broadcast %cst_92 : f32 to vector<2x64xf32>
    %409 = arith.addf %408, %407 : vector<2x64xf32>
    %410 = arith.divf %408, %409 : vector<2x64xf32>
    %411 = arith.mulf %402, %355 : vector<2x64xf32>
    %412 = arith.mulf %396, %404 : vector<2x64xf32>
    %413 = arith.addf %411, %412 : vector<2x64xf32>
    %414 = math.tanh %413 : vector<2x64xf32>
    %415 = arith.mulf %410, %414 : vector<2x64xf32>
    %416 = vector.extract_strided_slice %5 {offsets = [14, 0], sizes = [2, 256], strides = [1, 1]} : vector<16x512xf32> to vector<2x256xf32>
    %c0_93 = arith.constant 0 : index
    %c0_94 = arith.constant 0 : index
    %417 = vector.load %arg6[%c0_93, %c0_94] : memref<64x256xf32, #tpu.memory_space<vmem>>, vector<64x256xf32>
    %cst_95 = arith.constant dense<0.000000e+00> : vector<2x256xf32>
    %418 = tpu.matmul %386, %417, %cst_95 {dimension_numbers = #tpu.dot_dimension_numbers<[1], [0], [0], [1], [0, 0, 1, 1], [], []>} : vector<2x64xf32>, vector<64x256xf32>, vector<2x256xf32> -> vector<2x256xf32>
    %419 = arith.addf %416, %418 : vector<2x256xf32>
    %420 = vector.extract_strided_slice %419 {offsets = [0, 0], sizes = [2, 64], strides = [1, 1]} : vector<2x256xf32> to vector<2x64xf32>
    %421 = arith.negf %420 : vector<2x64xf32>
    %422 = math.exp %421 : vector<2x64xf32>
    %cst_96 = arith.constant 1.000000e+00 : f32
    %423 = vector.broadcast %cst_96 : f32 to vector<2x64xf32>
    %424 = arith.addf %423, %422 : vector<2x64xf32>
    %425 = arith.divf %423, %424 : vector<2x64xf32>
    %426 = vector.extract_strided_slice %419 {offsets = [0, 64], sizes = [2, 64], strides = [1, 1]} : vector<2x256xf32> to vector<2x64xf32>
    %427 = arith.negf %426 : vector<2x64xf32>
    %428 = math.exp %427 : vector<2x64xf32>
    %cst_97 = arith.constant 1.000000e+00 : f32
    %429 = vector.broadcast %cst_97 : f32 to vector<2x64xf32>
    %430 = arith.addf %429, %428 : vector<2x64xf32>
    %431 = arith.divf %429, %430 : vector<2x64xf32>
    %432 = vector.extract_strided_slice %419 {offsets = [0, 128], sizes = [2, 64], strides = [1, 1]} : vector<2x256xf32> to vector<2x64xf32>
    %433 = math.tanh %432 : vector<2x64xf32>
    %434 = vector.extract_strided_slice %419 {offsets = [0, 192], sizes = [2, 64], strides = [1, 1]} : vector<2x256xf32> to vector<2x64xf32>
    %435 = arith.negf %434 : vector<2x64xf32>
    %436 = math.exp %435 : vector<2x64xf32>
    %cst_98 = arith.constant 1.000000e+00 : f32
    %437 = vector.broadcast %cst_98 : f32 to vector<2x64xf32>
    %438 = arith.addf %437, %436 : vector<2x64xf32>
    %439 = arith.divf %437, %438 : vector<2x64xf32>
    %440 = arith.mulf %431, %384 : vector<2x64xf32>
    %441 = arith.mulf %425, %433 : vector<2x64xf32>
    %442 = arith.addf %440, %441 : vector<2x64xf32>
    %443 = math.tanh %442 : vector<2x64xf32>
    %444 = arith.mulf %439, %443 : vector<2x64xf32>
    %445 = vector.extract_strided_slice %5 {offsets = [0, 256], sizes = [2, 256], strides = [1, 1]} : vector<16x512xf32> to vector<2x256xf32>
    %c0_99 = arith.constant 0 : index
    %c0_100 = arith.constant 0 : index
    %446 = vector.load %arg7[%c0_99, %c0_100] : memref<64x256xf32, #tpu.memory_space<vmem>>, vector<64x256xf32>
    %cst_101 = arith.constant dense<0.000000e+00> : vector<2x256xf32>
    %447 = tpu.matmul %415, %446, %cst_101 {dimension_numbers = #tpu.dot_dimension_numbers<[1], [0], [0], [1], [0, 0, 1, 1], [], []>} : vector<2x64xf32>, vector<64x256xf32>, vector<2x256xf32> -> vector<2x256xf32>
    %448 = arith.addf %445, %447 : vector<2x256xf32>
    %449 = vector.extract_strided_slice %448 {offsets = [0, 0], sizes = [2, 64], strides = [1, 1]} : vector<2x256xf32> to vector<2x64xf32>
    %450 = arith.negf %449 : vector<2x64xf32>
    %451 = math.exp %450 : vector<2x64xf32>
    %cst_102 = arith.constant 1.000000e+00 : f32
    %452 = vector.broadcast %cst_102 : f32 to vector<2x64xf32>
    %453 = arith.addf %452, %451 : vector<2x64xf32>
    %454 = arith.divf %452, %453 : vector<2x64xf32>
    %455 = vector.extract_strided_slice %448 {offsets = [0, 64], sizes = [2, 64], strides = [1, 1]} : vector<2x256xf32> to vector<2x64xf32>
    %456 = arith.negf %455 : vector<2x64xf32>
    %457 = math.exp %456 : vector<2x64xf32>
    %cst_103 = arith.constant 1.000000e+00 : f32
    %458 = vector.broadcast %cst_103 : f32 to vector<2x64xf32>
    %459 = arith.addf %458, %457 : vector<2x64xf32>
    %460 = arith.divf %458, %459 : vector<2x64xf32>
    %461 = vector.extract_strided_slice %448 {offsets = [0, 128], sizes = [2, 64], strides = [1, 1]} : vector<2x256xf32> to vector<2x64xf32>
    %462 = math.tanh %461 : vector<2x64xf32>
    %463 = vector.extract_strided_slice %448 {offsets = [0, 192], sizes = [2, 64], strides = [1, 1]} : vector<2x256xf32> to vector<2x64xf32>
    %464 = arith.negf %463 : vector<2x64xf32>
    %465 = math.exp %464 : vector<2x64xf32>
    %cst_104 = arith.constant 1.000000e+00 : f32
    %466 = vector.broadcast %cst_104 : f32 to vector<2x64xf32>
    %467 = arith.addf %466, %465 : vector<2x64xf32>
    %468 = arith.divf %466, %467 : vector<2x64xf32>
    %469 = arith.mulf %460, %413 : vector<2x64xf32>
    %470 = arith.mulf %454, %462 : vector<2x64xf32>
    %471 = arith.addf %469, %470 : vector<2x64xf32>
    %472 = math.tanh %471 : vector<2x64xf32>
    %473 = arith.mulf %468, %472 : vector<2x64xf32>
    %474 = tpu.concatenate %444, %473 in 1 : vector<2x64xf32>, vector<2x64xf32> -> vector<2x128xf32>
    %c0_105 = arith.constant 0 : index
    %c0_106 = arith.constant 0 : index
    %475 = vector.load %arg8[%c0_105, %c0_106] : memref<128x64xf32, #tpu.memory_space<vmem>>, vector<128x64xf32>
    %cst_107 = arith.constant dense<0.000000e+00> : vector<2x64xf32>
    %476 = tpu.matmul %474, %475, %cst_107 {dimension_numbers = #tpu.dot_dimension_numbers<[1], [0], [0], [1], [0, 0, 1, 1], [], []>} : vector<2x128xf32>, vector<128x64xf32>, vector<2x64xf32> -> vector<2x64xf32>
    %c0_108 = arith.constant 0 : index
    %c0_109 = arith.constant 0 : index
    %477 = vector.load %arg9[%c0_108, %c0_109] : memref<1x64xf32, #tpu.memory_space<vmem>>, vector<1x64xf32>
    %478 = vector.broadcast %477 : vector<1x64xf32> to vector<2x64xf32>
    %479 = arith.addf %476, %478 : vector<2x64xf32>
    %c0_110 = arith.constant 0 : index
    %c0_111 = arith.constant 0 : index
    %c0_112 = arith.constant 0 : index
    %480 = vector.load %arg1[%c0_110, %c0_111, %c0_112] : memref<2x56x64xf32, #tpu.memory_space<vmem>>, vector<2x56x64xf32>
    %481 = vector.shape_cast %480 : vector<2x56x64xf32> to vector<112x64xf32>
    %c0_113 = arith.constant 0 : index
    %c0_114 = arith.constant 0 : index
    %482 = vector.load %arg10[%c0_113, %c0_114] : memref<64x64xf32, #tpu.memory_space<vmem>>, vector<64x64xf32>
    %cst_115 = arith.constant dense<0.000000e+00> : vector<112x64xf32>
    %483 = tpu.matmul %481, %482, %cst_115 {dimension_numbers = #tpu.dot_dimension_numbers<[1], [0], [0], [1], [0, 0, 1, 1], [], []>} : vector<112x64xf32>, vector<64x64xf32>, vector<112x64xf32> -> vector<112x64xf32>
    %c0_116 = arith.constant 0 : index
    %c0_117 = arith.constant 0 : index
    %484 = vector.load %arg11[%c0_116, %c0_117] : memref<1x64xf32, #tpu.memory_space<vmem>>, vector<1x64xf32>
    %485 = vector.broadcast %484 : vector<1x64xf32> to vector<112x64xf32>
    %486 = arith.addf %483, %485 : vector<112x64xf32>
    %cst_118 = arith.constant 0.000000e+00 : f32
    %487 = vector.broadcast %cst_118 : f32 to vector<112x64xf32>
    %488 = arith.maximumf %486, %487 : vector<112x64xf32>
    %c0_119 = arith.constant 0 : index
    %c0_120 = arith.constant 0 : index
    %489 = vector.load %arg12[%c0_119, %c0_120] : memref<64x64xf32, #tpu.memory_space<vmem>>, vector<64x64xf32>
    %cst_121 = arith.constant dense<0.000000e+00> : vector<2x64xf32>
    %490 = tpu.matmul %479, %489, %cst_121 {dimension_numbers = #tpu.dot_dimension_numbers<[1], [0], [0], [1], [0, 0, 1, 1], [], []>} : vector<2x64xf32>, vector<64x64xf32>, vector<2x64xf32> -> vector<2x64xf32>
    %c0_122 = arith.constant 0 : index
    %c0_123 = arith.constant 0 : index
    %491 = vector.load %arg13[%c0_122, %c0_123] : memref<1x64xf32, #tpu.memory_space<vmem>>, vector<1x64xf32>
    %492 = vector.broadcast %491 : vector<1x64xf32> to vector<2x64xf32>
    %493 = arith.addf %490, %492 : vector<2x64xf32>
    %cst_124 = arith.constant 0.000000e+00 : f32
    %494 = vector.broadcast %cst_124 : f32 to vector<2x64xf32>
    %495 = arith.maximumf %493, %494 : vector<2x64xf32>
    %c0_125 = arith.constant 0 : index
    %c0_126 = arith.constant 0 : index
    %496 = vector.load %arg14[%c0_125, %c0_126] : memref<1x64xf32, #tpu.memory_space<vmem>>, vector<1x64xf32>
    %497 = vector.broadcast %496 : vector<1x64xf32> to vector<2x64xf32>
    %498 = arith.mulf %495, %497 : vector<2x64xf32>
    %499 = vector.shape_cast %488 : vector<112x64xf32> to vector<2x56x64xf32>
    %500 = vector.shape_cast %498 : vector<2x64xf32> to vector<2x1x64xf32>
    %501 = vector.broadcast %500 : vector<2x1x64xf32> to vector<2x56x64xf32>
    %502 = arith.mulf %499, %501 : vector<2x56x64xf32>
    %cst_127 = arith.constant dense<0.000000e+00> : vector<2x56xf32>
    %503 = vector.multi_reduction <add>, %502, %cst_127 [2] : vector<2x56x64xf32> to vector<2x56xf32>
    %c0_128 = arith.constant 0 : index
    %c0_129 = arith.constant 0 : index
    %504 = vector.load %arg15[%c0_128, %c0_129] : memref<1x1xf32, #tpu.memory_space<vmem>>, vector<1x1xf32>
    %505 = vector.broadcast %504 : vector<1x1xf32> to vector<2x56xf32>
    %506 = arith.addf %503, %505 : vector<2x56xf32>
    %507 = tpu.iota {dimensions = array<i32: 1>} : vector<2x56xi32>
    %c49_i32 = arith.constant 49 : i32
    %508 = vector.broadcast %c49_i32 : i32 to vector<2x56xi32>
    %509 = arith.cmpi slt, %507, %508 : vector<2x56xi32>
    %cst_130 = arith.constant -1.000000e+30 : f32
    %510 = vector.broadcast %cst_130 : f32 to vector<2x56xf32>
    %511 = arith.select %509, %506, %510 : vector<2x56xi1>, vector<2x56xf32>
    %cst_131 = arith.constant dense<0xFF800000> : vector<2xf32>
    %512 = vector.multi_reduction <maximumf>, %511, %cst_131 [1] : vector<2x56xf32> to vector<2xf32>
    %513 = vector.shape_cast %512 : vector<2xf32> to vector<2x1xf32>
    %514 = vector.broadcast %513 : vector<2x1xf32> to vector<2x56xf32>
    %515 = arith.subf %511, %514 : vector<2x56xf32>
    %516 = math.exp %515 : vector<2x56xf32>
    %cst_132 = arith.constant dense<0.000000e+00> : vector<2xf32>
    %517 = vector.multi_reduction <add>, %516, %cst_132 [1] : vector<2x56xf32> to vector<2xf32>
    %518 = vector.shape_cast %517 : vector<2xf32> to vector<2x1xf32>
    %519 = vector.broadcast %518 : vector<2x1xf32> to vector<2x56xf32>
    %520 = arith.divf %516, %519 : vector<2x56xf32>
    %521 = arith.truncf %520 : vector<2x56xf32> to vector<2x56xbf16>
    %c0_133 = arith.constant 0 : index
    %c0_134 = arith.constant 0 : index
    %522 = vector.load %arg3[%c0_133, %c0_134] : memref<56x3584xbf16, #tpu.memory_space<vmem>>, vector<56x3584xbf16>
    %cst_135 = arith.constant dense<0.000000e+00> : vector<2x3584xf32>
    %523 = tpu.matmul %521, %522, %cst_135 {dimension_numbers = #tpu.dot_dimension_numbers<[1], [0], [0], [1], [0, 0, 1, 1], [], []>} : vector<2x56xbf16>, vector<56x3584xbf16>, vector<2x3584xf32> -> vector<2x3584xf32>
    %c0_136 = arith.constant 0 : index
    %c0_137 = arith.constant 0 : index
    %524 = vector.load %arg2[%c0_136, %c0_137] : memref<2x3584xf32, #tpu.memory_space<vmem>>, vector<2x3584xf32>
    %525 = arith.mulf %523, %524 : vector<2x3584xf32>
    %c0_138 = arith.constant 0 : index
    %c0_139 = arith.constant 0 : index
    %526 = vector.load %arg17[%c0_138, %c0_139] : memref<64x512xf32, #tpu.memory_space<vmem>>, vector<64x512xf32>
    %cst_140 = arith.constant dense<0.000000e+00> : vector<2x512xf32>
    %527 = tpu.matmul %479, %526, %cst_140 {dimension_numbers = #tpu.dot_dimension_numbers<[1], [0], [0], [1], [0, 0, 1, 1], [], []>} : vector<2x64xf32>, vector<64x512xf32>, vector<2x512xf32> -> vector<2x512xf32>
    %c0_141 = arith.constant 0 : index
    %c0_142 = arith.constant 0 : index
    %528 = vector.load %arg18[%c0_141, %c0_142] : memref<1x512xf32, #tpu.memory_space<vmem>>, vector<1x512xf32>
    %529 = vector.broadcast %528 : vector<1x512xf32> to vector<2x512xf32>
    %530 = arith.addf %527, %529 : vector<2x512xf32>
    tpu.wait_dma2 semaphore(%arg23 : memref<!tpu.dma_semaphore, #tpu.memory_space<semaphore_mem>>) src(%arg16 : memref<3584x512xbf16, #tpu.memory_space<any>>) dst(%arg22 : memref<3584x512xbf16, #tpu.memory_space<vmem>>)
    %531 = arith.truncf %525 : vector<2x3584xf32> to vector<2x3584xbf16>
    %c0_143 = arith.constant 0 : index
    %c0_144 = arith.constant 0 : index
    %532 = vector.load %arg22[%c0_143, %c0_144] : memref<3584x512xbf16, #tpu.memory_space<vmem>>, vector<3584x512xbf16>
    %cst_145 = arith.constant dense<0.000000e+00> : vector<2x512xf32>
    %533 = tpu.matmul %531, %532, %cst_145 {dimension_numbers = #tpu.dot_dimension_numbers<[1], [0], [0], [1], [0, 0, 1, 1], [], []>} : vector<2x3584xbf16>, vector<3584x512xbf16>, vector<2x512xf32> -> vector<2x512xf32>
    %534 = arith.addf %530, %533 : vector<2x512xf32>
    %cst_146 = arith.constant 0.000000e+00 : f32
    %535 = vector.broadcast %cst_146 : f32 to vector<2x512xf32>
    %536 = arith.maximumf %534, %535 : vector<2x512xf32>
    %537 = arith.truncf %536 : vector<2x512xf32> to vector<2x512xbf16>
    %c0_147 = arith.constant 0 : index
    %c0_148 = arith.constant 0 : index
    %538 = vector.load %arg19[%c0_147, %c0_148] : memref<512x512xbf16, #tpu.memory_space<vmem>>, vector<512x512xbf16>
    %cst_149 = arith.constant dense<0.000000e+00> : vector<2x512xf32>
    %539 = tpu.matmul %537, %538, %cst_149 {dimension_numbers = #tpu.dot_dimension_numbers<[1], [0], [0], [1], [0, 0, 1, 1], [], []>} : vector<2x512xbf16>, vector<512x512xbf16>, vector<2x512xf32> -> vector<2x512xf32>
    %c0_150 = arith.constant 0 : index
    %c0_151 = arith.constant 0 : index
    %540 = vector.load %arg20[%c0_150, %c0_151] : memref<1x512xf32, #tpu.memory_space<vmem>>, vector<1x512xf32>
    %541 = vector.broadcast %540 : vector<1x512xf32> to vector<2x512xf32>
    %542 = arith.addf %539, %541 : vector<2x512xf32>
    %cst_152 = arith.constant 0.000000e+00 : f32
    %543 = vector.broadcast %cst_152 : f32 to vector<2x512xf32>
    %544 = arith.maximumf %542, %543 : vector<2x512xf32>
    %c0_153 = arith.constant 0 : index
    %c0_154 = arith.constant 0 : index
    %545 = vector.load %arg21[%c0_153, %c0_154] : memref<2x512xf32, #tpu.memory_space<vmem>>, vector<2x512xf32>
    tpu.vector_store %arg21[%c0_153, %c0_154], %544 {strides = array<i32>} : memref<2x512xf32, #tpu.memory_space<vmem>>, vector<2x512xf32>,
    return
  }
}

</mosaic_0001>

<llo_original>
// kernel: topdown_forward.1
$region0: #{topdown_forward.1}
  #allocation0 [shape = 'u32[]', space=smem, size = 0x4, offset = 0x4, fixed_abs, tag = 'smem constant byte address 0x4 - core index']
  #allocation1 [shape = 'u32[72,128]{1,0:T(1,128)}', space=vmem, size = 0x9000, scoped, tag = 'internal scratch']
  #allocation2 [shape = 'bf16[3584,512]{1,0:T(8,128)(2,1)}', space=vmem, size = 0x380000, scoped, tag = 'scratch operand']
  #allocation3 [shape = 's32[1]{0}', space=sflag, size = 0x4, scoped, tag = 'scratch operand']
  #allocation4 [shape = 'f32[1,1]{1,0:T(1,128)S(1)}', space=vmem, size = 0x200, scoped, tag = 'scoped memory for topdown_forward.1']
  #allocation30 [shape = 's32[]', space=sflag, size = 0x4, offset = 0, fixed_abs, tag = 'sflag constant byte address 0x0 - dummy sync flag']
  #allocation31 [shape = 's32[]', space=sflag, size = 0x4, offset = 0, fixed_abs, tag = 'sflag constant byte address 0x0 - dummy sync flag']
  #allocation32 [shape = 'u32[]', space=smem, size = 0x4, offset = 0x44, fixed_abs, tag = 'smem constant byte address 0x44 - assertion arg 0']
  #allocation33 [shape = 'u32[]', space=smem, size = 0x4, offset = 0x48, fixed_abs, tag = 'smem constant byte address 0x48 - assertion arg 1']
  %s0 = inlined_call_operand.vmem [shape: f32[16,32], index: 0, kind: input, shape index: {}]
  %s1 = inlined_call_operand.vmem [shape: f32[2,56,64], index: 1, kind: input, shape index: {}]
  %s2 = inlined_call_operand.vmem [shape: f32[2,3584], index: 2, kind: input, shape index: {}]
  %s3 = inlined_call_operand.hbm [shape: bf16[56,3584], index: 3, kind: input, shape index: {}]
  %s4 = inlined_call_operand.hbm [shape: f32[32,512], index: 4, kind: input, shape index: {}]
  %s5 = inlined_call_operand.hbm [shape: f32[1,512], index: 5, kind: input, shape index: {}]
  %s6 = inlined_call_operand.hbm [shape: f32[64,256], index: 6, kind: input, shape index: {}]
  %s7 = inlined_call_operand.hbm [shape: f32[64,256], index: 7, kind: input, shape index: {}]
  %s8 = inlined_call_operand.vmem [shape: f32[128,64], index: 8, kind: input, shape index: {}]
  %s9 = inlined_call_operand.hbm [shape: f32[1,64], index: 9, kind: input, shape index: {}]
  %s10 = inlined_call_operand.hbm [shape: f32[64,64], index: 10, kind: input, shape index: {}]
  %s11 = inlined_call_operand.hbm [shape: f32[1,64], index: 11, kind: input, shape index: {}]
  %s12 = inlined_call_operand.hbm [shape: f32[64,64], index: 12, kind: input, shape index: {}]
  %s13 = inlined_call_operand.hbm [shape: f32[1,64], index: 13, kind: input, shape index: {}]
  %s14 = inlined_call_operand.hbm [shape: f32[1,64], index: 14, kind: input, shape index: {}]
  %s15 = inlined_call_operand.<no memory space> [shape: f32[1,1], index: 15, kind: input, shape index: {}]
  %s16 = inlined_call_operand.hbm [shape: bf16[3584,512], index: 16, kind: input, shape index: {}]
  %s17 = inlined_call_operand.hbm [shape: f32[64,512], index: 17, kind: input, shape index: {}]
  %s18 = inlined_call_operand.hbm [shape: f32[1,512], index: 18, kind: input, shape index: {}]
  %s19 = inlined_call_operand.hbm [shape: bf16[512,512], index: 19, kind: input, shape index: {}]
  %s20 = inlined_call_operand.hbm [shape: f32[1,512], index: 20, kind: input, shape index: {}]
  %s21 = inlined_call_operand.hbm [shape: f32[2,512], index: 21, kind: output, shape index: {}]
  %s22 = sld [smem:[#allocation0]]
  $region154: #{topdown_forward.1} parent=0
    _
  %s24 = ssub.s32 1, %s22
  %s25 = scalar_select 0, %s24, %s22
  %v26 = vstv %s15
  %27 = vst [vmem:[#allocation4] sm:$0x1] %v26
  $region1: #{topdown_forward.1} parent=0
    #allocation5 [shape = 'u8[401408]{0}', space=vmem, size = 0x62000, scoped, tag = 'input window, operand 3, single buffered']
    #allocation6 [shape = 's32[1]{0}', space=sflag, size = 0x4, scoped, tag = 'scoped memory for topdown_forward.1']
    #allocation7 [shape = 's32[1]{0}', space=sflag, size = 0x4, scoped, tag = 'scoped memory for topdown_forward.1']
    #allocation8 [shape = 'u8[65536]{0}', space=vmem, size = 0x10000, scoped, tag = 'input window, operand 4, single buffered']
    #allocation9 [shape = 's32[1]{0}', space=sflag, size = 0x4, scoped, tag = 'scoped memory for topdown_forward.1']
    #allocation10 [shape = 'u8[2048]{0}', space=vmem, size = 0x800, scoped, tag = 'input window, operand 5, single buffered']
    #allocation11 [shape = 'u8[65536]{0}', space=vmem, size = 0x10000, scoped, tag = 'input window, operand 6, single buffered']
    #allocation12 [shape = 's32[1]{0}', space=sflag, size = 0x4, scoped, tag = 'scoped memory for topdown_forward.1']
    #allocation13 [shape = 'u8[65536]{0}', space=vmem, size = 0x10000, scoped, tag = 'input window, operand 7, single buffered']
    #allocation14 [shape = 'u8[512]{0}', space=vmem, size = 0x400, scoped, tag = 'input window, operand 9, single buffered']
    #allocation15 [shape = 's32[1]{0}', space=sflag, size = 0x4, scoped, tag = 'scoped memory for topdown_forward.1']
    #allocation16 [shape = 'u8[32768]{0}', space=vmem, size = 0x8000, scoped, tag = 'input window, operand 10, single buffered']
    #allocation17 [shape = 'u8[512]{0}', space=vmem, size = 0x400, scoped, tag = 'input window, operand 11, single buffered']
    #allocation18 [shape = 's32[1]{0}', space=sflag, size = 0x4, scoped, tag = 'scoped memory for topdown_forward.1']
    #allocation19 [shape = 'u8[32768]{0}', space=vmem, size = 0x8000, scoped, tag = 'input window, operand 12, single buffered']
    #allocation20 [shape = 'u8[512]{0}', space=vmem, size = 0x400, scoped, tag = 'input window, operand 13, single buffered']
    #allocation21 [shape = 's32[1]{0}', space=sflag, size = 0x4, scoped, tag = 'scoped memory for topdown_forward.1']
    #allocation22 [shape = 'u8[512]{0}', space=vmem, size = 0x400, scoped, tag = 'input window, operand 14, single buffered']
    #allocation23 [shape = 'u8[131072]{0}', space=vmem, size = 0x20000, scoped, tag = 'input window, operand 17, single buffered']
    #allocation24 [shape = 's32[1]{0}', space=sflag, size = 0x4, scoped, tag = 'scoped memory for topdown_forward.1']
    #allocation25 [shape = 'u8[2048]{0}', space=vmem, size = 0x800, scoped, tag = 'input window, operand 18, single buffered']
    #allocation26 [shape = 'u8[524288]{0}', space=vmem, size = 0x80000, scoped, tag = 'input window, operand 19, single buffered']
    #allocation27 [shape = 's32[1]{0}', space=sflag, size = 0x4, scoped, tag = 'scoped memory for topdown_forward.1']
    #allocation28 [shape = 'u8[2048]{0}', space=vmem, size = 0x800, scoped, tag = 'input window, operand 20, single buffered']
    #allocation29 [shape = 'u8[4096]{0}', space=vmem, size = 0x1000, scoped, tag = 'output window, operand 0, single buffered']
    %28 = vsyncpa [#allocation6], 0
    %29 = vsyncpa [#allocation9], 0
    %30 = vsyncpa [#allocation12], 0
    %31 = vsyncpa [#allocation15], 0
    %32 = vsyncpa [#allocation18], 0
    %33 = vsyncpa [#allocation21], 0
    %34 = vsyncpa [#allocation24], 0
    %35 = vsyncpa [#allocation27], 0
    %36 = vsyncpa [#allocation7], 0
    // Predicated region
    $region2: #{topdown_forward.1} parent=1 // pred_check
      _
    $region3: #{topdown_forward.1} parent=1 // pred_check_branch
      %38 = sbr.rel (0) target = $region5
    $region4: #{topdown_forward.1} parent=1 // pred_region
      _
    $region5: #{topdown_forward.1} parent=1 // pred_fallthru
      _
    // Predicated region
    $region6: #{topdown_forward.1} parent=1 // pred_check
      _
    $region7: #{topdown_forward.1} parent=1 // pred_check_branch
      %40 = sbr.rel (0) target = $region9
    $region8: #{topdown_forward.1} parent=1 // pred_region
      _
    $region9: #{topdown_forward.1} parent=1 // pred_fallthru
      _
    // Predicated region
    $region10: #{topdown_forward.1} parent=1 // pred_check
      _
    $region11: #{topdown_forward.1} parent=1 // pred_check_branch
      %42 = sbr.rel (0) target = $region13
    $region12: #{topdown_forward.1} parent=1 // pred_region
      _
    $region13: #{topdown_forward.1} parent=1 // pred_fallthru
      _
    // Predicated region
    $region14: #{topdown_forward.1} parent=1 // pred_check
      _
    $region15: #{topdown_forward.1} parent=1 // pred_check_branch
      %44 = sbr.rel (0) target = $region17
    $region16: #{topdown_forward.1} parent=1 // pred_region
      %46 = vsyncadd [#allocation6], 0
      %s47 = sshll.u32 %s3, 4
      %s48 = int_to_ptr.hbm [resolvable:$true] %s47
      %s49 = sshll.u32 [#allocation5], 4
      %s50 = int_to_ptr.vmem [resolvable:$true] %s49
      %55 = dma.hbm_to_vmem [thread:$0]  %s48, 12544, %s50, [#allocation6], 1792, 1792, 112
    $region17: #{topdown_forward.1} parent=1 // pred_fallthru
      _
    // Predicated region
    $region18: #{topdown_forward.1} parent=1 // pred_check
      _
    $region19: #{topdown_forward.1} parent=1 // pred_check_branch
      %57 = sbr.rel (0) target = $region21
    $region20: #{topdown_forward.1} parent=1 // pred_region
      %59 = vsyncadd [#allocation9], 0
      %s60 = sshll.u32 %s4, 4
      %s61 = int_to_ptr.hbm [resolvable:$true] %s60
      %s62 = sshll.u32 [#allocation8], 4
      %s63 = int_to_ptr.vmem [resolvable:$true] %s62
      %68 = dma.hbm_to_vmem [thread:$0]  %s61, 2048, %s63, [#allocation9], 512, 512, 32
    $region21: #{topdown_forward.1} parent=1 // pred_fallthru
      _
    // Predicated region
    $region22: #{topdown_forward.1} parent=1 // pred_check
      _
    $region23: #{topdown_forward.1} parent=1 // pred_check_branch
      %70 = sbr.rel (0) target = $region25
    $region24: #{topdown_forward.1} parent=1 // pred_region
      %72 = vsyncadd [#allocation9], 0
      %s74 = sshll.u32 %s5, 4
      %s75 = int_to_ptr.hbm [resolvable:$true] %s74
      %s76 = sshll.u32 [#allocation10], 4
      %s77 = int_to_ptr.vmem [resolvable:$true] %s76
      %79 = dma.hbm_to_vmem [thread:$0]  %s75, 64, %s77, [#allocation9]
    $region25: #{topdown_forward.1} parent=1 // pred_fallthru
      _
    // Predicated region
    $region26: #{topdown_forward.1} parent=1 // pred_check
      _
    $region27: #{topdown_forward.1} parent=1 // pred_check_branch
      %81 = sbr.rel (0) target = $region29
    $region28: #{topdown_forward.1} parent=1 // pred_region
      %83 = vsyncadd [#allocation12], 0
      %s84 = sshll.u32 %s6, 4
      %s85 = int_to_ptr.hbm [resolvable:$true] %s84
      %s86 = sshll.u32 [#allocation11], 4
      %s87 = int_to_ptr.vmem [resolvable:$true] %s86
      %92 = dma.hbm_to_vmem [thread:$0]  %s85, 2048, %s87, [#allocation12], 256, 256, 16
    $region29: #{topdown_forward.1} parent=1 // pred_fallthru
      _
    // Predicated region
    $region30: #{topdown_forward.1} parent=1 // pred_check
      _
    $region31: #{topdown_forward.1} parent=1 // pred_check_branch
      %94 = sbr.rel (0) target = $region33
    $region32: #{topdown_forward.1} parent=1 // pred_region
      %96 = vsyncadd [#allocation12], 0
      %s97 = sshll.u32 %s7, 4
      %s98 = int_to_ptr.hbm [resolvable:$true] %s97
      %s99 = sshll.u32 [#allocation13], 4
      %s100 = int_to_ptr.vmem [resolvable:$true] %s99
      %105 = dma.hbm_to_vmem [thread:$0]  %s98, 2048, %s100, [#allocation12], 256, 256, 16
    $region33: #{topdown_forward.1} parent=1 // pred_fallthru
      _
    // Predicated region
    $region34: #{topdown_forward.1} parent=1 // pred_check
      _
    $region35: #{topdown_forward.1} parent=1 // pred_check_branch
      %107 = sbr.rel (0) target = $region37
    $region36: #{topdown_forward.1} parent=1 // pred_region
      _
    $region37: #{topdown_forward.1} parent=1 // pred_fallthru
      _
    // Predicated region
    $region38: #{topdown_forward.1} parent=1 // pred_check
      _
    $region39: #{topdown_forward.1} parent=1 // pred_check_branch
      %109 = sbr.rel (0) target = $region41
    $region40: #{topdown_forward.1} parent=1 // pred_region
      %111 = vsyncadd [#allocation15], 0
      %s113 = sshll.u32 %s9, 4
      %s114 = int_to_ptr.hbm [resolvable:$true] %s113
      %s115 = sshll.u32 [#allocation14], 4
      %s116 = int_to_ptr.vmem [resolvable:$true] %s115
      %118 = dma.hbm_to_vmem [thread:$0]  %s114, 16, %s116, [#allocation15]
    $region41: #{topdown_forward.1} parent=1 // pred_fallthru
      _
    // Predicated region
    $region42: #{topdown_forward.1} parent=1 // pred_check
      _
    $region43: #{topdown_forward.1} parent=1 // pred_check_branch
      %120 = sbr.rel (0) target = $region45
    $region44: #{topdown_forward.1} parent=1 // pred_region
      %122 = vsyncadd [#allocation15], 0
      %s123 = sshll.u32 %s10, 4
      %s124 = int_to_ptr.hbm [resolvable:$true] %s123
      %s125 = sshll.u32 [#allocation16], 4
      %s126 = int_to_ptr.vmem [resolvable:$true] %s125
      %131 = dma.hbm_to_vmem [thread:$0]  %s124, 1024, %s126, [#allocation15], 128, 128, 8
    $region45: #{topdown_forward.1} parent=1 // pred_fallthru
      _
    // Predicated region
    $region46: #{topdown_forward.1} parent=1 // pred_check
      _
    $region47: #{topdown_forward.1} parent=1 // pred_check_branch
      %133 = sbr.rel (0) target = $region49
    $region48: #{topdown_forward.1} parent=1 // pred_region
      %135 = vsyncadd [#allocation18], 0
      %s137 = sshll.u32 %s11, 4
      %s138 = int_to_ptr.hbm [resolvable:$true] %s137
      %s139 = sshll.u32 [#allocation17], 4
      %s140 = int_to_ptr.vmem [resolvable:$true] %s139
      %142 = dma.hbm_to_vmem [thread:$0]  %s138, 16, %s140, [#allocation18]
    $region49: #{topdown_forward.1} parent=1 // pred_fallthru
      _
    // Predicated region
    $region50: #{topdown_forward.1} parent=1 // pred_check
      _
    $region51: #{topdown_forward.1} parent=1 // pred_check_branch
      %144 = sbr.rel (0) target = $region53
    $region52: #{topdown_forward.1} parent=1 // pred_region
      %146 = vsyncadd [#allocation18], 0
      %s147 = sshll.u32 %s12, 4
      %s148 = int_to_ptr.hbm [resolvable:$true] %s147
      %s149 = sshll.u32 [#allocation19], 4
      %s150 = int_to_ptr.vmem [resolvable:$true] %s149
      %155 = dma.hbm_to_vmem [thread:$0]  %s148, 1024, %s150, [#allocation18], 128, 128, 8
    $region53: #{topdown_forward.1} parent=1 // pred_fallthru
      _
    // Predicated region
    $region54: #{topdown_forward.1} parent=1 // pred_check
      _
    $region55: #{topdown_forward.1} parent=1 // pred_check_branch
      %157 = sbr.rel (0) target = $region57
    $region56: #{topdown_forward.1} parent=1 // pred_region
      %159 = vsyncadd [#allocation21], 0
      %s161 = sshll.u32 %s13, 4
      %s162 = int_to_ptr.hbm [resolvable:$true] %s161
      %s163 = sshll.u32 [#allocation20], 4
      %s164 = int_to_ptr.vmem [resolvable:$true] %s163
      %166 = dma.hbm_to_vmem [thread:$0]  %s162, 16, %s164, [#allocation21]
    $region57: #{topdown_forward.1} parent=1 // pred_fallthru
      _
    // Predicated region
    $region58: #{topdown_forward.1} parent=1 // pred_check
      _
    $region59: #{topdown_forward.1} parent=1 // pred_check_branch
      %168 = sbr.rel (0) target = $region61
    $region60: #{topdown_forward.1} parent=1 // pred_region
      %170 = vsyncadd [#allocation21], 0
      %s172 = sshll.u32 %s14, 4
      %s173 = int_to_ptr.hbm [resolvable:$true] %s172
      %s174 = sshll.u32 [#allocation22], 4
      %s175 = int_to_ptr.vmem [resolvable:$true] %s174
      %177 = dma.hbm_to_vmem [thread:$0]  %s173, 16, %s175, [#allocation21]
    $region61: #{topdown_forward.1} parent=1 // pred_fallthru
      _
    // Predicated region
    $region62: #{topdown_forward.1} parent=1 // pred_check
      _
    $region63: #{topdown_forward.1} parent=1 // pred_check_branch
      %179 = sbr.rel (0) target = $region65
    $region64: #{topdown_forward.1} parent=1 // pred_region
      _
    $region65: #{topdown_forward.1} parent=1 // pred_fallthru
      _
    // Predicated region
    $region66: #{topdown_forward.1} parent=1 // pred_check
      _
    $region67: #{topdown_forward.1} parent=1 // pred_check_branch
      %181 = sbr.rel (0) target = $region69
    $region68: #{topdown_forward.1} parent=1 // pred_region
      %183 = vsyncadd [#allocation24], 0
      %s184 = sshll.u32 %s17, 4
      %s185 = int_to_ptr.hbm [resolvable:$true] %s184
      %s186 = sshll.u32 [#allocation23], 4
      %s187 = int_to_ptr.vmem [resolvable:$true] %s186
      %192 = dma.hbm_to_vmem [thread:$0]  %s185, 4096, %s187, [#allocation24], 512, 512, 32
    $region69: #{topdown_forward.1} parent=1 // pred_fallthru
      _
    // Predicated region
    $region70: #{topdown_forward.1} parent=1 // pred_check
      _
    $region71: #{topdown_forward.1} parent=1 // pred_check_branch
      %194 = sbr.rel (0) target = $region73
    $region72: #{topdown_forward.1} parent=1 // pred_region
      %196 = vsyncadd [#allocation24], 0
      %s198 = sshll.u32 %s18, 4
      %s199 = int_to_ptr.hbm [resolvable:$true] %s198
      %s200 = sshll.u32 [#allocation25], 4
      %s201 = int_to_ptr.vmem [resolvable:$true] %s200
      %203 = dma.hbm_to_vmem [thread:$0]  %s199, 64, %s201, [#allocation24]
    $region73: #{topdown_forward.1} parent=1 // pred_fallthru
      _
    // Predicated region
    $region74: #{topdown_forward.1} parent=1 // pred_check
      _
    $region75: #{topdown_forward.1} parent=1 // pred_check_branch
      %205 = sbr.rel (0) target = $region77
    $region76: #{topdown_forward.1} parent=1 // pred_region
      %207 = vsyncadd [#allocation27], 0
      %s208 = sshll.u32 %s19, 4
      %s209 = int_to_ptr.hbm [resolvable:$true] %s208
      %s210 = sshll.u32 [#allocation26], 4
      %s211 = int_to_ptr.vmem [resolvable:$true] %s210
      %216 = dma.hbm_to_vmem [thread:$0]  %s209, 16384, %s211, [#allocation27], 256, 256, 16
    $region77: #{topdown_forward.1} parent=1 // pred_fallthru
      _
    // Predicated region
    $region78: #{topdown_forward.1} parent=1 // pred_check
      _
    $region79: #{topdown_forward.1} parent=1 // pred_check_branch
      %218 = sbr.rel (0) target = $region81
    $region80: #{topdown_forward.1} parent=1 // pred_region
      %220 = vsyncadd [#allocation27], 0
      %s222 = sshll.u32 %s20, 4
      %s223 = int_to_ptr.hbm [resolvable:$true] %s222
      %s224 = sshll.u32 [#allocation28], 4
      %s225 = int_to_ptr.vmem [resolvable:$true] %s224
      %227 = dma.hbm_to_vmem [thread:$0]  %s223, 64, %s225, [#allocation27]
    $region81: #{topdown_forward.1} parent=1 // pred_fallthru
      _
    // Predicated region
    $region82: #{topdown_forward.1} parent=1 // pred_check
      _
    $region83: #{topdown_forward.1} parent=1 // pred_check_branch
      %229 = sbr.rel (0) target = $region85
    $region84: #{topdown_forward.1} parent=1 // pred_region
      %231 = dma.done [#allocation6], 12544
    $region85: #{topdown_forward.1} parent=1 // pred_fallthru
      _
    // Predicated region
    $region86: #{topdown_forward.1} parent=1 // pred_check
      _
    $region87: #{topdown_forward.1} parent=1 // pred_check_branch
      %233 = sbr.rel (0) target = $region89
    $region88: #{topdown_forward.1} parent=1 // pred_region
      %235 = dma.done [#allocation9], 2048
    $region89: #{topdown_forward.1} parent=1 // pred_fallthru
      _
    // Predicated region
    $region90: #{topdown_forward.1} parent=1 // pred_check
      _
    $region91: #{topdown_forward.1} parent=1 // pred_check_branch
      %237 = sbr.rel (0) target = $region93
    $region92: #{topdown_forward.1} parent=1 // pred_region
      %239 = dma.done [#allocation9], 64
    $region93: #{topdown_forward.1} parent=1 // pred_fallthru
      _
    // Predicated region
    $region94: #{topdown_forward.1} parent=1 // pred_check
      _
    $region95: #{topdown_forward.1} parent=1 // pred_check_branch
      %241 = sbr.rel (0) target = $region97
    $region96: #{topdown_forward.1} parent=1 // pred_region
      %243 = dma.done [#allocation12], 2048
    $region97: #{topdown_forward.1} parent=1 // pred_fallthru
      _
    // Predicated region
    $region98: #{topdown_forward.1} parent=1 // pred_check
      _
    $region99: #{topdown_forward.1} parent=1 // pred_check_branch
      %245 = sbr.rel (0) target = $region101
    $region100: #{topdown_forward.1} parent=1 // pred_region
      %247 = dma.done [#allocation12], 2048
    $region101: #{topdown_forward.1} parent=1 // pred_fallthru
      _
    // Predicated region
    $region102: #{topdown_forward.1} parent=1 // pred_check
      _
    $region103: #{topdown_forward.1} parent=1 // pred_check_branch
      %249 = sbr.rel (0) target = $region105
    $region104: #{topdown_forward.1} parent=1 // pred_region
      %251 = dma.done [#allocation15], 16
    $region105: #{topdown_forward.1} parent=1 // pred_fallthru
      _
    // Predicated region
    $region106: #{topdown_forward.1} parent=1 // pred_check
      _
    $region107: #{topdown_forward.1} parent=1 // pred_check_branch
      %253 = sbr.rel (0) target = $region109
    $region108: #{topdown_forward.1} parent=1 // pred_region
      %255 = dma.done [#allocation15], 1024
    $region109: #{topdown_forward.1} parent=1 // pred_fallthru
      _
    // Predicated region
    $region110: #{topdown_forward.1} parent=1 // pred_check
      _
    $region111: #{topdown_forward.1} parent=1 // pred_check_branch
      %257 = sbr.rel (0) target = $region113
    $region112: #{topdown_forward.1} parent=1 // pred_region
      %259 = dma.done [#allocation18], 16
    $region113: #{topdown_forward.1} parent=1 // pred_fallthru
      _
    // Predicated region
    $region114: #{topdown_forward.1} parent=1 // pred_check
      _
    $region115: #{topdown_forward.1} parent=1 // pred_check_branch
      %261 = sbr.rel (0) target = $region117
    $region116: #{topdown_forward.1} parent=1 // pred_region
      %263 = dma.done [#allocation18], 1024
    $region117: #{topdown_forward.1} parent=1 // pred_fallthru
      _
    // Predicated region
    $region118: #{topdown_forward.1} parent=1 // pred_check
      _
    $region119: #{topdown_forward.1} parent=1 // pred_check_branch
      %265 = sbr.rel (0) target = $region121
    $region120: #{topdown_forward.1} parent=1 // pred_region
      %267 = dma.done [#allocation21], 16
    $region121: #{topdown_forward.1} parent=1 // pred_fallthru
      _
    // Predicated region
    $region122: #{topdown_forward.1} parent=1 // pred_check
      _
    $region123: #{topdown_forward.1} parent=1 // pred_check_branch
      %269 = sbr.rel (0) target = $region125
    $region124: #{topdown_forward.1} parent=1 // pred_region
      %271 = dma.done [#allocation21], 16
    $region125: #{topdown_forward.1} parent=1 // pred_fallthru
      _
    // Predicated region
    $region126: #{topdown_forward.1} parent=1 // pred_check
      _
    $region127: #{topdown_forward.1} parent=1 // pred_check_branch
      %273 = sbr.rel (0) target = $region129
    $region128: #{topdown_forward.1} parent=1 // pred_region
      %275 = dma.done [#allocation24], 4096
    $region129: #{topdown_forward.1} parent=1 // pred_fallthru
      _
    // Predicated region
    $region130: #{topdown_forward.1} parent=1 // pred_check
      _
    $region131: #{topdown_forward.1} parent=1 // pred_check_branch
      %277 = sbr.rel (0) target = $region133
    $region132: #{topdown_forward.1} parent=1 // pred_region
      %279 = dma.done [#allocation24], 64
    $region133: #{topdown_forward.1} parent=1 // pred_fallthru
      _
    // Predicated region
    $region134: #{topdown_forward.1} parent=1 // pred_check
      _
    $region135: #{topdown_forward.1} parent=1 // pred_check_branch
      %281 = sbr.rel (0) target = $region137
    $region136: #{topdown_forward.1} parent=1 // pred_region
      %283 = dma.done [#allocation27], 16384
    $region137: #{topdown_forward.1} parent=1 // pred_fallthru
      _
    // Predicated region
    $region138: #{topdown_forward.1} parent=1 // pred_check
      _
    $region139: #{topdown_forward.1} parent=1 // pred_check_branch
      %285 = sbr.rel (0) target = $region141
    $region140: #{topdown_forward.1} parent=1 // pred_region
      %287 = dma.done [#allocation27], 64
    $region141: #{topdown_forward.1} parent=1 // pred_fallthru
      _
    // Predicated region
    $region142: #{topdown_forward.1} parent=1 // pred_check
      _
    $region143: #{topdown_forward.1} parent=1 // pred_check_branch
      %290 = sbr.rel target = $region145
    $region144: #{topdown_forward.1} parent=1 // pred_region
      %291 = sst [smem:[#allocation32]] [#allocation31]
      %292 = sst [smem:[#allocation33]] [#allocation30]
    $region145: #{topdown_forward.1} parent=1 // pred_fallthru
      _
    %294 = shalt.err (0)
    %s296 = sshll.u32 %s16, 4
    %s297 = int_to_ptr.hbm [resolvable:$true] %s296
    %s298 = sshll.u32 [#allocation2], 4
    %s299 = int_to_ptr.vmem [resolvable:$true] %s298
    %301 = dma.hbm_to_vmem [thread:$0]  %s297, 114688, %s299, [#allocation3]
    %v302 = vld [vmem:[%s0] sm:$0xff]
    %v303 = vld [vmem:[%s0 + $0x8] sm:$0xff]
    %v304 = vld [vmem:[#allocation8] sm:$0xff]
    %v305 = vld [vmem:[#allocation8 + $0x8] sm:$0xff]
    %v306 = vld [vmem:[#allocation8 + $0x10] sm:$0xff]
    %v307 = vld [vmem:[#allocation8 + $0x18] sm:$0xff]
    %v308 = vld [vmem:[#allocation8 + $0x20] sm:$0xff]
    %v309 = vld [vmem:[#allocation8 + $0x28] sm:$0xff]
    %v310 = vld [vmem:[#allocation8 + $0x30] sm:$0xff]
    %v311 = vld [vmem:[#allocation8 + $0x38] sm:$0xff]
    %v312 = vld [vmem:[#allocation8 + $0x40] sm:$0xff]
    %v313 = vld [vmem:[#allocation8 + $0x48] sm:$0xff]
    %v314 = vld [vmem:[#allocation8 + $0x50] sm:$0xff]
    %v315 = vld [vmem:[#allocation8 + $0x58] sm:$0xff]
    %v316 = vld [vmem:[#allocation8 + $0x60] sm:$0xff]
    %v317 = vld [vmem:[#allocation8 + $0x68] sm:$0xff]
    %v318 = vld [vmem:[#allocation8 + $0x70] sm:$0xff]
    %v319 = vld [vmem:[#allocation8 + $0x78] sm:$0xff]
    %v320 = vld [vmem:[#allocation10] sm:$0xf]
    %v322 = vperm.slane %v320, 0
    %v323 = vperm.slane %v320, 1
    %v324 = vperm.slane %v320, 2
    %v325 = vperm.slane %v320, 3
    %vm330 = vcmask 261120
    %v332 = vsel %vm330, %v302, 0
    %v335 = vsel %vm330, %v303, 0
    %337 = vmatpush.msra.mxu0 0.0
    %338 = vmatpush.msra.mxu0 0.0
    %339 = vmatpush.msra.mxu0 0.0
    %340 = vmatpush.msra.mxu0 0.0
    %341 = vmatpush.msra.mxu0 0.0
    %342 = vmatpush.msra.mxu0 0.0
    %343 = vmatpush.msra.mxu0 0.0
    %344 = vmatpush.msra.mxu0 0.0
    %345 = vmatpush.msra.mxu0 0.0
    %346 = vmatpush.msra.mxu0 0.0
    %347 = vmatpush.msra.mxu0 0.0
    %348 = vmatpush.msra.mxu0 0.0
    %349 = vmatpush.msra.mxu0 %v316
    %350 = vmatpush.msra.mxu0 %v312
    %351 = vmatpush.msra.mxu0 %v308
    %352 = vmatpush.msra.mxu0 %v304
    %353 = vmatmul.f32.gmra.mxu0 %v332
    %v354 = vpop.f32.mrf.mxu0
    %v355 = vadd.f32 %v322, %v354
    %356 = vmatmul.f32.gmra.mxu0 %v335
    %v357 = vpop.f32.mrf.mxu0
    %v358 = vadd.f32 %v322, %v357
    %359 = vdwg.mxu0
    %360 = vmatpush.msra.mxu0 0.0
    %361 = vmatpush.msra.mxu0 0.0
    %362 = vmatpush.msra.mxu0 0.0
    %363 = vmatpush.msra.mxu0 0.0
    %364 = vmatpush.msra.mxu0 0.0
    %365 = vmatpush.msra.mxu0 0.0
    %366 = vmatpush.msra.mxu0 0.0
    %367 = vmatpush.msra.mxu0 0.0
    %368 = vmatpush.msra.mxu0 0.0
    %369 = vmatpush.msra.mxu0 0.0
    %370 = vmatpush.msra.mxu0 0.0
    %371 = vmatpush.msra.mxu0 0.0
    %372 = vmatpush.msra.mxu0 %v317
    %373 = vmatpush.msra.mxu0 %v313
    %374 = vmatpush.msra.mxu0 %v309
    %375 = vmatpush.msra.mxu0 %v305
    %376 = vmatmul.f32.gmra.mxu0 %v332
    %v377 = vpop.f32.mrf.mxu0
    %v378 = vadd.f32 %v323, %v377
    %379 = vmatmul.f32.gmra.mxu0 %v335
    %v380 = vpop.f32.mrf.mxu0
    %v381 = vadd.f32 %v323, %v380
    %382 = vdwg.mxu0
    %383 = vmatpush.msra.mxu0 0.0
    %384 = vmatpush.msra.mxu0 0.0
    %385 = vmatpush.msra.mxu0 0.0
    %386 = vmatpush.msra.mxu0 0.0
    %387 = vmatpush.msra.mxu0 0.0
    %388 = vmatpush.msra.mxu0 0.0
    %389 = vmatpush.msra.mxu0 0.0
    %390 = vmatpush.msra.mxu0 0.0
    %391 = vmatpush.msra.mxu0 0.0
    %392 = vmatpush.msra.mxu0 0.0
    %393 = vmatpush.msra.mxu0 0.0
    %394 = vmatpush.msra.mxu0 0.0
    %395 = vmatpush.msra.mxu0 %v318
    %396 = vmatpush.msra.mxu0 %v314
    %397 = vmatpush.msra.mxu0 %v310
    %398 = vmatpush.msra.mxu0 %v306
    %399 = vmatmul.f32.gmra.mxu0 %v332
    %v400 = vpop.f32.mrf.mxu0
    %v401 = vadd.f32 %v324, %v400
    %402 = vmatmul.f32.gmra.mxu0 %v335
    %v403 = vpop.f32.mrf.mxu0
    %v404 = vadd.f32 %v324, %v403
    %405 = vdwg.mxu0
    %406 = vmatpush.msra.mxu0 0.0
    %407 = vmatpush.msra.mxu0 0.0
    %408 = vmatpush.msra.mxu0 0.0
    %409 = vmatpush.msra.mxu0 0.0
    %410 = vmatpush.msra.mxu0 0.0
    %411 = vmatpush.msra.mxu0 0.0
    %412 = vmatpush.msra.mxu0 0.0
    %413 = vmatpush.msra.mxu0 0.0
    %414 = vmatpush.msra.mxu0 0.0
    %415 = vmatpush.msra.mxu0 0.0
    %416 = vmatpush.msra.mxu0 0.0
    %417 = vmatpush.msra.mxu0 0.0
    %418 = vmatpush.msra.mxu0 %v319
    %419 = vmatpush.msra.mxu0 %v315
    %420 = vmatpush.msra.mxu0 %v311
    %421 = vmatpush.msra.mxu0 %v307
    %422 = vmatmul.f32.gmra.mxu0 %v332
    %v423 = vpop.f32.mrf.mxu0
    %v424 = vadd.f32 %v325, %v423
    %425 = vmatmul.f32.gmra.mxu0 %v335
    %v426 = vpop.f32.mrf.mxu0
    %v427 = vadd.f32 %v325, %v426
    %428 = vdwg.mxu0
    %v429 = vld [vmem:[#allocation11] sm:$0xff]
    %v430 = vld [vmem:[#allocation11 + $0x8] sm:$0xff]
    %v431 = vld [vmem:[#allocation11 + $0x10] sm:$0xff]
    %v432 = vld [vmem:[#allocation11 + $0x18] sm:$0xff]
    %v433 = vld [vmem:[#allocation11 + $0x20] sm:$0xff]
    %v434 = vld [vmem:[#allocation11 + $0x28] sm:$0xff]
    %v435 = vld [vmem:[#allocation11 + $0x30] sm:$0xff]
    %v436 = vld [vmem:[#allocation11 + $0x38] sm:$0xff]
    %v437 = vld [vmem:[#allocation11 + $0x40] sm:$0xff]
    %v438 = vld [vmem:[#allocation11 + $0x48] sm:$0xff]
    %v439 = vld [vmem:[#allocation11 + $0x50] sm:$0xff]
    %v440 = vld [vmem:[#allocation11 + $0x58] sm:$0xff]
    %v441 = vld [vmem:[#allocation11 + $0x60] sm:$0xff]
    %v442 = vld [vmem:[#allocation11 + $0x68] sm:$0xff]
    %v443 = vld [vmem:[#allocation11 + $0x70] sm:$0xff]
    %v444 = vld [vmem:[#allocation11 + $0x78] sm:$0xff]
    %vm445 = vcmask 523264
    %v447 = vsel %vm445, 0.0, 0
    %449 = vmatpush.msra.mxu0 0.0
    %450 = vmatpush.msra.mxu0 0.0
    %451 = vmatpush.msra.mxu0 0.0
    %452 = vmatpush.msra.mxu0 0.0
    %453 = vmatpush.msra.mxu0 0.0
    %454 = vmatpush.msra.mxu0 0.0
    %455 = vmatpush.msra.mxu0 0.0
    %456 = vmatpush.msra.mxu0 0.0
    %457 = vmatpush.msra.mxu0 %v443
    %458 = vmatpush.msra.mxu0 %v441
    %459 = vmatpush.msra.mxu0 %v439
    %460 = vmatpush.msra.mxu0 %v437
    %461 = vmatpush.msra.mxu0 %v435
    %462 = vmatpush.msra.mxu0 %v433
    %463 = vmatpush.msra.mxu0 %v431
    %464 = vmatpush.msra.mxu0 %v429
    %465 = vmatmul.f32.gmra.mxu0 %v447
    %v466 = vpop.f32.mrf.mxu0
    %v467 = vadd.f32 0.0, %v466
    %468 = vdwg.mxu0
    %469 = vmatpush.msra.mxu0 0.0
    %470 = vmatpush.msra.mxu0 0.0
    %471 = vmatpush.msra.mxu0 0.0
    %472 = vmatpush.msra.mxu0 0.0
    %473 = vmatpush.msra.mxu0 0.0
    %474 = vmatpush.msra.mxu0 0.0
    %475 = vmatpush.msra.mxu0 0.0
    %476 = vmatpush.msra.mxu0 0.0
    %477 = vmatpush.msra.mxu0 %v444
    %478 = vmatpush.msra.mxu0 %v442
    %479 = vmatpush.msra.mxu0 %v440
    %480 = vmatpush.msra.mxu0 %v438
    %481 = vmatpush.msra.mxu0 %v436
    %482 = vmatpush.msra.mxu0 %v434
    %483 = vmatpush.msra.mxu0 %v432
    %484 = vmatpush.msra.mxu0 %v430
    %485 = vmatmul.f32.gmra.mxu0 %v447
    %v486 = vpop.f32.mrf.mxu0
    %v487 = vadd.f32 0.0, %v486
    %488 = vdwg.mxu0
    %v489 = vadd.f32 %v355, %v467
    %v490 = vadd.f32 %v378, %v487
    %v491 = vxor.u32 %v489, 2147483648
    %v492 = vmul.f32 %v491, 1.442695
    %v493 = vpow.pop %v492
    %v494 = vadd.f32 %v493, 1.0
    %v495 = vrcp.pop %v494
    %v496 = vmul.f32 %v494, %v495
    %v497 = vsub.f32 1.0, %v496
    %v498 = vmul.f32 %v495, %v497
    %v499 = vadd.f32 %v495, %v498
    %vm500 = vweird.f32 %v494
    %vm501 = vweird.f32 %v495
    %vm502 = vmor %vm500, %vm501
    %v503 = vsel %vm502, %v495, %v499
    %v504 = vand.u32 2147483647, %v494
    %vm505 = vcmp.eq.f32.partialorder %v504, 8.507059e+37
    %v506 = vand.u32 %v494, 2147483648
    %v507 = vor.u32 1.1754944e-38, %v506
    %v508 = vsel %vm505, %v507, %v503
    %v509 = vmul.f32 1.0, %v508
    %v510 = vtanh.pop %v490
    %v511 = vxor.u32 %v490, 2147483648
    %v512 = vmul.f32 %v511, 1.442695
    %v513 = vpow.pop %v512
    %v514 = vadd.f32 %v513, 1.0
    %v515 = vrcp.pop %v514
    %v516 = vmul.f32 %v514, %v515
    %v517 = vsub.f32 1.0, %v516
    %v518 = vmul.f32 %v515, %v517
    %v519 = vadd.f32 %v515, %v518
    %vm520 = vweird.f32 %v514
    %vm521 = vweird.f32 %v515
    %vm522 = vmor %vm520, %vm521
    %v523 = vsel %vm522, %v515, %v519
    %v524 = vand.u32 2147483647, %v514
    %vm525 = vcmp.eq.f32.partialorder %v524, 8.507059e+37
    %v526 = vand.u32 %v514, 2147483648
    %v527 = vor.u32 1.1754944e-38, %v526
    %v528 = vsel %vm525, %v527, %v523
    %v529 = vmul.f32 1.0, %v528
    %v530 = vmul.f32 %v509, 0.0
    %v531 = vmul.f32 %v509, %v510
    %533 = vrot.lane.b32.xlu0 %v531, 64
    %v534 = vpop.permute.xlu0 %533
    %v536 = vadd.f32 %v530, %v534
    %v537 = vtanh.pop %v536
    %v538 = vmul.f32 %v529, %v537
    %v539 = vld [vmem:[#allocation13] sm:$0xff]
    %v540 = vld [vmem:[#allocation13 + $0x8] sm:$0xff]
    %v541 = vld [vmem:[#allocation13 + $0x10] sm:$0xff]
    %v542 = vld [vmem:[#allocation13 + $0x18] sm:$0xff]
    %v543 = vld [vmem:[#allocation13 + $0x20] sm:$0xff]
    %v544 = vld [vmem:[#allocation13 + $0x28] sm:$0xff]
    %v545 = vld [vmem:[#allocation13 + $0x30] sm:$0xff]
    %v546 = vld [vmem:[#allocation13 + $0x38] sm:$0xff]
    %v547 = vld [vmem:[#allocation13 + $0x40] sm:$0xff]
    %v548 = vld [vmem:[#allocation13 + $0x48] sm:$0xff]
    %v549 = vld [vmem:[#allocation13 + $0x50] sm:$0xff]
    %v550 = vld [vmem:[#allocation13 + $0x58] sm:$0xff]
    %v551 = vld [vmem:[#allocation13 + $0x60] sm:$0xff]
    %v552 = vld [vmem:[#allocation13 + $0x68] sm:$0xff]
    %v553 = vld [vmem:[#allocation13 + $0x70] sm:$0xff]
    %v554 = vld [vmem:[#allocation13 + $0x78] sm:$0xff]
    %555 = vmatpush.msra.mxu0 0.0
    %556 = vmatpush.msra.mxu0 0.0
    %557 = vmatpush.msra.mxu0 0.0
    %558 = vmatpush.msra.mxu0 0.0
    %559 = vmatpush.msra.mxu0 0.0
    %560 = vmatpush.msra.mxu0 0.0
    %561 = vmatpush.msra.mxu0 0.0
    %562 = vmatpush.msra.mxu0 0.0
    %563 = vmatpush.msra.mxu0 %v553
    %564 = vmatpush.msra.mxu0 %v551
    %565 = vmatpush.msra.mxu0 %v549
    %566 = vmatpush.msra.mxu0 %v547
    %567 = vmatpush.msra.mxu0 %v545
    %568 = vmatpush.msra.mxu0 %v543
    %569 = vmatpush.msra.mxu0 %v541
    %570 = vmatpush.msra.mxu0 %v539
    %571 = vmatmul.f32.gmra.mxu0 %v447
    %v572 = vpop.f32.mrf.mxu0
    %v573 = vadd.f32 0.0, %v572
    %574 = vdwg.mxu0
    %575 = vmatpush.msra.mxu0 0.0
    %576 = vmatpush.msra.mxu0 0.0
    %577 = vmatpush.msra.mxu0 0.0
    %578 = vmatpush.msra.mxu0 0.0
    %579 = vmatpush.msra.mxu0 0.0
    %580 = vmatpush.msra.mxu0 0.0
    %581 = vmatpush.msra.mxu0 0.0
    %582 = vmatpush.msra.mxu0 0.0
    %583 = vmatpush.msra.mxu0 %v554
    %584 = vmatpush.msra.mxu0 %v552
    %585 = vmatpush.msra.mxu0 %v550
    %586 = vmatpush.msra.mxu0 %v548
    %587 = vmatpush.msra.mxu0 %v546
    %588 = vmatpush.msra.mxu0 %v544
    %589 = vmatpush.msra.mxu0 %v542
    %590 = vmatpush.msra.mxu0 %v540
    %591 = vmatmul.f32.gmra.mxu0 %v447
    %v592 = vpop.f32.mrf.mxu0
    %v593 = vadd.f32 0.0, %v592
    %594 = vdwg.mxu0
    %v597 = vrot.slane %v573, 2
    %v598 = vrot.slane %v593, 2
    %v601 = vadd.f32 %v404, %v597
    %v602 = vadd.f32 %v427, %v598
    %v603 = vxor.u32 %v601, 2147483648
    %v604 = vmul.f32 %v603, 1.442695
    %v605 = vpow.pop %v604
    %v606 = vadd.f32 %v605, 1.0
    %v607 = vrcp.pop %v606
    %v608 = vmul.f32 %v606, %v607
    %v609 = vsub.f32 1.0, %v608
    %v610 = vmul.f32 %v607, %v609
    %v611 = vadd.f32 %v607, %v610
    %vm612 = vweird.f32 %v606
    %vm613 = vweird.f32 %v607
    %vm614 = vmor %vm612, %vm613
    %v615 = vsel %vm614, %v607, %v611
    %v616 = vand.u32 2147483647, %v606
    %vm617 = vcmp.eq.f32.partialorder %v616, 8.507059e+37
    %v618 = vand.u32 %v606, 2147483648
    %v619 = vor.u32 1.1754944e-38, %v618
    %v620 = vsel %vm617, %v619, %v615
    %v621 = vmul.f32 1.0, %v620
    %v622 = vtanh.pop %v602
    %v623 = vxor.u32 %v602, 2147483648
    %v624 = vmul.f32 %v623, 1.442695
    %v625 = vpow.pop %v624
    %v626 = vadd.f32 %v625, 1.0
    %v627 = vrcp.pop %v626
    %v628 = vmul.f32 %v626, %v627
    %v629 = vsub.f32 1.0, %v628
    %v630 = vmul.f32 %v627, %v629
    %v631 = vadd.f32 %v627, %v630
    %vm632 = vweird.f32 %v626
    %vm633 = vweird.f32 %v627
    %vm634 = vmor %vm632, %vm633
    %v635 = vsel %vm634, %v627, %v631
    %v636 = vand.u32 2147483647, %v626
    %vm637 = vcmp.eq.f32.partialorder %v636, 8.507059e+37
    %v638 = vand.u32 %v626, 2147483648
    %v639 = vor.u32 1.1754944e-38, %v638
    %v640 = vsel %vm637, %v639, %v635
    %v641 = vmul.f32 1.0, %v640
    %v642 = vmul.f32 %v621, 0.0
    %v643 = vmul.f32 %v621, %v622
    %645 = vrot.lane.b32.xlu0 %v643, 64
    %v646 = vpop.permute.xlu0 %645
    %v648 = vadd.f32 %v642, %v646
    %v649 = vtanh.pop %v648
    %v650 = vmul.f32 %v641, %v649
    %652 = vrot.lane.b32.xlu0 %v538, 64
    %v653 = vpop.permute.xlu0 %652
    %v654 = vsel %vm445, %v653, 0
    %656 = vmatpush.msra.mxu0 0.0
    %657 = vmatpush.msra.mxu0 0.0
    %658 = vmatpush.msra.mxu0 0.0
    %659 = vmatpush.msra.mxu0 0.0
    %660 = vmatpush.msra.mxu0 0.0
    %661 = vmatpush.msra.mxu0 0.0
    %662 = vmatpush.msra.mxu0 0.0
    %663 = vmatpush.msra.mxu0 0.0
    %664 = vmatpush.msra.mxu0 %v443
    %665 = vmatpush.msra.mxu0 %v441
    %666 = vmatpush.msra.mxu0 %v439
    %667 = vmatpush.msra.mxu0 %v437
    %668 = vmatpush.msra.mxu0 %v435
    %669 = vmatpush.msra.mxu0 %v433
    %670 = vmatpush.msra.mxu0 %v431
    %671 = vmatpush.msra.mxu0 %v429
    %672 = vmatmul.f32.gmra.mxu0 %v654
    %v673 = vpop.f32.mrf.mxu0
    %v674 = vadd.f32 0.0, %v673
    %675 = vdwg.mxu0
    %676 = vmatpush.msra.mxu0 0.0
    %677 = vmatpush.msra.mxu0 0.0
    %678 = vmatpush.msra.mxu0 0.0
    %679 = vmatpush.msra.mxu0 0.0
    %680 = vmatpush.msra.mxu0 0.0
    %681 = vmatpush.msra.mxu0 0.0
    %682 = vmatpush.msra.mxu0 0.0
    %683 = vmatpush.msra.mxu0 0.0
    %684 = vmatpush.msra.mxu0 %v444
    %685 = vmatpush.msra.mxu0 %v442
    %686 = vmatpush.msra.mxu0 %v440
    %687 = vmatpush.msra.mxu0 %v438
    %688 = vmatpush.msra.mxu0 %v436
    %689 = vmatpush.msra.mxu0 %v434
    %690 = vmatpush.msra.mxu0 %v432
    %691 = vmatpush.msra.mxu0 %v430
    %692 = vmatmul.f32.gmra.mxu0 %v654
    %v693 = vpop.f32.mrf.mxu0
    %v694 = vadd.f32 0.0, %v693
    %695 = vdwg.mxu0
    %v698 = vrot.slane %v674, 6
    %v699 = vrot.slane %v694, 6
    %v702 = vadd.f32 %v355, %v698
    %v703 = vadd.f32 %v378, %v699
    %v704 = vxor.u32 %v702, 2147483648
    %v705 = vmul.f32 %v704, 1.442695
    %v706 = vpow.pop %v705
    %v707 = vadd.f32 %v706, 1.0
    %v708 = vrcp.pop %v707
    %v709 = vmul.f32 %v707, %v708
    %v710 = vsub.f32 1.0, %v709
    %v711 = vmul.f32 %v708, %v710
    %v712 = vadd.f32 %v708, %v711
    %vm713 = vweird.f32 %v707
    %vm714 = vweird.f32 %v708
    %vm715 = vmor %vm713, %vm714
    %v716 = vsel %vm715, %v708, %v712
    %v717 = vand.u32 2147483647, %v707
    %vm718 = vcmp.eq.f32.partialorder %v717, 8.507059e+37
    %v719 = vand.u32 %v707, 2147483648
    %v720 = vor.u32 1.1754944e-38, %v719
    %v721 = vsel %vm718, %v720, %v716
    %v722 = vmul.f32 1.0, %v721
    %v723 = vtanh.pop %v703
    %v724 = vxor.u32 %v703, 2147483648
    %v725 = vmul.f32 %v724, 1.442695
    %v726 = vpow.pop %v725
    %v727 = vadd.f32 %v726, 1.0
    %v728 = vrcp.pop %v727
    %v729 = vmul.f32 %v727, %v728
    %v730 = vsub.f32 1.0, %v729
    %v731 = vmul.f32 %v728, %v730
    %v732 = vadd.f32 %v728, %v731
    %vm733 = vweird.f32 %v727
    %vm734 = vweird.f32 %v728
    %vm735 = vmor %vm733, %vm734
    %v736 = vsel %vm735, %v728, %v732
    %v737 = vand.u32 2147483647, %v727
    %vm738 = vcmp.eq.f32.partialorder %v737, 8.507059e+37
    %v739 = vand.u32 %v727, 2147483648
    %v740 = vor.u32 1.1754944e-38, %v739
    %v741 = vsel %vm738, %v740, %v736
    %v742 = vmul.f32 1.0, %v741
    %v744 = vrot.slane %v536, 6
    %v746 = vmul.f32 %v722, %v744
    %v747 = vmul.f32 %v722, %v723
    %749 = vrot.lane.b32.xlu0 %v747, 64
    %v750 = vpop.permute.xlu0 %749
    %v752 = vadd.f32 %v746, %v750
    %v753 = vtanh.pop %v752
    %v754 = vmul.f32 %v742, %v753
    %v756 = vrot.slane %v650, 6
    %757 = vrot.lane.b32.xlu0 %v756, 64
    %v758 = vpop.permute.xlu0 %757
    %v759 = vsel %vm445, %v758, 0
    %761 = vmatpush.msra.mxu0 0.0
    %762 = vmatpush.msra.mxu0 0.0
    %763 = vmatpush.msra.mxu0 0.0
    %764 = vmatpush.msra.mxu0 0.0
    %765 = vmatpush.msra.mxu0 0.0
    %766 = vmatpush.msra.mxu0 0.0
    %767 = vmatpush.msra.mxu0 0.0
    %768 = vmatpush.msra.mxu0 0.0
    %769 = vmatpush.msra.mxu0 %v553
    %770 = vmatpush.msra.mxu0 %v551
    %771 = vmatpush.msra.mxu0 %v549
    %772 = vmatpush.msra.mxu0 %v547
    %773 = vmatpush.msra.mxu0 %v545
    %774 = vmatpush.msra.mxu0 %v543
    %775 = vmatpush.msra.mxu0 %v541
    %776 = vmatpush.msra.mxu0 %v539
    %777 = vmatmul.f32.gmra.mxu0 %v759
    %v778 = vpop.f32.mrf.mxu0
    %v779 = vadd.f32 0.0, %v778
    %780 = vdwg.mxu0
    %781 = vmatpush.msra.mxu0 0.0
    %782 = vmatpush.msra.mxu0 0.0
    %783 = vmatpush.msra.mxu0 0.0
    %784 = vmatpush.msra.mxu0 0.0
    %785 = vmatpush.msra.mxu0 0.0
    %786 = vmatpush.msra.mxu0 0.0
    %787 = vmatpush.msra.mxu0 0.0
    %788 = vmatpush.msra.mxu0 0.0
    %789 = vmatpush.msra.mxu0 %v554
    %790 = vmatpush.msra.mxu0 %v552
    %791 = vmatpush.msra.mxu0 %v550
    %792 = vmatpush.msra.mxu0 %v548
    %793 = vmatpush.msra.mxu0 %v546
    %794 = vmatpush.msra.mxu0 %v544
    %795 = vmatpush.msra.mxu0 %v542
    %796 = vmatpush.msra.mxu0 %v540
    %797 = vmatmul.f32.gmra.mxu0 %v759
    %v798 = vpop.f32.mrf.mxu0
    %v799 = vadd.f32 0.0, %v798
    %800 = vdwg.mxu0
    %v803 = vrot.slane %v779, 4
    %v804 = vrot.slane %v799, 4
    %v807 = vadd.f32 %v404, %v803
    %v808 = vadd.f32 %v427, %v804
    %v809 = vxor.u32 %v807, 2147483648
    %v810 = vmul.f32 %v809, 1.442695
    %v811 = vpow.pop %v810
    %v812 = vadd.f32 %v811, 1.0
    %v813 = vrcp.pop %v812
    %v814 = vmul.f32 %v812, %v813
    %v815 = vsub.f32 1.0, %v814
    %v816 = vmul.f32 %v813, %v815
    %v817 = vadd.f32 %v813, %v816
    %vm818 = vweird.f32 %v812
    %vm819 = vweird.f32 %v813
    %vm820 = vmor %vm818, %vm819
    %v821 = vsel %vm820, %v813, %v817
    %v822 = vand.u32 2147483647, %v812
    %vm823 = vcmp.eq.f32.partialorder %v822, 8.507059e+37
    %v824 = vand.u32 %v812, 2147483648
    %v825 = vor.u32 1.1754944e-38, %v824
    %v826 = vsel %vm823, %v825, %v821
    %v827 = vmul.f32 1.0, %v826
    %v828 = vtanh.pop %v808
    %v829 = vxor.u32 %v808, 2147483648
    %v830 = vmul.f32 %v829, 1.442695
    %v831 = vpow.pop %v830
    %v832 = vadd.f32 %v831, 1.0
    %v833 = vrcp.pop %v832
    %v834 = vmul.f32 %v832, %v833
    %v835 = vsub.f32 1.0, %v834
    %v836 = vmul.f32 %v833, %v835
    %v837 = vadd.f32 %v833, %v836
    %vm838 = vweird.f32 %v832
    %vm839 = vweird.f32 %v833
    %vm840 = vmor %vm838, %vm839
    %v841 = vsel %vm840, %v833, %v837
    %v842 = vand.u32 2147483647, %v832
    %vm843 = vcmp.eq.f32.partialorder %v842, 8.507059e+37
    %v844 = vand.u32 %v832, 2147483648
    %v845 = vor.u32 1.1754944e-38, %v844
    %v846 = vsel %vm843, %v845, %v841
    %v847 = vmul.f32 1.0, %v846
    %v849 = vrot.slane %v648, 2
    %v851 = vmul.f32 %v827, %v849
    %v852 = vmul.f32 %v827, %v828
    %854 = vrot.lane.b32.xlu0 %v852, 64
    %v855 = vpop.permute.xlu0 %854
    %v857 = vadd.f32 %v851, %v855
    %v858 = vtanh.pop %v857
    %v859 = vmul.f32 %v847, %v858
    %v861 = vrot.slane %v754, 2
    %862 = vrot.lane.b32.xlu0 %v861, 64
    %v863 = vpop.permute.xlu0 %862
    %v864 = vsel %vm445, %v863, 0
    %866 = vmatpush.msra.mxu0 0.0
    %867 = vmatpush.msra.mxu0 0.0
    %868 = vmatpush.msra.mxu0 0.0
    %869 = vmatpush.msra.mxu0 0.0
    %870 = vmatpush.msra.mxu0 0.0
    %871 = vmatpush.msra.mxu0 0.0
    %872 = vmatpush.msra.mxu0 0.0
    %873 = vmatpush.msra.mxu0 0.0
    %874 = vmatpush.msra.mxu0 %v443
    %875 = vmatpush.msra.mxu0 %v441
    %876 = vmatpush.msra.mxu0 %v439
    %877 = vmatpush.msra.mxu0 %v437
    %878 = vmatpush.msra.mxu0 %v435
    %879 = vmatpush.msra.mxu0 %v433
    %880 = vmatpush.msra.mxu0 %v431
    %881 = vmatpush.msra.mxu0 %v429
    %882 = vmatmul.f32.gmra.mxu0 %v864
    %v883 = vpop.f32.mrf.mxu0
    %v884 = vadd.f32 0.0, %v883
    %885 = vdwg.mxu0
    %886 = vmatpush.msra.mxu0 0.0
    %887 = vmatpush.msra.mxu0 0.0
    %888 = vmatpush.msra.mxu0 0.0
    %889 = vmatpush.msra.mxu0 0.0
    %890 = vmatpush.msra.mxu0 0.0
    %891 = vmatpush.msra.mxu0 0.0
    %892 = vmatpush.msra.mxu0 0.0
    %893 = vmatpush.msra.mxu0 0.0
    %894 = vmatpush.msra.mxu0 %v444
    %895 = vmatpush.msra.mxu0 %v442
    %896 = vmatpush.msra.mxu0 %v440
    %897 = vmatpush.msra.mxu0 %v438
    %898 = vmatpush.msra.mxu0 %v436
    %899 = vmatpush.msra.mxu0 %v434
    %900 = vmatpush.msra.mxu0 %v432
    %901 = vmatpush.msra.mxu0 %v430
    %902 = vmatmul.f32.gmra.mxu0 %v864
    %v903 = vpop.f32.mrf.mxu0
    %v904 = vadd.f32 0.0, %v903
    %905 = vdwg.mxu0
    %v908 = vrot.slane %v884, 4
    %v909 = vrot.slane %v904, 4
    %v912 = vadd.f32 %v355, %v908
    %v913 = vadd.f32 %v378, %v909
    %v914 = vxor.u32 %v912, 2147483648
    %v915 = vmul.f32 %v914, 1.442695
    %v916 = vpow.pop %v915
    %v917 = vadd.f32 %v916, 1.0
    %v918 = vrcp.pop %v917
    %v919 = vmul.f32 %v917, %v918
    %v920 = vsub.f32 1.0, %v919
    %v921 = vmul.f32 %v918, %v920
    %v922 = vadd.f32 %v918, %v921
    %vm923 = vweird.f32 %v917
    %vm924 = vweird.f32 %v918
    %vm925 = vmor %vm923, %vm924
    %v926 = vsel %vm925, %v918, %v922
    %v927 = vand.u32 2147483647, %v917
    %vm928 = vcmp.eq.f32.partialorder %v927, 8.507059e+37
    %v929 = vand.u32 %v917, 2147483648
    %v930 = vor.u32 1.1754944e-38, %v929
    %v931 = vsel %vm928, %v930, %v926
    %v932 = vmul.f32 1.0, %v931
    %v933 = vtanh.pop %v913
    %v934 = vxor.u32 %v913, 2147483648
    %v935 = vmul.f32 %v934, 1.442695
    %v936 = vpow.pop %v935
    %v937 = vadd.f32 %v936, 1.0
    %v938 = vrcp.pop %v937
    %v939 = vmul.f32 %v937, %v938
    %v940 = vsub.f32 1.0, %v939
    %v941 = vmul.f32 %v938, %v940
    %v942 = vadd.f32 %v938, %v941
    %vm943 = vweird.f32 %v937
    %vm944 = vweird.f32 %v938
    %vm945 = vmor %vm943, %vm944
    %v946 = vsel %vm945, %v938, %v942
    %v947 = vand.u32 2147483647, %v937
    %vm948 = vcmp.eq.f32.partialorder %v947, 8.507059e+37
    %v949 = vand.u32 %v937, 2147483648
    %v950 = vor.u32 1.1754944e-38, %v949
    %v951 = vsel %vm948, %v950, %v946
    %v952 = vmul.f32 1.0, %v951
    %v954 = vrot.slane %v752, 6
    %v956 = vmul.f32 %v932, %v954
    %v957 = vmul.f32 %v932, %v933
    %959 = vrot.lane.b32.xlu0 %v957, 64
    %v960 = vpop.permute.xlu0 %959
    %v962 = vadd.f32 %v956, %v960
    %v963 = vtanh.pop %v962
    %v964 = vmul.f32 %v952, %v963
    %v966 = vrot.slane %v859, 4
    %967 = vrot.lane.b32.xlu0 %v966, 64
    %v968 = vpop.permute.xlu0 %967
    %v969 = vsel %vm445, %v968, 0
    %971 = vmatpush.msra.mxu0 0.0
    %972 = vmatpush.msra.mxu0 0.0
    %973 = vmatpush.msra.mxu0 0.0
    %974 = vmatpush.msra.mxu0 0.0
    %975 = vmatpush.msra.mxu0 0.0
    %976 = vmatpush.msra.mxu0 0.0
    %977 = vmatpush.msra.mxu0 0.0
    %978 = vmatpush.msra.mxu0 0.0
    %979 = vmatpush.msra.mxu0 %v553
    %980 = vmatpush.msra.mxu0 %v551
    %981 = vmatpush.msra.mxu0 %v549
    %982 = vmatpush.msra.mxu0 %v547
    %983 = vmatpush.msra.mxu0 %v545
    %984 = vmatpush.msra.mxu0 %v543
    %985 = vmatpush.msra.mxu0 %v541
    %986 = vmatpush.msra.mxu0 %v539
    %987 = vmatmul.f32.gmra.mxu0 %v969
    %v988 = vpop.f32.mrf.mxu0
    %v989 = vadd.f32 0.0, %v988
    %990 = vdwg.mxu0
    %991 = vmatpush.msra.mxu0 0.0
    %992 = vmatpush.msra.mxu0 0.0
    %993 = vmatpush.msra.mxu0 0.0
    %994 = vmatpush.msra.mxu0 0.0
    %995 = vmatpush.msra.mxu0 0.0
    %996 = vmatpush.msra.mxu0 0.0
    %997 = vmatpush.msra.mxu0 0.0
    %998 = vmatpush.msra.mxu0 0.0
    %999 = vmatpush.msra.mxu0 %v554
    %1000 = vmatpush.msra.mxu0 %v552
    %1001 = vmatpush.msra.mxu0 %v550
    %1002 = vmatpush.msra.mxu0 %v548
    %1003 = vmatpush.msra.mxu0 %v546
    %1004 = vmatpush.msra.mxu0 %v544
    %1005 = vmatpush.msra.mxu0 %v542
    %1006 = vmatpush.msra.mxu0 %v540
    %1007 = vmatmul.f32.gmra.mxu0 %v969
    %v1008 = vpop.f32.mrf.mxu0
    %v1009 = vadd.f32 0.0, %v1008
    %1010 = vdwg.mxu0
    %v1013 = vrot.slane %v989, 6
    %v1014 = vrot.slane %v1009, 6
    %v1017 = vadd.f32 %v404, %v1013
    %v1018 = vadd.f32 %v427, %v1014
    %v1019 = vxor.u32 %v1017, 2147483648
    %v1020 = vmul.f32 %v1019, 1.442695
    %v1021 = vpow.pop %v1020
    %v1022 = vadd.f32 %v1021, 1.0
    %v1023 = vrcp.pop %v1022
    %v1024 = vmul.f32 %v1022, %v1023
    %v1025 = vsub.f32 1.0, %v1024
    %v1026 = vmul.f32 %v1023, %v1025
    %v1027 = vadd.f32 %v1023, %v1026
    %vm1028 = vweird.f32 %v1022
    %vm1029 = vweird.f32 %v1023
    %vm1030 = vmor %vm1028, %vm1029
    %v1031 = vsel %vm1030, %v1023, %v1027
    %v1032 = vand.u32 2147483647, %v1022
    %vm1033 = vcmp.eq.f32.partialorder %v1032, 8.507059e+37
    %v1034 = vand.u32 %v1022, 2147483648
    %v1035 = vor.u32 1.1754944e-38, %v1034
    %v1036 = vsel %vm1033, %v1035, %v1031
    %v1037 = vmul.f32 1.0, %v1036
    %v1038 = vtanh.pop %v1018
    %v1039 = vxor.u32 %v1018, 2147483648
    %v1040 = vmul.f32 %v1039, 1.442695
    %v1041 = vpow.pop %v1040
    %v1042 = vadd.f32 %v1041, 1.0
    %v1043 = vrcp.pop %v1042
    %v1044 = vmul.f32 %v1042, %v1043
    %v1045 = vsub.f32 1.0, %v1044
    %v1046 = vmul.f32 %v1043, %v1045
    %v1047 = vadd.f32 %v1043, %v1046
    %vm1048 = vweird.f32 %v1042
    %vm1049 = vweird.f32 %v1043
    %vm1050 = vmor %vm1048, %vm1049
    %v1051 = vsel %vm1050, %v1043, %v1047
    %v1052 = vand.u32 2147483647, %v1042
    %vm1053 = vcmp.eq.f32.partialorder %v1052, 8.507059e+37
    %v1054 = vand.u32 %v1042, 2147483648
    %v1055 = vor.u32 1.1754944e-38, %v1054
    %v1056 = vsel %vm1053, %v1055, %v1051
    %v1057 = vmul.f32 1.0, %v1056
    %v1059 = vrot.slane %v857, 2
    %v1061 = vmul.f32 %v1037, %v1059
    %v1062 = vmul.f32 %v1037, %v1038
    %1064 = vrot.lane.b32.xlu0 %v1062, 64
    %v1065 = vpop.permute.xlu0 %1064
    %v1067 = vadd.f32 %v1061, %v1065
    %v1068 = vtanh.pop %v1067
    %v1069 = vmul.f32 %v1057, %v1068
    %v1071 = vrot.slane %v964, 4
    %1072 = vrot.lane.b32.xlu0 %v1071, 64
    %v1073 = vpop.permute.xlu0 %1072
    %v1074 = vsel %vm445, %v1073, 0
    %1076 = vmatpush.msra.mxu0 0.0
    %1077 = vmatpush.msra.mxu0 0.0
    %1078 = vmatpush.msra.mxu0 0.0
    %1079 = vmatpush.msra.mxu0 0.0
    %1080 = vmatpush.msra.mxu0 0.0
    %1081 = vmatpush.msra.mxu0 0.0
    %1082 = vmatpush.msra.mxu0 0.0
    %1083 = vmatpush.msra.mxu0 0.0
    %1084 = vmatpush.msra.mxu0 %v443
    %1085 = vmatpush.msra.mxu0 %v441
    %1086 = vmatpush.msra.mxu0 %v439
    %1087 = vmatpush.msra.mxu0 %v437
    %1088 = vmatpush.msra.mxu0 %v435
    %1089 = vmatpush.msra.mxu0 %v433
    %1090 = vmatpush.msra.mxu0 %v431
    %1091 = vmatpush.msra.mxu0 %v429
    %1092 = vmatmul.f32.gmra.mxu0 %v1074
    %v1093 = vpop.f32.mrf.mxu0
    %v1094 = vadd.f32 0.0, %v1093
    %1095 = vdwg.mxu0
    %1096 = vmatpush.msra.mxu0 0.0
    %1097 = vmatpush.msra.mxu0 0.0
    %1098 = vmatpush.msra.mxu0 0.0
    %1099 = vmatpush.msra.mxu0 0.0
    %1100 = vmatpush.msra.mxu0 0.0
    %1101 = vmatpush.msra.mxu0 0.0
    %1102 = vmatpush.msra.mxu0 0.0
    %1103 = vmatpush.msra.mxu0 0.0
    %1104 = vmatpush.msra.mxu0 %v444
    %1105 = vmatpush.msra.mxu0 %v442
    %1106 = vmatpush.msra.mxu0 %v440
    %1107 = vmatpush.msra.mxu0 %v438
    %1108 = vmatpush.msra.mxu0 %v436
    %1109 = vmatpush.msra.mxu0 %v434
    %1110 = vmatpush.msra.mxu0 %v432
    %1111 = vmatpush.msra.mxu0 %v430
    %1112 = vmatmul.f32.gmra.mxu0 %v1074
    %v1113 = vpop.f32.mrf.mxu0
    %v1114 = vadd.f32 0.0, %v1113
    %1115 = vdwg.mxu0
    %v1118 = vrot.slane %v1094, 2
    %v1119 = vrot.slane %v1114, 2
    %v1122 = vadd.f32 %v355, %v1118
    %v1123 = vadd.f32 %v378, %v1119
    %v1124 = vxor.u32 %v1122, 2147483648
    %v1125 = vmul.f32 %v1124, 1.442695
    %v1126 = vpow.pop %v1125
    %v1127 = vadd.f32 %v1126, 1.0
    %v1128 = vrcp.pop %v1127
    %v1129 = vmul.f32 %v1127, %v1128
    %v1130 = vsub.f32 1.0, %v1129
    %v1131 = vmul.f32 %v1128, %v1130
    %v1132 = vadd.f32 %v1128, %v1131
    %vm1133 = vweird.f32 %v1127
    %vm1134 = vweird.f32 %v1128
    %vm1135 = vmor %vm1133, %vm1134
    %v1136 = vsel %vm1135, %v1128, %v1132
    %v1137 = vand.u32 2147483647, %v1127
    %vm1138 = vcmp.eq.f32.partialorder %v1137, 8.507059e+37
    %v1139 = vand.u32 %v1127, 2147483648
    %v1140 = vor.u32 1.1754944e-38, %v1139
    %v1141 = vsel %vm1138, %v1140, %v1136
    %v1142 = vmul.f32 1.0, %v1141
    %v1143 = vtanh.pop %v1123
    %v1144 = vxor.u32 %v1123, 2147483648
    %v1145 = vmul.f32 %v1144, 1.442695
    %v1146 = vpow.pop %v1145
    %v1147 = vadd.f32 %v1146, 1.0
    %v1148 = vrcp.pop %v1147
    %v1149 = vmul.f32 %v1147, %v1148
    %v1150 = vsub.f32 1.0, %v1149
    %v1151 = vmul.f32 %v1148, %v1150
    %v1152 = vadd.f32 %v1148, %v1151
    %vm1153 = vweird.f32 %v1147
    %vm1154 = vweird.f32 %v1148
    %vm1155 = vmor %vm1153, %vm1154
    %v1156 = vsel %vm1155, %v1148, %v1152
    %v1157 = vand.u32 2147483647, %v1147
    %vm1158 = vcmp.eq.f32.partialorder %v1157, 8.507059e+37
    %v1159 = vand.u32 %v1147, 2147483648
    %v1160 = vor.u32 1.1754944e-38, %v1159
    %v1161 = vsel %vm1158, %v1160, %v1156
    %v1162 = vmul.f32 1.0, %v1161
    %v1164 = vrot.slane %v962, 6
    %v1166 = vmul.f32 %v1142, %v1164
    %v1167 = vmul.f32 %v1142, %v1143
    %1169 = vrot.lane.b32.xlu0 %v1167, 64
    %v1170 = vpop.permute.xlu0 %1169
    %v1172 = vadd.f32 %v1166, %v1170
    %v1173 = vtanh.pop %v1172
    %v1174 = vmul.f32 %v1162, %v1173
    %v1176 = vrot.slane %v1069, 2
    %1177 = vrot.lane.b32.xlu0 %v1176, 64
    %v1178 = vpop.permute.xlu0 %1177
    %v1179 = vsel %vm445, %v1178, 0
    %1181 = vmatpush.msra.mxu0 0.0
    %1182 = vmatpush.msra.mxu0 0.0
    %1183 = vmatpush.msra.mxu0 0.0
    %1184 = vmatpush.msra.mxu0 0.0
    %1185 = vmatpush.msra.mxu0 0.0
    %1186 = vmatpush.msra.mxu0 0.0
    %1187 = vmatpush.msra.mxu0 0.0
    %1188 = vmatpush.msra.mxu0 0.0
    %1189 = vmatpush.msra.mxu0 %v553
    %1190 = vmatpush.msra.mxu0 %v551
    %1191 = vmatpush.msra.mxu0 %v549
    %1192 = vmatpush.msra.mxu0 %v547
    %1193 = vmatpush.msra.mxu0 %v545
    %1194 = vmatpush.msra.mxu0 %v543
    %1195 = vmatpush.msra.mxu0 %v541
    %1196 = vmatpush.msra.mxu0 %v539
    %1197 = vmatmul.f32.gmra.mxu0 %v1179
    %v1198 = vpop.f32.mrf.mxu0
    %v1199 = vadd.f32 0.0, %v1198
    %1200 = vdwg.mxu0
    %1201 = vmatpush.msra.mxu0 0.0
    %1202 = vmatpush.msra.mxu0 0.0
    %1203 = vmatpush.msra.mxu0 0.0
    %1204 = vmatpush.msra.mxu0 0.0
    %1205 = vmatpush.msra.mxu0 0.0
    %1206 = vmatpush.msra.mxu0 0.0
    %1207 = vmatpush.msra.mxu0 0.0
    %1208 = vmatpush.msra.mxu0 0.0
    %1209 = vmatpush.msra.mxu0 %v554
    %1210 = vmatpush.msra.mxu0 %v552
    %1211 = vmatpush.msra.mxu0 %v550
    %1212 = vmatpush.msra.mxu0 %v548
    %1213 = vmatpush.msra.mxu0 %v546
    %1214 = vmatpush.msra.mxu0 %v544
    %1215 = vmatpush.msra.mxu0 %v542
    %1216 = vmatpush.msra.mxu0 %v540
    %1217 = vmatmul.f32.gmra.mxu0 %v1179
    %v1218 = vpop.f32.mrf.mxu0
    %v1219 = vadd.f32 0.0, %v1218
    %1220 = vdwg.mxu0
    %v1221 = vadd.f32 %v404, %v1199
    %v1222 = vadd.f32 %v427, %v1219
    %v1223 = vxor.u32 %v1221, 2147483648
    %v1224 = vmul.f32 %v1223, 1.442695
    %v1225 = vpow.pop %v1224
    %v1226 = vadd.f32 %v1225, 1.0
    %v1227 = vrcp.pop %v1226
    %v1228 = vmul.f32 %v1226, %v1227
    %v1229 = vsub.f32 1.0, %v1228
    %v1230 = vmul.f32 %v1227, %v1229
    %v1231 = vadd.f32 %v1227, %v1230
    %vm1232 = vweird.f32 %v1226
    %vm1233 = vweird.f32 %v1227
    %vm1234 = vmor %vm1232, %vm1233
    %v1235 = vsel %vm1234, %v1227, %v1231
    %v1236 = vand.u32 2147483647, %v1226
    %vm1237 = vcmp.eq.f32.partialorder %v1236, 8.507059e+37
    %v1238 = vand.u32 %v1226, 2147483648
    %v1239 = vor.u32 1.1754944e-38, %v1238
    %v1240 = vsel %vm1237, %v1239, %v1235
    %v1241 = vmul.f32 1.0, %v1240
    %v1242 = vtanh.pop %v1222
    %v1243 = vxor.u32 %v1222, 2147483648
    %v1244 = vmul.f32 %v1243, 1.442695
    %v1245 = vpow.pop %v1244
    %v1246 = vadd.f32 %v1245, 1.0
    %v1247 = vrcp.pop %v1246
    %v1248 = vmul.f32 %v1246, %v1247
    %v1249 = vsub.f32 1.0, %v1248
    %v1250 = vmul.f32 %v1247, %v1249
    %v1251 = vadd.f32 %v1247, %v1250
    %vm1252 = vweird.f32 %v1246
    %vm1253 = vweird.f32 %v1247
    %vm1254 = vmor %vm1252, %vm1253
    %v1255 = vsel %vm1254, %v1247, %v1251
    %v1256 = vand.u32 2147483647, %v1246
    %vm1257 = vcmp.eq.f32.partialorder %v1256, 8.507059e+37
    %v1258 = vand.u32 %v1246, 2147483648
    %v1259 = vor.u32 1.1754944e-38, %v1258
    %v1260 = vsel %vm1257, %v1259, %v1255
    %v1261 = vmul.f32 1.0, %v1260
    %v1263 = vrot.slane %v1067, 2
    %v1265 = vmul.f32 %v1241, %v1263
    %v1266 = vmul.f32 %v1241, %v1242
    %1268 = vrot.lane.b32.xlu0 %v1266, 64
    %v1269 = vpop.permute.xlu0 %1268
    %v1271 = vadd.f32 %v1265, %v1269
    %v1272 = vtanh.pop %v1271
    %v1273 = vmul.f32 %v1261, %v1272
    %v1275 = vrot.slane %v1174, 6
    %1276 = vrot.lane.b32.xlu0 %v1275, 64
    %v1277 = vpop.permute.xlu0 %1276
    %v1278 = vsel %vm445, %v1277, 0
    %1280 = vmatpush.msra.mxu0 0.0
    %1281 = vmatpush.msra.mxu0 0.0
    %1282 = vmatpush.msra.mxu0 0.0
    %1283 = vmatpush.msra.mxu0 0.0
    %1284 = vmatpush.msra.mxu0 0.0
    %1285 = vmatpush.msra.mxu0 0.0
    %1286 = vmatpush.msra.mxu0 0.0
    %1287 = vmatpush.msra.mxu0 0.0
    %1288 = vmatpush.msra.mxu0 %v443
    %1289 = vmatpush.msra.mxu0 %v441
    %1290 = vmatpush.msra.mxu0 %v439
    %1291 = vmatpush.msra.mxu0 %v437
    %1292 = vmatpush.msra.mxu0 %v435
    %1293 = vmatpush.msra.mxu0 %v433
    %1294 = vmatpush.msra.mxu0 %v431
    %1295 = vmatpush.msra.mxu0 %v429
    %1296 = vmatmul.f32.gmra.mxu0 %v1278
    %v1297 = vpop.f32.mrf.mxu0
    %v1298 = vadd.f32 0.0, %v1297
    %1299 = vdwg.mxu0
    %1300 = vmatpush.msra.mxu0 0.0
    %1301 = vmatpush.msra.mxu0 0.0
    %1302 = vmatpush.msra.mxu0 0.0
    %1303 = vmatpush.msra.mxu0 0.0
    %1304 = vmatpush.msra.mxu0 0.0
    %1305 = vmatpush.msra.mxu0 0.0
    %1306 = vmatpush.msra.mxu0 0.0
    %1307 = vmatpush.msra.mxu0 0.0
    %1308 = vmatpush.msra.mxu0 %v444
    %1309 = vmatpush.msra.mxu0 %v442
    %1310 = vmatpush.msra.mxu0 %v440
    %1311 = vmatpush.msra.mxu0 %v438
    %1312 = vmatpush.msra.mxu0 %v436
    %1313 = vmatpush.msra.mxu0 %v434
    %1314 = vmatpush.msra.mxu0 %v432
    %1315 = vmatpush.msra.mxu0 %v430
    %1316 = vmatmul.f32.gmra.mxu0 %v1278
    %v1317 = vpop.f32.mrf.mxu0
    %v1318 = vadd.f32 0.0, %v1317
    %1319 = vdwg.mxu0
    %v1320 = vadd.f32 %v358, %v1298
    %v1321 = vadd.f32 %v381, %v1318
    %v1322 = vxor.u32 %v1320, 2147483648
    %v1323 = vmul.f32 %v1322, 1.442695
    %v1324 = vpow.pop %v1323
    %v1325 = vadd.f32 %v1324, 1.0
    %v1326 = vrcp.pop %v1325
    %v1327 = vmul.f32 %v1325, %v1326
    %v1328 = vsub.f32 1.0, %v1327
    %v1329 = vmul.f32 %v1326, %v1328
    %v1330 = vadd.f32 %v1326, %v1329
    %vm1331 = vweird.f32 %v1325
    %vm1332 = vweird.f32 %v1326
    %vm1333 = vmor %vm1331, %vm1332
    %v1334 = vsel %vm1333, %v1326, %v1330
    %v1335 = vand.u32 2147483647, %v1325
    %vm1336 = vcmp.eq.f32.partialorder %v1335, 8.507059e+37
    %v1337 = vand.u32 %v1325, 2147483648
    %v1338 = vor.u32 1.1754944e-38, %v1337
    %v1339 = vsel %vm1336, %v1338, %v1334
    %v1340 = vmul.f32 1.0, %v1339
    %v1341 = vtanh.pop %v1321
    %v1342 = vxor.u32 %v1321, 2147483648
    %v1343 = vmul.f32 %v1342, 1.442695
    %v1344 = vpow.pop %v1343
    %v1345 = vadd.f32 %v1344, 1.0
    %v1346 = vrcp.pop %v1345
    %v1347 = vmul.f32 %v1345, %v1346
    %v1348 = vsub.f32 1.0, %v1347
    %v1349 = vmul.f32 %v1346, %v1348
    %v1350 = vadd.f32 %v1346, %v1349
    %vm1351 = vweird.f32 %v1345
    %vm1352 = vweird.f32 %v1346
    %vm1353 = vmor %vm1351, %vm1352
    %v1354 = vsel %vm1353, %v1346, %v1350
    %v1355 = vand.u32 2147483647, %v1345
    %vm1356 = vcmp.eq.f32.partialorder %v1355, 8.507059e+37
    %v1357 = vand.u32 %v1345, 2147483648
    %v1358 = vor.u32 1.1754944e-38, %v1357
    %v1359 = vsel %vm1356, %v1358, %v1354
    %v1360 = vmul.f32 1.0, %v1359
    %v1362 = vrot.slane %v1172, 6
    %v1364 = vmul.f32 %v1340, %v1362
    %v1365 = vmul.f32 %v1340, %v1341
    %1367 = vrot.lane.b32.xlu0 %v1365, 64
    %v1368 = vpop.permute.xlu0 %1367
    %v1370 = vadd.f32 %v1364, %v1368
    %v1371 = vtanh.pop %v1370
    %v1372 = vmul.f32 %v1360, %v1371
    %1374 = vrot.lane.b32.xlu0 %v1273, 64
    %v1375 = vpop.permute.xlu0 %1374
    %v1376 = vsel %vm445, %v1375, 0
    %1378 = vmatpush.msra.mxu0 0.0
    %1379 = vmatpush.msra.mxu0 0.0
    %1380 = vmatpush.msra.mxu0 0.0
    %1381 = vmatpush.msra.mxu0 0.0
    %1382 = vmatpush.msra.mxu0 0.0
    %1383 = vmatpush.msra.mxu0 0.0
    %1384 = vmatpush.msra.mxu0 0.0
    %1385 = vmatpush.msra.mxu0 0.0
    %1386 = vmatpush.msra.mxu0 %v553
    %1387 = vmatpush.msra.mxu0 %v551
    %1388 = vmatpush.msra.mxu0 %v549
    %1389 = vmatpush.msra.mxu0 %v547
    %1390 = vmatpush.msra.mxu0 %v545
    %1391 = vmatpush.msra.mxu0 %v543
    %1392 = vmatpush.msra.mxu0 %v541
    %1393 = vmatpush.msra.mxu0 %v539
    %1394 = vmatmul.f32.gmra.mxu0 %v1376
    %v1395 = vpop.f32.mrf.mxu0
    %v1396 = vadd.f32 0.0, %v1395
    %1397 = vdwg.mxu0
    %1398 = vmatpush.msra.mxu0 0.0
    %1399 = vmatpush.msra.mxu0 0.0
    %1400 = vmatpush.msra.mxu0 0.0
    %1401 = vmatpush.msra.mxu0 0.0
    %1402 = vmatpush.msra.mxu0 0.0
    %1403 = vmatpush.msra.mxu0 0.0
    %1404 = vmatpush.msra.mxu0 0.0
    %1405 = vmatpush.msra.mxu0 0.0
    %1406 = vmatpush.msra.mxu0 %v554
    %1407 = vmatpush.msra.mxu0 %v552
    %1408 = vmatpush.msra.mxu0 %v550
    %1409 = vmatpush.msra.mxu0 %v548
    %1410 = vmatpush.msra.mxu0 %v546
    %1411 = vmatpush.msra.mxu0 %v544
    %1412 = vmatpush.msra.mxu0 %v542
    %1413 = vmatpush.msra.mxu0 %v540
    %1414 = vmatmul.f32.gmra.mxu0 %v1376
    %v1415 = vpop.f32.mrf.mxu0
    %v1416 = vadd.f32 0.0, %v1415
    %1417 = vdwg.mxu0
    %v1420 = vrot.slane %v1396, 2
    %v1421 = vrot.slane %v1416, 2
    %v1424 = vadd.f32 %v401, %v1420
    %v1425 = vadd.f32 %v424, %v1421
    %v1426 = vxor.u32 %v1424, 2147483648
    %v1427 = vmul.f32 %v1426, 1.442695
    %v1428 = vpow.pop %v1427
    %v1429 = vadd.f32 %v1428, 1.0
    %v1430 = vrcp.pop %v1429
    %v1431 = vmul.f32 %v1429, %v1430
    %v1432 = vsub.f32 1.0, %v1431
    %v1433 = vmul.f32 %v1430, %v1432
    %v1434 = vadd.f32 %v1430, %v1433
    %vm1435 = vweird.f32 %v1429
    %vm1436 = vweird.f32 %v1430
    %vm1437 = vmor %vm1435, %vm1436
    %v1438 = vsel %vm1437, %v1430, %v1434
    %v1439 = vand.u32 2147483647, %v1429
    %vm1440 = vcmp.eq.f32.partialorder %v1439, 8.507059e+37
    %v1441 = vand.u32 %v1429, 2147483648
    %v1442 = vor.u32 1.1754944e-38, %v1441
    %v1443 = vsel %vm1440, %v1442, %v1438
    %v1444 = vmul.f32 1.0, %v1443
    %v1445 = vtanh.pop %v1425
    %v1446 = vxor.u32 %v1425, 2147483648
    %v1447 = vmul.f32 %v1446, 1.442695
    %v1448 = vpow.pop %v1447
    %v1449 = vadd.f32 %v1448, 1.0
    %v1450 = vrcp.pop %v1449
    %v1451 = vmul.f32 %v1449, %v1450
    %v1452 = vsub.f32 1.0, %v1451
    %v1453 = vmul.f32 %v1450, %v1452
    %v1454 = vadd.f32 %v1450, %v1453
    %vm1455 = vweird.f32 %v1449
    %vm1456 = vweird.f32 %v1450
    %vm1457 = vmor %vm1455, %vm1456
    %v1458 = vsel %vm1457, %v1450, %v1454
    %v1459 = vand.u32 2147483647, %v1449
    %vm1460 = vcmp.eq.f32.partialorder %v1459, 8.507059e+37
    %v1461 = vand.u32 %v1449, 2147483648
    %v1462 = vor.u32 1.1754944e-38, %v1461
    %v1463 = vsel %vm1460, %v1462, %v1458
    %v1464 = vmul.f32 1.0, %v1463
    %v1466 = vrot.slane %v1271, 2
    %v1468 = vmul.f32 %v1444, %v1466
    %v1469 = vmul.f32 %v1444, %v1445
    %1471 = vrot.lane.b32.xlu0 %v1469, 64
    %v1472 = vpop.permute.xlu0 %1471
    %v1474 = vadd.f32 %v1468, %v1472
    %v1475 = vtanh.pop %v1474
    %v1476 = vmul.f32 %v1464, %v1475
    %1478 = vrot.lane.b32.xlu0 %v1372, 64
    %v1479 = vpop.permute.xlu0 %1478
    %v1480 = vsel %vm445, %v1479, 0
    %1482 = vmatpush.msra.mxu0 0.0
    %1483 = vmatpush.msra.mxu0 0.0
    %1484 = vmatpush.msra.mxu0 0.0
    %1485 = vmatpush.msra.mxu0 0.0
    %1486 = vmatpush.msra.mxu0 0.0
    %1487 = vmatpush.msra.mxu0 0.0
    %1488 = vmatpush.msra.mxu0 0.0
    %1489 = vmatpush.msra.mxu0 0.0
    %1490 = vmatpush.msra.mxu0 %v443
    %1491 = vmatpush.msra.mxu0 %v441
    %1492 = vmatpush.msra.mxu0 %v439
    %1493 = vmatpush.msra.mxu0 %v437
    %1494 = vmatpush.msra.mxu0 %v435
    %1495 = vmatpush.msra.mxu0 %v433
    %1496 = vmatpush.msra.mxu0 %v431
    %1497 = vmatpush.msra.mxu0 %v429
    %1498 = vmatmul.f32.gmra.mxu0 %v1480
    %v1499 = vpop.f32.mrf.mxu0
    %v1500 = vadd.f32 0.0, %v1499
    %1501 = vdwg.mxu0
    %1502 = vmatpush.msra.mxu0 0.0
    %1503 = vmatpush.msra.mxu0 0.0
    %1504 = vmatpush.msra.mxu0 0.0
    %1505 = vmatpush.msra.mxu0 0.0
    %1506 = vmatpush.msra.mxu0 0.0
    %1507 = vmatpush.msra.mxu0 0.0
    %1508 = vmatpush.msra.mxu0 0.0
    %1509 = vmatpush.msra.mxu0 0.0
    %1510 = vmatpush.msra.mxu0 %v444
    %1511 = vmatpush.msra.mxu0 %v442
    %1512 = vmatpush.msra.mxu0 %v440
    %1513 = vmatpush.msra.mxu0 %v438
    %1514 = vmatpush.msra.mxu0 %v436
    %1515 = vmatpush.msra.mxu0 %v434
    %1516 = vmatpush.msra.mxu0 %v432
    %1517 = vmatpush.msra.mxu0 %v430
    %1518 = vmatmul.f32.gmra.mxu0 %v1480
    %v1519 = vpop.f32.mrf.mxu0
    %v1520 = vadd.f32 0.0, %v1519
    %1521 = vdwg.mxu0
    %v1524 = vrot.slane %v1500, 6
    %v1525 = vrot.slane %v1520, 6
    %v1528 = vadd.f32 %v358, %v1524
    %v1529 = vadd.f32 %v381, %v1525
    %v1530 = vxor.u32 %v1528, 2147483648
    %v1531 = vmul.f32 %v1530, 1.442695
    %v1532 = vpow.pop %v1531
    %v1533 = vadd.f32 %v1532, 1.0
    %v1534 = vrcp.pop %v1533
    %v1535 = vmul.f32 %v1533, %v1534
    %v1536 = vsub.f32 1.0, %v1535
    %v1537 = vmul.f32 %v1534, %v1536
    %v1538 = vadd.f32 %v1534, %v1537
    %vm1539 = vweird.f32 %v1533
    %vm1540 = vweird.f32 %v1534
    %vm1541 = vmor %vm1539, %vm1540
    %v1542 = vsel %vm1541, %v1534, %v1538
    %v1543 = vand.u32 2147483647, %v1533
    %vm1544 = vcmp.eq.f32.partialorder %v1543, 8.507059e+37
    %v1545 = vand.u32 %v1533, 2147483648
    %v1546 = vor.u32 1.1754944e-38, %v1545
    %v1547 = vsel %vm1544, %v1546, %v1542
    %v1548 = vmul.f32 1.0, %v1547
    %v1549 = vtanh.pop %v1529
    %v1550 = vxor.u32 %v1529, 2147483648
    %v1551 = vmul.f32 %v1550, 1.442695
    %v1552 = vpow.pop %v1551
    %v1553 = vadd.f32 %v1552, 1.0
    %v1554 = vrcp.pop %v1553
    %v1555 = vmul.f32 %v1553, %v1554
    %v1556 = vsub.f32 1.0, %v1555
    %v1557 = vmul.f32 %v1554, %v1556
    %v1558 = vadd.f32 %v1554, %v1557
    %vm1559 = vweird.f32 %v1553
    %vm1560 = vweird.f32 %v1554
    %vm1561 = vmor %vm1559, %vm1560
    %v1562 = vsel %vm1561, %v1554, %v1558
    %v1563 = vand.u32 2147483647, %v1553
    %vm1564 = vcmp.eq.f32.partialorder %v1563, 8.507059e+37
    %v1565 = vand.u32 %v1553, 2147483648
    %v1566 = vor.u32 1.1754944e-38, %v1565
    %v1567 = vsel %vm1564, %v1566, %v1562
    %v1568 = vmul.f32 1.0, %v1567
    %v1570 = vrot.slane %v1370, 6
    %v1572 = vmul.f32 %v1548, %v1570
    %v1573 = vmul.f32 %v1548, %v1549
    %1575 = vrot.lane.b32.xlu0 %v1573, 64
    %v1576 = vpop.permute.xlu0 %1575
    %v1578 = vadd.f32 %v1572, %v1576
    %v1579 = vtanh.pop %v1578
    %v1580 = vmul.f32 %v1568, %v1579
    %v1582 = vrot.slane %v1476, 6
    %1583 = vrot.lane.b32.xlu0 %v1582, 64
    %v1584 = vpop.permute.xlu0 %1583
    %v1585 = vsel %vm445, %v1584, 0
    %1587 = vmatpush.msra.mxu0 0.0
    %1588 = vmatpush.msra.mxu0 0.0
    %1589 = vmatpush.msra.mxu0 0.0
    %1590 = vmatpush.msra.mxu0 0.0
    %1591 = vmatpush.msra.mxu0 0.0
    %1592 = vmatpush.msra.mxu0 0.0
    %1593 = vmatpush.msra.mxu0 0.0
    %1594 = vmatpush.msra.mxu0 0.0
    %1595 = vmatpush.msra.mxu0 %v553
    %1596 = vmatpush.msra.mxu0 %v551
    %1597 = vmatpush.msra.mxu0 %v549
    %1598 = vmatpush.msra.mxu0 %v547
    %1599 = vmatpush.msra.mxu0 %v545
    %1600 = vmatpush.msra.mxu0 %v543
    %1601 = vmatpush.msra.mxu0 %v541
    %1602 = vmatpush.msra.mxu0 %v539
    %1603 = vmatmul.f32.gmra.mxu0 %v1585
    %v1604 = vpop.f32.mrf.mxu0
    %v1605 = vadd.f32 0.0, %v1604
    %1606 = vdwg.mxu0
    %1607 = vmatpush.msra.mxu0 0.0
    %1608 = vmatpush.msra.mxu0 0.0
    %1609 = vmatpush.msra.mxu0 0.0
    %1610 = vmatpush.msra.mxu0 0.0
    %1611 = vmatpush.msra.mxu0 0.0
    %1612 = vmatpush.msra.mxu0 0.0
    %1613 = vmatpush.msra.mxu0 0.0
    %1614 = vmatpush.msra.mxu0 0.0
    %1615 = vmatpush.msra.mxu0 %v554
    %1616 = vmatpush.msra.mxu0 %v552
    %1617 = vmatpush.msra.mxu0 %v550
    %1618 = vmatpush.msra.mxu0 %v548
    %1619 = vmatpush.msra.mxu0 %v546
    %1620 = vmatpush.msra.mxu0 %v544
    %1621 = vmatpush.msra.mxu0 %v542
    %1622 = vmatpush.msra.mxu0 %v540
    %1623 = vmatmul.f32.gmra.mxu0 %v1585
    %v1624 = vpop.f32.mrf.mxu0
    %v1625 = vadd.f32 0.0, %v1624
    %1626 = vdwg.mxu0
    %v1629 = vrot.slane %v1605, 4
    %v1630 = vrot.slane %v1625, 4
    %v1633 = vadd.f32 %v401, %v1629
    %v1634 = vadd.f32 %v424, %v1630
    %v1635 = vxor.u32 %v1633, 2147483648
    %v1636 = vmul.f32 %v1635, 1.442695
    %v1637 = vpow.pop %v1636
    %v1638 = vadd.f32 %v1637, 1.0
    %v1639 = vrcp.pop %v1638
    %v1640 = vmul.f32 %v1638, %v1639
    %v1641 = vsub.f32 1.0, %v1640
    %v1642 = vmul.f32 %v1639, %v1641
    %v1643 = vadd.f32 %v1639, %v1642
    %vm1644 = vweird.f32 %v1638
    %vm1645 = vweird.f32 %v1639
    %vm1646 = vmor %vm1644, %vm1645
    %v1647 = vsel %vm1646, %v1639, %v1643
    %v1648 = vand.u32 2147483647, %v1638
    %vm1649 = vcmp.eq.f32.partialorder %v1648, 8.507059e+37
    %v1650 = vand.u32 %v1638, 2147483648
    %v1651 = vor.u32 1.1754944e-38, %v1650
    %v1652 = vsel %vm1649, %v1651, %v1647
    %v1653 = vmul.f32 1.0, %v1652
    %v1654 = vtanh.pop %v1634
    %v1655 = vxor.u32 %v1634, 2147483648
    %v1656 = vmul.f32 %v1655, 1.442695
    %v1657 = vpow.pop %v1656
    %v1658 = vadd.f32 %v1657, 1.0
    %v1659 = vrcp.pop %v1658
    %v1660 = vmul.f32 %v1658, %v1659
    %v1661 = vsub.f32 1.0, %v1660
    %v1662 = vmul.f32 %v1659, %v1661
    %v1663 = vadd.f32 %v1659, %v1662
    %vm1664 = vweird.f32 %v1658
    %vm1665 = vweird.f32 %v1659
    %vm1666 = vmor %vm1664, %vm1665
    %v1667 = vsel %vm1666, %v1659, %v1663
    %v1668 = vand.u32 2147483647, %v1658
    %vm1669 = vcmp.eq.f32.partialorder %v1668, 8.507059e+37
    %v1670 = vand.u32 %v1658, 2147483648
    %v1671 = vor.u32 1.1754944e-38, %v1670
    %v1672 = vsel %vm1669, %v1671, %v1667
    %v1673 = vmul.f32 1.0, %v1672
    %v1675 = vrot.slane %v1474, 2
    %v1677 = vmul.f32 %v1653, %v1675
    %v1678 = vmul.f32 %v1653, %v1654
    %1680 = vrot.lane.b32.xlu0 %v1678, 64
    %v1681 = vpop.permute.xlu0 %1680
    %v1683 = vadd.f32 %v1677, %v1681
    %v1684 = vtanh.pop %v1683
    %v1685 = vmul.f32 %v1673, %v1684
    %v1687 = vrot.slane %v1580, 2
    %1688 = vrot.lane.b32.xlu0 %v1687, 64
    %v1689 = vpop.permute.xlu0 %1688
    %v1690 = vsel %vm445, %v1689, 0
    %1692 = vmatpush.msra.mxu0 0.0
    %1693 = vmatpush.msra.mxu0 0.0
    %1694 = vmatpush.msra.mxu0 0.0
    %1695 = vmatpush.msra.mxu0 0.0
    %1696 = vmatpush.msra.mxu0 0.0
    %1697 = vmatpush.msra.mxu0 0.0
    %1698 = vmatpush.msra.mxu0 0.0
    %1699 = vmatpush.msra.mxu0 0.0
    %1700 = vmatpush.msra.mxu0 %v443
    %1701 = vmatpush.msra.mxu0 %v441
    %1702 = vmatpush.msra.mxu0 %v439
    %1703 = vmatpush.msra.mxu0 %v437
    %1704 = vmatpush.msra.mxu0 %v435
    %1705 = vmatpush.msra.mxu0 %v433
    %1706 = vmatpush.msra.mxu0 %v431
    %1707 = vmatpush.msra.mxu0 %v429
    %1708 = vmatmul.f32.gmra.mxu0 %v1690
    %v1709 = vpop.f32.mrf.mxu0
    %v1710 = vadd.f32 0.0, %v1709
    %1711 = vdwg.mxu0
    %1712 = vmatpush.msra.mxu0 0.0
    %1713 = vmatpush.msra.mxu0 0.0
    %1714 = vmatpush.msra.mxu0 0.0
    %1715 = vmatpush.msra.mxu0 0.0
    %1716 = vmatpush.msra.mxu0 0.0
    %1717 = vmatpush.msra.mxu0 0.0
    %1718 = vmatpush.msra.mxu0 0.0
    %1719 = vmatpush.msra.mxu0 0.0
    %1720 = vmatpush.msra.mxu0 %v444
    %1721 = vmatpush.msra.mxu0 %v442
    %1722 = vmatpush.msra.mxu0 %v440
    %1723 = vmatpush.msra.mxu0 %v438
    %1724 = vmatpush.msra.mxu0 %v436
    %1725 = vmatpush.msra.mxu0 %v434
    %1726 = vmatpush.msra.mxu0 %v432
    %1727 = vmatpush.msra.mxu0 %v430
    %1728 = vmatmul.f32.gmra.mxu0 %v1690
    %v1729 = vpop.f32.mrf.mxu0
    %v1730 = vadd.f32 0.0, %v1729
    %1731 = vdwg.mxu0
    %v1734 = vrot.slane %v1710, 4
    %v1735 = vrot.slane %v1730, 4
    %v1738 = vadd.f32 %v358, %v1734
    %v1739 = vadd.f32 %v381, %v1735
    %v1740 = vxor.u32 %v1738, 2147483648
    %v1741 = vmul.f32 %v1740, 1.442695
    %v1742 = vpow.pop %v1741
    %v1743 = vadd.f32 %v1742, 1.0
    %v1744 = vrcp.pop %v1743
    %v1745 = vmul.f32 %v1743, %v1744
    %v1746 = vsub.f32 1.0, %v1745
    %v1747 = vmul.f32 %v1744, %v1746
    %v1748 = vadd.f32 %v1744, %v1747
    %vm1749 = vweird.f32 %v1743
    %vm1750 = vweird.f32 %v1744
    %vm1751 = vmor %vm1749, %vm1750
    %v1752 = vsel %vm1751, %v1744, %v1748
    %v1753 = vand.u32 2147483647, %v1743
    %vm1754 = vcmp.eq.f32.partialorder %v1753, 8.507059e+37
    %v1755 = vand.u32 %v1743, 2147483648
    %v1756 = vor.u32 1.1754944e-38, %v1755
    %v1757 = vsel %vm1754, %v1756, %v1752
    %v1758 = vmul.f32 1.0, %v1757
    %v1759 = vtanh.pop %v1739
    %v1760 = vxor.u32 %v1739, 2147483648
    %v1761 = vmul.f32 %v1760, 1.442695
    %v1762 = vpow.pop %v1761
    %v1763 = vadd.f32 %v1762, 1.0
    %v1764 = vrcp.pop %v1763
    %v1765 = vmul.f32 %v1763, %v1764
    %v1766 = vsub.f32 1.0, %v1765
    %v1767 = vmul.f32 %v1764, %v1766
    %v1768 = vadd.f32 %v1764, %v1767
    %vm1769 = vweird.f32 %v1763
    %vm1770 = vweird.f32 %v1764
    %vm1771 = vmor %vm1769, %vm1770
    %v1772 = vsel %vm1771, %v1764, %v1768
    %v1773 = vand.u32 2147483647, %v1763
    %vm1774 = vcmp.eq.f32.partialorder %v1773, 8.507059e+37
    %v1775 = vand.u32 %v1763, 2147483648
    %v1776 = vor.u32 1.1754944e-38, %v1775
    %v1777 = vsel %vm1774, %v1776, %v1772
    %v1778 = vmul.f32 1.0, %v1777
    %v1780 = vrot.slane %v1578, 6
    %v1782 = vmul.f32 %v1758, %v1780
    %v1783 = vmul.f32 %v1758, %v1759
    %1785 = vrot.lane.b32.xlu0 %v1783, 64
    %v1786 = vpop.permute.xlu0 %1785
    %v1788 = vadd.f32 %v1782, %v1786
    %v1789 = vtanh.pop %v1788
    %v1790 = vmul.f32 %v1778, %v1789
    %v1792 = vrot.slane %v1685, 4
    %1793 = vrot.lane.b32.xlu0 %v1792, 64
    %v1794 = vpop.permute.xlu0 %1793
    %v1795 = vsel %vm445, %v1794, 0
    %1797 = vmatpush.msra.mxu0 0.0
    %1798 = vmatpush.msra.mxu0 0.0
    %1799 = vmatpush.msra.mxu0 0.0
    %1800 = vmatpush.msra.mxu0 0.0
    %1801 = vmatpush.msra.mxu0 0.0
    %1802 = vmatpush.msra.mxu0 0.0
    %1803 = vmatpush.msra.mxu0 0.0
    %1804 = vmatpush.msra.mxu0 0.0
    %1805 = vmatpush.msra.mxu0 %v553
    %1806 = vmatpush.msra.mxu0 %v551
    %1807 = vmatpush.msra.mxu0 %v549
    %1808 = vmatpush.msra.mxu0 %v547
    %1809 = vmatpush.msra.mxu0 %v545
    %1810 = vmatpush.msra.mxu0 %v543
    %1811 = vmatpush.msra.mxu0 %v541
    %1812 = vmatpush.msra.mxu0 %v539
    %1813 = vmatmul.f32.gmra.mxu0 %v1795
    %v1814 = vpop.f32.mrf.mxu0
    %v1815 = vadd.f32 0.0, %v1814
    %1816 = vdwg.mxu0
    %1817 = vmatpush.msra.mxu0 0.0
    %1818 = vmatpush.msra.mxu0 0.0
    %1819 = vmatpush.msra.mxu0 0.0
    %1820 = vmatpush.msra.mxu0 0.0
    %1821 = vmatpush.msra.mxu0 0.0
    %1822 = vmatpush.msra.mxu0 0.0
    %1823 = vmatpush.msra.mxu0 0.0
    %1824 = vmatpush.msra.mxu0 0.0
    %1825 = vmatpush.msra.mxu0 %v554
    %1826 = vmatpush.msra.mxu0 %v552
    %1827 = vmatpush.msra.mxu0 %v550
    %1828 = vmatpush.msra.mxu0 %v548
    %1829 = vmatpush.msra.mxu0 %v546
    %1830 = vmatpush.msra.mxu0 %v544
    %1831 = vmatpush.msra.mxu0 %v542
    %1832 = vmatpush.msra.mxu0 %v540
    %1833 = vmatmul.f32.gmra.mxu0 %v1795
    %v1834 = vpop.f32.mrf.mxu0
    %v1835 = vadd.f32 0.0, %v1834
    %1836 = vdwg.mxu0
    %v1839 = vrot.slane %v1815, 6
    %v1840 = vrot.slane %v1835, 6
    %v1843 = vadd.f32 %v401, %v1839
    %v1844 = vadd.f32 %v424, %v1840
    %v1845 = vxor.u32 %v1843, 2147483648
    %v1846 = vmul.f32 %v1845, 1.442695
    %v1847 = vpow.pop %v1846
    %v1848 = vadd.f32 %v1847, 1.0
    %v1849 = vrcp.pop %v1848
    %v1850 = vmul.f32 %v1848, %v1849
    %v1851 = vsub.f32 1.0, %v1850
    %v1852 = vmul.f32 %v1849, %v1851
    %v1853 = vadd.f32 %v1849, %v1852
    %vm1854 = vweird.f32 %v1848
    %vm1855 = vweird.f32 %v1849
    %vm1856 = vmor %vm1854, %vm1855
    %v1857 = vsel %vm1856, %v1849, %v1853
    %v1858 = vand.u32 2147483647, %v1848
    %vm1859 = vcmp.eq.f32.partialorder %v1858, 8.507059e+37
    %v1860 = vand.u32 %v1848, 2147483648
    %v1861 = vor.u32 1.1754944e-38, %v1860
    %v1862 = vsel %vm1859, %v1861, %v1857
    %v1863 = vmul.f32 1.0, %v1862
    %v1864 = vtanh.pop %v1844
    %v1865 = vxor.u32 %v1844, 2147483648
    %v1866 = vmul.f32 %v1865, 1.442695
    %v1867 = vpow.pop %v1866
    %v1868 = vadd.f32 %v1867, 1.0
    %v1869 = vrcp.pop %v1868
    %v1870 = vmul.f32 %v1868, %v1869
    %v1871 = vsub.f32 1.0, %v1870
    %v1872 = vmul.f32 %v1869, %v1871
    %v1873 = vadd.f32 %v1869, %v1872
    %vm1874 = vweird.f32 %v1868
    %vm1875 = vweird.f32 %v1869
    %vm1876 = vmor %vm1874, %vm1875
    %v1877 = vsel %vm1876, %v1869, %v1873
    %v1878 = vand.u32 2147483647, %v1868
    %vm1879 = vcmp.eq.f32.partialorder %v1878, 8.507059e+37
    %v1880 = vand.u32 %v1868, 2147483648
    %v1881 = vor.u32 1.1754944e-38, %v1880
    %v1882 = vsel %vm1879, %v1881, %v1877
    %v1883 = vmul.f32 1.0, %v1882
    %v1885 = vrot.slane %v1683, 2
    %v1887 = vmul.f32 %v1863, %v1885
    %v1888 = vmul.f32 %v1863, %v1864
    %1890 = vrot.lane.b32.xlu0 %v1888, 64
    %v1891 = vpop.permute.xlu0 %1890
    %v1893 = vadd.f32 %v1887, %v1891
    %v1894 = vtanh.pop %v1893
    %v1895 = vmul.f32 %v1883, %v1894
    %v1897 = vrot.slane %v1790, 4
    %1898 = vrot.lane.b32.xlu0 %v1897, 64
    %v1899 = vpop.permute.xlu0 %1898
    %v1900 = vsel %vm445, %v1899, 0
    %1902 = vmatpush.msra.mxu0 0.0
    %1903 = vmatpush.msra.mxu0 0.0
    %1904 = vmatpush.msra.mxu0 0.0
    %1905 = vmatpush.msra.mxu0 0.0
    %1906 = vmatpush.msra.mxu0 0.0
    %1907 = vmatpush.msra.mxu0 0.0
    %1908 = vmatpush.msra.mxu0 0.0
    %1909 = vmatpush.msra.mxu0 0.0
    %1910 = vmatpush.msra.mxu0 %v443
    %1911 = vmatpush.msra.mxu0 %v441
    %1912 = vmatpush.msra.mxu0 %v439
    %1913 = vmatpush.msra.mxu0 %v437
    %1914 = vmatpush.msra.mxu0 %v435
    %1915 = vmatpush.msra.mxu0 %v433
    %1916 = vmatpush.msra.mxu0 %v431
    %1917 = vmatpush.msra.mxu0 %v429
    %1918 = vmatmul.f32.gmra.mxu0 %v1900
    %v1919 = vpop.f32.mrf.mxu0
    %v1920 = vadd.f32 0.0, %v1919
    %1921 = vdwg.mxu0
    %1922 = vmatpush.msra.mxu0 0.0
    %1923 = vmatpush.msra.mxu0 0.0
    %1924 = vmatpush.msra.mxu0 0.0
    %1925 = vmatpush.msra.mxu0 0.0
    %1926 = vmatpush.msra.mxu0 0.0
    %1927 = vmatpush.msra.mxu0 0.0
    %1928 = vmatpush.msra.mxu0 0.0
    %1929 = vmatpush.msra.mxu0 0.0
    %1930 = vmatpush.msra.mxu0 %v444
    %1931 = vmatpush.msra.mxu0 %v442
    %1932 = vmatpush.msra.mxu0 %v440
    %1933 = vmatpush.msra.mxu0 %v438
    %1934 = vmatpush.msra.mxu0 %v436
    %1935 = vmatpush.msra.mxu0 %v434
    %1936 = vmatpush.msra.mxu0 %v432
    %1937 = vmatpush.msra.mxu0 %v430
    %1938 = vmatmul.f32.gmra.mxu0 %v1900
    %v1939 = vpop.f32.mrf.mxu0
    %v1940 = vadd.f32 0.0, %v1939
    %1941 = vdwg.mxu0
    %v1944 = vrot.slane %v1920, 2
    %v1945 = vrot.slane %v1940, 2
    %v1948 = vadd.f32 %v358, %v1944
    %v1949 = vadd.f32 %v381, %v1945
    %v1950 = vxor.u32 %v1948, 2147483648
    %v1951 = vmul.f32 %v1950, 1.442695
    %v1952 = vpow.pop %v1951
    %v1953 = vadd.f32 %v1952, 1.0
    %v1954 = vrcp.pop %v1953
    %v1955 = vmul.f32 %v1953, %v1954
    %v1956 = vsub.f32 1.0, %v1955
    %v1957 = vmul.f32 %v1954, %v1956
    %v1958 = vadd.f32 %v1954, %v1957
    %vm1959 = vweird.f32 %v1953
    %vm1960 = vweird.f32 %v1954
    %vm1961 = vmor %vm1959, %vm1960
    %v1962 = vsel %vm1961, %v1954, %v1958
    %v1963 = vand.u32 2147483647, %v1953
    %vm1964 = vcmp.eq.f32.partialorder %v1963, 8.507059e+37
    %v1965 = vand.u32 %v1953, 2147483648
    %v1966 = vor.u32 1.1754944e-38, %v1965
    %v1967 = vsel %vm1964, %v1966, %v1962
    %v1968 = vmul.f32 1.0, %v1967
    %v1969 = vtanh.pop %v1949
    %v1970 = vxor.u32 %v1949, 2147483648
    %v1971 = vmul.f32 %v1970, 1.442695
    %v1972 = vpow.pop %v1971
    %v1973 = vadd.f32 %v1972, 1.0
    %v1974 = vrcp.pop %v1973
    %v1975 = vmul.f32 %v1973, %v1974
    %v1976 = vsub.f32 1.0, %v1975
    %v1977 = vmul.f32 %v1974, %v1976
    %v1978 = vadd.f32 %v1974, %v1977
    %vm1979 = vweird.f32 %v1973
    %vm1980 = vweird.f32 %v1974
    %vm1981 = vmor %vm1979, %vm1980
    %v1982 = vsel %vm1981, %v1974, %v1978
    %v1983 = vand.u32 2147483647, %v1973
    %vm1984 = vcmp.eq.f32.partialorder %v1983, 8.507059e+37
    %v1985 = vand.u32 %v1973, 2147483648
    %v1986 = vor.u32 1.1754944e-38, %v1985
    %v1987 = vsel %vm1984, %v1986, %v1982
    %v1988 = vmul.f32 1.0, %v1987
    %v1990 = vrot.slane %v1788, 6
    %v1992 = vmul.f32 %v1968, %v1990
    %v1993 = vmul.f32 %v1968, %v1969
    %1995 = vrot.lane.b32.xlu0 %v1993, 64
    %v1996 = vpop.permute.xlu0 %1995
    %v1998 = vadd.f32 %v1992, %v1996
    %v1999 = vtanh.pop %v1998
    %v2000 = vmul.f32 %v1988, %v1999
    %v2002 = vrot.slane %v1895, 2
    %2003 = vrot.lane.b32.xlu0 %v2002, 64
    %v2004 = vpop.permute.xlu0 %2003
    %v2005 = vsel %vm445, %v2004, 0
    %2007 = vmatpush.msra.mxu0 0.0
    %2008 = vmatpush.msra.mxu0 0.0
    %2009 = vmatpush.msra.mxu0 0.0
    %2010 = vmatpush.msra.mxu0 0.0
    %2011 = vmatpush.msra.mxu0 0.0
    %2012 = vmatpush.msra.mxu0 0.0
    %2013 = vmatpush.msra.mxu0 0.0
    %2014 = vmatpush.msra.mxu0 0.0
    %2015 = vmatpush.msra.mxu0 %v553
    %2016 = vmatpush.msra.mxu0 %v551
    %2017 = vmatpush.msra.mxu0 %v549
    %2018 = vmatpush.msra.mxu0 %v547
    %2019 = vmatpush.msra.mxu0 %v545
    %2020 = vmatpush.msra.mxu0 %v543
    %2021 = vmatpush.msra.mxu0 %v541
    %2022 = vmatpush.msra.mxu0 %v539
    %2023 = vmatmul.f32.gmra.mxu0 %v2005
    %v2024 = vpop.f32.mrf.mxu0
    %v2025 = vadd.f32 0.0, %v2024
    %2026 = vdwg.mxu0
    %2027 = vmatpush.msra.mxu0 0.0
    %2028 = vmatpush.msra.mxu0 0.0
    %2029 = vmatpush.msra.mxu0 0.0
    %2030 = vmatpush.msra.mxu0 0.0
    %2031 = vmatpush.msra.mxu0 0.0
    %2032 = vmatpush.msra.mxu0 0.0
    %2033 = vmatpush.msra.mxu0 0.0
    %2034 = vmatpush.msra.mxu0 0.0
    %2035 = vmatpush.msra.mxu0 %v554
    %2036 = vmatpush.msra.mxu0 %v552
    %2037 = vmatpush.msra.mxu0 %v550
    %2038 = vmatpush.msra.mxu0 %v548
    %2039 = vmatpush.msra.mxu0 %v546
    %2040 = vmatpush.msra.mxu0 %v544
    %2041 = vmatpush.msra.mxu0 %v542
    %2042 = vmatpush.msra.mxu0 %v540
    %2043 = vmatmul.f32.gmra.mxu0 %v2005
    %v2044 = vpop.f32.mrf.mxu0
    %v2045 = vadd.f32 0.0, %v2044
    %2046 = vdwg.mxu0
    %v2047 = vadd.f32 %v401, %v2025
    %v2048 = vadd.f32 %v424, %v2045
    %v2049 = vxor.u32 %v2047, 2147483648
    %v2050 = vmul.f32 %v2049, 1.442695
    %v2051 = vpow.pop %v2050
    %v2052 = vadd.f32 %v2051, 1.0
    %v2053 = vrcp.pop %v2052
    %v2054 = vmul.f32 %v2052, %v2053
    %v2055 = vsub.f32 1.0, %v2054
    %v2056 = vmul.f32 %v2053, %v2055
    %v2057 = vadd.f32 %v2053, %v2056
    %vm2058 = vweird.f32 %v2052
    %vm2059 = vweird.f32 %v2053
    %vm2060 = vmor %vm2058, %vm2059
    %v2061 = vsel %vm2060, %v2053, %v2057
    %v2062 = vand.u32 2147483647, %v2052
    %vm2063 = vcmp.eq.f32.partialorder %v2062, 8.507059e+37
    %v2064 = vand.u32 %v2052, 2147483648
    %v2065 = vor.u32 1.1754944e-38, %v2064
    %v2066 = vsel %vm2063, %v2065, %v2061
    %v2067 = vmul.f32 1.0, %v2066
    %v2068 = vtanh.pop %v2048
    %v2069 = vxor.u32 %v2048, 2147483648
    %v2070 = vmul.f32 %v2069, 1.442695
    %v2071 = vpow.pop %v2070
    %v2072 = vadd.f32 %v2071, 1.0
    %v2073 = vrcp.pop %v2072
    %v2074 = vmul.f32 %v2072, %v2073
    %v2075 = vsub.f32 1.0, %v2074
    %v2076 = vmul.f32 %v2073, %v2075
    %v2077 = vadd.f32 %v2073, %v2076
    %vm2078 = vweird.f32 %v2072
    %vm2079 = vweird.f32 %v2073
    %vm2080 = vmor %vm2078, %vm2079
    %v2081 = vsel %vm2080, %v2073, %v2077
    %v2082 = vand.u32 2147483647, %v2072
    %vm2083 = vcmp.eq.f32.partialorder %v2082, 8.507059e+37
    %v2084 = vand.u32 %v2072, 2147483648
    %v2085 = vor.u32 1.1754944e-38, %v2084
    %v2086 = vsel %vm2083, %v2085, %v2081
    %v2087 = vmul.f32 1.0, %v2086
    %v2089 = vrot.slane %v1893, 2
    %v2091 = vmul.f32 %v2067, %v2089
    %v2092 = vmul.f32 %v2067, %v2068
    %2094 = vrot.lane.b32.xlu0 %v2092, 64
    %v2095 = vpop.permute.xlu0 %2094
    %v2097 = vadd.f32 %v2091, %v2095
    %v2098 = vtanh.pop %v2097
    %v2099 = vmul.f32 %v2087, %v2098
    %2101 = vrot.lane.b32.xlu0 %v2000, 64
    %v2102 = vpop.permute.xlu0 %2101
    %v2105 = vrot.slane %v2099, 2
    %v2107 = vsel %vm445, %v2102, %v2105
    %v2108 = vld [vmem:[%s8] sm:$0xff]
    %v2109 = vld [vmem:[%s8 + $0x8] sm:$0xff]
    %v2110 = vld [vmem:[%s8 + $0x10] sm:$0xff]
    %v2111 = vld [vmem:[%s8 + $0x18] sm:$0xff]
    %v2112 = vld [vmem:[%s8 + $0x20] sm:$0xff]
    %v2113 = vld [vmem:[%s8 + $0x28] sm:$0xff]
    %v2114 = vld [vmem:[%s8 + $0x30] sm:$0xff]
    %v2115 = vld [vmem:[%s8 + $0x38] sm:$0xff]
    %v2116 = vld [vmem:[%s8 + $0x40] sm:$0xff]
    %v2117 = vld [vmem:[%s8 + $0x48] sm:$0xff]
    %v2118 = vld [vmem:[%s8 + $0x50] sm:$0xff]
    %v2119 = vld [vmem:[%s8 + $0x58] sm:$0xff]
    %v2120 = vld [vmem:[%s8 + $0x60] sm:$0xff]
    %v2121 = vld [vmem:[%s8 + $0x68] sm:$0xff]
    %v2122 = vld [vmem:[%s8 + $0x70] sm:$0xff]
    %v2123 = vld [vmem:[%s8 + $0x78] sm:$0xff]
    %v2124 = vld [vmem:[#allocation14] sm:$0x1]
    %v2126 = vperm.slane %v2124, 0
    %v2129 = vrot.slane %v2107, 6
    %2131 = vmatpush.msra.mxu0 %v2123
    %2132 = vmatpush.msra.mxu0 %v2122
    %2133 = vmatpush.msra.mxu0 %v2121
    %2134 = vmatpush.msra.mxu0 %v2120
    %2135 = vmatpush.msra.mxu0 %v2119
    %2136 = vmatpush.msra.mxu0 %v2118
    %2137 = vmatpush.msra.mxu0 %v2117
    %2138 = vmatpush.msra.mxu0 %v2116
    %2139 = vmatpush.msra.mxu0 %v2115
    %2140 = vmatpush.msra.mxu0 %v2114
    %2141 = vmatpush.msra.mxu0 %v2113
    %2142 = vmatpush.msra.mxu0 %v2112
    %2143 = vmatpush.msra.mxu0 %v2111
    %2144 = vmatpush.msra.mxu0 %v2110
    %2145 = vmatpush.msra.mxu0 %v2109
    %2146 = vmatpush.msra.mxu0 %v2108
    %2147 = vmatmul.f32.gmra.mxu0 %v2129
    %v2148 = vpop.f32.mrf.mxu0
    %v2149 = vadd.f32 %v2126, %v2148
    %2150 = vdwg.mxu0
    %v2151 = vld [vmem:[%s1] sm:$0xff]
    %v2152 = vld [vmem:[%s1 + $0x8] sm:$0xff]
    %v2153 = vld [vmem:[%s1 + $0x10] sm:$0xff]
    %v2154 = vld [vmem:[%s1 + $0x18] sm:$0xff]
    %v2155 = vld [vmem:[%s1 + $0x20] sm:$0xff]
    %v2156 = vld [vmem:[%s1 + $0x28] sm:$0xff]
    %v2157 = vld [vmem:[%s1 + $0x30] sm:$0xff]
    %v2158 = vld [vmem:[%s1 + $0x38] sm:$0xff]
    %v2159 = vld [vmem:[%s1 + $0x40] sm:$0xff]
    %v2160 = vld [vmem:[%s1 + $0x48] sm:$0xff]
    %v2161 = vld [vmem:[%s1 + $0x50] sm:$0xff]
    %v2162 = vld [vmem:[%s1 + $0x58] sm:$0xff]
    %v2163 = vld [vmem:[%s1 + $0x60] sm:$0xff]
    %v2164 = vld [vmem:[%s1 + $0x68] sm:$0xff]
    %v2165 = vld [vmem:[#allocation16] sm:$0xff]
    %v2166 = vld [vmem:[#allocation16 + $0x8] sm:$0xff]
    %v2167 = vld [vmem:[#allocation16 + $0x10] sm:$0xff]
    %v2168 = vld [vmem:[#allocation16 + $0x18] sm:$0xff]
    %v2169 = vld [vmem:[#allocation16 + $0x20] sm:$0xff]
    %v2170 = vld [vmem:[#allocation16 + $0x28] sm:$0xff]
    %v2171 = vld [vmem:[#allocation16 + $0x30] sm:$0xff]
    %v2172 = vld [vmem:[#allocation16 + $0x38] sm:$0xff]
    %v2173 = vld [vmem:[#allocation17] sm:$0x1]
    %v2175 = vperm.slane %v2173, 0
    %v2178 = vsel %vm445, %v2151, 0
    %v2181 = vsel %vm445, %v2152, 0
    %v2184 = vsel %vm445, %v2153, 0
    %v2187 = vsel %vm445, %v2154, 0
    %v2190 = vsel %vm445, %v2155, 0
    %v2193 = vsel %vm445, %v2156, 0
    %v2196 = vsel %vm445, %v2157, 0
    %v2199 = vsel %vm445, %v2158, 0
    %v2202 = vsel %vm445, %v2159, 0
    %v2205 = vsel %vm445, %v2160, 0
    %v2208 = vsel %vm445, %v2161, 0
    %v2211 = vsel %vm445, %v2162, 0
    %v2214 = vsel %vm445, %v2163, 0
    %v2217 = vsel %vm445, %v2164, 0
    %2219 = vmatpush.msra.mxu0 0.0
    %2220 = vmatpush.msra.mxu0 0.0
    %2221 = vmatpush.msra.mxu0 0.0
    %2222 = vmatpush.msra.mxu0 0.0
    %2223 = vmatpush.msra.mxu0 0.0
    %2224 = vmatpush.msra.mxu0 0.0
    %2225 = vmatpush.msra.mxu0 0.0
    %2226 = vmatpush.msra.mxu0 0.0
    %2227 = vmatpush.msra.mxu0 %v2172
    %2228 = vmatpush.msra.mxu0 %v2171
    %2229 = vmatpush.msra.mxu0 %v2170
    %2230 = vmatpush.msra.mxu0 %v2169
    %2231 = vmatpush.msra.mxu0 %v2168
    %2232 = vmatpush.msra.mxu0 %v2167
    %2233 = vmatpush.msra.mxu0 %v2166
    %2234 = vmatpush.msra.mxu0 %v2165
    %2235 = vmatmul.f32.gmra.mxu0 %v2178
    %v2236 = vpop.f32.mrf.mxu0
    %v2237 = vadd.f32 %v2175, %v2236
    %2238 = vmatmul.f32.gmra.mxu0 %v2181
    %v2239 = vpop.f32.mrf.mxu0
    %v2240 = vadd.f32 %v2175, %v2239
    %2241 = vmatmul.f32.gmra.mxu0 %v2184
    %v2242 = vpop.f32.mrf.mxu0
    %v2243 = vadd.f32 %v2175, %v2242
    %2244 = vmatmul.f32.gmra.mxu0 %v2187
    %v2245 = vpop.f32.mrf.mxu0
    %v2246 = vadd.f32 %v2175, %v2245
    %2247 = vmatmul.f32.gmra.mxu0 %v2190
    %v2248 = vpop.f32.mrf.mxu0
    %v2249 = vadd.f32 %v2175, %v2248
    %2250 = vmatmul.f32.gmra.mxu0 %v2193
    %v2251 = vpop.f32.mrf.mxu0
    %v2252 = vadd.f32 %v2175, %v2251
    %2253 = vmatmul.f32.gmra.mxu0 %v2196
    %v2254 = vpop.f32.mrf.mxu0
    %v2255 = vadd.f32 %v2175, %v2254
    %2256 = vmatmul.f32.gmra.mxu0 %v2199
    %v2257 = vpop.f32.mrf.mxu0
    %v2258 = vadd.f32 %v2175, %v2257
    %2259 = vmatmul.f32.gmra.mxu0 %v2202
    %v2260 = vpop.f32.mrf.mxu0
    %v2261 = vadd.f32 %v2175, %v2260
    %2262 = vmatmul.f32.gmra.mxu0 %v2205
    %v2263 = vpop.f32.mrf.mxu0
    %v2264 = vadd.f32 %v2175, %v2263
    %2265 = vmatmul.f32.gmra.mxu0 %v2208
    %v2266 = vpop.f32.mrf.mxu0
    %v2267 = vadd.f32 %v2175, %v2266
    %2268 = vmatmul.f32.gmra.mxu0 %v2211
    %v2269 = vpop.f32.mrf.mxu0
    %v2270 = vadd.f32 %v2175, %v2269
    %2271 = vmatmul.f32.gmra.mxu0 %v2214
    %v2272 = vpop.f32.mrf.mxu0
    %v2273 = vadd.f32 %v2175, %v2272
    %2274 = vmatmul.f32.gmra.mxu0 %v2217
    %v2275 = vpop.f32.mrf.mxu0
    %v2276 = vadd.f32 %v2175, %v2275
    %2277 = vdwg.mxu0
    %v2278 = vmax.f32 %v2237, 0.0
    %v2279 = vmax.f32 %v2240, 0.0
    %v2280 = vmax.f32 %v2243, 0.0
    %v2281 = vmax.f32 %v2246, 0.0
    %v2282 = vmax.f32 %v2249, 0.0
    %v2283 = vmax.f32 %v2252, 0.0
    %v2284 = vmax.f32 %v2255, 0.0
    %v2285 = vmax.f32 %v2258, 0.0
    %v2286 = vmax.f32 %v2261, 0.0
    %v2287 = vmax.f32 %v2264, 0.0
    %v2288 = vmax.f32 %v2267, 0.0
    %v2289 = vmax.f32 %v2270, 0.0
    %v2290 = vmax.f32 %v2273, 0.0
    %v2291 = vmax.f32 %v2276, 0.0
    %v2292 = vld [vmem:[#allocation19] sm:$0xff]
    %v2293 = vld [vmem:[#allocation19 + $0x8] sm:$0xff]
    %v2294 = vld [vmem:[#allocation19 + $0x10] sm:$0xff]
    %v2295 = vld [vmem:[#allocation19 + $0x18] sm:$0xff]
    %v2296 = vld [vmem:[#allocation19 + $0x20] sm:$0xff]
    %v2297 = vld [vmem:[#allocation19 + $0x28] sm:$0xff]
    %v2298 = vld [vmem:[#allocation19 + $0x30] sm:$0xff]
    %v2299 = vld [vmem:[#allocation19 + $0x38] sm:$0xff]
    %v2300 = vld [vmem:[#allocation20] sm:$0x1]
    %v2302 = vperm.slane %v2300, 0
    %v2305 = vsel %vm445, %v2149, 0
    %2307 = vmatpush.msra.mxu0 0.0
    %2308 = vmatpush.msra.mxu0 0.0
    %2309 = vmatpush.msra.mxu0 0.0
    %2310 = vmatpush.msra.mxu0 0.0
    %2311 = vmatpush.msra.mxu0 0.0
    %2312 = vmatpush.msra.mxu0 0.0
    %2313 = vmatpush.msra.mxu0 0.0
    %2314 = vmatpush.msra.mxu0 0.0
    %2315 = vmatpush.msra.mxu0 %v2299
    %2316 = vmatpush.msra.mxu0 %v2298
    %2317 = vmatpush.msra.mxu0 %v2297
    %2318 = vmatpush.msra.mxu0 %v2296
    %2319 = vmatpush.msra.mxu0 %v2295
    %2320 = vmatpush.msra.mxu0 %v2294
    %2321 = vmatpush.msra.mxu0 %v2293
    %2322 = vmatpush.msra.mxu0 %v2292
    %2323 = vmatmul.f32.gmra.mxu0 %v2305
    %v2324 = vpop.f32.mrf.mxu0
    %v2325 = vadd.f32 %v2302, %v2324
    %2326 = vdwg.mxu0
    %v2327 = vmax.f32 %v2325, 0.0
    %v2328 = vld [vmem:[#allocation22] sm:$0x1]
    %v2330 = vperm.slane %v2328, 0
    %v2332 = vmul.f32 %v2327, %v2330
    %v2334 = vrot.slane %v2332, 1
    %v2335 = vperm.slane %v2332, 0
    %v2336 = vperm.slane %v2334, 0
    %v2339 = vmul.f32 %v2278, %v2335
    %v2340 = vmul.f32 %v2279, %v2335
    %v2341 = vmul.f32 %v2280, %v2335
    %v2342 = vmul.f32 %v2281, %v2335
    %v2343 = vmul.f32 %v2282, %v2335
    %v2344 = vmul.f32 %v2283, %v2335
    %v2345 = vmul.f32 %v2284, %v2335
    %v2346 = vmul.f32 %v2285, %v2336
    %v2347 = vmul.f32 %v2286, %v2336
    %v2348 = vmul.f32 %v2287, %v2336
    %v2349 = vmul.f32 %v2288, %v2336
    %v2350 = vmul.f32 %v2289, %v2336
    %v2351 = vmul.f32 %v2290, %v2336
    %v2352 = vmul.f32 %v2291, %v2336
    %v2353 = vsel %vm445, %v2339, 0.0
    %2354 = vadd.xlane.f32.xlu0 %v2353
    %v2355 = vpop.xlane.xlu0 %2354
    %v2356 = vsel %vm445, %v2340, 0.0
    %2357 = vadd.xlane.f32.xlu0 %v2356
    %v2358 = vpop.xlane.xlu0 %2357
    %v2359 = vsel %vm445, %v2341, 0.0
    %2360 = vadd.xlane.f32.xlu0 %v2359
    %v2361 = vpop.xlane.xlu0 %2360
    %v2362 = vsel %vm445, %v2342, 0.0
    %2363 = vadd.xlane.f32.xlu0 %v2362
    %v2364 = vpop.xlane.xlu0 %2363
    %v2365 = vsel %vm445, %v2343, 0.0
    %2366 = vadd.xlane.f32.xlu0 %v2365
    %v2367 = vpop.xlane.xlu0 %2366
    %v2368 = vsel %vm445, %v2344, 0.0
    %2369 = vadd.xlane.f32.xlu0 %v2368
    %v2370 = vpop.xlane.xlu0 %2369
    %v2371 = vsel %vm445, %v2345, 0.0
    %2372 = vadd.xlane.f32.xlu0 %v2371
    %v2373 = vpop.xlane.xlu0 %2372
    %v2374 = vsel %vm445, %v2346, 0.0
    %2375 = vadd.xlane.f32.xlu0 %v2374
    %v2376 = vpop.xlane.xlu0 %2375
    %v2377 = vsel %vm445, %v2347, 0.0
    %2378 = vadd.xlane.f32.xlu0 %v2377
    %v2379 = vpop.xlane.xlu0 %2378
    %v2380 = vsel %vm445, %v2348, 0.0
    %2381 = vadd.xlane.f32.xlu0 %v2380
    %v2382 = vpop.xlane.xlu0 %2381
    %v2383 = vsel %vm445, %v2349, 0.0
    %2384 = vadd.xlane.f32.xlu0 %v2383
    %v2385 = vpop.xlane.xlu0 %2384
    %v2386 = vsel %vm445, %v2350, 0.0
    %2387 = vadd.xlane.f32.xlu0 %v2386
    %v2388 = vpop.xlane.xlu0 %2387
    %v2389 = vsel %vm445, %v2351, 0.0
    %2390 = vadd.xlane.f32.xlu0 %v2389
    %v2391 = vpop.xlane.xlu0 %2390
    %v2392 = vsel %vm445, %v2352, 0.0
    %2393 = vadd.xlane.f32.xlu0 %v2392
    %v2394 = vpop.xlane.xlu0 %2393
    %v2395 = vld [vmem:[#allocation4] sm:$0x1]
    %v2397 = vperm.slane %v2395, 0
    %2398 = vset.pattern.permute.xlu0 0
    %2399 = vperm.xlu0 %2398, %v2397
    %v2400 = vpop.permute.xlu0 %2399
    %v2402 = vadd.f32 %v2355, %v2400
    %v2403 = vadd.f32 %v2358, %v2400
    %v2404 = vadd.f32 %v2361, %v2400
    %v2405 = vadd.f32 %v2364, %v2400
    %v2406 = vadd.f32 %v2367, %v2400
    %v2407 = vadd.f32 %v2370, %v2400
    %v2408 = vadd.f32 %v2373, %v2400
    %v2409 = vadd.f32 %v2376, %v2400
    %v2410 = vadd.f32 %v2379, %v2400
    %v2411 = vadd.f32 %v2382, %v2400
    %v2412 = vadd.f32 %v2385, %v2400
    %v2413 = vadd.f32 %v2388, %v2400
    %v2414 = vadd.f32 %v2391, %v2400
    %v2415 = vadd.f32 %v2394, %v2400
    %v2416 = vlaneseq
    %v2417 = vand.u32 %v2416, 127
    %vm2418 = vcmp.lt.s32.totalorder %v2417, 49
    %v2433 = vperm.slane %v2402, %v2417
    %v2434 = vadd.s32 %v2417, 4294967288
    %v2435 = vperm.slane %v2403, %v2434
    %vm2436 = vcmask 130112
    %v2437 = vsel %vm2436, %v2435, %v2433
    %v2438 = vadd.s32 %v2417, 4294967280
    %v2439 = vperm.slane %v2404, %v2438
    %vm2440 = vcmask 195712
    %v2441 = vsel %vm2440, %v2439, %v2437
    %v2442 = vadd.s32 %v2417, 4294967272
    %v2443 = vperm.slane %v2405, %v2442
    %vm2444 = vcmask 261312
    %v2445 = vsel %vm2444, %v2443, %v2441
    %v2446 = vadd.s32 %v2417, 4294967264
    %v2447 = vperm.slane %v2406, %v2446
    %vm2448 = vcmask 326912
    %v2449 = vsel %vm2448, %v2447, %v2445
    %v2450 = vadd.s32 %v2417, 4294967256
    %v2451 = vperm.slane %v2407, %v2450
    %vm2452 = vcmask 392512
    %v2453 = vsel %vm2452, %v2451, %v2449
    %v2454 = vadd.s32 %v2417, 4294967248
    %v2455 = vperm.slane %v2408, %v2454
    %vm2456 = vcmask 458112
    %v2457 = vsel %vm2456, %v2455, %v2453
    %v2458 = vperm.slane %v2409, %v2417
    %v2459 = vperm.slane %v2410, %v2434
    %v2460 = vsel %vm2436, %v2459, %v2458
    %v2461 = vperm.slane %v2411, %v2438
    %v2462 = vsel %vm2440, %v2461, %v2460
    %v2463 = vperm.slane %v2412, %v2442
    %v2464 = vsel %vm2444, %v2463, %v2462
    %v2465 = vperm.slane %v2413, %v2446
    %v2466 = vsel %vm2448, %v2465, %v2464
    %v2467 = vperm.slane %v2414, %v2450
    %v2468 = vsel %vm2452, %v2467, %v2466
    %v2469 = vperm.slane %v2415, %v2454
    %v2470 = vsel %vm2456, %v2469, %v2468
    %vm2471 = vcmask 1041409
    %v2472 = vsel %vm2471, %v2470, %v2457
    %v2474 = vsel %vm2418, %v2472, -1e+30
    %vm2475 = vcmask 451584
    %v2476 = vsel %vm2475, %v2474, -inf
    %2477 = vmax.xlane.f32.xlu0 %v2476
    %v2478 = vpop.xlane.xlu0 %2477
    %v2479 = vsub.f32 %v2474, %v2478
    %v2480 = vmul.f32 %v2479, 1.442695
    %v2481 = vpow.pop %v2480
    %v2482 = vsel %vm2475, %v2481, 0.0
    %2483 = vadd.xlane.f32.xlu0 %v2482
    %v2484 = vpop.xlane.xlu0 %2483
    %v2485 = vrcp.pop %v2484
    %v2486 = vmul.f32 %v2484, %v2485
    %v2487 = vsub.f32 1.0, %v2486
    %v2488 = vmul.f32 %v2485, %v2487
    %v2489 = vadd.f32 %v2485, %v2488
    %vm2490 = vweird.f32 %v2484
    %vm2491 = vweird.f32 %v2485
    %vm2492 = vmor %vm2490, %vm2491
    %v2493 = vsel %vm2492, %v2485, %v2489
    %v2494 = vand.u32 2147483647, %v2484
    %vm2495 = vcmp.eq.f32.partialorder %v2494, 8.507059e+37
    %v2496 = vand.u32 %v2484, 2147483648
    %v2497 = vor.u32 1.1754944e-38, %v2496
    %v2498 = vsel %vm2495, %v2497, %v2493
    %v2499 = vmul.f32 %v2481, %v2498
    %v2500 = vpack.c.bf16 %v2499, %v2499
    %v2501 = vld [vmem:[#allocation5] sm:$0xff]
    %v2502 = vld [vmem:[#allocation5 + $0x8] sm:$0xff]
    %v2503 = vld [vmem:[#allocation5 + $0x10] sm:$0xff]
    %v2504 = vld [vmem:[#allocation5 + $0x18] sm:$0xff]
    %v2505 = vld [vmem:[#allocation5 + $0x20] sm:$0xff]
    %v2506 = vld [vmem:[#allocation5 + $0x28] sm:$0xff]
    %v2507 = vld [vmem:[#allocation5 + $0x30] sm:$0xff]
    %v2508 = vld [vmem:[#allocation5 + $0x38] sm:$0xff]
    %v2509 = vld [vmem:[#allocation5 + $0x40] sm:$0xff]
    %v2510 = vld [vmem:[#allocation5 + $0x48] sm:$0xff]
    %v2511 = vld [vmem:[#allocation5 + $0x50] sm:$0xff]
    %v2512 = vld [vmem:[#allocation5 + $0x58] sm:$0xff]
    %v2513 = vld [vmem:[#allocation5 + $0x60] sm:$0xff]
    %v2514 = vld [vmem:[#allocation5 + $0x68] sm:$0xff]
    %v2515 = vld [vmem:[#allocation5 + $0x70] sm:$0xff]
    %v2516 = vld [vmem:[#allocation5 + $0x78] sm:$0xff]
    %v2517 = vld [vmem:[#allocation5 + $0x80] sm:$0xff]
    %v2518 = vld [vmem:[#allocation5 + $0x88] sm:$0xff]
    %v2519 = vld [vmem:[#allocation5 + $0x90] sm:$0xff]
    %v2520 = vld [vmem:[#allocation5 + $0x98] sm:$0xff]
    %v2521 = vld [vmem:[#allocation5 + $0xa0] sm:$0xff]
    %v2522 = vld [vmem:[#allocation5 + $0xa8] sm:$0xff]
    %v2523 = vld [vmem:[#allocation5 + $0xb0] sm:$0xff]
    %v2524 = vld [vmem:[#allocation5 + $0xb8] sm:$0xff]
    %v2525 = vld [vmem:[#allocation5 + $0xc0] sm:$0xff]
    %v2526 = vld [vmem:[#allocation5 + $0xc8] sm:$0xff]
    %v2527 = vld [vmem:[#allocation5 + $0xd0] sm:$0xff]
    %v2528 = vld [vmem:[#allocation5 + $0xd8] sm:$0xff]
    %v2529 = vld [vmem:[#allocation5 + $0xe0] sm:$0xff]
    %v2530 = vld [vmem:[#allocation5 + $0xe8] sm:$0xff]
    %v2531 = vld [vmem:[#allocation5 + $0xf0] sm:$0xff]
    %v2532 = vld [vmem:[#allocation5 + $0xf8] sm:$0xff]
    %v2533 = vld [vmem:[#allocation5 + $0x100] sm:$0xff]
    %v2534 = vld [vmem:[#allocation5 + $0x108] sm:$0xff]
    %v2535 = vld [vmem:[#allocation5 + $0x110] sm:$0xff]
    %v2536 = vld [vmem:[#allocation5 + $0x118] sm:$0xff]
    %v2537 = vld [vmem:[#allocation5 + $0x120] sm:$0xff]
    %v2538 = vld [vmem:[#allocation5 + $0x128] sm:$0xff]
    %v2539 = vld [vmem:[#allocation5 + $0x130] sm:$0xff]
    %v2540 = vld [vmem:[#allocation5 + $0x138] sm:$0xff]
    %v2541 = vld [vmem:[#allocation5 + $0x140] sm:$0xff]
    %v2542 = vld [vmem:[#allocation5 + $0x148] sm:$0xff]
    %v2543 = vld [vmem:[#allocation5 + $0x150] sm:$0xff]
    %v2544 = vld [vmem:[#allocation5 + $0x158] sm:$0xff]
    %v2545 = vld [vmem:[#allocation5 + $0x160] sm:$0xff]
    %v2546 = vld [vmem:[#allocation5 + $0x168] sm:$0xff]
    %v2547 = vld [vmem:[#allocation5 + $0x170] sm:$0xff]
    %v2548 = vld [vmem:[#allocation5 + $0x178] sm:$0xff]
    %v2549 = vld [vmem:[#allocation5 + $0x180] sm:$0xff]
    %v2550 = vld [vmem:[#allocation5 + $0x188] sm:$0xff]
    %v2551 = vld [vmem:[#allocation5 + $0x190] sm:$0xff]
    %v2552 = vld [vmem:[#allocation5 + $0x198] sm:$0xff]
    %v2553 = vld [vmem:[#allocation5 + $0x1a0] sm:$0xff]
    %v2554 = vld [vmem:[#allocation5 + $0x1a8] sm:$0xff]
    %v2555 = vld [vmem:[#allocation5 + $0x1b0] sm:$0xff]
    %v2556 = vld [vmem:[#allocation5 + $0x1b8] sm:$0xff]
    %v2557 = vld [vmem:[#allocation5 + $0x1c0] sm:$0xff]
    %v2558 = vld [vmem:[#allocation5 + $0x1c8] sm:$0xff]
    %v2559 = vld [vmem:[#allocation5 + $0x1d0] sm:$0xff]
    %v2560 = vld [vmem:[#allocation5 + $0x1d8] sm:$0xff]
    %v2561 = vld [vmem:[#allocation5 + $0x1e0] sm:$0xff]
    %v2562 = vld [vmem:[#allocation5 + $0x1e8] sm:$0xff]
    %v2563 = vld [vmem:[#allocation5 + $0x1f0] sm:$0xff]
    %v2564 = vld [vmem:[#allocation5 + $0x1f8] sm:$0xff]
    %v2565 = vld [vmem:[#allocation5 + $0x200] sm:$0xff]
    %v2566 = vld [vmem:[#allocation5 + $0x208] sm:$0xff]
    %v2567 = vld [vmem:[#allocation5 + $0x210] sm:$0xff]
    %v2568 = vld [vmem:[#allocation5 + $0x218] sm:$0xff]
    %v2569 = vld [vmem:[#allocation5 + $0x220] sm:$0xff]
    %v2570 = vld [vmem:[#allocation5 + $0x228] sm:$0xff]
    %v2571 = vld [vmem:[#allocation5 + $0x230] sm:$0xff]
    %v2572 = vld [vmem:[#allocation5 + $0x238] sm:$0xff]
    %v2573 = vld [vmem:[#allocation5 + $0x240] sm:$0xff]
    %v2574 = vld [vmem:[#allocation5 + $0x248] sm:$0xff]
    %v2575 = vld [vmem:[#allocation5 + $0x250] sm:$0xff]
    %v2576 = vld [vmem:[#allocation5 + $0x258] sm:$0xff]
    %v2577 = vld [vmem:[#allocation5 + $0x260] sm:$0xff]
    %v2578 = vld [vmem:[#allocation5 + $0x268] sm:$0xff]
    %v2579 = vld [vmem:[#allocation5 + $0x270] sm:$0xff]
    %v2580 = vld [vmem:[#allocation5 + $0x278] sm:$0xff]
    %v2581 = vld [vmem:[#allocation5 + $0x280] sm:$0xff]
    %v2582 = vld [vmem:[#allocation5 + $0x288] sm:$0xff]
    %v2583 = vld [vmem:[#allocation5 + $0x290] sm:$0xff]
    %v2584 = vld [vmem:[#allocation5 + $0x298] sm:$0xff]
    %v2585 = vld [vmem:[#allocation5 + $0x2a0] sm:$0xff]
    %v2586 = vld [vmem:[#allocation5 + $0x2a8] sm:$0xff]
    %v2587 = vld [vmem:[#allocation5 + $0x2b0] sm:$0xff]
    %v2588 = vld [vmem:[#allocation5 + $0x2b8] sm:$0xff]
    %v2589 = vld [vmem:[#allocation5 + $0x2c0] sm:$0xff]
    %v2590 = vld [vmem:[#allocation5 + $0x2c8] sm:$0xff]
    %v2591 = vld [vmem:[#allocation5 + $0x2d0] sm:$0xff]
    %v2592 = vld [vmem:[#allocation5 + $0x2d8] sm:$0xff]
    %v2593 = vld [vmem:[#allocation5 + $0x2e0] sm:$0xff]
    %v2594 = vld [vmem:[#allocation5 + $0x2e8] sm:$0xff]
    %v2595 = vld [vmem:[#allocation5 + $0x2f0] sm:$0xff]
    %v2596 = vld [vmem:[#allocation5 + $0x2f8] sm:$0xff]
    %v2597 = vld [vmem:[#allocation5 + $0x300] sm:$0xff]
    %v2598 = vld [vmem:[#allocation5 + $0x308] sm:$0xff]
    %v2697 = vunpack.c.l.b16 %v2501
    %v2698 = vunpack.c.h.b16 %v2501
    %v2699 = vunpack.c.l.b16 %v2502
    %v2700 = vunpack.c.h.b16 %v2502
    %v2701 = vunpack.c.l.b16 %v2503
    %v2702 = vunpack.c.h.b16 %v2503
    %v2703 = vunpack.c.l.b16 %v2504
    %v2704 = vunpack.c.h.b16 %v2504
    %v2705 = vunpack.c.l.b16 %v2505
    %v2706 = vunpack.c.h.b16 %v2505
    %v2707 = vunpack.c.l.b16 %v2506
    %v2708 = vunpack.c.h.b16 %v2506
    %v2709 = vunpack.c.l.b16 %v2507
    %v2710 = vunpack.c.h.b16 %v2507
    %v2711 = vunpack.c.l.b16 %v2508
    %v2712 = vunpack.c.h.b16 %v2508
    %v2713 = vunpack.c.l.b16 %v2509
    %v2714 = vunpack.c.h.b16 %v2509
    %v2715 = vunpack.c.l.b16 %v2510
    %v2716 = vunpack.c.h.b16 %v2510
    %v2717 = vunpack.c.l.b16 %v2511
    %v2718 = vunpack.c.h.b16 %v2511
    %v2719 = vunpack.c.l.b16 %v2512
    %v2720 = vunpack.c.h.b16 %v2512
    %v2721 = vunpack.c.l.b16 %v2513
    %v2722 = vunpack.c.h.b16 %v2513
    %v2723 = vunpack.c.l.b16 %v2514
    %v2724 = vunpack.c.h.b16 %v2514
    %v2725 = vunpack.c.l.b16 %v2515
    %v2726 = vunpack.c.h.b16 %v2515
    %v2727 = vunpack.c.l.b16 %v2516
    %v2728 = vunpack.c.h.b16 %v2516
    %v2729 = vunpack.c.l.b16 %v2517
    %v2730 = vunpack.c.h.b16 %v2517
    %v2731 = vunpack.c.l.b16 %v2518
    %v2732 = vunpack.c.h.b16 %v2518
    %v2733 = vunpack.c.l.b16 %v2519
    %v2734 = vunpack.c.h.b16 %v2519
    %v2735 = vunpack.c.l.b16 %v2520
    %v2736 = vunpack.c.h.b16 %v2520
    %v2737 = vunpack.c.l.b16 %v2521
    %v2738 = vunpack.c.h.b16 %v2521
    %v2739 = vunpack.c.l.b16 %v2522
    %v2740 = vunpack.c.h.b16 %v2522
    %v2741 = vunpack.c.l.b16 %v2523
    %v2742 = vunpack.c.h.b16 %v2523
    %v2743 = vunpack.c.l.b16 %v2524
    %v2744 = vunpack.c.h.b16 %v2524
    %v2745 = vunpack.c.l.b16 %v2525
    %v2746 = vunpack.c.h.b16 %v2525
    %v2747 = vunpack.c.l.b16 %v2526
    %v2748 = vunpack.c.h.b16 %v2526
    %v2749 = vunpack.c.l.b16 %v2527
    %v2750 = vunpack.c.h.b16 %v2527
    %v2751 = vunpack.c.l.b16 %v2528
    %v2752 = vunpack.c.h.b16 %v2528
    %v2753 = vunpack.c.l.b16 %v2529
    %v2754 = vunpack.c.h.b16 %v2529
    %v2755 = vunpack.c.l.b16 %v2530
    %v2756 = vunpack.c.h.b16 %v2530
    %v2757 = vunpack.c.l.b16 %v2531
    %v2758 = vunpack.c.h.b16 %v2531
    %v2759 = vunpack.c.l.b16 %v2532
    %v2760 = vunpack.c.h.b16 %v2532
    %v2761 = vunpack.c.l.b16 %v2533
    %v2762 = vunpack.c.h.b16 %v2533
    %v2763 = vunpack.c.l.b16 %v2534
    %v2764 = vunpack.c.h.b16 %v2534
    %v2765 = vunpack.c.l.b16 %v2535
    %v2766 = vunpack.c.h.b16 %v2535
    %v2767 = vunpack.c.l.b16 %v2536
    %v2768 = vunpack.c.h.b16 %v2536
    %v2769 = vunpack.c.l.b16 %v2537
    %v2770 = vunpack.c.h.b16 %v2537
    %v2771 = vunpack.c.l.b16 %v2538
    %v2772 = vunpack.c.h.b16 %v2538
    %v2773 = vunpack.c.l.b16 %v2539
    %v2774 = vunpack.c.h.b16 %v2539
    %v2775 = vunpack.c.l.b16 %v2540
    %v2776 = vunpack.c.h.b16 %v2540
    %v2777 = vunpack.c.l.b16 %v2541
    %v2778 = vunpack.c.h.b16 %v2541
    %v2779 = vunpack.c.l.b16 %v2542
    %v2780 = vunpack.c.h.b16 %v2542
    %v2781 = vunpack.c.l.b16 %v2543
    %v2782 = vunpack.c.h.b16 %v2543
    %v2783 = vunpack.c.l.b16 %v2544
    %v2784 = vunpack.c.h.b16 %v2544
    %v2785 = vunpack.c.l.b16 %v2545
    %v2786 = vunpack.c.h.b16 %v2545
    %v2787 = vunpack.c.l.b16 %v2546
    %v2788 = vunpack.c.h.b16 %v2546
    %v2789 = vunpack.c.l.b16 %v2547
    %v2790 = vunpack.c.h.b16 %v2547
    %v2791 = vunpack.c.l.b16 %v2548
    %v2792 = vunpack.c.h.b16 %v2548
    %v2793 = vunpack.c.l.b16 %v2549
    %v2794 = vunpack.c.h.b16 %v2549
    %v2795 = vunpack.c.l.b16 %v2550
    %v2796 = vunpack.c.h.b16 %v2550
    %v2797 = vunpack.c.l.b16 %v2551
    %v2798 = vunpack.c.h.b16 %v2551
    %v2799 = vunpack.c.l.b16 %v2552
    %v2800 = vunpack.c.h.b16 %v2552
    %v2801 = vunpack.c.l.b16 %v2553
    %v2802 = vunpack.c.h.b16 %v2553
    %v2803 = vunpack.c.l.b16 %v2554
    %v2804 = vunpack.c.h.b16 %v2554
    %v2805 = vunpack.c.l.b16 %v2555
    %v2806 = vunpack.c.h.b16 %v2555
    %v2807 = vunpack.c.l.b16 %v2556
    %v2808 = vunpack.c.h.b16 %v2556
    %v2809 = vunpack.c.l.b16 %v2557
    %v2810 = vunpack.c.h.b16 %v2557
    %v2811 = vunpack.c.l.b16 %v2558
    %v2812 = vunpack.c.h.b16 %v2558
    %v2813 = vunpack.c.l.b16 %v2559
    %v2814 = vunpack.c.h.b16 %v2559
    %v2815 = vunpack.c.l.b16 %v2560
    %v2816 = vunpack.c.h.b16 %v2560
    %v2817 = vunpack.c.l.b16 %v2561
    %v2818 = vunpack.c.h.b16 %v2561
    %v2819 = vunpack.c.l.b16 %v2562
    %v2820 = vunpack.c.h.b16 %v2562
    %v2821 = vunpack.c.l.b16 %v2563
    %v2822 = vunpack.c.h.b16 %v2563
    %v2823 = vunpack.c.l.b16 %v2564
    %v2824 = vunpack.c.h.b16 %v2564
    %v2825 = vunpack.c.l.b16 %v2565
    %v2826 = vunpack.c.h.b16 %v2565
    %v2827 = vunpack.c.l.b16 %v2566
    %v2828 = vunpack.c.h.b16 %v2566
    %v2829 = vunpack.c.l.b16 %v2567
    %v2830 = vunpack.c.h.b16 %v2567
    %v2831 = vunpack.c.l.b16 %v2568
    %v2832 = vunpack.c.h.b16 %v2568
    %v2833 = vunpack.c.l.b16 %v2569
    %v2834 = vunpack.c.h.b16 %v2569
    %v2835 = vunpack.c.l.b16 %v2570
    %v2836 = vunpack.c.h.b16 %v2570
    %v2837 = vunpack.c.l.b16 %v2571
    %v2838 = vunpack.c.h.b16 %v2571
    %v2839 = vunpack.c.l.b16 %v2572
    %v2840 = vunpack.c.h.b16 %v2572
    %v2841 = vunpack.c.l.b16 %v2573
    %v2842 = vunpack.c.h.b16 %v2573
    %v2843 = vunpack.c.l.b16 %v2574
    %v2844 = vunpack.c.h.b16 %v2574
    %v2845 = vunpack.c.l.b16 %v2575
    %v2846 = vunpack.c.h.b16 %v2575
    %v2847 = vunpack.c.l.b16 %v2576
    %v2848 = vunpack.c.h.b16 %v2576
    %v2849 = vunpack.c.l.b16 %v2577
    %v2850 = vunpack.c.h.b16 %v2577
    %v2851 = vunpack.c.l.b16 %v2578
    %v2852 = vunpack.c.h.b16 %v2578
    %v2853 = vunpack.c.l.b16 %v2579
    %v2854 = vunpack.c.h.b16 %v2579
    %v2855 = vunpack.c.l.b16 %v2580
    %v2856 = vunpack.c.h.b16 %v2580
    %v2857 = vunpack.c.l.b16 %v2581
    %v2858 = vunpack.c.h.b16 %v2581
    %v2859 = vunpack.c.l.b16 %v2582
    %v2860 = vunpack.c.h.b16 %v2582
    %v2861 = vunpack.c.l.b16 %v2583
    %v2862 = vunpack.c.h.b16 %v2583
    %v2863 = vunpack.c.l.b16 %v2584
    %v2864 = vunpack.c.h.b16 %v2584
    %v2865 = vunpack.c.l.b16 %v2585
    %v2866 = vunpack.c.h.b16 %v2585
    %v2867 = vunpack.c.l.b16 %v2586
    %v2868 = vunpack.c.h.b16 %v2586
    %v2869 = vunpack.c.l.b16 %v2587
    %v2870 = vunpack.c.h.b16 %v2587
    %v2871 = vunpack.c.l.b16 %v2588
    %v2872 = vunpack.c.h.b16 %v2588
    %v2873 = vunpack.c.l.b16 %v2589
    %v2874 = vunpack.c.h.b16 %v2589
    %v2875 = vunpack.c.l.b16 %v2590
    %v2876 = vunpack.c.h.b16 %v2590
    %v2877 = vunpack.c.l.b16 %v2591
    %v2878 = vunpack.c.h.b16 %v2591
    %v2879 = vunpack.c.l.b16 %v2592
    %v2880 = vunpack.c.h.b16 %v2592
    %v2881 = vunpack.c.l.b16 %v2593
    %v2882 = vunpack.c.h.b16 %v2593
    %v2883 = vunpack.c.l.b16 %v2594
    %v2884 = vunpack.c.h.b16 %v2594
    %v2885 = vunpack.c.l.b16 %v2595
    %v2886 = vunpack.c.h.b16 %v2595
    %v2887 = vunpack.c.l.b16 %v2596
    %v2888 = vunpack.c.h.b16 %v2596
    %v2889 = vunpack.c.l.b16 %v2597
    %v2890 = vunpack.c.h.b16 %v2597
    %v2891 = vunpack.c.l.b16 %v2598
    %v2892 = vunpack.c.h.b16 %v2598
    %v2893 = vpack.c.b16 %v2725, %v2697
    %v2894 = vpack.c.b16 %v2726, %v2698
    %v2895 = vpack.c.b16 %v2727, %v2699
    %v2896 = vpack.c.b16 %v2728, %v2700
    %v2897 = vpack.c.b16 %v2729, %v2701
    %v2898 = vpack.c.b16 %v2730, %v2702
    %v2899 = vpack.c.b16 %v2731, %v2703
    %v2900 = vpack.c.b16 %v2732, %v2704
    %v2901 = vpack.c.b16 %v2733, %v2705
    %v2902 = vpack.c.b16 %v2734, %v2706
    %v2903 = vpack.c.b16 %v2735, %v2707
    %v2904 = vpack.c.b16 %v2736, %v2708
    %v2905 = vpack.c.b16 %v2737, %v2709
    %v2906 = vpack.c.b16 %v2738, %v2710
    %v2907 = vpack.c.b16 %v2739, %v2711
    %v2908 = vpack.c.b16 %v2740, %v2712
    %v2909 = vpack.c.b16 %v2741, %v2713
    %v2910 = vpack.c.b16 %v2742, %v2714
    %v2911 = vpack.c.b16 %v2743, %v2715
    %v2912 = vpack.c.b16 %v2744, %v2716
    %v2913 = vpack.c.b16 %v2745, %v2717
    %v2914 = vpack.c.b16 %v2746, %v2718
    %v2915 = vpack.c.b16 %v2747, %v2719
    %v2916 = vpack.c.b16 %v2748, %v2720
    %v2917 = vpack.c.b16 %v2749, %v2721
    %v2918 = vpack.c.b16 %v2750, %v2722
    %v2919 = vpack.c.b16 %v2751, %v2723
    %v2920 = vpack.c.b16 %v2752, %v2724
    %v2921 = vpack.c.b16 %v2781, %v2753
    %v2922 = vpack.c.b16 %v2782, %v2754
    %v2923 = vpack.c.b16 %v2783, %v2755
    %v2924 = vpack.c.b16 %v2784, %v2756
    %v2925 = vpack.c.b16 %v2785, %v2757
    %v2926 = vpack.c.b16 %v2786, %v2758
    %v2927 = vpack.c.b16 %v2787, %v2759
    %v2928 = vpack.c.b16 %v2788, %v2760
    %v2929 = vpack.c.b16 %v2789, %v2761
    %v2930 = vpack.c.b16 %v2790, %v2762
    %v2931 = vpack.c.b16 %v2791, %v2763
    %v2932 = vpack.c.b16 %v2792, %v2764
    %v2933 = vpack.c.b16 %v2793, %v2765
    %v2934 = vpack.c.b16 %v2794, %v2766
    %v2935 = vpack.c.b16 %v2795, %v2767
    %v2936 = vpack.c.b16 %v2796, %v2768
    %v2937 = vpack.c.b16 %v2797, %v2769
    %v2938 = vpack.c.b16 %v2798, %v2770
    %v2939 = vpack.c.b16 %v2799, %v2771
    %v2940 = vpack.c.b16 %v2800, %v2772
    %v2941 = vpack.c.b16 %v2801, %v2773
    %v2942 = vpack.c.b16 %v2802, %v2774
    %v2943 = vpack.c.b16 %v2803, %v2775
    %v2944 = vpack.c.b16 %v2804, %v2776
    %v2945 = vpack.c.b16 %v2805, %v2777
    %v2946 = vpack.c.b16 %v2806, %v2778
    %v2947 = vpack.c.b16 %v2807, %v2779
    %v2948 = vpack.c.b16 %v2808, %v2780
    %v2949 = vpack.c.b16 %v2837, %v2809
    %v2950 = vpack.c.b16 %v2838, %v2810
    %v2951 = vpack.c.b16 %v2839, %v2811
    %v2952 = vpack.c.b16 %v2840, %v2812
    %v2953 = vpack.c.b16 %v2841, %v2813
    %v2954 = vpack.c.b16 %v2842, %v2814
    %v2955 = vpack.c.b16 %v2843, %v2815
    %v2956 = vpack.c.b16 %v2844, %v2816
    %v2957 = vpack.c.b16 %v2845, %v2817
    %v2958 = vpack.c.b16 %v2846, %v2818
    %v2959 = vpack.c.b16 %v2847, %v2819
    %v2960 = vpack.c.b16 %v2848, %v2820
    %v2961 = vpack.c.b16 %v2849, %v2821
    %v2962 = vpack.c.b16 %v2850, %v2822
    %v2963 = vpack.c.b16 %v2851, %v2823
    %v2964 = vpack.c.b16 %v2852, %v2824
    %v2965 = vpack.c.b16 %v2853, %v2825
    %v2966 = vpack.c.b16 %v2854, %v2826
    %v2967 = vpack.c.b16 %v2855, %v2827
    %v2968 = vpack.c.b16 %v2856, %v2828
    %v2969 = vpack.c.b16 %v2857, %v2829
    %v2970 = vpack.c.b16 %v2858, %v2830
    %v2971 = vpack.c.b16 %v2859, %v2831
    %v2972 = vpack.c.b16 %v2860, %v2832
    %v2973 = vpack.c.b16 %v2861, %v2833
    %v2974 = vpack.c.b16 %v2862, %v2834
    %v2975 = vpack.c.b16 %v2863, %v2835
    %v2976 = vpack.c.b16 %v2864, %v2836
    %v2977 = vpack.c.b16 %v2865, %v2865
    %v2978 = vpack.c.b16 %v2866, %v2866
    %v2979 = vpack.c.b16 %v2867, %v2867
    %v2980 = vpack.c.b16 %v2868, %v2868
    %v2981 = vpack.c.b16 %v2869, %v2869
    %v2982 = vpack.c.b16 %v2870, %v2870
    %v2983 = vpack.c.b16 %v2871, %v2871
    %v2984 = vpack.c.b16 %v2872, %v2872
    %v2985 = vpack.c.b16 %v2873, %v2873
    %v2986 = vpack.c.b16 %v2874, %v2874
    %v2987 = vpack.c.b16 %v2875, %v2875
    %v2988 = vpack.c.b16 %v2876, %v2876
    %v2989 = vpack.c.b16 %v2877, %v2877
    %v2990 = vpack.c.b16 %v2878, %v2878
    %v2991 = vpack.c.b16 %v2879, %v2879
    %v2992 = vpack.c.b16 %v2880, %v2880
    %v2993 = vpack.c.b16 %v2881, %v2881
    %v2994 = vpack.c.b16 %v2882, %v2882
    %v2995 = vpack.c.b16 %v2883, %v2883
    %v2996 = vpack.c.b16 %v2884, %v2884
    %v2997 = vpack.c.b16 %v2885, %v2885
    %v2998 = vpack.c.b16 %v2886, %v2886
    %v2999 = vpack.c.b16 %v2887, %v2887
    %v3000 = vpack.c.b16 %v2888, %v2888
    %v3001 = vpack.c.b16 %v2889, %v2889
    %v3002 = vpack.c.b16 %v2890, %v2890
    %v3003 = vpack.c.b16 %v2891, %v2891
    %v3004 = vpack.c.b16 %v2892, %v2892
    %vm3089 = vcmask 457728
    %v3091 = vsel %vm3089, %v2500, 0
    %vm3093 = vcmask 1043456
    %v3095 = vsel %vm3093, %v2977, 0
    %v3098 = vsel %vm3093, %v2978, 0
    %v3101 = vsel %vm3093, %v2979, 0
    %v3104 = vsel %vm3093, %v2980, 0
    %v3107 = vsel %vm3093, %v2981, 0
    %v3110 = vsel %vm3093, %v2982, 0
    %v3113 = vsel %vm3093, %v2983, 0
    %v3116 = vsel %vm3093, %v2984, 0
    %v3119 = vsel %vm3093, %v2985, 0
    %v3122 = vsel %vm3093, %v2986, 0
    %v3125 = vsel %vm3093, %v2987, 0
    %v3128 = vsel %vm3093, %v2988, 0
    %v3131 = vsel %vm3093, %v2989, 0
    %v3134 = vsel %vm3093, %v2990, 0
    %v3137 = vsel %vm3093, %v2991, 0
    %v3140 = vsel %vm3093, %v2992, 0
    %v3143 = vsel %vm3093, %v2993, 0
    %v3146 = vsel %vm3093, %v2994, 0
    %v3149 = vsel %vm3093, %v2995, 0
    %v3152 = vsel %vm3093, %v2996, 0
    %v3155 = vsel %vm3093, %v2997, 0
    %v3158 = vsel %vm3093, %v2998, 0
    %v3161 = vsel %vm3093, %v2999, 0
    %v3164 = vsel %vm3093, %v3000, 0
    %v3167 = vsel %vm3093, %v3001, 0
    %v3170 = vsel %vm3093, %v3002, 0
    %v3173 = vsel %vm3093, %v3003, 0
    %v3176 = vsel %vm3093, %v3004, 0
    %3178 = vmatpush.bf16.msra.mxu0 0
    %3179 = vmatpush.bf16.msra.mxu0 0
    %3180 = vmatpush.bf16.msra.mxu0 0
    %3181 = vmatpush.bf16.msra.mxu0 0
    %3182 = vmatpush.bf16.msra.mxu0 %v3095
    %3183 = vmatpush.bf16.msra.mxu0 %v2949
    %3184 = vmatpush.bf16.msra.mxu0 %v2921
    %3185 = vmatpush.bf16.msra.mxu0 %v2893
    %3186 = vmatmul.bf16.gmra.mxu0 %v3091
    %v3187 = vpop.f32.mrf.mxu0
    %v3188 = vadd.f32 0.0, %v3187
    %v3189 = vpop.f32.mrf.mxu0
    %3190 = vdwg.mxu0
    %3191 = vmatpush.bf16.msra.mxu0 0
    %3192 = vmatpush.bf16.msra.mxu0 0
    %3193 = vmatpush.bf16.msra.mxu0 0
    %3194 = vmatpush.bf16.msra.mxu0 0
    %3195 = vmatpush.bf16.msra.mxu0 %v3098
    %3196 = vmatpush.bf16.msra.mxu0 %v2950
    %3197 = vmatpush.bf16.msra.mxu0 %v2922
    %3198 = vmatpush.bf16.msra.mxu0 %v2894
    %3199 = vmatmul.bf16.gmra.mxu0 %v3091
    %v3200 = vpop.f32.mrf.mxu0
    %v3201 = vadd.f32 0.0, %v3200
    %v3202 = vpop.f32.mrf.mxu0
    %3203 = vdwg.mxu0
    %3204 = vmatpush.bf16.msra.mxu0 0
    %3205 = vmatpush.bf16.msra.mxu0 0
    %3206 = vmatpush.bf16.msra.mxu0 0
    %3207 = vmatpush.bf16.msra.mxu0 0
    %3208 = vmatpush.bf16.msra.mxu0 %v3101
    %3209 = vmatpush.bf16.msra.mxu0 %v2951
    %3210 = vmatpush.bf16.msra.mxu0 %v2923
    %3211 = vmatpush.bf16.msra.mxu0 %v2895
    %3212 = vmatmul.bf16.gmra.mxu0 %v3091
    %v3213 = vpop.f32.mrf.mxu0
    %v3214 = vadd.f32 0.0, %v3213
    %v3215 = vpop.f32.mrf.mxu0
    %3216 = vdwg.mxu0
    %3217 = vmatpush.bf16.msra.mxu0 0
    %3218 = vmatpush.bf16.msra.mxu0 0
    %3219 = vmatpush.bf16.msra.mxu0 0
    %3220 = vmatpush.bf16.msra.mxu0 0
    %3221 = vmatpush.bf16.msra.mxu0 %v3104
    %3222 = vmatpush.bf16.msra.mxu0 %v2952
    %3223 = vmatpush.bf16.msra.mxu0 %v2924
    %3224 = vmatpush.bf16.msra.mxu0 %v2896
    %3225 = vmatmul.bf16.gmra.mxu0 %v3091
    %v3226 = vpop.f32.mrf.mxu0
    %v3227 = vadd.f32 0.0, %v3226
    %v3228 = vpop.f32.mrf.mxu0
    %3229 = vdwg.mxu0
    %3230 = vmatpush.bf16.msra.mxu0 0
    %3231 = vmatpush.bf16.msra.mxu0 0
    %3232 = vmatpush.bf16.msra.mxu0 0
    %3233 = vmatpush.bf16.msra.mxu0 0
    %3234 = vmatpush.bf16.msra.mxu0 %v3107
    %3235 = vmatpush.bf16.msra.mxu0 %v2953
    %3236 = vmatpush.bf16.msra.mxu0 %v2925
    %3237 = vmatpush.bf16.msra.mxu0 %v2897
    %3238 = vmatmul.bf16.gmra.mxu0 %v3091
    %v3239 = vpop.f32.mrf.mxu0
    %v3240 = vadd.f32 0.0, %v3239
    %v3241 = vpop.f32.mrf.mxu0
    %3242 = vdwg.mxu0
    %3243 = vmatpush.bf16.msra.mxu0 0
    %3244 = vmatpush.bf16.msra.mxu0 0
    %3245 = vmatpush.bf16.msra.mxu0 0
    %3246 = vmatpush.bf16.msra.mxu0 0
    %3247 = vmatpush.bf16.msra.mxu0 %v3110
    %3248 = vmatpush.bf16.msra.mxu0 %v2954
    %3249 = vmatpush.bf16.msra.mxu0 %v2926
    %3250 = vmatpush.bf16.msra.mxu0 %v2898
    %3251 = vmatmul.bf16.gmra.mxu0 %v3091
    %v3252 = vpop.f32.mrf.mxu0
    %v3253 = vadd.f32 0.0, %v3252
    %v3254 = vpop.f32.mrf.mxu0
    %3255 = vdwg.mxu0
    %3256 = vmatpush.bf16.msra.mxu0 0
    %3257 = vmatpush.bf16.msra.mxu0 0
    %3258 = vmatpush.bf16.msra.mxu0 0
    %3259 = vmatpush.bf16.msra.mxu0 0
    %3260 = vmatpush.bf16.msra.mxu0 %v3113
    %3261 = vmatpush.bf16.msra.mxu0 %v2955
    %3262 = vmatpush.bf16.msra.mxu0 %v2927
    %3263 = vmatpush.bf16.msra.mxu0 %v2899
    %3264 = vmatmul.bf16.gmra.mxu0 %v3091
    %v3265 = vpop.f32.mrf.mxu0
    %v3266 = vadd.f32 0.0, %v3265
    %v3267 = vpop.f32.mrf.mxu0
    %3268 = vdwg.mxu0
    %3269 = vmatpush.bf16.msra.mxu0 0
    %3270 = vmatpush.bf16.msra.mxu0 0
    %3271 = vmatpush.bf16.msra.mxu0 0
    %3272 = vmatpush.bf16.msra.mxu0 0
    %3273 = vmatpush.bf16.msra.mxu0 %v3116
    %3274 = vmatpush.bf16.msra.mxu0 %v2956
    %3275 = vmatpush.bf16.msra.mxu0 %v2928
    %3276 = vmatpush.bf16.msra.mxu0 %v2900
    %3277 = vmatmul.bf16.gmra.mxu0 %v3091
    %v3278 = vpop.f32.mrf.mxu0
    %v3279 = vadd.f32 0.0, %v3278
    %v3280 = vpop.f32.mrf.mxu0
    %3281 = vdwg.mxu0
    %3282 = vmatpush.bf16.msra.mxu0 0
    %3283 = vmatpush.bf16.msra.mxu0 0
    %3284 = vmatpush.bf16.msra.mxu0 0
    %3285 = vmatpush.bf16.msra.mxu0 0
    %3286 = vmatpush.bf16.msra.mxu0 %v3119
    %3287 = vmatpush.bf16.msra.mxu0 %v2957
    %3288 = vmatpush.bf16.msra.mxu0 %v2929
    %3289 = vmatpush.bf16.msra.mxu0 %v2901
    %3290 = vmatmul.bf16.gmra.mxu0 %v3091
    %v3291 = vpop.f32.mrf.mxu0
    %v3292 = vadd.f32 0.0, %v3291
    %v3293 = vpop.f32.mrf.mxu0
    %3294 = vdwg.mxu0
    %3295 = vmatpush.bf16.msra.mxu0 0
    %3296 = vmatpush.bf16.msra.mxu0 0
    %3297 = vmatpush.bf16.msra.mxu0 0
    %3298 = vmatpush.bf16.msra.mxu0 0
    %3299 = vmatpush.bf16.msra.mxu0 %v3122
    %3300 = vmatpush.bf16.msra.mxu0 %v2958
    %3301 = vmatpush.bf16.msra.mxu0 %v2930
    %3302 = vmatpush.bf16.msra.mxu0 %v2902
    %3303 = vmatmul.bf16.gmra.mxu0 %v3091
    %v3304 = vpop.f32.mrf.mxu0
    %v3305 = vadd.f32 0.0, %v3304
    %v3306 = vpop.f32.mrf.mxu0
    %3307 = vdwg.mxu0
    %3308 = vmatpush.bf16.msra.mxu0 0
    %3309 = vmatpush.bf16.msra.mxu0 0
    %3310 = vmatpush.bf16.msra.mxu0 0
    %3311 = vmatpush.bf16.msra.mxu0 0
    %3312 = vmatpush.bf16.msra.mxu0 %v3125
    %3313 = vmatpush.bf16.msra.mxu0 %v2959
    %3314 = vmatpush.bf16.msra.mxu0 %v2931
    %3315 = vmatpush.bf16.msra.mxu0 %v2903
    %3316 = vmatmul.bf16.gmra.mxu0 %v3091
    %v3317 = vpop.f32.mrf.mxu0
    %v3318 = vadd.f32 0.0, %v3317
    %v3319 = vpop.f32.mrf.mxu0
    %3320 = vdwg.mxu0
    %3321 = vmatpush.bf16.msra.mxu0 0
    %3322 = vmatpush.bf16.msra.mxu0 0
    %3323 = vmatpush.bf16.msra.mxu0 0
    %3324 = vmatpush.bf16.msra.mxu0 0
    %3325 = vmatpush.bf16.msra.mxu0 %v3128
    %3326 = vmatpush.bf16.msra.mxu0 %v2960
    %3327 = vmatpush.bf16.msra.mxu0 %v2932
    %3328 = vmatpush.bf16.msra.mxu0 %v2904
    %3329 = vmatmul.bf16.gmra.mxu0 %v3091
    %v3330 = vpop.f32.mrf.mxu0
    %v3331 = vadd.f32 0.0, %v3330
    %v3332 = vpop.f32.mrf.mxu0
    %3333 = vdwg.mxu0
    %3334 = vmatpush.bf16.msra.mxu0 0
    %3335 = vmatpush.bf16.msra.mxu0 0
    %3336 = vmatpush.bf16.msra.mxu0 0
    %3337 = vmatpush.bf16.msra.mxu0 0
    %3338 = vmatpush.bf16.msra.mxu0 %v3131
    %3339 = vmatpush.bf16.msra.mxu0 %v2961
    %3340 = vmatpush.bf16.msra.mxu0 %v2933
    %3341 = vmatpush.bf16.msra.mxu0 %v2905
    %3342 = vmatmul.bf16.gmra.mxu0 %v3091
    %v3343 = vpop.f32.mrf.mxu0
    %v3344 = vadd.f32 0.0, %v3343
    %v3345 = vpop.f32.mrf.mxu0
    %3346 = vdwg.mxu0
    %3347 = vmatpush.bf16.msra.mxu0 0
    %3348 = vmatpush.bf16.msra.mxu0 0
    %3349 = vmatpush.bf16.msra.mxu0 0
    %3350 = vmatpush.bf16.msra.mxu0 0
    %3351 = vmatpush.bf16.msra.mxu0 %v3134
    %3352 = vmatpush.bf16.msra.mxu0 %v2962
    %3353 = vmatpush.bf16.msra.mxu0 %v2934
    %3354 = vmatpush.bf16.msra.mxu0 %v2906
    %3355 = vmatmul.bf16.gmra.mxu0 %v3091
    %v3356 = vpop.f32.mrf.mxu0
    %v3357 = vadd.f32 0.0, %v3356
    %v3358 = vpop.f32.mrf.mxu0
    %3359 = vdwg.mxu0
    %3360 = vmatpush.bf16.msra.mxu0 0
    %3361 = vmatpush.bf16.msra.mxu0 0
    %3362 = vmatpush.bf16.msra.mxu0 0
    %3363 = vmatpush.bf16.msra.mxu0 0
    %3364 = vmatpush.bf16.msra.mxu0 %v3137
    %3365 = vmatpush.bf16.msra.mxu0 %v2963
    %3366 = vmatpush.bf16.msra.mxu0 %v2935
    %3367 = vmatpush.bf16.msra.mxu0 %v2907
    %3368 = vmatmul.bf16.gmra.mxu0 %v3091
    %v3369 = vpop.f32.mrf.mxu0
    %v3370 = vadd.f32 0.0, %v3369
    %v3371 = vpop.f32.mrf.mxu0
    %3372 = vdwg.mxu0
    %3373 = vmatpush.bf16.msra.mxu0 0
    %3374 = vmatpush.bf16.msra.mxu0 0
    %3375 = vmatpush.bf16.msra.mxu0 0
    %3376 = vmatpush.bf16.msra.mxu0 0
    %3377 = vmatpush.bf16.msra.mxu0 %v3140
    %3378 = vmatpush.bf16.msra.mxu0 %v2964
    %3379 = vmatpush.bf16.msra.mxu0 %v2936
    %3380 = vmatpush.bf16.msra.mxu0 %v2908
    %3381 = vmatmul.bf16.gmra.mxu0 %v3091
    %v3382 = vpop.f32.mrf.mxu0
    %v3383 = vadd.f32 0.0, %v3382
    %v3384 = vpop.f32.mrf.mxu0
    %3385 = vdwg.mxu0
    %3386 = vmatpush.bf16.msra.mxu0 0
    %3387 = vmatpush.bf16.msra.mxu0 0
    %3388 = vmatpush.bf16.msra.mxu0 0
    %3389 = vmatpush.bf16.msra.mxu0 0
    %3390 = vmatpush.bf16.msra.mxu0 %v3143
    %3391 = vmatpush.bf16.msra.mxu0 %v2965
    %3392 = vmatpush.bf16.msra.mxu0 %v2937
    %3393 = vmatpush.bf16.msra.mxu0 %v2909
    %3394 = vmatmul.bf16.gmra.mxu0 %v3091
    %v3395 = vpop.f32.mrf.mxu0
    %v3396 = vadd.f32 0.0, %v3395
    %v3397 = vpop.f32.mrf.mxu0
    %3398 = vdwg.mxu0
    %3399 = vmatpush.bf16.msra.mxu0 0
    %3400 = vmatpush.bf16.msra.mxu0 0
    %3401 = vmatpush.bf16.msra.mxu0 0
    %3402 = vmatpush.bf16.msra.mxu0 0
    %3403 = vmatpush.bf16.msra.mxu0 %v3146
    %3404 = vmatpush.bf16.msra.mxu0 %v2966
    %3405 = vmatpush.bf16.msra.mxu0 %v2938
    %3406 = vmatpush.bf16.msra.mxu0 %v2910
    %3407 = vmatmul.bf16.gmra.mxu0 %v3091
    %v3408 = vpop.f32.mrf.mxu0
    %v3409 = vadd.f32 0.0, %v3408
    %v3410 = vpop.f32.mrf.mxu0
    %3411 = vdwg.mxu0
    %3412 = vmatpush.bf16.msra.mxu0 0
    %3413 = vmatpush.bf16.msra.mxu0 0
    %3414 = vmatpush.bf16.msra.mxu0 0
    %3415 = vmatpush.bf16.msra.mxu0 0
    %3416 = vmatpush.bf16.msra.mxu0 %v3149
    %3417 = vmatpush.bf16.msra.mxu0 %v2967
    %3418 = vmatpush.bf16.msra.mxu0 %v2939
    %3419 = vmatpush.bf16.msra.mxu0 %v2911
    %3420 = vmatmul.bf16.gmra.mxu0 %v3091
    %v3421 = vpop.f32.mrf.mxu0
    %v3422 = vadd.f32 0.0, %v3421
    %v3423 = vpop.f32.mrf.mxu0
    %3424 = vdwg.mxu0
    %3425 = vmatpush.bf16.msra.mxu0 0
    %3426 = vmatpush.bf16.msra.mxu0 0
    %3427 = vmatpush.bf16.msra.mxu0 0
    %3428 = vmatpush.bf16.msra.mxu0 0
    %3429 = vmatpush.bf16.msra.mxu0 %v3152
    %3430 = vmatpush.bf16.msra.mxu0 %v2968
    %3431 = vmatpush.bf16.msra.mxu0 %v2940
    %3432 = vmatpush.bf16.msra.mxu0 %v2912
    %3433 = vmatmul.bf16.gmra.mxu0 %v3091
    %v3434 = vpop.f32.mrf.mxu0
    %v3435 = vadd.f32 0.0, %v3434
    %v3436 = vpop.f32.mrf.mxu0
    %3437 = vdwg.mxu0
    %3438 = vmatpush.bf16.msra.mxu0 0
    %3439 = vmatpush.bf16.msra.mxu0 0
    %3440 = vmatpush.bf16.msra.mxu0 0
    %3441 = vmatpush.bf16.msra.mxu0 0
    %3442 = vmatpush.bf16.msra.mxu0 %v3155
    %3443 = vmatpush.bf16.msra.mxu0 %v2969
    %3444 = vmatpush.bf16.msra.mxu0 %v2941
    %3445 = vmatpush.bf16.msra.mxu0 %v2913
    %3446 = vmatmul.bf16.gmra.mxu0 %v3091
    %v3447 = vpop.f32.mrf.mxu0
    %v3448 = vadd.f32 0.0, %v3447
    %v3449 = vpop.f32.mrf.mxu0
    %3450 = vdwg.mxu0
    %3451 = vmatpush.bf16.msra.mxu0 0
    %3452 = vmatpush.bf16.msra.mxu0 0
    %3453 = vmatpush.bf16.msra.mxu0 0
    %3454 = vmatpush.bf16.msra.mxu0 0
    %3455 = vmatpush.bf16.msra.mxu0 %v3158
    %3456 = vmatpush.bf16.msra.mxu0 %v2970
    %3457 = vmatpush.bf16.msra.mxu0 %v2942
    %3458 = vmatpush.bf16.msra.mxu0 %v2914
    %3459 = vmatmul.bf16.gmra.mxu0 %v3091
    %v3460 = vpop.f32.mrf.mxu0
    %v3461 = vadd.f32 0.0, %v3460
    %v3462 = vpop.f32.mrf.mxu0
    %3463 = vdwg.mxu0
    %3464 = vmatpush.bf16.msra.mxu0 0
    %3465 = vmatpush.bf16.msra.mxu0 0
    %3466 = vmatpush.bf16.msra.mxu0 0
    %3467 = vmatpush.bf16.msra.mxu0 0
    %3468 = vmatpush.bf16.msra.mxu0 %v3161
    %3469 = vmatpush.bf16.msra.mxu0 %v2971
    %3470 = vmatpush.bf16.msra.mxu0 %v2943
    %3471 = vmatpush.bf16.msra.mxu0 %v2915
    %3472 = vmatmul.bf16.gmra.mxu0 %v3091
    %v3473 = vpop.f32.mrf.mxu0
    %v3474 = vadd.f32 0.0, %v3473
    %v3475 = vpop.f32.mrf.mxu0
    %3476 = vdwg.mxu0
    %3477 = vmatpush.bf16.msra.mxu0 0
    %3478 = vmatpush.bf16.msra.mxu0 0
    %3479 = vmatpush.bf16.msra.mxu0 0
    %3480 = vmatpush.bf16.msra.mxu0 0
    %3481 = vmatpush.bf16.msra.mxu0 %v3164
    %3482 = vmatpush.bf16.msra.mxu0 %v2972
    %3483 = vmatpush.bf16.msra.mxu0 %v2944
    %3484 = vmatpush.bf16.msra.mxu0 %v2916
    %3485 = vmatmul.bf16.gmra.mxu0 %v3091
    %v3486 = vpop.f32.mrf.mxu0
    %v3487 = vadd.f32 0.0, %v3486
    %v3488 = vpop.f32.mrf.mxu0
    %3489 = vdwg.mxu0
    %3490 = vmatpush.bf16.msra.mxu0 0
    %3491 = vmatpush.bf16.msra.mxu0 0
    %3492 = vmatpush.bf16.msra.mxu0 0
    %3493 = vmatpush.bf16.msra.mxu0 0
    %3494 = vmatpush.bf16.msra.mxu0 %v3167
    %3495 = vmatpush.bf16.msra.mxu0 %v2973
    %3496 = vmatpush.bf16.msra.mxu0 %v2945
    %3497 = vmatpush.bf16.msra.mxu0 %v2917
    %3498 = vmatmul.bf16.gmra.mxu0 %v3091
    %v3499 = vpop.f32.mrf.mxu0
    %v3500 = vadd.f32 0.0, %v3499
    %v3501 = vpop.f32.mrf.mxu0
    %3502 = vdwg.mxu0
    %3503 = vmatpush.bf16.msra.mxu0 0
    %3504 = vmatpush.bf16.msra.mxu0 0
    %3505 = vmatpush.bf16.msra.mxu0 0
    %3506 = vmatpush.bf16.msra.mxu0 0
    %3507 = vmatpush.bf16.msra.mxu0 %v3170
    %3508 = vmatpush.bf16.msra.mxu0 %v2974
    %3509 = vmatpush.bf16.msra.mxu0 %v2946
    %3510 = vmatpush.bf16.msra.mxu0 %v2918
    %3511 = vmatmul.bf16.gmra.mxu0 %v3091
    %v3512 = vpop.f32.mrf.mxu0
    %v3513 = vadd.f32 0.0, %v3512
    %v3514 = vpop.f32.mrf.mxu0
    %3515 = vdwg.mxu0
    %3516 = vmatpush.bf16.msra.mxu0 0
    %3517 = vmatpush.bf16.msra.mxu0 0
    %3518 = vmatpush.bf16.msra.mxu0 0
    %3519 = vmatpush.bf16.msra.mxu0 0
    %3520 = vmatpush.bf16.msra.mxu0 %v3173
    %3521 = vmatpush.bf16.msra.mxu0 %v2975
    %3522 = vmatpush.bf16.msra.mxu0 %v2947
    %3523 = vmatpush.bf16.msra.mxu0 %v2919
    %3524 = vmatmul.bf16.gmra.mxu0 %v3091
    %v3525 = vpop.f32.mrf.mxu0
    %v3526 = vadd.f32 0.0, %v3525
    %v3527 = vpop.f32.mrf.mxu0
    %3528 = vdwg.mxu0
    %3529 = vmatpush.bf16.msra.mxu0 0
    %3530 = vmatpush.bf16.msra.mxu0 0
    %3531 = vmatpush.bf16.msra.mxu0 0
    %3532 = vmatpush.bf16.msra.mxu0 0
    %3533 = vmatpush.bf16.msra.mxu0 %v3176
    %3534 = vmatpush.bf16.msra.mxu0 %v2976
    %3535 = vmatpush.bf16.msra.mxu0 %v2948
    %3536 = vmatpush.bf16.msra.mxu0 %v2920
    %3537 = vmatmul.bf16.gmra.mxu0 %v3091
    %v3538 = vpop.f32.mrf.mxu0
    %v3539 = vadd.f32 0.0, %v3538
    %v3540 = vpop.f32.mrf.mxu0
    %3541 = vdwg.mxu0
    %v3542 = vld [vmem:[%s2] sm:$0xff]
    %v3543 = vld [vmem:[%s2 + $0x8] sm:$0xff]
    %v3544 = vld [vmem:[%s2 + $0x10] sm:$0xff]
    %v3545 = vld [vmem:[%s2 + $0x18] sm:$0xff]
    %v3546 = vld [vmem:[%s2 + $0x20] sm:$0xff]
    %v3547 = vld [vmem:[%s2 + $0x28] sm:$0xff]
    %v3548 = vld [vmem:[%s2 + $0x30] sm:$0xff]
    %3556 = vst [vmem:[#allocation1] ss:$4 sm:$0xff] %v3542
    %s3557 = scalar_lea.vmem [#allocation1], 32
    %3558 = vst [vmem:[%s3557] ss:$4 sm:$0xff] %v3543
    %v3559 = vld.sshfl [vmem:[#allocation1] sm:$0xff pattern:$0x73625140]
    %v3560 = vld.sshfl [vmem:[#allocation1 + $0x8] sm:$0xff pattern:$0x73625140]
    %v3561 = vld.sshfl [vmem:[#allocation1 + $0x10] sm:$0xff pattern:$0x73625140]
    %v3562 = vld.sshfl [vmem:[#allocation1 + $0x18] sm:$0xff pattern:$0x73625140]
    %v3563 = vld.sshfl [vmem:[#allocation1 + $0x20] sm:$0xff pattern:$0x73625140]
    %v3564 = vld.sshfl [vmem:[#allocation1 + $0x28] sm:$0xff pattern:$0x73625140]
    %v3565 = vld.sshfl [vmem:[#allocation1 + $0x30] sm:$0xff pattern:$0x73625140]
    %v3566 = vld.sshfl [vmem:[#allocation1 + $0x38] sm:$0xff pattern:$0x73625140]
    %3567 = vst [vmem:[#allocation1] ss:$4 sm:$0xff] %v3544
    %3568 = vst [vmem:[%s3557] ss:$4 sm:$0xff] %v3545
    %v3569 = vld.sshfl [vmem:[#allocation1] sm:$0xff pattern:$0x73625140]
    %v3570 = vld.sshfl [vmem:[#allocation1 + $0x8] sm:$0xff pattern:$0x73625140]
    %v3571 = vld.sshfl [vmem:[#allocation1 + $0x10] sm:$0xff pattern:$0x73625140]
    %v3572 = vld.sshfl [vmem:[#allocation1 + $0x18] sm:$0xff pattern:$0x73625140]
    %v3573 = vld.sshfl [vmem:[#allocation1 + $0x20] sm:$0xff pattern:$0x73625140]
    %v3574 = vld.sshfl [vmem:[#allocation1 + $0x28] sm:$0xff pattern:$0x73625140]
    %v3575 = vld.sshfl [vmem:[#allocation1 + $0x30] sm:$0xff pattern:$0x73625140]
    %v3576 = vld.sshfl [vmem:[#allocation1 + $0x38] sm:$0xff pattern:$0x73625140]
    %3577 = vst [vmem:[#allocation1] ss:$4 sm:$0xff] %v3546
    %3578 = vst [vmem:[%s3557] ss:$4 sm:$0xff] %v3547
    %v3579 = vld.sshfl [vmem:[#allocation1] sm:$0xff pattern:$0x73625140]
    %v3580 = vld.sshfl [vmem:[#allocation1 + $0x8] sm:$0xff pattern:$0x73625140]
    %v3581 = vld.sshfl [vmem:[#allocation1 + $0x10] sm:$0xff pattern:$0x73625140]
    %v3582 = vld.sshfl [vmem:[#allocation1 + $0x18] sm:$0xff pattern:$0x73625140]
    %v3583 = vld.sshfl [vmem:[#allocation1 + $0x20] sm:$0xff pattern:$0x73625140]
    %v3584 = vld.sshfl [vmem:[#allocation1 + $0x28] sm:$0xff pattern:$0x73625140]
    %v3585 = vld.sshfl [vmem:[#allocation1 + $0x30] sm:$0xff pattern:$0x73625140]
    %v3586 = vld.sshfl [vmem:[#allocation1 + $0x38] sm:$0xff pattern:$0x73625140]
    %3587 = vst [vmem:[#allocation1] ss:$4 sm:$0xff] %v3548
    %v3588 = vld.sshfl [vmem:[#allocation1] sm:$0xff pattern:$0x73625140]
    %v3589 = vld.sshfl [vmem:[#allocation1 + $0x8] sm:$0xff pattern:$0x73625140]
    %v3590 = vld.sshfl [vmem:[#allocation1 + $0x10] sm:$0xff pattern:$0x73625140]
    %v3591 = vld.sshfl [vmem:[#allocation1 + $0x18] sm:$0xff pattern:$0x73625140]
    %v3620 = vmul.f32 %v3188, %v3559
    %v3621 = vmul.f32 %v3201, %v3560
    %v3622 = vmul.f32 %v3214, %v3561
    %v3623 = vmul.f32 %v3227, %v3562
    %v3624 = vmul.f32 %v3240, %v3563
    %v3625 = vmul.f32 %v3253, %v3564
    %v3626 = vmul.f32 %v3266, %v3565
    %v3627 = vmul.f32 %v3279, %v3566
    %v3628 = vmul.f32 %v3292, %v3569
    %v3629 = vmul.f32 %v3305, %v3570
    %v3630 = vmul.f32 %v3318, %v3571
    %v3631 = vmul.f32 %v3331, %v3572
    %v3632 = vmul.f32 %v3344, %v3573
    %v3633 = vmul.f32 %v3357, %v3574
    %v3634 = vmul.f32 %v3370, %v3575
    %v3635 = vmul.f32 %v3383, %v3576
    %v3636 = vmul.f32 %v3396, %v3579
    %v3637 = vmul.f32 %v3409, %v3580
    %v3638 = vmul.f32 %v3422, %v3581
    %v3639 = vmul.f32 %v3435, %v3582
    %v3640 = vmul.f32 %v3448, %v3583
    %v3641 = vmul.f32 %v3461, %v3584
    %v3642 = vmul.f32 %v3474, %v3585
    %v3643 = vmul.f32 %v3487, %v3586
    %v3644 = vmul.f32 %v3500, %v3588
    %v3645 = vmul.f32 %v3513, %v3589
    %v3646 = vmul.f32 %v3526, %v3590
    %v3647 = vmul.f32 %v3539, %v3591
    %v3648 = vld [vmem:[#allocation23] sm:$0xff]
    %v3649 = vld [vmem:[#allocation23 + $0x8] sm:$0xff]
    %v3650 = vld [vmem:[#allocation23 + $0x10] sm:$0xff]
    %v3651 = vld [vmem:[#allocation23 + $0x18] sm:$0xff]
    %v3652 = vld [vmem:[#allocation23 + $0x20] sm:$0xff]
    %v3653 = vld [vmem:[#allocation23 + $0x28] sm:$0xff]
    %v3654 = vld [vmem:[#allocation23 + $0x30] sm:$0xff]
    %v3655 = vld [vmem:[#allocation23 + $0x38] sm:$0xff]
    %v3656 = vld [vmem:[#allocation23 + $0x40] sm:$0xff]
    %v3657 = vld [vmem:[#allocation23 + $0x48] sm:$0xff]
    %v3658 = vld [vmem:[#allocation23 + $0x50] sm:$0xff]
    %v3659 = vld [vmem:[#allocation23 + $0x58] sm:$0xff]
    %v3660 = vld [vmem:[#allocation23 + $0x60] sm:$0xff]
    %v3661 = vld [vmem:[#allocation23 + $0x68] sm:$0xff]
    %v3662 = vld [vmem:[#allocation23 + $0x70] sm:$0xff]
    %v3663 = vld [vmem:[#allocation23 + $0x78] sm:$0xff]
    %v3664 = vld [vmem:[#allocation23 + $0x80] sm:$0xff]
    %v3665 = vld [vmem:[#allocation23 + $0x88] sm:$0xff]
    %v3666 = vld [vmem:[#allocation23 + $0x90] sm:$0xff]
    %v3667 = vld [vmem:[#allocation23 + $0x98] sm:$0xff]
    %v3668 = vld [vmem:[#allocation23 + $0xa0] sm:$0xff]
    %v3669 = vld [vmem:[#allocation23 + $0xa8] sm:$0xff]
    %v3670 = vld [vmem:[#allocation23 + $0xb0] sm:$0xff]
    %v3671 = vld [vmem:[#allocation23 + $0xb8] sm:$0xff]
    %v3672 = vld [vmem:[#allocation23 + $0xc0] sm:$0xff]
    %v3673 = vld [vmem:[#allocation23 + $0xc8] sm:$0xff]
    %v3674 = vld [vmem:[#allocation23 + $0xd0] sm:$0xff]
    %v3675 = vld [vmem:[#allocation23 + $0xd8] sm:$0xff]
    %v3676 = vld [vmem:[#allocation23 + $0xe0] sm:$0xff]
    %v3677 = vld [vmem:[#allocation23 + $0xe8] sm:$0xff]
    %v3678 = vld [vmem:[#allocation23 + $0xf0] sm:$0xff]
    %v3679 = vld [vmem:[#allocation23 + $0xf8] sm:$0xff]
    %v3680 = vld [vmem:[#allocation25] sm:$0xf]
    %v3682 = vperm.slane %v3680, 0
    %v3683 = vperm.slane %v3680, 1
    %v3684 = vperm.slane %v3680, 2
    %v3685 = vperm.slane %v3680, 3
    %3690 = vmatpush.msra.mxu0 0.0
    %3691 = vmatpush.msra.mxu0 0.0
    %3692 = vmatpush.msra.mxu0 0.0
    %3693 = vmatpush.msra.mxu0 0.0
    %3694 = vmatpush.msra.mxu0 0.0
    %3695 = vmatpush.msra.mxu0 0.0
    %3696 = vmatpush.msra.mxu0 0.0
    %3697 = vmatpush.msra.mxu0 0.0
    %3698 = vmatpush.msra.mxu0 %v3676
    %3699 = vmatpush.msra.mxu0 %v3672
    %3700 = vmatpush.msra.mxu0 %v3668
    %3701 = vmatpush.msra.mxu0 %v3664
    %3702 = vmatpush.msra.mxu0 %v3660
    %3703 = vmatpush.msra.mxu0 %v3656
    %3704 = vmatpush.msra.mxu0 %v3652
    %3705 = vmatpush.msra.mxu0 %v3648
    %3706 = vmatmul.f32.gmra.mxu0 %v2305
    %v3707 = vpop.f32.mrf.mxu0
    %v3708 = vadd.f32 %v3682, %v3707
    %3709 = vdwg.mxu0
    %3710 = vmatpush.msra.mxu0 0.0
    %3711 = vmatpush.msra.mxu0 0.0
    %3712 = vmatpush.msra.mxu0 0.0
    %3713 = vmatpush.msra.mxu0 0.0
    %3714 = vmatpush.msra.mxu0 0.0
    %3715 = vmatpush.msra.mxu0 0.0
    %3716 = vmatpush.msra.mxu0 0.0
    %3717 = vmatpush.msra.mxu0 0.0
    %3718 = vmatpush.msra.mxu0 %v3677
    %3719 = vmatpush.msra.mxu0 %v3673
    %3720 = vmatpush.msra.mxu0 %v3669
    %3721 = vmatpush.msra.mxu0 %v3665
    %3722 = vmatpush.msra.mxu0 %v3661
    %3723 = vmatpush.msra.mxu0 %v3657
    %3724 = vmatpush.msra.mxu0 %v3653
    %3725 = vmatpush.msra.mxu0 %v3649
    %3726 = vmatmul.f32.gmra.mxu0 %v2305
    %v3727 = vpop.f32.mrf.mxu0
    %v3728 = vadd.f32 %v3683, %v3727
    %3729 = vdwg.mxu0
    %3730 = vmatpush.msra.mxu0 0.0
    %3731 = vmatpush.msra.mxu0 0.0
    %3732 = vmatpush.msra.mxu0 0.0
    %3733 = vmatpush.msra.mxu0 0.0
    %3734 = vmatpush.msra.mxu0 0.0
    %3735 = vmatpush.msra.mxu0 0.0
    %3736 = vmatpush.msra.mxu0 0.0
    %3737 = vmatpush.msra.mxu0 0.0
    %3738 = vmatpush.msra.mxu0 %v3678
    %3739 = vmatpush.msra.mxu0 %v3674
    %3740 = vmatpush.msra.mxu0 %v3670
    %3741 = vmatpush.msra.mxu0 %v3666
    %3742 = vmatpush.msra.mxu0 %v3662
    %3743 = vmatpush.msra.mxu0 %v3658
    %3744 = vmatpush.msra.mxu0 %v3654
    %3745 = vmatpush.msra.mxu0 %v3650
    %3746 = vmatmul.f32.gmra.mxu0 %v2305
    %v3747 = vpop.f32.mrf.mxu0
    %v3748 = vadd.f32 %v3684, %v3747
    %3749 = vdwg.mxu0
    %3750 = vmatpush.msra.mxu0 0.0
    %3751 = vmatpush.msra.mxu0 0.0
    %3752 = vmatpush.msra.mxu0 0.0
    %3753 = vmatpush.msra.mxu0 0.0
    %3754 = vmatpush.msra.mxu0 0.0
    %3755 = vmatpush.msra.mxu0 0.0
    %3756 = vmatpush.msra.mxu0 0.0
    %3757 = vmatpush.msra.mxu0 0.0
    %3758 = vmatpush.msra.mxu0 %v3679
    %3759 = vmatpush.msra.mxu0 %v3675
    %3760 = vmatpush.msra.mxu0 %v3671
    %3761 = vmatpush.msra.mxu0 %v3667
    %3762 = vmatpush.msra.mxu0 %v3663
    %3763 = vmatpush.msra.mxu0 %v3659
    %3764 = vmatpush.msra.mxu0 %v3655
    %3765 = vmatpush.msra.mxu0 %v3651
    %3766 = vmatmul.f32.gmra.mxu0 %v2305
    %v3767 = vpop.f32.mrf.mxu0
    %v3768 = vadd.f32 %v3685, %v3767
    %3769 = vdwg.mxu0
    %s3770 = smul.u32 4, 448
    %s3771 = smul.u32 %s3770, 4
    %s3772 = sshll.u32 %s3771, 4
    %3773 = dma.done [#allocation3], %s3772
    %v3774 = vpack.c.bf16 %v3620, %v3620
    %v3775 = vpack.c.bf16 %v3621, %v3621
    %v3776 = vpack.c.bf16 %v3622, %v3622
    %v3777 = vpack.c.bf16 %v3623, %v3623
    %v3778 = vpack.c.bf16 %v3624, %v3624
    %v3779 = vpack.c.bf16 %v3625, %v3625
    %v3780 = vpack.c.bf16 %v3626, %v3626
    %v3781 = vpack.c.bf16 %v3627, %v3627
    %v3782 = vpack.c.bf16 %v3628, %v3628
    %v3783 = vpack.c.bf16 %v3629, %v3629
    %v3784 = vpack.c.bf16 %v3630, %v3630
    %v3785 = vpack.c.bf16 %v3631, %v3631
    %v3786 = vpack.c.bf16 %v3632, %v3632
    %v3787 = vpack.c.bf16 %v3633, %v3633
    %v3788 = vpack.c.bf16 %v3634, %v3634
    %v3789 = vpack.c.bf16 %v3635, %v3635
    %v3790 = vpack.c.bf16 %v3636, %v3636
    %v3791 = vpack.c.bf16 %v3637, %v3637
    %v3792 = vpack.c.bf16 %v3638, %v3638
    %v3793 = vpack.c.bf16 %v3639, %v3639
    %v3794 = vpack.c.bf16 %v3640, %v3640
    %v3795 = vpack.c.bf16 %v3641, %v3641
    %v3796 = vpack.c.bf16 %v3642, %v3642
    %v3797 = vpack.c.bf16 %v3643, %v3643
    %v3798 = vpack.c.bf16 %v3644, %v3644
    %v3799 = vpack.c.bf16 %v3645, %v3645
    %v3800 = vpack.c.bf16 %v3646, %v3646
    %v3801 = vpack.c.bf16 %v3647, %v3647
    %v3802 = vld [vmem:[#allocation2] sm:$0xff]
    %v3803 = vld [vmem:[#allocation2 + $0x8] sm:$0xff]
    %v3804 = vld [vmem:[#allocation2 + $0x10] sm:$0xff]
    %v3805 = vld [vmem:[#allocation2 + $0x18] sm:$0xff]
    %v3806 = vld [vmem:[#allocation2 + $0x20] sm:$0xff]
    %v3807 = vld [vmem:[#allocation2 + $0x28] sm:$0xff]
    %v3808 = vld [vmem:[#allocation2 + $0x30] sm:$0xff]
    %v3809 = vld [vmem:[#allocation2 + $0x38] sm:$0xff]
    %v3810 = vld [vmem:[#allocation2 + $0x40] sm:$0xff]
    %v3811 = vld [vmem:[#allocation2 + $0x48] sm:$0xff]
    %v3812 = vld [vmem:[#allocation2 + $0x50] sm:$0xff]
    %v3813 = vld [vmem:[#allocation2 + $0x58] sm:$0xff]
    %v3814 = vld [vmem:[#allocation2 + $0x60] sm:$0xff]
    %v3815 = vld [vmem:[#allocation2 + $0x68] sm:$0xff]
    %v3816 = vld [vmem:[#allocation2 + $0x70] sm:$0xff]
    %v3817 = vld [vmem:[#allocation2 + $0x78] sm:$0xff]
    %v3818 = vld [vmem:[#allocation2 + $0x80] sm:$0xff]
    %v3819 = vld [vmem:[#allocation2 + $0x88] sm:$0xff]
    %v3820 = vld [vmem:[#allocation2 + $0x90] sm:$0xff]
    %v3821 = vld [vmem:[#allocation2 + $0x98] sm:$0xff]
    %v3822 = vld [vmem:[#allocation2 + $0xa0] sm:$0xff]
    %v3823 = vld [vmem:[#allocation2 + $0xa8] sm:$0xff]
    %v3824 = vld [vmem:[#allocation2 + $0xb0] sm:$0xff]
    %v3825 = vld [vmem:[#allocation2 + $0xb8] sm:$0xff]
    %v3826 = vld [vmem:[#allocation2 + $0xc0] sm:$0xff]
    %v3827 = vld [vmem:[#allocation2 + $0xc8] sm:$0xff]
    %v3828 = vld [vmem:[#allocation2 + $0xd0] sm:$0xff]
    %v3829 = vld [vmem:[#allocation2 + $0xd8] sm:$0xff]
    %v3830 = vld [vmem:[#allocation2 + $0xe0] sm:$0xff]
    %v3831 = vld [vmem:[#allocation2 + $0xe8] sm:$0xff]
    %v3832 = vld [vmem:[#allocation2 + $0xf0] sm:$0xff]
    %v3833 = vld [vmem:[#allocation2 + $0xf8] sm:$0xff]
    %v3834 = vld [vmem:[#allocation2 + $0x100] sm:$0xff]
    %v3835 = vld [vmem:[#allocation2 + $0x108] sm:$0xff]
    %v3836 = vld [vmem:[#allocation2 + $0x110] sm:$0xff]
    %v3837 = vld [vmem:[#allocation2 + $0x118] sm:$0xff]
    %v3838 = vld [vmem:[#allocation2 + $0x120] sm:$0xff]
    %v3839 = vld [vmem:[#allocation2 + $0x128] sm:$0xff]
    %v3840 = vld [vmem:[#allocation2 + $0x130] sm:$0xff]
    %v3841 = vld [vmem:[#allocation2 + $0x138] sm:$0xff]
    %v3842 = vld [vmem:[#allocation2 + $0x140] sm:$0xff]
    %v3843 = vld [vmem:[#allocation2 + $0x148] sm:$0xff]
    %v3844 = vld [vmem:[#allocation2 + $0x150] sm:$0xff]
    %v3845 = vld [vmem:[#allocation2 + $0x158] sm:$0xff]
    %v3846 = vld [vmem:[#allocation2 + $0x160] sm:$0xff]
    %v3847 = vld [vmem:[#allocation2 + $0x168] sm:$0xff]
    %v3848 = vld [vmem:[#allocation2 + $0x170] sm:$0xff]
    %v3849 = vld [vmem:[#allocation2 + $0x178] sm:$0xff]
    %v3850 = vld [vmem:[#allocation2 + $0x180] sm:$0xff]
    %v3851 = vld [vmem:[#allocation2 + $0x188] sm:$0xff]
    %v3852 = vld [vmem:[#allocation2 + $0x190] sm:$0xff]
    %v3853 = vld [vmem:[#allocation2 + $0x198] sm:$0xff]
    %v3854 = vld [vmem:[#allocation2 + $0x1a0] sm:$0xff]
    %v3855 = vld [vmem:[#allocation2 + $0x1a8] sm:$0xff]
    %v3856 = vld [vmem:[#allocation2 + $0x1b0] sm:$0xff]
    %v3857 = vld [vmem:[#allocation2 + $0x1b8] sm:$0xff]
    %v3858 = vld [vmem:[#allocation2 + $0x1c0] sm:$0xff]
    %v3859 = vld [vmem:[#allocation2 + $0x1c8] sm:$0xff]
    %v3860 = vld [vmem:[#allocation2 + $0x1d0] sm:$0xff]
    %v3861 = vld [vmem:[#allocation2 + $0x1d8] sm:$0xff]
    %v3862 = vld [vmem:[#allocation2 + $0x1e0] sm:$0xff]
    %v3863 = vld [vmem:[#allocation2 + $0x1e8] sm:$0xff]
    %v3864 = vld [vmem:[#allocation2 + $0x1f0] sm:$0xff]
    %v3865 = vld [vmem:[#allocation2 + $0x1f8] sm:$0xff]
    %v3866 = vld [vmem:[#allocation2 + $0x200] sm:$0xff]
    %v3867 = vld [vmem:[#allocation2 + $0x208] sm:$0xff]
    %v3868 = vld [vmem:[#allocation2 + $0x210] sm:$0xff]
    %v3869 = vld [vmem:[#allocation2 + $0x218] sm:$0xff]
    %v3870 = vld [vmem:[#allocation2 + $0x220] sm:$0xff]
    %v3871 = vld [vmem:[#allocation2 + $0x228] sm:$0xff]
    %v3872 = vld [vmem:[#allocation2 + $0x230] sm:$0xff]
    %v3873 = vld [vmem:[#allocation2 + $0x238] sm:$0xff]
    %v3874 = vld [vmem:[#allocation2 + $0x240] sm:$0xff]
    %v3875 = vld [vmem:[#allocation2 + $0x248] sm:$0xff]
    %v3876 = vld [vmem:[#allocation2 + $0x250] sm:$0xff]
    %v3877 = vld [vmem:[#allocation2 + $0x258] sm:$0xff]
    %v3878 = vld [vmem:[#allocation2 + $0x260] sm:$0xff]
    %v3879 = vld [vmem:[#allocation2 + $0x268] sm:$0xff]
    %v3880 = vld [vmem:[#allocation2 + $0x270] sm:$0xff]
    %v3881 = vld [vmem:[#allocation2 + $0x278] sm:$0xff]
    %v3882 = vld [vmem:[#allocation2 + $0x280] sm:$0xff]
    %v3883 = vld [vmem:[#allocation2 + $0x288] sm:$0xff]
    %v3884 = vld [vmem:[#allocation2 + $0x290] sm:$0xff]
    %v3885 = vld [vmem:[#allocation2 + $0x298] sm:$0xff]
    %v3886 = vld [vmem:[#allocation2 + $0x2a0] sm:$0xff]
    %v3887 = vld [vmem:[#allocation2 + $0x2a8] sm:$0xff]
    %v3888 = vld [vmem:[#allocation2 + $0x2b0] sm:$0xff]
    %v3889 = vld [vmem:[#allocation2 + $0x2b8] sm:$0xff]
    %v3890 = vld [vmem:[#allocation2 + $0x2c0] sm:$0xff]
    %v3891 = vld [vmem:[#allocation2 + $0x2c8] sm:$0xff]
    %v3892 = vld [vmem:[#allocation2 + $0x2d0] sm:$0xff]
    %v3893 = vld [vmem:[#allocation2 + $0x2d8] sm:$0xff]
    %v3894 = vld [vmem:[#allocation2 + $0x2e0] sm:$0xff]
    %v3895 = vld [vmem:[#allocation2 + $0x2e8] sm:$0xff]
    %v3896 = vld [vmem:[#allocation2 + $0x2f0] sm:$0xff]
    %v3897 = vld [vmem:[#allocation2 + $0x2f8] sm:$0xff]
    %v3898 = vld [vmem:[#allocation2 + $0x300] sm:$0xff]
    %v3899 = vld [vmem:[#allocation2 + $0x308] sm:$0xff]
    %v3900 = vld [vmem:[#allocation2 + $0x310] sm:$0xff]
    %v3901 = vld [vmem:[#allocation2 + $0x318] sm:$0xff]
    %v3902 = vld [vmem:[#allocation2 + $0x320] sm:$0xff]
    %v3903 = vld [vmem:[#allocation2 + $0x328] sm:$0xff]
    %v3904 = vld [vmem:[#allocation2 + $0x330] sm:$0xff]
    %v3905 = vld [vmem:[#allocation2 + $0x338] sm:$0xff]
    %v3906 = vld [vmem:[#allocation2 + $0x340] sm:$0xff]
    %v3907 = vld [vmem:[#allocation2 + $0x348] sm:$0xff]
    %v3908 = vld [vmem:[#allocation2 + $0x350] sm:$0xff]
    %v3909 = vld [vmem:[#allocation2 + $0x358] sm:$0xff]
    %v3910 = vld [vmem:[#allocation2 + $0x360] sm:$0xff]
    %v3911 = vld [vmem:[#allocation2 + $0x368] sm:$0xff]
    %v3912 = vld [vmem:[#allocation2 + $0x370] sm:$0xff]
    %v3913 = vld [vmem:[#allocation2 + $0x378] sm:$0xff]
    %v3914 = vld [vmem:[#allocation2 + $0x380] sm:$0xff]
    %v3915 = vld [vmem:[#allocation2 + $0x388] sm:$0xff]
    %v3916 = vld [vmem:[#allocation2 + $0x390] sm:$0xff]
    %v3917 = vld [vmem:[#allocation2 + $0x398] sm:$0xff]
    %v3918 = vld [vmem:[#allocation2 + $0x3a0] sm:$0xff]
    %v3919 = vld [vmem:[#allocation2 + $0x3a8] sm:$0xff]
    %v3920 = vld [vmem:[#allocation2 + $0x3b0] sm:$0xff]
    %v3921 = vld [vmem:[#allocation2 + $0x3b8] sm:$0xff]
    %v3922 = vld [vmem:[#allocation2 + $0x3c0] sm:$0xff]
    %v3923 = vld [vmem:[#allocation2 + $0x3c8] sm:$0xff]
    %v3924 = vld [vmem:[#allocation2 + $0x3d0] sm:$0xff]
    %v3925 = vld [vmem:[#allocation2 + $0x3d8] sm:$0xff]
    %v3926 = vld [vmem:[#allocation2 + $0x3e0] sm:$0xff]
    %v3927 = vld [vmem:[#allocation2 + $0x3e8] sm:$0xff]
    %v3928 = vld [vmem:[#allocation2 + $0x3f0] sm:$0xff]
    %v3929 = vld [vmem:[#allocation2 + $0x3f8] sm:$0xff]
    %v3930 = vld [vmem:[#allocation2 + $0x400] sm:$0xff]
    %v3931 = vld [vmem:[#allocation2 + $0x408] sm:$0xff]
    %v3932 = vld [vmem:[#allocation2 + $0x410] sm:$0xff]
    %v3933 = vld [vmem:[#allocation2 + $0x418] sm:$0xff]
    %v3934 = vld [vmem:[#allocation2 + $0x420] sm:$0xff]
    %v3935 = vld [vmem:[#allocation2 + $0x428] sm:$0xff]
    %v3936 = vld [vmem:[#allocation2 + $0x430] sm:$0xff]
    %v3937 = vld [vmem:[#allocation2 + $0x438] sm:$0xff]
    %v3938 = vld [vmem:[#allocation2 + $0x440] sm:$0xff]
    %v3939 = vld [vmem:[#allocation2 + $0x448] sm:$0xff]
    %v3940 = vld [vmem:[#allocation2 + $0x450] sm:$0xff]
    %v3941 = vld [vmem:[#allocation2 + $0x458] sm:$0xff]
    %v3942 = vld [vmem:[#allocation2 + $0x460] sm:$0xff]
    %v3943 = vld [vmem:[#allocation2 + $0x468] sm:$0xff]
    %v3944 = vld [vmem:[#allocation2 + $0x470] sm:$0xff]
    %v3945 = vld [vmem:[#allocation2 + $0x478] sm:$0xff]
    %v3946 = vld [vmem:[#allocation2 + $0x480] sm:$0xff]
    %v3947 = vld [vmem:[#allocation2 + $0x488] sm:$0xff]
    %v3948 = vld [vmem:[#allocation2 + $0x490] sm:$0xff]
    %v3949 = vld [vmem:[#allocation2 + $0x498] sm:$0xff]
    %v3950 = vld [vmem:[#allocation2 + $0x4a0] sm:$0xff]
    %v3951 = vld [vmem:[#allocation2 + $0x4a8] sm:$0xff]
    %v3952 = vld [vmem:[#allocation2 + $0x4b0] sm:$0xff]
    %v3953 = vld [vmem:[#allocation2 + $0x4b8] sm:$0xff]
    %v3954 = vld [vmem:[#allocation2 + $0x4c0] sm:$0xff]
    %v3955 = vld [vmem:[#allocation2 + $0x4c8] sm:$0xff]
    %v3956 = vld [vmem:[#allocation2 + $0x4d0] sm:$0xff]
    %v3957 = vld [vmem:[#allocation2 + $0x4d8] sm:$0xff]
    %v3958 = vld [vmem:[#allocation2 + $0x4e0] sm:$0xff]
    %v3959 = vld [vmem:[#allocation2 + $0x4e8] sm:$0xff]
    %v3960 = vld [vmem:[#allocation2 + $0x4f0] sm:$0xff]
    %v3961 = vld [vmem:[#allocation2 + $0x4f8] sm:$0xff]
    %v3962 = vld [vmem:[#allocation2 + $0x500] sm:$0xff]
    %v3963 = vld [vmem:[#allocation2 + $0x508] sm:$0xff]
    %v3964 = vld [vmem:[#allocation2 + $0x510] sm:$0xff]
    %v3965 = vld [vmem:[#allocation2 + $0x518] sm:$0xff]
    %v3966 = vld [vmem:[#allocation2 + $0x520] sm:$0xff]
    %v3967 = vld [vmem:[#allocation2 + $0x528] sm:$0xff]
    %v3968 = vld [vmem:[#allocation2 + $0x530] sm:$0xff]
    %v3969 = vld [vmem:[#allocation2 + $0x538] sm:$0xff]
    %v3970 = vld [vmem:[#allocation2 + $0x540] sm:$0xff]
    %v3971 = vld [vmem:[#allocation2 + $0x548] sm:$0xff]
    %v3972 = vld [vmem:[#allocation2 + $0x550] sm:$0xff]
    %v3973 = vld [vmem:[#allocation2 + $0x558] sm:$0xff]
    %v3974 = vld [vmem:[#allocation2 + $0x560] sm:$0xff]
    %v3975 = vld [vmem:[#allocation2 + $0x568] sm:$0xff]
    %v3976 = vld [vmem:[#allocation2 + $0x570] sm:$0xff]
    %v3977 = vld [vmem:[#allocation2 + $0x578] sm:$0xff]
    %v3978 = vld [vmem:[#allocation2 + $0x580] sm:$0xff]
    %v3979 = vld [vmem:[#allocation2 + $0x588] sm:$0xff]
    %v3980 = vld [vmem:[#allocation2 + $0x590] sm:$0xff]
    %v3981 = vld [vmem:[#allocation2 + $0x598] sm:$0xff]
    %v3982 = vld [vmem:[#allocation2 + $0x5a0] sm:$0xff]
    %v3983 = vld [vmem:[#allocation2 + $0x5a8] sm:$0xff]
    %v3984 = vld [vmem:[#allocation2 + $0x5b0] sm:$0xff]
    %v3985 = vld [vmem:[#allocation2 + $0x5b8] sm:$0xff]
    %v3986 = vld [vmem:[#allocation2 + $0x5c0] sm:$0xff]
    %v3987 = vld [vmem:[#allocation2 + $0x5c8] sm:$0xff]
    %v3988 = vld [vmem:[#allocation2 + $0x5d0] sm:$0xff]
    %v3989 = vld [vmem:[#allocation2 + $0x5d8] sm:$0xff]
    %v3990 = vld [vmem:[#allocation2 + $0x5e0] sm:$0xff]
    %v3991 = vld [vmem:[#allocation2 + $0x5e8] sm:$0xff]
    %v3992 = vld [vmem:[#allocation2 + $0x5f0] sm:$0xff]
    %v3993 = vld [vmem:[#allocation2 + $0x5f8] sm:$0xff]
    %v3994 = vld [vmem:[#allocation2 + $0x600] sm:$0xff]
    %v3995 = vld [vmem:[#allocation2 + $0x608] sm:$0xff]
    %v3996 = vld [vmem:[#allocation2 + $0x610] sm:$0xff]
    %v3997 = vld [vmem:[#allocation2 + $0x618] sm:$0xff]
    %v3998 = vld [vmem:[#allocation2 + $0x620] sm:$0xff]
    %v3999 = vld [vmem:[#allocation2 + $0x628] sm:$0xff]
    %v4000 = vld [vmem:[#allocation2 + $0x630] sm:$0xff]
    %v4001 = vld [vmem:[#allocation2 + $0x638] sm:$0xff]
    %v4002 = vld [vmem:[#allocation2 + $0x640] sm:$0xff]
    %v4003 = vld [vmem:[#allocation2 + $0x648] sm:$0xff]
    %v4004 = vld [vmem:[#allocation2 + $0x650] sm:$0xff]
    %v4005 = vld [vmem:[#allocation2 + $0x658] sm:$0xff]
    %v4006 = vld [vmem:[#allocation2 + $0x660] sm:$0xff]
    %v4007 = vld [vmem:[#allocation2 + $0x668] sm:$0xff]
    %v4008 = vld [vmem:[#allocation2 + $0x670] sm:$0xff]
    %v4009 = vld [vmem:[#allocation2 + $0x678] sm:$0xff]
    %v4010 = vld [vmem:[#allocation2 + $0x680] sm:$0xff]
    %v4011 = vld [vmem:[#allocation2 + $0x688] sm:$0xff]
    %v4012 = vld [vmem:[#allocation2 + $0x690] sm:$0xff]
    %v4013 = vld [vmem:[#allocation2 + $0x698] sm:$0xff]
    %v4014 = vld [vmem:[#allocation2 + $0x6a0] sm:$0xff]
    %v4015 = vld [vmem:[#allocation2 + $0x6a8] sm:$0xff]
    %v4016 = vld [vmem:[#allocation2 + $0x6b0] sm:$0xff]
    %v4017 = vld [vmem:[#allocation2 + $0x6b8] sm:$0xff]
    %v4018 = vld [vmem:[#allocation2 + $0x6c0] sm:$0xff]
    %v4019 = vld [vmem:[#allocation2 + $0x6c8] sm:$0xff]
    %v4020 = vld [vmem:[#allocation2 + $0x6d0] sm:$0xff]
    %v4021 = vld [vmem:[#allocation2 + $0x6d8] sm:$0xff]
    %v4022 = vld [vmem:[#allocation2 + $0x6e0] sm:$0xff]
    %v4023 = vld [vmem:[#allocation2 + $0x6e8] sm:$0xff]
    %v4024 = vld [vmem:[#allocation2 + $0x6f0] sm:$0xff]
    %v4025 = vld [vmem:[#allocation2 + $0x6f8] sm:$0xff]
    %v4026 = vld [vmem:[#allocation2 + $0x700] sm:$0xff]
    %v4027 = vld [vmem:[#allocation2 + $0x708] sm:$0xff]
    %v4028 = vld [vmem:[#allocation2 + $0x710] sm:$0xff]
    %v4029 = vld [vmem:[#allocation2 + $0x718] sm:$0xff]
    %v4030 = vld [vmem:[#allocation2 + $0x720] sm:$0xff]
    %v4031 = vld [vmem:[#allocation2 + $0x728] sm:$0xff]
    %v4032 = vld [vmem:[#allocation2 + $0x730] sm:$0xff]
    %v4033 = vld [vmem:[#allocation2 + $0x738] sm:$0xff]
    %v4034 = vld [vmem:[#allocation2 + $0x740] sm:$0xff]
    %v4035 = vld [vmem:[#allocation2 + $0x748] sm:$0xff]
    %v4036 = vld [vmem:[#allocation2 + $0x750] sm:$0xff]
    %v4037 = vld [vmem:[#allocation2 + $0x758] sm:$0xff]
    %v4038 = vld [vmem:[#allocation2 + $0x760] sm:$0xff]
    %v4039 = vld [vmem:[#allocation2 + $0x768] sm:$0xff]
    %v4040 = vld [vmem:[#allocation2 + $0x770] sm:$0xff]
    %v4041 = vld [vmem:[#allocation2 + $0x778] sm:$0xff]
    %v4042 = vld [vmem:[#allocation2 + $0x780] sm:$0xff]
    %v4043 = vld [vmem:[#allocation2 + $0x788] sm:$0xff]
    %v4044 = vld [vmem:[#allocation2 + $0x790] sm:$0xff]
    %v4045 = vld [vmem:[#allocation2 + $0x798] sm:$0xff]
    %v4046 = vld [vmem:[#allocation2 + $0x7a0] sm:$0xff]
    %v4047 = vld [vmem:[#allocation2 + $0x7a8] sm:$0xff]
    %v4048 = vld [vmem:[#allocation2 + $0x7b0] sm:$0xff]
    %v4049 = vld [vmem:[#allocation2 + $0x7b8] sm:$0xff]
    %v4050 = vld [vmem:[#allocation2 + $0x7c0] sm:$0xff]
    %v4051 = vld [vmem:[#allocation2 + $0x7c8] sm:$0xff]
    %v4052 = vld [vmem:[#allocation2 + $0x7d0] sm:$0xff]
    %v4053 = vld [vmem:[#allocation2 + $0x7d8] sm:$0xff]
    %v4054 = vld [vmem:[#allocation2 + $0x7e0] sm:$0xff]
    %v4055 = vld [vmem:[#allocation2 + $0x7e8] sm:$0xff]
    %v4056 = vld [vmem:[#allocation2 + $0x7f0] sm:$0xff]
    %v4057 = vld [vmem:[#allocation2 + $0x7f8] sm:$0xff]
    %v4058 = vld [vmem:[#allocation2 + $0x800] sm:$0xff]
    %v4059 = vld [vmem:[#allocation2 + $0x808] sm:$0xff]
    %v4060 = vld [vmem:[#allocation2 + $0x810] sm:$0xff]
    %v4061 = vld [vmem:[#allocation2 + $0x818] sm:$0xff]
    %v4062 = vld [vmem:[#allocation2 + $0x820] sm:$0xff]
    %v4063 = vld [vmem:[#allocation2 + $0x828] sm:$0xff]
    %v4064 = vld [vmem:[#allocation2 + $0x830] sm:$0xff]
    %v4065 = vld [vmem:[#allocation2 + $0x838] sm:$0xff]
    %v4066 = vld [vmem:[#allocation2 + $0x840] sm:$0xff]
    %v4067 = vld [vmem:[#allocation2 + $0x848] sm:$0xff]
    %v4068 = vld [vmem:[#allocation2 + $0x850] sm:$0xff]
    %v4069 = vld [vmem:[#allocation2 + $0x858] sm:$0xff]
    %v4070 = vld [vmem:[#allocation2 + $0x860] sm:$0xff]
    %v4071 = vld [vmem:[#allocation2 + $0x868] sm:$0xff]
    %v4072 = vld [vmem:[#allocation2 + $0x870] sm:$0xff]
    %v4073 = vld [vmem:[#allocation2 + $0x878] sm:$0xff]
    %v4074 = vld [vmem:[#allocation2 + $0x880] sm:$0xff]
    %v4075 = vld [vmem:[#allocation2 + $0x888] sm:$0xff]
    %v4076 = vld [vmem:[#allocation2 + $0x890] sm:$0xff]
    %v4077 = vld [vmem:[#allocation2 + $0x898] sm:$0xff]
    %v4078 = vld [vmem:[#allocation2 + $0x8a0] sm:$0xff]
    %v4079 = vld [vmem:[#allocation2 + $0x8a8] sm:$0xff]
    %v4080 = vld [vmem:[#allocation2 + $0x8b0] sm:$0xff]
    %v4081 = vld [vmem:[#allocation2 + $0x8b8] sm:$0xff]
    %v4082 = vld [vmem:[#allocation2 + $0x8c0] sm:$0xff]
    %v4083 = vld [vmem:[#allocation2 + $0x8c8] sm:$0xff]
    %v4084 = vld [vmem:[#allocation2 + $0x8d0] sm:$0xff]
    %v4085 = vld [vmem:[#allocation2 + $0x8d8] sm:$0xff]
    %v4086 = vld [vmem:[#allocation2 + $0x8e0] sm:$0xff]
    %v4087 = vld [vmem:[#allocation2 + $0x8e8] sm:$0xff]
    %v4088 = vld [vmem:[#allocation2 + $0x8f0] sm:$0xff]
    %v4089 = vld [vmem:[#allocation2 + $0x8f8] sm:$0xff]
    %v4090 = vld [vmem:[#allocation2 + $0x900] sm:$0xff]
    %v4091 = vld [vmem:[#allocation2 + $0x908] sm:$0xff]
    %v4092 = vld [vmem:[#allocation2 + $0x910] sm:$0xff]
    %v4093 = vld [vmem:[#allocation2 + $0x918] sm:$0xff]
    %v4094 = vld [vmem:[#allocation2 + $0x920] sm:$0xff]
    %v4095 = vld [vmem:[#allocation2 + $0x928] sm:$0xff]
    %v4096 = vld [vmem:[#allocation2 + $0x930] sm:$0xff]
    %v4097 = vld [vmem:[#allocation2 + $0x938] sm:$0xff]
    %v4098 = vld [vmem:[#allocation2 + $0x940] sm:$0xff]
    %v4099 = vld [vmem:[#allocation2 + $0x948] sm:$0xff]
    %v4100 = vld [vmem:[#allocation2 + $0x950] sm:$0xff]
    %v4101 = vld [vmem:[#allocation2 + $0x958] sm:$0xff]
    %v4102 = vld [vmem:[#allocation2 + $0x960] sm:$0xff]
    %v4103 = vld [vmem:[#allocation2 + $0x968] sm:$0xff]
    %v4104 = vld [vmem:[#allocation2 + $0x970] sm:$0xff]
    %v4105 = vld [vmem:[#allocation2 + $0x978] sm:$0xff]
    %v4106 = vld [vmem:[#allocation2 + $0x980] sm:$0xff]
    %v4107 = vld [vmem:[#allocation2 + $0x988] sm:$0xff]
    %v4108 = vld [vmem:[#allocation2 + $0x990] sm:$0xff]
    %v4109 = vld [vmem:[#allocation2 + $0x998] sm:$0xff]
    %v4110 = vld [vmem:[#allocation2 + $0x9a0] sm:$0xff]
    %v4111 = vld [vmem:[#allocation2 + $0x9a8] sm:$0xff]
    %v4112 = vld [vmem:[#allocation2 + $0x9b0] sm:$0xff]
    %v4113 = vld [vmem:[#allocation2 + $0x9b8] sm:$0xff]
    %v4114 = vld [vmem:[#allocation2 + $0x9c0] sm:$0xff]
    %v4115 = vld [vmem:[#allocation2 + $0x9c8] sm:$0xff]
    %v4116 = vld [vmem:[#allocation2 + $0x9d0] sm:$0xff]
    %v4117 = vld [vmem:[#allocation2 + $0x9d8] sm:$0xff]
    %v4118 = vld [vmem:[#allocation2 + $0x9e0] sm:$0xff]
    %v4119 = vld [vmem:[#allocation2 + $0x9e8] sm:$0xff]
    %v4120 = vld [vmem:[#allocation2 + $0x9f0] sm:$0xff]
    %v4121 = vld [vmem:[#allocation2 + $0x9f8] sm:$0xff]
    %v4122 = vld [vmem:[#allocation2 + $0xa00] sm:$0xff]
    %v4123 = vld [vmem:[#allocation2 + $0xa08] sm:$0xff]
    %v4124 = vld [vmem:[#allocation2 + $0xa10] sm:$0xff]
    %v4125 = vld [vmem:[#allocation2 + $0xa18] sm:$0xff]
    %v4126 = vld [vmem:[#allocation2 + $0xa20] sm:$0xff]
    %v4127 = vld [vmem:[#allocation2 + $0xa28] sm:$0xff]
    %v4128 = vld [vmem:[#allocation2 + $0xa30] sm:$0xff]
    %v4129 = vld [vmem:[#allocation2 + $0xa38] sm:$0xff]
    %v4130 = vld [vmem:[#allocation2 + $0xa40] sm:$0xff]
    %v4131 = vld [vmem:[#allocation2 + $0xa48] sm:$0xff]
    %v4132 = vld [vmem:[#allocation2 + $0xa50] sm:$0xff]
    %v4133 = vld [vmem:[#allocation2 + $0xa58] sm:$0xff]
    %v4134 = vld [vmem:[#allocation2 + $0xa60] sm:$0xff]
    %v4135 = vld [vmem:[#allocation2 + $0xa68] sm:$0xff]
    %v4136 = vld [vmem:[#allocation2 + $0xa70] sm:$0xff]
    %v4137 = vld [vmem:[#allocation2 + $0xa78] sm:$0xff]
    %v4138 = vld [vmem:[#allocation2 + $0xa80] sm:$0xff]
    %v4139 = vld [vmem:[#allocation2 + $0xa88] sm:$0xff]
    %v4140 = vld [vmem:[#allocation2 + $0xa90] sm:$0xff]
    %v4141 = vld [vmem:[#allocation2 + $0xa98] sm:$0xff]
    %v4142 = vld [vmem:[#allocation2 + $0xaa0] sm:$0xff]
    %v4143 = vld [vmem:[#allocation2 + $0xaa8] sm:$0xff]
    %v4144 = vld [vmem:[#allocation2 + $0xab0] sm:$0xff]
    %v4145 = vld [vmem:[#allocation2 + $0xab8] sm:$0xff]
    %v4146 = vld [vmem:[#allocation2 + $0xac0] sm:$0xff]
    %v4147 = vld [vmem:[#allocation2 + $0xac8] sm:$0xff]
    %v4148 = vld [vmem:[#allocation2 + $0xad0] sm:$0xff]
    %v4149 = vld [vmem:[#allocation2 + $0xad8] sm:$0xff]
    %v4150 = vld [vmem:[#allocation2 + $0xae0] sm:$0xff]
    %v4151 = vld [vmem:[#allocation2 + $0xae8] sm:$0xff]
    %v4152 = vld [vmem:[#allocation2 + $0xaf0] sm:$0xff]
    %v4153 = vld [vmem:[#allocation2 + $0xaf8] sm:$0xff]
    %v4154 = vld [vmem:[#allocation2 + $0xb00] sm:$0xff]
    %v4155 = vld [vmem:[#allocation2 + $0xb08] sm:$0xff]
    %v4156 = vld [vmem:[#allocation2 + $0xb10] sm:$0xff]
    %v4157 = vld [vmem:[#allocation2 + $0xb18] sm:$0xff]
    %v4158 = vld [vmem:[#allocation2 + $0xb20] sm:$0xff]
    %v4159 = vld [vmem:[#allocation2 + $0xb28] sm:$0xff]
    %v4160 = vld [vmem:[#allocation2 + $0xb30] sm:$0xff]
    %v4161 = vld [vmem:[#allocation2 + $0xb38] sm:$0xff]
    %v4162 = vld [vmem:[#allocation2 + $0xb40] sm:$0xff]
    %v4163 = vld [vmem:[#allocation2 + $0xb48] sm:$0xff]
    %v4164 = vld [vmem:[#allocation2 + $0xb50] sm:$0xff]
    %v4165 = vld [vmem:[#allocation2 + $0xb58] sm:$0xff]
    %v4166 = vld [vmem:[#allocation2 + $0xb60] sm:$0xff]
    %v4167 = vld [vmem:[#allocation2 + $0xb68] sm:$0xff]
    %v4168 = vld [vmem:[#allocation2 + $0xb70] sm:$0xff]
    %v4169 = vld [vmem:[#allocation2 + $0xb78] sm:$0xff]
    %v4170 = vld [vmem:[#allocation2 + $0xb80] sm:$0xff]
    %v4171 = vld [vmem:[#allocation2 + $0xb88] sm:$0xff]
    %v4172 = vld [vmem:[#allocation2 + $0xb90] sm:$0xff]
    %v4173 = vld [vmem:[#allocation2 + $0xb98] sm:$0xff]
    %v4174 = vld [vmem:[#allocation2 + $0xba0] sm:$0xff]
    %v4175 = vld [vmem:[#allocation2 + $0xba8] sm:$0xff]
    %v4176 = vld [vmem:[#allocation2 + $0xbb0] sm:$0xff]
    %v4177 = vld [vmem:[#allocation2 + $0xbb8] sm:$0xff]
    %v4178 = vld [vmem:[#allocation2 + $0xbc0] sm:$0xff]
    %v4179 = vld [vmem:[#allocation2 + $0xbc8] sm:$0xff]
    %v4180 = vld [vmem:[#allocation2 + $0xbd0] sm:$0xff]
    %v4181 = vld [vmem:[#allocation2 + $0xbd8] sm:$0xff]
    %v4182 = vld [vmem:[#allocation2 + $0xbe0] sm:$0xff]
    %v4183 = vld [vmem:[#allocation2 + $0xbe8] sm:$0xff]
    %v4184 = vld [vmem:[#allocation2 + $0xbf0] sm:$0xff]
    %v4185 = vld [vmem:[#allocation2 + $0xbf8] sm:$0xff]
    %v4186 = vld [vmem:[#allocation2 + $0xc00] sm:$0xff]
    %v4187 = vld [vmem:[#allocation2 + $0xc08] sm:$0xff]
    %v4188 = vld [vmem:[#allocation2 + $0xc10] sm:$0xff]
    %v4189 = vld [vmem:[#allocation2 + $0xc18] sm:$0xff]
    %v4190 = vld [vmem:[#allocation2 + $0xc20] sm:$0xff]
    %v4191 = vld [vmem:[#allocation2 + $0xc28] sm:$0xff]
    %v4192 = vld [vmem:[#allocation2 + $0xc30] sm:$0xff]
    %v4193 = vld [vmem:[#allocation2 + $0xc38] sm:$0xff]
    %v4194 = vld [vmem:[#allocation2 + $0xc40] sm:$0xff]
    %v4195 = vld [vmem:[#allocation2 + $0xc48] sm:$0xff]
    %v4196 = vld [vmem:[#allocation2 + $0xc50] sm:$0xff]
    %v4197 = vld [vmem:[#allocation2 + $0xc58] sm:$0xff]
    %v4198 = vld [vmem:[#allocation2 + $0xc60] sm:$0xff]
    %v4199 = vld [vmem:[#allocation2 + $0xc68] sm:$0xff]
    %v4200 = vld [vmem:[#allocation2 + $0xc70] sm:$0xff]
    %v4201 = vld [vmem:[#allocation2 + $0xc78] sm:$0xff]
    %v4202 = vld [vmem:[#allocation2 + $0xc80] sm:$0xff]
    %v4203 = vld [vmem:[#allocation2 + $0xc88] sm:$0xff]
    %v4204 = vld [vmem:[#allocation2 + $0xc90] sm:$0xff]
    %v4205 = vld [vmem:[#allocation2 + $0xc98] sm:$0xff]
    %v4206 = vld [vmem:[#allocation2 + $0xca0] sm:$0xff]
    %v4207 = vld [vmem:[#allocation2 + $0xca8] sm:$0xff]
    %v4208 = vld [vmem:[#allocation2 + $0xcb0] sm:$0xff]
    %v4209 = vld [vmem:[#allocation2 + $0xcb8] sm:$0xff]
    %v4210 = vld [vmem:[#allocation2 + $0xcc0] sm:$0xff]
    %v4211 = vld [vmem:[#allocation2 + $0xcc8] sm:$0xff]
    %v4212 = vld [vmem:[#allocation2 + $0xcd0] sm:$0xff]
    %v4213 = vld [vmem:[#allocation2 + $0xcd8] sm:$0xff]
    %v4214 = vld [vmem:[#allocation2 + $0xce0] sm:$0xff]
    %v4215 = vld [vmem:[#allocation2 + $0xce8] sm:$0xff]
    %v4216 = vld [vmem:[#allocation2 + $0xcf0] sm:$0xff]
    %v4217 = vld [vmem:[#allocation2 + $0xcf8] sm:$0xff]
    %v4218 = vld [vmem:[#allocation2 + $0xd00] sm:$0xff]
    %v4219 = vld [vmem:[#allocation2 + $0xd08] sm:$0xff]
    %v4220 = vld [vmem:[#allocation2 + $0xd10] sm:$0xff]
    %v4221 = vld [vmem:[#allocation2 + $0xd18] sm:$0xff]
    %v4222 = vld [vmem:[#allocation2 + $0xd20] sm:$0xff]
    %v4223 = vld [vmem:[#allocation2 + $0xd28] sm:$0xff]
    %v4224 = vld [vmem:[#allocation2 + $0xd30] sm:$0xff]
    %v4225 = vld [vmem:[#allocation2 + $0xd38] sm:$0xff]
    %v4226 = vld [vmem:[#allocation2 + $0xd40] sm:$0xff]
    %v4227 = vld [vmem:[#allocation2 + $0xd48] sm:$0xff]
    %v4228 = vld [vmem:[#allocation2 + $0xd50] sm:$0xff]
    %v4229 = vld [vmem:[#allocation2 + $0xd58] sm:$0xff]
    %v4230 = vld [vmem:[#allocation2 + $0xd60] sm:$0xff]
    %v4231 = vld [vmem:[#allocation2 + $0xd68] sm:$0xff]
    %v4232 = vld [vmem:[#allocation2 + $0xd70] sm:$0xff]
    %v4233 = vld [vmem:[#allocation2 + $0xd78] sm:$0xff]
    %v4234 = vld [vmem:[#allocation2 + $0xd80] sm:$0xff]
    %v4235 = vld [vmem:[#allocation2 + $0xd88] sm:$0xff]
    %v4236 = vld [vmem:[#allocation2 + $0xd90] sm:$0xff]
    %v4237 = vld [vmem:[#allocation2 + $0xd98] sm:$0xff]
    %v4238 = vld [vmem:[#allocation2 + $0xda0] sm:$0xff]
    %v4239 = vld [vmem:[#allocation2 + $0xda8] sm:$0xff]
    %v4240 = vld [vmem:[#allocation2 + $0xdb0] sm:$0xff]
    %v4241 = vld [vmem:[#allocation2 + $0xdb8] sm:$0xff]
    %v4242 = vld [vmem:[#allocation2 + $0xdc0] sm:$0xff]
    %v4243 = vld [vmem:[#allocation2 + $0xdc8] sm:$0xff]
    %v4244 = vld [vmem:[#allocation2 + $0xdd0] sm:$0xff]
    %v4245 = vld [vmem:[#allocation2 + $0xdd8] sm:$0xff]
    %v4246 = vld [vmem:[#allocation2 + $0xde0] sm:$0xff]
    %v4247 = vld [vmem:[#allocation2 + $0xde8] sm:$0xff]
    %v4248 = vld [vmem:[#allocation2 + $0xdf0] sm:$0xff]
    %v4249 = vld [vmem:[#allocation2 + $0xdf8] sm:$0xff]
    %v4250 = vld [vmem:[#allocation2 + $0xe00] sm:$0xff]
    %v4251 = vld [vmem:[#allocation2 + $0xe08] sm:$0xff]
    %v4252 = vld [vmem:[#allocation2 + $0xe10] sm:$0xff]
    %v4253 = vld [vmem:[#allocation2 + $0xe18] sm:$0xff]
    %v4254 = vld [vmem:[#allocation2 + $0xe20] sm:$0xff]
    %v4255 = vld [vmem:[#allocation2 + $0xe28] sm:$0xff]
    %v4256 = vld [vmem:[#allocation2 + $0xe30] sm:$0xff]
    %v4257 = vld [vmem:[#allocation2 + $0xe38] sm:$0xff]
    %v4258 = vld [vmem:[#allocation2 + $0xe40] sm:$0xff]
    %v4259 = vld [vmem:[#allocation2 + $0xe48] sm:$0xff]
    %v4260 = vld [vmem:[#allocation2 + $0xe50] sm:$0xff]
    %v4261 = vld [vmem:[#allocation2 + $0xe58] sm:$0xff]
    %v4262 = vld [vmem:[#allocation2 + $0xe60] sm:$0xff]
    %v4263 = vld [vmem:[#allocation2 + $0xe68] sm:$0xff]
    %v4264 = vld [vmem:[#allocation2 + $0xe70] sm:$0xff]
    %v4265 = vld [vmem:[#allocation2 + $0xe78] sm:$0xff]
    %v4266 = vld [vmem:[#allocation2 + $0xe80] sm:$0xff]
    %v4267 = vld [vmem:[#allocation2 + $0xe88] sm:$0xff]
    %v4268 = vld [vmem:[#allocation2 + $0xe90] sm:$0xff]
    %v4269 = vld [vmem:[#allocation2 + $0xe98] sm:$0xff]
    %v4270 = vld [vmem:[#allocation2 + $0xea0] sm:$0xff]
    %v4271 = vld [vmem:[#allocation2 + $0xea8] sm:$0xff]
    %v4272 = vld [vmem:[#allocation2 + $0xeb0] sm:$0xff]
    %v4273 = vld [vmem:[#allocation2 + $0xeb8] sm:$0xff]
    %v4274 = vld [vmem:[#allocation2 + $0xec0] sm:$0xff]
    %v4275 = vld [vmem:[#allocation2 + $0xec8] sm:$0xff]
    %v4276 = vld [vmem:[#allocation2 + $0xed0] sm:$0xff]
    %v4277 = vld [vmem:[#allocation2 + $0xed8] sm:$0xff]
    %v4278 = vld [vmem:[#allocation2 + $0xee0] sm:$0xff]
    %v4279 = vld [vmem:[#allocation2 + $0xee8] sm:$0xff]
    %v4280 = vld [vmem:[#allocation2 + $0xef0] sm:$0xff]
    %v4281 = vld [vmem:[#allocation2 + $0xef8] sm:$0xff]
    %v4282 = vld [vmem:[#allocation2 + $0xf00] sm:$0xff]
    %v4283 = vld [vmem:[#allocation2 + $0xf08] sm:$0xff]
    %v4284 = vld [vmem:[#allocation2 + $0xf10] sm:$0xff]
    %v4285 = vld [vmem:[#allocation2 + $0xf18] sm:$0xff]
    %v4286 = vld [vmem:[#allocation2 + $0xf20] sm:$0xff]
    %v4287 = vld [vmem:[#allocation2 + $0xf28] sm:$0xff]
    %v4288 = vld [vmem:[#allocation2 + $0xf30] sm:$0xff]
    %v4289 = vld [vmem:[#allocation2 + $0xf38] sm:$0xff]
    %v4290 = vld [vmem:[#allocation2 + $0xf40] sm:$0xff]
    %v4291 = vld [vmem:[#allocation2 + $0xf48] sm:$0xff]
    %v4292 = vld [vmem:[#allocation2 + $0xf50] sm:$0xff]
    %v4293 = vld [vmem:[#allocation2 + $0xf58] sm:$0xff]
    %v4294 = vld [vmem:[#allocation2 + $0xf60] sm:$0xff]
    %v4295 = vld [vmem:[#allocation2 + $0xf68] sm:$0xff]
    %v4296 = vld [vmem:[#allocation2 + $0xf70] sm:$0xff]
    %v4297 = vld [vmem:[#allocation2 + $0xf78] sm:$0xff]
    %v4298 = vld [vmem:[#allocation2 + $0xf80] sm:$0xff]
    %v4299 = vld [vmem:[#allocation2 + $0xf88] sm:$0xff]
    %v4300 = vld [vmem:[#allocation2 + $0xf90] sm:$0xff]
    %v4301 = vld [vmem:[#allocation2 + $0xf98] sm:$0xff]
    %v4302 = vld [vmem:[#allocation2 + $0xfa0] sm:$0xff]
    %v4303 = vld [vmem:[#allocation2 + $0xfa8] sm:$0xff]
    %v4304 = vld [vmem:[#allocation2 + $0xfb0] sm:$0xff]
    %v4305 = vld [vmem:[#allocation2 + $0xfb8] sm:$0xff]
    %v4306 = vld [vmem:[#allocation2 + $0xfc0] sm:$0xff]
    %v4307 = vld [vmem:[#allocation2 + $0xfc8] sm:$0xff]
    %v4308 = vld [vmem:[#allocation2 + $0xfd0] sm:$0xff]
    %v4309 = vld [vmem:[#allocation2 + $0xfd8] sm:$0xff]
    %v4310 = vld [vmem:[#allocation2 + $0xfe0] sm:$0xff]
    %v4311 = vld [vmem:[#allocation2 + $0xfe8] sm:$0xff]
    %v4312 = vld [vmem:[#allocation2 + $0xff0] sm:$0xff]
    %v4313 = vld [vmem:[#allocation2 + $0xff8] sm:$0xff]
    %v4314 = vld [vmem:[#allocation2 + $0x1000] sm:$0xff]
    %v4315 = vld [vmem:[#allocation2 + $0x1008] sm:$0xff]
    %v4316 = vld [vmem:[#allocation2 + $0x1010] sm:$0xff]
    %v4317 = vld [vmem:[#allocation2 + $0x1018] sm:$0xff]
    %v4318 = vld [vmem:[#allocation2 + $0x1020] sm:$0xff]
    %v4319 = vld [vmem:[#allocation2 + $0x1028] sm:$0xff]
    %v4320 = vld [vmem:[#allocation2 + $0x1030] sm:$0xff]
    %v4321 = vld [vmem:[#allocation2 + $0x1038] sm:$0xff]
    %v4322 = vld [vmem:[#allocation2 + $0x1040] sm:$0xff]
    %v4323 = vld [vmem:[#allocation2 + $0x1048] sm:$0xff]
    %v4324 = vld [vmem:[#allocation2 + $0x1050] sm:$0xff]
    %v4325 = vld [vmem:[#allocation2 + $0x1058] sm:$0xff]
    %v4326 = vld [vmem:[#allocation2 + $0x1060] sm:$0xff]
    %v4327 = vld [vmem:[#allocation2 + $0x1068] sm:$0xff]
    %v4328 = vld [vmem:[#allocation2 + $0x1070] sm:$0xff]
    %v4329 = vld [vmem:[#allocation2 + $0x1078] sm:$0xff]
    %v4330 = vld [vmem:[#allocation2 + $0x1080] sm:$0xff]
    %v4331 = vld [vmem:[#allocation2 + $0x1088] sm:$0xff]
    %v4332 = vld [vmem:[#allocation2 + $0x1090] sm:$0xff]
    %v4333 = vld [vmem:[#allocation2 + $0x1098] sm:$0xff]
    %v4334 = vld [vmem:[#allocation2 + $0x10a0] sm:$0xff]
    %v4335 = vld [vmem:[#allocation2 + $0x10a8] sm:$0xff]
    %v4336 = vld [vmem:[#allocation2 + $0x10b0] sm:$0xff]
    %v4337 = vld [vmem:[#allocation2 + $0x10b8] sm:$0xff]
    %v4338 = vld [vmem:[#allocation2 + $0x10c0] sm:$0xff]
    %v4339 = vld [vmem:[#allocation2 + $0x10c8] sm:$0xff]
    %v4340 = vld [vmem:[#allocation2 + $0x10d0] sm:$0xff]
    %v4341 = vld [vmem:[#allocation2 + $0x10d8] sm:$0xff]
    %v4342 = vld [vmem:[#allocation2 + $0x10e0] sm:$0xff]
    %v4343 = vld [vmem:[#allocation2 + $0x10e8] sm:$0xff]
    %v4344 = vld [vmem:[#allocation2 + $0x10f0] sm:$0xff]
    %v4345 = vld [vmem:[#allocation2 + $0x10f8] sm:$0xff]
    %v4346 = vld [vmem:[#allocation2 + $0x1100] sm:$0xff]
    %v4347 = vld [vmem:[#allocation2 + $0x1108] sm:$0xff]
    %v4348 = vld [vmem:[#allocation2 + $0x1110] sm:$0xff]
    %v4349 = vld [vmem:[#allocation2 + $0x1118] sm:$0xff]
    %v4350 = vld [vmem:[#allocation2 + $0x1120] sm:$0xff]
    %v4351 = vld [vmem:[#allocation2 + $0x1128] sm:$0xff]
    %v4352 = vld [vmem:[#allocation2 + $0x1130] sm:$0xff]
    %v4353 = vld [vmem:[#allocation2 + $0x1138] sm:$0xff]
    %v4354 = vld [vmem:[#allocation2 + $0x1140] sm:$0xff]
    %v4355 = vld [vmem:[#allocation2 + $0x1148] sm:$0xff]
    %v4356 = vld [vmem:[#allocation2 + $0x1150] sm:$0xff]
    %v4357 = vld [vmem:[#allocation2 + $0x1158] sm:$0xff]
    %v4358 = vld [vmem:[#allocation2 + $0x1160] sm:$0xff]
    %v4359 = vld [vmem:[#allocation2 + $0x1168] sm:$0xff]
    %v4360 = vld [vmem:[#allocation2 + $0x1170] sm:$0xff]
    %v4361 = vld [vmem:[#allocation2 + $0x1178] sm:$0xff]
    %v4362 = vld [vmem:[#allocation2 + $0x1180] sm:$0xff]
    %v4363 = vld [vmem:[#allocation2 + $0x1188] sm:$0xff]
    %v4364 = vld [vmem:[#allocation2 + $0x1190] sm:$0xff]
    %v4365 = vld [vmem:[#allocation2 + $0x1198] sm:$0xff]
    %v4366 = vld [vmem:[#allocation2 + $0x11a0] sm:$0xff]
    %v4367 = vld [vmem:[#allocation2 + $0x11a8] sm:$0xff]
    %v4368 = vld [vmem:[#allocation2 + $0x11b0] sm:$0xff]
    %v4369 = vld [vmem:[#allocation2 + $0x11b8] sm:$0xff]
    %v4370 = vld [vmem:[#allocation2 + $0x11c0] sm:$0xff]
    %v4371 = vld [vmem:[#allocation2 + $0x11c8] sm:$0xff]
    %v4372 = vld [vmem:[#allocation2 + $0x11d0] sm:$0xff]
    %v4373 = vld [vmem:[#allocation2 + $0x11d8] sm:$0xff]
    %v4374 = vld [vmem:[#allocation2 + $0x11e0] sm:$0xff]
    %v4375 = vld [vmem:[#allocation2 + $0x11e8] sm:$0xff]
    %v4376 = vld [vmem:[#allocation2 + $0x11f0] sm:$0xff]
    %v4377 = vld [vmem:[#allocation2 + $0x11f8] sm:$0xff]
    %v4378 = vld [vmem:[#allocation2 + $0x1200] sm:$0xff]
    %v4379 = vld [vmem:[#allocation2 + $0x1208] sm:$0xff]
    %v4380 = vld [vmem:[#allocation2 + $0x1210] sm:$0xff]
    %v4381 = vld [vmem:[#allocation2 + $0x1218] sm:$0xff]
    %v4382 = vld [vmem:[#allocation2 + $0x1220] sm:$0xff]
    %v4383 = vld [vmem:[#allocation2 + $0x1228] sm:$0xff]
    %v4384 = vld [vmem:[#allocation2 + $0x1230] sm:$0xff]
    %v4385 = vld [vmem:[#allocation2 + $0x1238] sm:$0xff]
    %v4386 = vld [vmem:[#allocation2 + $0x1240] sm:$0xff]
    %v4387 = vld [vmem:[#allocation2 + $0x1248] sm:$0xff]
    %v4388 = vld [vmem:[#allocation2 + $0x1250] sm:$0xff]
    %v4389 = vld [vmem:[#allocation2 + $0x1258] sm:$0xff]
    %v4390 = vld [vmem:[#allocation2 + $0x1260] sm:$0xff]
    %v4391 = vld [vmem:[#allocation2 + $0x1268] sm:$0xff]
    %v4392 = vld [vmem:[#allocation2 + $0x1270] sm:$0xff]
    %v4393 = vld [vmem:[#allocation2 + $0x1278] sm:$0xff]
    %v4394 = vld [vmem:[#allocation2 + $0x1280] sm:$0xff]
    %v4395 = vld [vmem:[#allocation2 + $0x1288] sm:$0xff]
    %v4396 = vld [vmem:[#allocation2 + $0x1290] sm:$0xff]
    %v4397 = vld [vmem:[#allocation2 + $0x1298] sm:$0xff]
    %v4398 = vld [vmem:[#allocation2 + $0x12a0] sm:$0xff]
    %v4399 = vld [vmem:[#allocation2 + $0x12a8] sm:$0xff]
    %v4400 = vld [vmem:[#allocation2 + $0x12b0] sm:$0xff]
    %v4401 = vld [vmem:[#allocation2 + $0x12b8] sm:$0xff]
    %v4402 = vld [vmem:[#allocation2 + $0x12c0] sm:$0xff]
    %v4403 = vld [vmem:[#allocation2 + $0x12c8] sm:$0xff]
    %v4404 = vld [vmem:[#allocation2 + $0x12d0] sm:$0xff]
    %v4405 = vld [vmem:[#allocation2 + $0x12d8] sm:$0xff]
    %v4406 = vld [vmem:[#allocation2 + $0x12e0] sm:$0xff]
    %v4407 = vld [vmem:[#allocation2 + $0x12e8] sm:$0xff]
    %v4408 = vld [vmem:[#allocation2 + $0x12f0] sm:$0xff]
    %v4409 = vld [vmem:[#allocation2 + $0x12f8] sm:$0xff]
    %v4410 = vld [vmem:[#allocation2 + $0x1300] sm:$0xff]
    %v4411 = vld [vmem:[#allocation2 + $0x1308] sm:$0xff]
    %v4412 = vld [vmem:[#allocation2 + $0x1310] sm:$0xff]
    %v4413 = vld [vmem:[#allocation2 + $0x1318] sm:$0xff]
    %v4414 = vld [vmem:[#allocation2 + $0x1320] sm:$0xff]
    %v4415 = vld [vmem:[#allocation2 + $0x1328] sm:$0xff]
    %v4416 = vld [vmem:[#allocation2 + $0x1330] sm:$0xff]
    %v4417 = vld [vmem:[#allocation2 + $0x1338] sm:$0xff]
    %v4418 = vld [vmem:[#allocation2 + $0x1340] sm:$0xff]
    %v4419 = vld [vmem:[#allocation2 + $0x1348] sm:$0xff]
    %v4420 = vld [vmem:[#allocation2 + $0x1350] sm:$0xff]
    %v4421 = vld [vmem:[#allocation2 + $0x1358] sm:$0xff]
    %v4422 = vld [vmem:[#allocation2 + $0x1360] sm:$0xff]
    %v4423 = vld [vmem:[#allocation2 + $0x1368] sm:$0xff]
    %v4424 = vld [vmem:[#allocation2 + $0x1370] sm:$0xff]
    %v4425 = vld [vmem:[#allocation2 + $0x1378] sm:$0xff]
    %v4426 = vld [vmem:[#allocation2 + $0x1380] sm:$0xff]
    %v4427 = vld [vmem:[#allocation2 + $0x1388] sm:$0xff]
    %v4428 = vld [vmem:[#allocation2 + $0x1390] sm:$0xff]
    %v4429 = vld [vmem:[#allocation2 + $0x1398] sm:$0xff]
    %v4430 = vld [vmem:[#allocation2 + $0x13a0] sm:$0xff]
    %v4431 = vld [vmem:[#allocation2 + $0x13a8] sm:$0xff]
    %v4432 = vld [vmem:[#allocation2 + $0x13b0] sm:$0xff]
    %v4433 = vld [vmem:[#allocation2 + $0x13b8] sm:$0xff]
    %v4434 = vld [vmem:[#allocation2 + $0x13c0] sm:$0xff]
    %v4435 = vld [vmem:[#allocation2 + $0x13c8] sm:$0xff]
    %v4436 = vld [vmem:[#allocation2 + $0x13d0] sm:$0xff]
    %v4437 = vld [vmem:[#allocation2 + $0x13d8] sm:$0xff]
    %v4438 = vld [vmem:[#allocation2 + $0x13e0] sm:$0xff]
    %v4439 = vld [vmem:[#allocation2 + $0x13e8] sm:$0xff]
    %v4440 = vld [vmem:[#allocation2 + $0x13f0] sm:$0xff]
    %v4441 = vld [vmem:[#allocation2 + $0x13f8] sm:$0xff]
    %v4442 = vld [vmem:[#allocation2 + $0x1400] sm:$0xff]
    %v4443 = vld [vmem:[#allocation2 + $0x1408] sm:$0xff]
    %v4444 = vld [vmem:[#allocation2 + $0x1410] sm:$0xff]
    %v4445 = vld [vmem:[#allocation2 + $0x1418] sm:$0xff]
    %v4446 = vld [vmem:[#allocation2 + $0x1420] sm:$0xff]
    %v4447 = vld [vmem:[#allocation2 + $0x1428] sm:$0xff]
    %v4448 = vld [vmem:[#allocation2 + $0x1430] sm:$0xff]
    %v4449 = vld [vmem:[#allocation2 + $0x1438] sm:$0xff]
    %v4450 = vld [vmem:[#allocation2 + $0x1440] sm:$0xff]
    %v4451 = vld [vmem:[#allocation2 + $0x1448] sm:$0xff]
    %v4452 = vld [vmem:[#allocation2 + $0x1450] sm:$0xff]
    %v4453 = vld [vmem:[#allocation2 + $0x1458] sm:$0xff]
    %v4454 = vld [vmem:[#allocation2 + $0x1460] sm:$0xff]
    %v4455 = vld [vmem:[#allocation2 + $0x1468] sm:$0xff]
    %v4456 = vld [vmem:[#allocation2 + $0x1470] sm:$0xff]
    %v4457 = vld [vmem:[#allocation2 + $0x1478] sm:$0xff]
    %v4458 = vld [vmem:[#allocation2 + $0x1480] sm:$0xff]
    %v4459 = vld [vmem:[#allocation2 + $0x1488] sm:$0xff]
    %v4460 = vld [vmem:[#allocation2 + $0x1490] sm:$0xff]
    %v4461 = vld [vmem:[#allocation2 + $0x1498] sm:$0xff]
    %v4462 = vld [vmem:[#allocation2 + $0x14a0] sm:$0xff]
    %v4463 = vld [vmem:[#allocation2 + $0x14a8] sm:$0xff]
    %v4464 = vld [vmem:[#allocation2 + $0x14b0] sm:$0xff]
    %v4465 = vld [vmem:[#allocation2 + $0x14b8] sm:$0xff]
    %v4466 = vld [vmem:[#allocation2 + $0x14c0] sm:$0xff]
    %v4467 = vld [vmem:[#allocation2 + $0x14c8] sm:$0xff]
    %v4468 = vld [vmem:[#allocation2 + $0x14d0] sm:$0xff]
    %v4469 = vld [vmem:[#allocation2 + $0x14d8] sm:$0xff]
    %v4470 = vld [vmem:[#allocation2 + $0x14e0] sm:$0xff]
    %v4471 = vld [vmem:[#allocation2 + $0x14e8] sm:$0xff]
    %v4472 = vld [vmem:[#allocation2 + $0x14f0] sm:$0xff]
    %v4473 = vld [vmem:[#allocation2 + $0x14f8] sm:$0xff]
    %v4474 = vld [vmem:[#allocation2 + $0x1500] sm:$0xff]
    %v4475 = vld [vmem:[#allocation2 + $0x1508] sm:$0xff]
    %v4476 = vld [vmem:[#allocation2 + $0x1510] sm:$0xff]
    %v4477 = vld [vmem:[#allocation2 + $0x1518] sm:$0xff]
    %v4478 = vld [vmem:[#allocation2 + $0x1520] sm:$0xff]
    %v4479 = vld [vmem:[#allocation2 + $0x1528] sm:$0xff]
    %v4480 = vld [vmem:[#allocation2 + $0x1530] sm:$0xff]
    %v4481 = vld [vmem:[#allocation2 + $0x1538] sm:$0xff]
    %v4482 = vld [vmem:[#allocation2 + $0x1540] sm:$0xff]
    %v4483 = vld [vmem:[#allocation2 + $0x1548] sm:$0xff]
    %v4484 = vld [vmem:[#allocation2 + $0x1550] sm:$0xff]
    %v4485 = vld [vmem:[#allocation2 + $0x1558] sm:$0xff]
    %v4486 = vld [vmem:[#allocation2 + $0x1560] sm:$0xff]
    %v4487 = vld [vmem:[#allocation2 + $0x1568] sm:$0xff]
    %v4488 = vld [vmem:[#allocation2 + $0x1570] sm:$0xff]
    %v4489 = vld [vmem:[#allocation2 + $0x1578] sm:$0xff]
    %v4490 = vld [vmem:[#allocation2 + $0x1580] sm:$0xff]
    %v4491 = vld [vmem:[#allocation2 + $0x1588] sm:$0xff]
    %v4492 = vld [vmem:[#allocation2 + $0x1590] sm:$0xff]
    %v4493 = vld [vmem:[#allocation2 + $0x1598] sm:$0xff]
    %v4494 = vld [vmem:[#allocation2 + $0x15a0] sm:$0xff]
    %v4495 = vld [vmem:[#allocation2 + $0x15a8] sm:$0xff]
    %v4496 = vld [vmem:[#allocation2 + $0x15b0] sm:$0xff]
    %v4497 = vld [vmem:[#allocation2 + $0x15b8] sm:$0xff]
    %v4498 = vld [vmem:[#allocation2 + $0x15c0] sm:$0xff]
    %v4499 = vld [vmem:[#allocation2 + $0x15c8] sm:$0xff]
    %v4500 = vld [vmem:[#allocation2 + $0x15d0] sm:$0xff]
    %v4501 = vld [vmem:[#allocation2 + $0x15d8] sm:$0xff]
    %v4502 = vld [vmem:[#allocation2 + $0x15e0] sm:$0xff]
    %v4503 = vld [vmem:[#allocation2 + $0x15e8] sm:$0xff]
    %v4504 = vld [vmem:[#allocation2 + $0x15f0] sm:$0xff]
    %v4505 = vld [vmem:[#allocation2 + $0x15f8] sm:$0xff]
    %v4506 = vld [vmem:[#allocation2 + $0x1600] sm:$0xff]
    %v4507 = vld [vmem:[#allocation2 + $0x1608] sm:$0xff]
    %v4508 = vld [vmem:[#allocation2 + $0x1610] sm:$0xff]
    %v4509 = vld [vmem:[#allocation2 + $0x1618] sm:$0xff]
    %v4510 = vld [vmem:[#allocation2 + $0x1620] sm:$0xff]
    %v4511 = vld [vmem:[#allocation2 + $0x1628] sm:$0xff]
    %v4512 = vld [vmem:[#allocation2 + $0x1630] sm:$0xff]
    %v4513 = vld [vmem:[#allocation2 + $0x1638] sm:$0xff]
    %v4514 = vld [vmem:[#allocation2 + $0x1640] sm:$0xff]
    %v4515 = vld [vmem:[#allocation2 + $0x1648] sm:$0xff]
    %v4516 = vld [vmem:[#allocation2 + $0x1650] sm:$0xff]
    %v4517 = vld [vmem:[#allocation2 + $0x1658] sm:$0xff]
    %v4518 = vld [vmem:[#allocation2 + $0x1660] sm:$0xff]
    %v4519 = vld [vmem:[#allocation2 + $0x1668] sm:$0xff]
    %v4520 = vld [vmem:[#allocation2 + $0x1670] sm:$0xff]
    %v4521 = vld [vmem:[#allocation2 + $0x1678] sm:$0xff]
    %v4522 = vld [vmem:[#allocation2 + $0x1680] sm:$0xff]
    %v4523 = vld [vmem:[#allocation2 + $0x1688] sm:$0xff]
    %v4524 = vld [vmem:[#allocation2 + $0x1690] sm:$0xff]
    %v4525 = vld [vmem:[#allocation2 + $0x1698] sm:$0xff]
    %v4526 = vld [vmem:[#allocation2 + $0x16a0] sm:$0xff]
    %v4527 = vld [vmem:[#allocation2 + $0x16a8] sm:$0xff]
    %v4528 = vld [vmem:[#allocation2 + $0x16b0] sm:$0xff]
    %v4529 = vld [vmem:[#allocation2 + $0x16b8] sm:$0xff]
    %v4530 = vld [vmem:[#allocation2 + $0x16c0] sm:$0xff]
    %v4531 = vld [vmem:[#allocation2 + $0x16c8] sm:$0xff]
    %v4532 = vld [vmem:[#allocation2 + $0x16d0] sm:$0xff]
    %v4533 = vld [vmem:[#allocation2 + $0x16d8] sm:$0xff]
    %v4534 = vld [vmem:[#allocation2 + $0x16e0] sm:$0xff]
    %v4535 = vld [vmem:[#allocation2 + $0x16e8] sm:$0xff]
    %v4536 = vld [vmem:[#allocation2 + $0x16f0] sm:$0xff]
    %v4537 = vld [vmem:[#allocation2 + $0x16f8] sm:$0xff]
    %v4538 = vld [vmem:[#allocation2 + $0x1700] sm:$0xff]
    %v4539 = vld [vmem:[#allocation2 + $0x1708] sm:$0xff]
    %v4540 = vld [vmem:[#allocation2 + $0x1710] sm:$0xff]
    %v4541 = vld [vmem:[#allocation2 + $0x1718] sm:$0xff]
    %v4542 = vld [vmem:[#allocation2 + $0x1720] sm:$0xff]
    %v4543 = vld [vmem:[#allocation2 + $0x1728] sm:$0xff]
    %v4544 = vld [vmem:[#allocation2 + $0x1730] sm:$0xff]
    %v4545 = vld [vmem:[#allocation2 + $0x1738] sm:$0xff]
    %v4546 = vld [vmem:[#allocation2 + $0x1740] sm:$0xff]
    %v4547 = vld [vmem:[#allocation2 + $0x1748] sm:$0xff]
    %v4548 = vld [vmem:[#allocation2 + $0x1750] sm:$0xff]
    %v4549 = vld [vmem:[#allocation2 + $0x1758] sm:$0xff]
    %v4550 = vld [vmem:[#allocation2 + $0x1760] sm:$0xff]
    %v4551 = vld [vmem:[#allocation2 + $0x1768] sm:$0xff]
    %v4552 = vld [vmem:[#allocation2 + $0x1770] sm:$0xff]
    %v4553 = vld [vmem:[#allocation2 + $0x1778] sm:$0xff]
    %v4554 = vld [vmem:[#allocation2 + $0x1780] sm:$0xff]
    %v4555 = vld [vmem:[#allocation2 + $0x1788] sm:$0xff]
    %v4556 = vld [vmem:[#allocation2 + $0x1790] sm:$0xff]
    %v4557 = vld [vmem:[#allocation2 + $0x1798] sm:$0xff]
    %v4558 = vld [vmem:[#allocation2 + $0x17a0] sm:$0xff]
    %v4559 = vld [vmem:[#allocation2 + $0x17a8] sm:$0xff]
    %v4560 = vld [vmem:[#allocation2 + $0x17b0] sm:$0xff]
    %v4561 = vld [vmem:[#allocation2 + $0x17b8] sm:$0xff]
    %v4562 = vld [vmem:[#allocation2 + $0x17c0] sm:$0xff]
    %v4563 = vld [vmem:[#allocation2 + $0x17c8] sm:$0xff]
    %v4564 = vld [vmem:[#allocation2 + $0x17d0] sm:$0xff]
    %v4565 = vld [vmem:[#allocation2 + $0x17d8] sm:$0xff]
    %v4566 = vld [vmem:[#allocation2 + $0x17e0] sm:$0xff]
    %v4567 = vld [vmem:[#allocation2 + $0x17e8] sm:$0xff]
    %v4568 = vld [vmem:[#allocation2 + $0x17f0] sm:$0xff]
    %v4569 = vld [vmem:[#allocation2 + $0x17f8] sm:$0xff]
    %v4570 = vld [vmem:[#allocation2 + $0x1800] sm:$0xff]
    %v4571 = vld [vmem:[#allocation2 + $0x1808] sm:$0xff]
    %v4572 = vld [vmem:[#allocation2 + $0x1810] sm:$0xff]
    %v4573 = vld [vmem:[#allocation2 + $0x1818] sm:$0xff]
    %v4574 = vld [vmem:[#allocation2 + $0x1820] sm:$0xff]
    %v4575 = vld [vmem:[#allocation2 + $0x1828] sm:$0xff]
    %v4576 = vld [vmem:[#allocation2 + $0x1830] sm:$0xff]
    %v4577 = vld [vmem:[#allocation2 + $0x1838] sm:$0xff]
    %v4578 = vld [vmem:[#allocation2 + $0x1840] sm:$0xff]
    %v4579 = vld [vmem:[#allocation2 + $0x1848] sm:$0xff]
    %v4580 = vld [vmem:[#allocation2 + $0x1850] sm:$0xff]
    %v4581 = vld [vmem:[#allocation2 + $0x1858] sm:$0xff]
    %v4582 = vld [vmem:[#allocation2 + $0x1860] sm:$0xff]
    %v4583 = vld [vmem:[#allocation2 + $0x1868] sm:$0xff]
    %v4584 = vld [vmem:[#allocation2 + $0x1870] sm:$0xff]
    %v4585 = vld [vmem:[#allocation2 + $0x1878] sm:$0xff]
    %v4586 = vld [vmem:[#allocation2 + $0x1880] sm:$0xff]
    %v4587 = vld [vmem:[#allocation2 + $0x1888] sm:$0xff]
    %v4588 = vld [vmem:[#allocation2 + $0x1890] sm:$0xff]
    %v4589 = vld [vmem:[#allocation2 + $0x1898] sm:$0xff]
    %v4590 = vld [vmem:[#allocation2 + $0x18a0] sm:$0xff]
    %v4591 = vld [vmem:[#allocation2 + $0x18a8] sm:$0xff]
    %v4592 = vld [vmem:[#allocation2 + $0x18b0] sm:$0xff]
    %v4593 = vld [vmem:[#allocation2 + $0x18b8] sm:$0xff]
    %v4594 = vld [vmem:[#allocation2 + $0x18c0] sm:$0xff]
    %v4595 = vld [vmem:[#allocation2 + $0x18c8] sm:$0xff]
    %v4596 = vld [vmem:[#allocation2 + $0x18d0] sm:$0xff]
    %v4597 = vld [vmem:[#allocation2 + $0x18d8] sm:$0xff]
    %v4598 = vld [vmem:[#allocation2 + $0x18e0] sm:$0xff]
    %v4599 = vld [vmem:[#allocation2 + $0x18e8] sm:$0xff]
    %v4600 = vld [vmem:[#allocation2 + $0x18f0] sm:$0xff]
    %v4601 = vld [vmem:[#allocation2 + $0x18f8] sm:$0xff]
    %v4602 = vld [vmem:[#allocation2 + $0x1900] sm:$0xff]
    %v4603 = vld [vmem:[#allocation2 + $0x1908] sm:$0xff]
    %v4604 = vld [vmem:[#allocation2 + $0x1910] sm:$0xff]
    %v4605 = vld [vmem:[#allocation2 + $0x1918] sm:$0xff]
    %v4606 = vld [vmem:[#allocation2 + $0x1920] sm:$0xff]
    %v4607 = vld [vmem:[#allocation2 + $0x1928] sm:$0xff]
    %v4608 = vld [vmem:[#allocation2 + $0x1930] sm:$0xff]
    %v4609 = vld [vmem:[#allocation2 + $0x1938] sm:$0xff]
    %v4610 = vld [vmem:[#allocation2 + $0x1940] sm:$0xff]
    %v4611 = vld [vmem:[#allocation2 + $0x1948] sm:$0xff]
    %v4612 = vld [vmem:[#allocation2 + $0x1950] sm:$0xff]
    %v4613 = vld [vmem:[#allocation2 + $0x1958] sm:$0xff]
    %v4614 = vld [vmem:[#allocation2 + $0x1960] sm:$0xff]
    %v4615 = vld [vmem:[#allocation2 + $0x1968] sm:$0xff]
    %v4616 = vld [vmem:[#allocation2 + $0x1970] sm:$0xff]
    %v4617 = vld [vmem:[#allocation2 + $0x1978] sm:$0xff]
    %v4618 = vld [vmem:[#allocation2 + $0x1980] sm:$0xff]
    %v4619 = vld [vmem:[#allocation2 + $0x1988] sm:$0xff]
    %v4620 = vld [vmem:[#allocation2 + $0x1990] sm:$0xff]
    %v4621 = vld [vmem:[#allocation2 + $0x1998] sm:$0xff]
    %v4622 = vld [vmem:[#allocation2 + $0x19a0] sm:$0xff]
    %v4623 = vld [vmem:[#allocation2 + $0x19a8] sm:$0xff]
    %v4624 = vld [vmem:[#allocation2 + $0x19b0] sm:$0xff]
    %v4625 = vld [vmem:[#allocation2 + $0x19b8] sm:$0xff]
    %v4626 = vld [vmem:[#allocation2 + $0x19c0] sm:$0xff]
    %v4627 = vld [vmem:[#allocation2 + $0x19c8] sm:$0xff]
    %v4628 = vld [vmem:[#allocation2 + $0x19d0] sm:$0xff]
    %v4629 = vld [vmem:[#allocation2 + $0x19d8] sm:$0xff]
    %v4630 = vld [vmem:[#allocation2 + $0x19e0] sm:$0xff]
    %v4631 = vld [vmem:[#allocation2 + $0x19e8] sm:$0xff]
    %v4632 = vld [vmem:[#allocation2 + $0x19f0] sm:$0xff]
    %v4633 = vld [vmem:[#allocation2 + $0x19f8] sm:$0xff]
    %v4634 = vld [vmem:[#allocation2 + $0x1a00] sm:$0xff]
    %v4635 = vld [vmem:[#allocation2 + $0x1a08] sm:$0xff]
    %v4636 = vld [vmem:[#allocation2 + $0x1a10] sm:$0xff]
    %v4637 = vld [vmem:[#allocation2 + $0x1a18] sm:$0xff]
    %v4638 = vld [vmem:[#allocation2 + $0x1a20] sm:$0xff]
    %v4639 = vld [vmem:[#allocation2 + $0x1a28] sm:$0xff]
    %v4640 = vld [vmem:[#allocation2 + $0x1a30] sm:$0xff]
    %v4641 = vld [vmem:[#allocation2 + $0x1a38] sm:$0xff]
    %v4642 = vld [vmem:[#allocation2 + $0x1a40] sm:$0xff]
    %v4643 = vld [vmem:[#allocation2 + $0x1a48] sm:$0xff]
    %v4644 = vld [vmem:[#allocation2 + $0x1a50] sm:$0xff]
    %v4645 = vld [vmem:[#allocation2 + $0x1a58] sm:$0xff]
    %v4646 = vld [vmem:[#allocation2 + $0x1a60] sm:$0xff]
    %v4647 = vld [vmem:[#allocation2 + $0x1a68] sm:$0xff]
    %v4648 = vld [vmem:[#allocation2 + $0x1a70] sm:$0xff]
    %v4649 = vld [vmem:[#allocation2 + $0x1a78] sm:$0xff]
    %v4650 = vld [vmem:[#allocation2 + $0x1a80] sm:$0xff]
    %v4651 = vld [vmem:[#allocation2 + $0x1a88] sm:$0xff]
    %v4652 = vld [vmem:[#allocation2 + $0x1a90] sm:$0xff]
    %v4653 = vld [vmem:[#allocation2 + $0x1a98] sm:$0xff]
    %v4654 = vld [vmem:[#allocation2 + $0x1aa0] sm:$0xff]
    %v4655 = vld [vmem:[#allocation2 + $0x1aa8] sm:$0xff]
    %v4656 = vld [vmem:[#allocation2 + $0x1ab0] sm:$0xff]
    %v4657 = vld [vmem:[#allocation2 + $0x1ab8] sm:$0xff]
    %v4658 = vld [vmem:[#allocation2 + $0x1ac0] sm:$0xff]
    %v4659 = vld [vmem:[#allocation2 + $0x1ac8] sm:$0xff]
    %v4660 = vld [vmem:[#allocation2 + $0x1ad0] sm:$0xff]
    %v4661 = vld [vmem:[#allocation2 + $0x1ad8] sm:$0xff]
    %v4662 = vld [vmem:[#allocation2 + $0x1ae0] sm:$0xff]
    %v4663 = vld [vmem:[#allocation2 + $0x1ae8] sm:$0xff]
    %v4664 = vld [vmem:[#allocation2 + $0x1af0] sm:$0xff]
    %v4665 = vld [vmem:[#allocation2 + $0x1af8] sm:$0xff]
    %v4666 = vld [vmem:[#allocation2 + $0x1b00] sm:$0xff]
    %v4667 = vld [vmem:[#allocation2 + $0x1b08] sm:$0xff]
    %v4668 = vld [vmem:[#allocation2 + $0x1b10] sm:$0xff]
    %v4669 = vld [vmem:[#allocation2 + $0x1b18] sm:$0xff]
    %v4670 = vld [vmem:[#allocation2 + $0x1b20] sm:$0xff]
    %v4671 = vld [vmem:[#allocation2 + $0x1b28] sm:$0xff]
    %v4672 = vld [vmem:[#allocation2 + $0x1b30] sm:$0xff]
    %v4673 = vld [vmem:[#allocation2 + $0x1b38] sm:$0xff]
    %v4674 = vld [vmem:[#allocation2 + $0x1b40] sm:$0xff]
    %v4675 = vld [vmem:[#allocation2 + $0x1b48] sm:$0xff]
    %v4676 = vld [vmem:[#allocation2 + $0x1b50] sm:$0xff]
    %v4677 = vld [vmem:[#allocation2 + $0x1b58] sm:$0xff]
    %v4678 = vld [vmem:[#allocation2 + $0x1b60] sm:$0xff]
    %v4679 = vld [vmem:[#allocation2 + $0x1b68] sm:$0xff]
    %v4680 = vld [vmem:[#allocation2 + $0x1b70] sm:$0xff]
    %v4681 = vld [vmem:[#allocation2 + $0x1b78] sm:$0xff]
    %v4682 = vld [vmem:[#allocation2 + $0x1b80] sm:$0xff]
    %v4683 = vld [vmem:[#allocation2 + $0x1b88] sm:$0xff]
    %v4684 = vld [vmem:[#allocation2 + $0x1b90] sm:$0xff]
    %v4685 = vld [vmem:[#allocation2 + $0x1b98] sm:$0xff]
    %v4686 = vld [vmem:[#allocation2 + $0x1ba0] sm:$0xff]
    %v4687 = vld [vmem:[#allocation2 + $0x1ba8] sm:$0xff]
    %v4688 = vld [vmem:[#allocation2 + $0x1bb0] sm:$0xff]
    %v4689 = vld [vmem:[#allocation2 + $0x1bb8] sm:$0xff]
    %v4690 = vld [vmem:[#allocation2 + $0x1bc0] sm:$0xff]
    %v4691 = vld [vmem:[#allocation2 + $0x1bc8] sm:$0xff]
    %v4692 = vld [vmem:[#allocation2 + $0x1bd0] sm:$0xff]
    %v4693 = vld [vmem:[#allocation2 + $0x1bd8] sm:$0xff]
    %v4694 = vld [vmem:[#allocation2 + $0x1be0] sm:$0xff]
    %v4695 = vld [vmem:[#allocation2 + $0x1be8] sm:$0xff]
    %v4696 = vld [vmem:[#allocation2 + $0x1bf0] sm:$0xff]
    %v4697 = vld [vmem:[#allocation2 + $0x1bf8] sm:$0xff]
    %v5594 = vunpack.c.l.b16 %v3802
    %v5595 = vunpack.c.h.b16 %v3802
    %v5596 = vunpack.c.l.b16 %v3803
    %v5597 = vunpack.c.h.b16 %v3803
    %v5598 = vunpack.c.l.b16 %v3804
    %v5599 = vunpack.c.h.b16 %v3804
    %v5600 = vunpack.c.l.b16 %v3805
    %v5601 = vunpack.c.h.b16 %v3805
    %v5602 = vunpack.c.l.b16 %v3806
    %v5603 = vunpack.c.h.b16 %v3806
    %v5604 = vunpack.c.l.b16 %v3807
    %v5605 = vunpack.c.h.b16 %v3807
    %v5606 = vunpack.c.l.b16 %v3808
    %v5607 = vunpack.c.h.b16 %v3808
    %v5608 = vunpack.c.l.b16 %v3809
    %v5609 = vunpack.c.h.b16 %v3809
    %v5610 = vunpack.c.l.b16 %v3810
    %v5611 = vunpack.c.h.b16 %v3810
    %v5612 = vunpack.c.l.b16 %v3811
    %v5613 = vunpack.c.h.b16 %v3811
    %v5614 = vunpack.c.l.b16 %v3812
    %v5615 = vunpack.c.h.b16 %v3812
    %v5616 = vunpack.c.l.b16 %v3813
    %v5617 = vunpack.c.h.b16 %v3813
    %v5618 = vunpack.c.l.b16 %v3814
    %v5619 = vunpack.c.h.b16 %v3814
    %v5620 = vunpack.c.l.b16 %v3815
    %v5621 = vunpack.c.h.b16 %v3815
    %v5622 = vunpack.c.l.b16 %v3816
    %v5623 = vunpack.c.h.b16 %v3816
    %v5624 = vunpack.c.l.b16 %v3817
    %v5625 = vunpack.c.h.b16 %v3817
    %v5626 = vunpack.c.l.b16 %v3818
    %v5627 = vunpack.c.h.b16 %v3818
    %v5628 = vunpack.c.l.b16 %v3819
    %v5629 = vunpack.c.h.b16 %v3819
    %v5630 = vunpack.c.l.b16 %v3820
    %v5631 = vunpack.c.h.b16 %v3820
    %v5632 = vunpack.c.l.b16 %v3821
    %v5633 = vunpack.c.h.b16 %v3821
    %v5634 = vunpack.c.l.b16 %v3822
    %v5635 = vunpack.c.h.b16 %v3822
    %v5636 = vunpack.c.l.b16 %v3823
    %v5637 = vunpack.c.h.b16 %v3823
    %v5638 = vunpack.c.l.b16 %v3824
    %v5639 = vunpack.c.h.b16 %v3824
    %v5640 = vunpack.c.l.b16 %v3825
    %v5641 = vunpack.c.h.b16 %v3825
    %v5642 = vunpack.c.l.b16 %v3826
    %v5643 = vunpack.c.h.b16 %v3826
    %v5644 = vunpack.c.l.b16 %v3827
    %v5645 = vunpack.c.h.b16 %v3827
    %v5646 = vunpack.c.l.b16 %v3828
    %v5647 = vunpack.c.h.b16 %v3828
    %v5648 = vunpack.c.l.b16 %v3829
    %v5649 = vunpack.c.h.b16 %v3829
    %v5650 = vunpack.c.l.b16 %v3830
    %v5651 = vunpack.c.h.b16 %v3830
    %v5652 = vunpack.c.l.b16 %v3831
    %v5653 = vunpack.c.h.b16 %v3831
    %v5654 = vunpack.c.l.b16 %v3832
    %v5655 = vunpack.c.h.b16 %v3832
    %v5656 = vunpack.c.l.b16 %v3833
    %v5657 = vunpack.c.h.b16 %v3833
    %v5658 = vunpack.c.l.b16 %v3834
    %v5659 = vunpack.c.h.b16 %v3834
    %v5660 = vunpack.c.l.b16 %v3835
    %v5661 = vunpack.c.h.b16 %v3835
    %v5662 = vunpack.c.l.b16 %v3836
    %v5663 = vunpack.c.h.b16 %v3836
    %v5664 = vunpack.c.l.b16 %v3837
    %v5665 = vunpack.c.h.b16 %v3837
    %v5666 = vunpack.c.l.b16 %v3838
    %v5667 = vunpack.c.h.b16 %v3838
    %v5668 = vunpack.c.l.b16 %v3839
    %v5669 = vunpack.c.h.b16 %v3839
    %v5670 = vunpack.c.l.b16 %v3840
    %v5671 = vunpack.c.h.b16 %v3840
    %v5672 = vunpack.c.l.b16 %v3841
    %v5673 = vunpack.c.h.b16 %v3841
    %v5674 = vunpack.c.l.b16 %v3842
    %v5675 = vunpack.c.h.b16 %v3842
    %v5676 = vunpack.c.l.b16 %v3843
    %v5677 = vunpack.c.h.b16 %v3843
    %v5678 = vunpack.c.l.b16 %v3844
    %v5679 = vunpack.c.h.b16 %v3844
    %v5680 = vunpack.c.l.b16 %v3845
    %v5681 = vunpack.c.h.b16 %v3845
    %v5682 = vunpack.c.l.b16 %v3846
    %v5683 = vunpack.c.h.b16 %v3846
    %v5684 = vunpack.c.l.b16 %v3847
    %v5685 = vunpack.c.h.b16 %v3847
    %v5686 = vunpack.c.l.b16 %v3848
    %v5687 = vunpack.c.h.b16 %v3848
    %v5688 = vunpack.c.l.b16 %v3849
    %v5689 = vunpack.c.h.b16 %v3849
    %v5690 = vunpack.c.l.b16 %v3850
    %v5691 = vunpack.c.h.b16 %v3850
    %v5692 = vunpack.c.l.b16 %v3851
    %v5693 = vunpack.c.h.b16 %v3851
    %v5694 = vunpack.c.l.b16 %v3852
    %v5695 = vunpack.c.h.b16 %v3852
    %v5696 = vunpack.c.l.b16 %v3853
    %v5697 = vunpack.c.h.b16 %v3853
    %v5698 = vunpack.c.l.b16 %v3854
    %v5699 = vunpack.c.h.b16 %v3854
    %v5700 = vunpack.c.l.b16 %v3855
    %v5701 = vunpack.c.h.b16 %v3855
    %v5702 = vunpack.c.l.b16 %v3856
    %v5703 = vunpack.c.h.b16 %v3856
    %v5704 = vunpack.c.l.b16 %v3857
    %v5705 = vunpack.c.h.b16 %v3857
    %v5706 = vunpack.c.l.b16 %v3858
    %v5707 = vunpack.c.h.b16 %v3858
    %v5708 = vunpack.c.l.b16 %v3859
    %v5709 = vunpack.c.h.b16 %v3859
    %v5710 = vunpack.c.l.b16 %v3860
    %v5711 = vunpack.c.h.b16 %v3860
    %v5712 = vunpack.c.l.b16 %v3861
    %v5713 = vunpack.c.h.b16 %v3861
    %v5714 = vunpack.c.l.b16 %v3862
    %v5715 = vunpack.c.h.b16 %v3862
    %v5716 = vunpack.c.l.b16 %v3863
    %v5717 = vunpack.c.h.b16 %v3863
    %v5718 = vunpack.c.l.b16 %v3864
    %v5719 = vunpack.c.h.b16 %v3864
    %v5720 = vunpack.c.l.b16 %v3865
    %v5721 = vunpack.c.h.b16 %v3865
    %v5722 = vunpack.c.l.b16 %v3866
    %v5723 = vunpack.c.h.b16 %v3866
    %v5724 = vunpack.c.l.b16 %v3867
    %v5725 = vunpack.c.h.b16 %v3867
    %v5726 = vunpack.c.l.b16 %v3868
    %v5727 = vunpack.c.h.b16 %v3868
    %v5728 = vunpack.c.l.b16 %v3869
    %v5729 = vunpack.c.h.b16 %v3869
    %v5730 = vunpack.c.l.b16 %v3870
    %v5731 = vunpack.c.h.b16 %v3870
    %v5732 = vunpack.c.l.b16 %v3871
    %v5733 = vunpack.c.h.b16 %v3871
    %v5734 = vunpack.c.l.b16 %v3872
    %v5735 = vunpack.c.h.b16 %v3872
    %v5736 = vunpack.c.l.b16 %v3873
    %v5737 = vunpack.c.h.b16 %v3873
    %v5738 = vunpack.c.l.b16 %v3874
    %v5739 = vunpack.c.h.b16 %v3874
    %v5740 = vunpack.c.l.b16 %v3875
    %v5741 = vunpack.c.h.b16 %v3875
    %v5742 = vunpack.c.l.b16 %v3876
    %v5743 = vunpack.c.h.b16 %v3876
    %v5744 = vunpack.c.l.b16 %v3877
    %v5745 = vunpack.c.h.b16 %v3877
    %v5746 = vunpack.c.l.b16 %v3878
    %v5747 = vunpack.c.h.b16 %v3878
    %v5748 = vunpack.c.l.b16 %v3879
    %v5749 = vunpack.c.h.b16 %v3879
    %v5750 = vunpack.c.l.b16 %v3880
    %v5751 = vunpack.c.h.b16 %v3880
    %v5752 = vunpack.c.l.b16 %v3881
    %v5753 = vunpack.c.h.b16 %v3881
    %v5754 = vunpack.c.l.b16 %v3882
    %v5755 = vunpack.c.h.b16 %v3882
    %v5756 = vunpack.c.l.b16 %v3883
    %v5757 = vunpack.c.h.b16 %v3883
    %v5758 = vunpack.c.l.b16 %v3884
    %v5759 = vunpack.c.h.b16 %v3884
    %v5760 = vunpack.c.l.b16 %v3885
    %v5761 = vunpack.c.h.b16 %v3885
    %v5762 = vunpack.c.l.b16 %v3886
    %v5763 = vunpack.c.h.b16 %v3886
    %v5764 = vunpack.c.l.b16 %v3887
    %v5765 = vunpack.c.h.b16 %v3887
    %v5766 = vunpack.c.l.b16 %v3888
    %v5767 = vunpack.c.h.b16 %v3888
    %v5768 = vunpack.c.l.b16 %v3889
    %v5769 = vunpack.c.h.b16 %v3889
    %v5770 = vunpack.c.l.b16 %v3890
    %v5771 = vunpack.c.h.b16 %v3890
    %v5772 = vunpack.c.l.b16 %v3891
    %v5773 = vunpack.c.h.b16 %v3891
    %v5774 = vunpack.c.l.b16 %v3892
    %v5775 = vunpack.c.h.b16 %v3892
    %v5776 = vunpack.c.l.b16 %v3893
    %v5777 = vunpack.c.h.b16 %v3893
    %v5778 = vunpack.c.l.b16 %v3894
    %v5779 = vunpack.c.h.b16 %v3894
    %v5780 = vunpack.c.l.b16 %v3895
    %v5781 = vunpack.c.h.b16 %v3895
    %v5782 = vunpack.c.l.b16 %v3896
    %v5783 = vunpack.c.h.b16 %v3896
    %v5784 = vunpack.c.l.b16 %v3897
    %v5785 = vunpack.c.h.b16 %v3897
    %v5786 = vunpack.c.l.b16 %v3898
    %v5787 = vunpack.c.h.b16 %v3898
    %v5788 = vunpack.c.l.b16 %v3899
    %v5789 = vunpack.c.h.b16 %v3899
    %v5790 = vunpack.c.l.b16 %v3900
    %v5791 = vunpack.c.h.b16 %v3900
    %v5792 = vunpack.c.l.b16 %v3901
    %v5793 = vunpack.c.h.b16 %v3901
    %v5794 = vunpack.c.l.b16 %v3902
    %v5795 = vunpack.c.h.b16 %v3902
    %v5796 = vunpack.c.l.b16 %v3903
    %v5797 = vunpack.c.h.b16 %v3903
    %v5798 = vunpack.c.l.b16 %v3904
    %v5799 = vunpack.c.h.b16 %v3904
    %v5800 = vunpack.c.l.b16 %v3905
    %v5801 = vunpack.c.h.b16 %v3905
    %v5802 = vunpack.c.l.b16 %v3906
    %v5803 = vunpack.c.h.b16 %v3906
    %v5804 = vunpack.c.l.b16 %v3907
    %v5805 = vunpack.c.h.b16 %v3907
    %v5806 = vunpack.c.l.b16 %v3908
    %v5807 = vunpack.c.h.b16 %v3908
    %v5808 = vunpack.c.l.b16 %v3909
    %v5809 = vunpack.c.h.b16 %v3909
    %v5810 = vunpack.c.l.b16 %v3910
    %v5811 = vunpack.c.h.b16 %v3910
    %v5812 = vunpack.c.l.b16 %v3911
    %v5813 = vunpack.c.h.b16 %v3911
    %v5814 = vunpack.c.l.b16 %v3912
    %v5815 = vunpack.c.h.b16 %v3912
    %v5816 = vunpack.c.l.b16 %v3913
    %v5817 = vunpack.c.h.b16 %v3913
    %v5818 = vunpack.c.l.b16 %v3914
    %v5819 = vunpack.c.h.b16 %v3914
    %v5820 = vunpack.c.l.b16 %v3915
    %v5821 = vunpack.c.h.b16 %v3915
    %v5822 = vunpack.c.l.b16 %v3916
    %v5823 = vunpack.c.h.b16 %v3916
    %v5824 = vunpack.c.l.b16 %v3917
    %v5825 = vunpack.c.h.b16 %v3917
    %v5826 = vunpack.c.l.b16 %v3918
    %v5827 = vunpack.c.h.b16 %v3918
    %v5828 = vunpack.c.l.b16 %v3919
    %v5829 = vunpack.c.h.b16 %v3919
    %v5830 = vunpack.c.l.b16 %v3920
    %v5831 = vunpack.c.h.b16 %v3920
    %v5832 = vunpack.c.l.b16 %v3921
    %v5833 = vunpack.c.h.b16 %v3921
    %v5834 = vunpack.c.l.b16 %v3922
    %v5835 = vunpack.c.h.b16 %v3922
    %v5836 = vunpack.c.l.b16 %v3923
    %v5837 = vunpack.c.h.b16 %v3923
    %v5838 = vunpack.c.l.b16 %v3924
    %v5839 = vunpack.c.h.b16 %v3924
    %v5840 = vunpack.c.l.b16 %v3925
    %v5841 = vunpack.c.h.b16 %v3925
    %v5842 = vunpack.c.l.b16 %v3926
    %v5843 = vunpack.c.h.b16 %v3926
    %v5844 = vunpack.c.l.b16 %v3927
    %v5845 = vunpack.c.h.b16 %v3927
    %v5846 = vunpack.c.l.b16 %v3928
    %v5847 = vunpack.c.h.b16 %v3928
    %v5848 = vunpack.c.l.b16 %v3929
    %v5849 = vunpack.c.h.b16 %v3929
    %v5850 = vunpack.c.l.b16 %v3930
    %v5851 = vunpack.c.h.b16 %v3930
    %v5852 = vunpack.c.l.b16 %v3931
    %v5853 = vunpack.c.h.b16 %v3931
    %v5854 = vunpack.c.l.b16 %v3932
    %v5855 = vunpack.c.h.b16 %v3932
    %v5856 = vunpack.c.l.b16 %v3933
    %v5857 = vunpack.c.h.b16 %v3933
    %v5858 = vunpack.c.l.b16 %v3934
    %v5859 = vunpack.c.h.b16 %v3934
    %v5860 = vunpack.c.l.b16 %v3935
    %v5861 = vunpack.c.h.b16 %v3935
    %v5862 = vunpack.c.l.b16 %v3936
    %v5863 = vunpack.c.h.b16 %v3936
    %v5864 = vunpack.c.l.b16 %v3937
    %v5865 = vunpack.c.h.b16 %v3937
    %v5866 = vunpack.c.l.b16 %v3938
    %v5867 = vunpack.c.h.b16 %v3938
    %v5868 = vunpack.c.l.b16 %v3939
    %v5869 = vunpack.c.h.b16 %v3939
    %v5870 = vunpack.c.l.b16 %v3940
    %v5871 = vunpack.c.h.b16 %v3940
    %v5872 = vunpack.c.l.b16 %v3941
    %v5873 = vunpack.c.h.b16 %v3941
    %v5874 = vunpack.c.l.b16 %v3942
    %v5875 = vunpack.c.h.b16 %v3942
    %v5876 = vunpack.c.l.b16 %v3943
    %v5877 = vunpack.c.h.b16 %v3943
    %v5878 = vunpack.c.l.b16 %v3944
    %v5879 = vunpack.c.h.b16 %v3944
    %v5880 = vunpack.c.l.b16 %v3945
    %v5881 = vunpack.c.h.b16 %v3945
    %v5882 = vunpack.c.l.b16 %v3946
    %v5883 = vunpack.c.h.b16 %v3946
    %v5884 = vunpack.c.l.b16 %v3947
    %v5885 = vunpack.c.h.b16 %v3947
    %v5886 = vunpack.c.l.b16 %v3948
    %v5887 = vunpack.c.h.b16 %v3948
    %v5888 = vunpack.c.l.b16 %v3949
    %v5889 = vunpack.c.h.b16 %v3949
    %v5890 = vunpack.c.l.b16 %v3950
    %v5891 = vunpack.c.h.b16 %v3950
    %v5892 = vunpack.c.l.b16 %v3951
    %v5893 = vunpack.c.h.b16 %v3951
    %v5894 = vunpack.c.l.b16 %v3952
    %v5895 = vunpack.c.h.b16 %v3952
    %v5896 = vunpack.c.l.b16 %v3953
    %v5897 = vunpack.c.h.b16 %v3953
    %v5898 = vunpack.c.l.b16 %v3954
    %v5899 = vunpack.c.h.b16 %v3954
    %v5900 = vunpack.c.l.b16 %v3955
    %v5901 = vunpack.c.h.b16 %v3955
    %v5902 = vunpack.c.l.b16 %v3956
    %v5903 = vunpack.c.h.b16 %v3956
    %v5904 = vunpack.c.l.b16 %v3957
    %v5905 = vunpack.c.h.b16 %v3957
    %v5906 = vunpack.c.l.b16 %v3958
    %v5907 = vunpack.c.h.b16 %v3958
    %v5908 = vunpack.c.l.b16 %v3959
    %v5909 = vunpack.c.h.b16 %v3959
    %v5910 = vunpack.c.l.b16 %v3960
    %v5911 = vunpack.c.h.b16 %v3960
    %v5912 = vunpack.c.l.b16 %v3961
    %v5913 = vunpack.c.h.b16 %v3961
    %v5914 = vunpack.c.l.b16 %v3962
    %v5915 = vunpack.c.h.b16 %v3962
    %v5916 = vunpack.c.l.b16 %v3963
    %v5917 = vunpack.c.h.b16 %v3963
    %v5918 = vunpack.c.l.b16 %v3964
    %v5919 = vunpack.c.h.b16 %v3964
    %v5920 = vunpack.c.l.b16 %v3965
    %v5921 = vunpack.c.h.b16 %v3965
    %v5922 = vunpack.c.l.b16 %v3966
    %v5923 = vunpack.c.h.b16 %v3966
    %v5924 = vunpack.c.l.b16 %v3967
    %v5925 = vunpack.c.h.b16 %v3967
    %v5926 = vunpack.c.l.b16 %v3968
    %v5927 = vunpack.c.h.b16 %v3968
    %v5928 = vunpack.c.l.b16 %v3969
    %v5929 = vunpack.c.h.b16 %v3969
    %v5930 = vunpack.c.l.b16 %v3970
    %v5931 = vunpack.c.h.b16 %v3970
    %v5932 = vunpack.c.l.b16 %v3971
    %v5933 = vunpack.c.h.b16 %v3971
    %v5934 = vunpack.c.l.b16 %v3972
    %v5935 = vunpack.c.h.b16 %v3972
    %v5936 = vunpack.c.l.b16 %v3973
    %v5937 = vunpack.c.h.b16 %v3973
    %v5938 = vunpack.c.l.b16 %v3974
    %v5939 = vunpack.c.h.b16 %v3974
    %v5940 = vunpack.c.l.b16 %v3975
    %v5941 = vunpack.c.h.b16 %v3975
    %v5942 = vunpack.c.l.b16 %v3976
    %v5943 = vunpack.c.h.b16 %v3976
    %v5944 = vunpack.c.l.b16 %v3977
    %v5945 = vunpack.c.h.b16 %v3977
    %v5946 = vunpack.c.l.b16 %v3978
    %v5947 = vunpack.c.h.b16 %v3978
    %v5948 = vunpack.c.l.b16 %v3979
    %v5949 = vunpack.c.h.b16 %v3979
    %v5950 = vunpack.c.l.b16 %v3980
    %v5951 = vunpack.c.h.b16 %v3980
    %v5952 = vunpack.c.l.b16 %v3981
    %v5953 = vunpack.c.h.b16 %v3981
    %v5954 = vunpack.c.l.b16 %v3982
    %v5955 = vunpack.c.h.b16 %v3982
    %v5956 = vunpack.c.l.b16 %v3983
    %v5957 = vunpack.c.h.b16 %v3983
    %v5958 = vunpack.c.l.b16 %v3984
    %v5959 = vunpack.c.h.b16 %v3984
    %v5960 = vunpack.c.l.b16 %v3985
    %v5961 = vunpack.c.h.b16 %v3985
    %v5962 = vunpack.c.l.b16 %v3986
    %v5963 = vunpack.c.h.b16 %v3986
    %v5964 = vunpack.c.l.b16 %v3987
    %v5965 = vunpack.c.h.b16 %v3987
    %v5966 = vunpack.c.l.b16 %v3988
    %v5967 = vunpack.c.h.b16 %v3988
    %v5968 = vunpack.c.l.b16 %v3989
    %v5969 = vunpack.c.h.b16 %v3989
    %v5970 = vunpack.c.l.b16 %v3990
    %v5971 = vunpack.c.h.b16 %v3990
    %v5972 = vunpack.c.l.b16 %v3991
    %v5973 = vunpack.c.h.b16 %v3991
    %v5974 = vunpack.c.l.b16 %v3992
    %v5975 = vunpack.c.h.b16 %v3992
    %v5976 = vunpack.c.l.b16 %v3993
    %v5977 = vunpack.c.h.b16 %v3993
    %v5978 = vunpack.c.l.b16 %v3994
    %v5979 = vunpack.c.h.b16 %v3994
    %v5980 = vunpack.c.l.b16 %v3995
    %v5981 = vunpack.c.h.b16 %v3995
    %v5982 = vunpack.c.l.b16 %v3996
    %v5983 = vunpack.c.h.b16 %v3996
    %v5984 = vunpack.c.l.b16 %v3997
    %v5985 = vunpack.c.h.b16 %v3997
    %v5986 = vunpack.c.l.b16 %v3998
    %v5987 = vunpack.c.h.b16 %v3998
    %v5988 = vunpack.c.l.b16 %v3999
    %v5989 = vunpack.c.h.b16 %v3999
    %v5990 = vunpack.c.l.b16 %v4000
    %v5991 = vunpack.c.h.b16 %v4000
    %v5992 = vunpack.c.l.b16 %v4001
    %v5993 = vunpack.c.h.b16 %v4001
    %v5994 = vunpack.c.l.b16 %v4002
    %v5995 = vunpack.c.h.b16 %v4002
    %v5996 = vunpack.c.l.b16 %v4003
    %v5997 = vunpack.c.h.b16 %v4003
    %v5998 = vunpack.c.l.b16 %v4004
    %v5999 = vunpack.c.h.b16 %v4004
    %v6000 = vunpack.c.l.b16 %v4005
    %v6001 = vunpack.c.h.b16 %v4005
    %v6002 = vunpack.c.l.b16 %v4006
    %v6003 = vunpack.c.h.b16 %v4006
    %v6004 = vunpack.c.l.b16 %v4007
    %v6005 = vunpack.c.h.b16 %v4007
    %v6006 = vunpack.c.l.b16 %v4008
    %v6007 = vunpack.c.h.b16 %v4008
    %v6008 = vunpack.c.l.b16 %v4009
    %v6009 = vunpack.c.h.b16 %v4009
    %v6010 = vunpack.c.l.b16 %v4010
    %v6011 = vunpack.c.h.b16 %v4010
    %v6012 = vunpack.c.l.b16 %v4011
    %v6013 = vunpack.c.h.b16 %v4011
    %v6014 = vunpack.c.l.b16 %v4012
    %v6015 = vunpack.c.h.b16 %v4012
    %v6016 = vunpack.c.l.b16 %v4013
    %v6017 = vunpack.c.h.b16 %v4013
    %v6018 = vunpack.c.l.b16 %v4014
    %v6019 = vunpack.c.h.b16 %v4014
    %v6020 = vunpack.c.l.b16 %v4015
    %v6021 = vunpack.c.h.b16 %v4015
    %v6022 = vunpack.c.l.b16 %v4016
    %v6023 = vunpack.c.h.b16 %v4016
    %v6024 = vunpack.c.l.b16 %v4017
    %v6025 = vunpack.c.h.b16 %v4017
    %v6026 = vunpack.c.l.b16 %v4018
    %v6027 = vunpack.c.h.b16 %v4018
    %v6028 = vunpack.c.l.b16 %v4019
    %v6029 = vunpack.c.h.b16 %v4019
    %v6030 = vunpack.c.l.b16 %v4020
    %v6031 = vunpack.c.h.b16 %v4020
    %v6032 = vunpack.c.l.b16 %v4021
    %v6033 = vunpack.c.h.b16 %v4021
    %v6034 = vunpack.c.l.b16 %v4022
    %v6035 = vunpack.c.h.b16 %v4022
    %v6036 = vunpack.c.l.b16 %v4023
    %v6037 = vunpack.c.h.b16 %v4023
    %v6038 = vunpack.c.l.b16 %v4024
    %v6039 = vunpack.c.h.b16 %v4024
    %v6040 = vunpack.c.l.b16 %v4025
    %v6041 = vunpack.c.h.b16 %v4025
    %v6042 = vunpack.c.l.b16 %v4026
    %v6043 = vunpack.c.h.b16 %v4026
    %v6044 = vunpack.c.l.b16 %v4027
    %v6045 = vunpack.c.h.b16 %v4027
    %v6046 = vunpack.c.l.b16 %v4028
    %v6047 = vunpack.c.h.b16 %v4028
    %v6048 = vunpack.c.l.b16 %v4029
    %v6049 = vunpack.c.h.b16 %v4029
    %v6050 = vunpack.c.l.b16 %v4030
    %v6051 = vunpack.c.h.b16 %v4030
    %v6052 = vunpack.c.l.b16 %v4031
    %v6053 = vunpack.c.h.b16 %v4031
    %v6054 = vunpack.c.l.b16 %v4032
    %v6055 = vunpack.c.h.b16 %v4032
    %v6056 = vunpack.c.l.b16 %v4033
    %v6057 = vunpack.c.h.b16 %v4033
    %v6058 = vunpack.c.l.b16 %v4034
    %v6059 = vunpack.c.h.b16 %v4034
    %v6060 = vunpack.c.l.b16 %v4035
    %v6061 = vunpack.c.h.b16 %v4035
    %v6062 = vunpack.c.l.b16 %v4036
    %v6063 = vunpack.c.h.b16 %v4036
    %v6064 = vunpack.c.l.b16 %v4037
    %v6065 = vunpack.c.h.b16 %v4037
    %v6066 = vunpack.c.l.b16 %v4038
    %v6067 = vunpack.c.h.b16 %v4038
    %v6068 = vunpack.c.l.b16 %v4039
    %v6069 = vunpack.c.h.b16 %v4039
    %v6070 = vunpack.c.l.b16 %v4040
    %v6071 = vunpack.c.h.b16 %v4040
    %v6072 = vunpack.c.l.b16 %v4041
    %v6073 = vunpack.c.h.b16 %v4041
    %v6074 = vunpack.c.l.b16 %v4042
    %v6075 = vunpack.c.h.b16 %v4042
    %v6076 = vunpack.c.l.b16 %v4043
    %v6077 = vunpack.c.h.b16 %v4043
    %v6078 = vunpack.c.l.b16 %v4044
    %v6079 = vunpack.c.h.b16 %v4044
    %v6080 = vunpack.c.l.b16 %v4045
    %v6081 = vunpack.c.h.b16 %v4045
    %v6082 = vunpack.c.l.b16 %v4046
    %v6083 = vunpack.c.h.b16 %v4046
    %v6084 = vunpack.c.l.b16 %v4047
    %v6085 = vunpack.c.h.b16 %v4047
    %v6086 = vunpack.c.l.b16 %v4048
    %v6087 = vunpack.c.h.b16 %v4048
    %v6088 = vunpack.c.l.b16 %v4049
    %v6089 = vunpack.c.h.b16 %v4049
    %v6090 = vunpack.c.l.b16 %v4050
    %v6091 = vunpack.c.h.b16 %v4050
    %v6092 = vunpack.c.l.b16 %v4051
    %v6093 = vunpack.c.h.b16 %v4051
    %v6094 = vunpack.c.l.b16 %v4052
    %v6095 = vunpack.c.h.b16 %v4052
    %v6096 = vunpack.c.l.b16 %v4053
    %v6097 = vunpack.c.h.b16 %v4053
    %v6098 = vunpack.c.l.b16 %v4054
    %v6099 = vunpack.c.h.b16 %v4054
    %v6100 = vunpack.c.l.b16 %v4055
    %v6101 = vunpack.c.h.b16 %v4055
    %v6102 = vunpack.c.l.b16 %v4056
    %v6103 = vunpack.c.h.b16 %v4056
    %v6104 = vunpack.c.l.b16 %v4057
    %v6105 = vunpack.c.h.b16 %v4057
    %v6106 = vunpack.c.l.b16 %v4058
    %v6107 = vunpack.c.h.b16 %v4058
    %v6108 = vunpack.c.l.b16 %v4059
    %v6109 = vunpack.c.h.b16 %v4059
    %v6110 = vunpack.c.l.b16 %v4060
    %v6111 = vunpack.c.h.b16 %v4060
    %v6112 = vunpack.c.l.b16 %v4061
    %v6113 = vunpack.c.h.b16 %v4061
    %v6114 = vunpack.c.l.b16 %v4062
    %v6115 = vunpack.c.h.b16 %v4062
    %v6116 = vunpack.c.l.b16 %v4063
    %v6117 = vunpack.c.h.b16 %v4063
    %v6118 = vunpack.c.l.b16 %v4064
    %v6119 = vunpack.c.h.b16 %v4064
    %v6120 = vunpack.c.l.b16 %v4065
    %v6121 = vunpack.c.h.b16 %v4065
    %v6122 = vunpack.c.l.b16 %v4066
    %v6123 = vunpack.c.h.b16 %v4066
    %v6124 = vunpack.c.l.b16 %v4067
    %v6125 = vunpack.c.h.b16 %v4067
    %v6126 = vunpack.c.l.b16 %v4068
    %v6127 = vunpack.c.h.b16 %v4068
    %v6128 = vunpack.c.l.b16 %v4069
    %v6129 = vunpack.c.h.b16 %v4069
    %v6130 = vunpack.c.l.b16 %v4070
    %v6131 = vunpack.c.h.b16 %v4070
    %v6132 = vunpack.c.l.b16 %v4071
    %v6133 = vunpack.c.h.b16 %v4071
    %v6134 = vunpack.c.l.b16 %v4072
    %v6135 = vunpack.c.h.b16 %v4072
    %v6136 = vunpack.c.l.b16 %v4073
    %v6137 = vunpack.c.h.b16 %v4073
    %v6138 = vunpack.c.l.b16 %v4074
    %v6139 = vunpack.c.h.b16 %v4074
    %v6140 = vunpack.c.l.b16 %v4075
    %v6141 = vunpack.c.h.b16 %v4075
    %v6142 = vunpack.c.l.b16 %v4076
    %v6143 = vunpack.c.h.b16 %v4076
    %v6144 = vunpack.c.l.b16 %v4077
    %v6145 = vunpack.c.h.b16 %v4077
    %v6146 = vunpack.c.l.b16 %v4078
    %v6147 = vunpack.c.h.b16 %v4078
    %v6148 = vunpack.c.l.b16 %v4079
    %v6149 = vunpack.c.h.b16 %v4079
    %v6150 = vunpack.c.l.b16 %v4080
    %v6151 = vunpack.c.h.b16 %v4080
    %v6152 = vunpack.c.l.b16 %v4081
    %v6153 = vunpack.c.h.b16 %v4081
    %v6154 = vunpack.c.l.b16 %v4082
    %v6155 = vunpack.c.h.b16 %v4082
    %v6156 = vunpack.c.l.b16 %v4083
    %v6157 = vunpack.c.h.b16 %v4083
    %v6158 = vunpack.c.l.b16 %v4084
    %v6159 = vunpack.c.h.b16 %v4084
    %v6160 = vunpack.c.l.b16 %v4085
    %v6161 = vunpack.c.h.b16 %v4085
    %v6162 = vunpack.c.l.b16 %v4086
    %v6163 = vunpack.c.h.b16 %v4086
    %v6164 = vunpack.c.l.b16 %v4087
    %v6165 = vunpack.c.h.b16 %v4087
    %v6166 = vunpack.c.l.b16 %v4088
    %v6167 = vunpack.c.h.b16 %v4088
    %v6168 = vunpack.c.l.b16 %v4089
    %v6169 = vunpack.c.h.b16 %v4089
    %v6170 = vunpack.c.l.b16 %v4090
    %v6171 = vunpack.c.h.b16 %v4090
    %v6172 = vunpack.c.l.b16 %v4091
    %v6173 = vunpack.c.h.b16 %v4091
    %v6174 = vunpack.c.l.b16 %v4092
    %v6175 = vunpack.c.h.b16 %v4092
    %v6176 = vunpack.c.l.b16 %v4093
    %v6177 = vunpack.c.h.b16 %v4093
    %v6178 = vunpack.c.l.b16 %v4094
    %v6179 = vunpack.c.h.b16 %v4094
    %v6180 = vunpack.c.l.b16 %v4095
    %v6181 = vunpack.c.h.b16 %v4095
    %v6182 = vunpack.c.l.b16 %v4096
    %v6183 = vunpack.c.h.b16 %v4096
    %v6184 = vunpack.c.l.b16 %v4097
    %v6185 = vunpack.c.h.b16 %v4097
    %v6186 = vunpack.c.l.b16 %v4098
    %v6187 = vunpack.c.h.b16 %v4098
    %v6188 = vunpack.c.l.b16 %v4099
    %v6189 = vunpack.c.h.b16 %v4099
    %v6190 = vunpack.c.l.b16 %v4100
    %v6191 = vunpack.c.h.b16 %v4100
    %v6192 = vunpack.c.l.b16 %v4101
    %v6193 = vunpack.c.h.b16 %v4101
    %v6194 = vunpack.c.l.b16 %v4102
    %v6195 = vunpack.c.h.b16 %v4102
    %v6196 = vunpack.c.l.b16 %v4103
    %v6197 = vunpack.c.h.b16 %v4103
    %v6198 = vunpack.c.l.b16 %v4104
    %v6199 = vunpack.c.h.b16 %v4104
    %v6200 = vunpack.c.l.b16 %v4105
    %v6201 = vunpack.c.h.b16 %v4105
    %v6202 = vunpack.c.l.b16 %v4106
    %v6203 = vunpack.c.h.b16 %v4106
    %v6204 = vunpack.c.l.b16 %v4107
    %v6205 = vunpack.c.h.b16 %v4107
    %v6206 = vunpack.c.l.b16 %v4108
    %v6207 = vunpack.c.h.b16 %v4108
    %v6208 = vunpack.c.l.b16 %v4109
    %v6209 = vunpack.c.h.b16 %v4109
    %v6210 = vunpack.c.l.b16 %v4110
    %v6211 = vunpack.c.h.b16 %v4110
    %v6212 = vunpack.c.l.b16 %v4111
    %v6213 = vunpack.c.h.b16 %v4111
    %v6214 = vunpack.c.l.b16 %v4112
    %v6215 = vunpack.c.h.b16 %v4112
    %v6216 = vunpack.c.l.b16 %v4113
    %v6217 = vunpack.c.h.b16 %v4113
    %v6218 = vunpack.c.l.b16 %v4114
    %v6219 = vunpack.c.h.b16 %v4114
    %v6220 = vunpack.c.l.b16 %v4115
    %v6221 = vunpack.c.h.b16 %v4115
    %v6222 = vunpack.c.l.b16 %v4116
    %v6223 = vunpack.c.h.b16 %v4116
    %v6224 = vunpack.c.l.b16 %v4117
    %v6225 = vunpack.c.h.b16 %v4117
    %v6226 = vunpack.c.l.b16 %v4118
    %v6227 = vunpack.c.h.b16 %v4118
    %v6228 = vunpack.c.l.b16 %v4119
    %v6229 = vunpack.c.h.b16 %v4119
    %v6230 = vunpack.c.l.b16 %v4120
    %v6231 = vunpack.c.h.b16 %v4120
    %v6232 = vunpack.c.l.b16 %v4121
    %v6233 = vunpack.c.h.b16 %v4121
    %v6234 = vunpack.c.l.b16 %v4122
    %v6235 = vunpack.c.h.b16 %v4122
    %v6236 = vunpack.c.l.b16 %v4123
    %v6237 = vunpack.c.h.b16 %v4123
    %v6238 = vunpack.c.l.b16 %v4124
    %v6239 = vunpack.c.h.b16 %v4124
    %v6240 = vunpack.c.l.b16 %v4125
    %v6241 = vunpack.c.h.b16 %v4125
    %v6242 = vunpack.c.l.b16 %v4126
    %v6243 = vunpack.c.h.b16 %v4126
    %v6244 = vunpack.c.l.b16 %v4127
    %v6245 = vunpack.c.h.b16 %v4127
    %v6246 = vunpack.c.l.b16 %v4128
    %v6247 = vunpack.c.h.b16 %v4128
    %v6248 = vunpack.c.l.b16 %v4129
    %v6249 = vunpack.c.h.b16 %v4129
    %v6250 = vunpack.c.l.b16 %v4130
    %v6251 = vunpack.c.h.b16 %v4130
    %v6252 = vunpack.c.l.b16 %v4131
    %v6253 = vunpack.c.h.b16 %v4131
    %v6254 = vunpack.c.l.b16 %v4132
    %v6255 = vunpack.c.h.b16 %v4132
    %v6256 = vunpack.c.l.b16 %v4133
    %v6257 = vunpack.c.h.b16 %v4133
    %v6258 = vunpack.c.l.b16 %v4134
    %v6259 = vunpack.c.h.b16 %v4134
    %v6260 = vunpack.c.l.b16 %v4135
    %v6261 = vunpack.c.h.b16 %v4135
    %v6262 = vunpack.c.l.b16 %v4136
    %v6263 = vunpack.c.h.b16 %v4136
    %v6264 = vunpack.c.l.b16 %v4137
    %v6265 = vunpack.c.h.b16 %v4137
    %v6266 = vunpack.c.l.b16 %v4138
    %v6267 = vunpack.c.h.b16 %v4138
    %v6268 = vunpack.c.l.b16 %v4139
    %v6269 = vunpack.c.h.b16 %v4139
    %v6270 = vunpack.c.l.b16 %v4140
    %v6271 = vunpack.c.h.b16 %v4140
    %v6272 = vunpack.c.l.b16 %v4141
    %v6273 = vunpack.c.h.b16 %v4141
    %v6274 = vunpack.c.l.b16 %v4142
    %v6275 = vunpack.c.h.b16 %v4142
    %v6276 = vunpack.c.l.b16 %v4143
    %v6277 = vunpack.c.h.b16 %v4143
    %v6278 = vunpack.c.l.b16 %v4144
    %v6279 = vunpack.c.h.b16 %v4144
    %v6280 = vunpack.c.l.b16 %v4145
    %v6281 = vunpack.c.h.b16 %v4145
    %v6282 = vunpack.c.l.b16 %v4146
    %v6283 = vunpack.c.h.b16 %v4146
    %v6284 = vunpack.c.l.b16 %v4147
    %v6285 = vunpack.c.h.b16 %v4147
    %v6286 = vunpack.c.l.b16 %v4148
    %v6287 = vunpack.c.h.b16 %v4148
    %v6288 = vunpack.c.l.b16 %v4149
    %v6289 = vunpack.c.h.b16 %v4149
    %v6290 = vunpack.c.l.b16 %v4150
    %v6291 = vunpack.c.h.b16 %v4150
    %v6292 = vunpack.c.l.b16 %v4151
    %v6293 = vunpack.c.h.b16 %v4151
    %v6294 = vunpack.c.l.b16 %v4152
    %v6295 = vunpack.c.h.b16 %v4152
    %v6296 = vunpack.c.l.b16 %v4153
    %v6297 = vunpack.c.h.b16 %v4153
    %v6298 = vunpack.c.l.b16 %v4154
    %v6299 = vunpack.c.h.b16 %v4154
    %v6300 = vunpack.c.l.b16 %v4155
    %v6301 = vunpack.c.h.b16 %v4155
    %v6302 = vunpack.c.l.b16 %v4156
    %v6303 = vunpack.c.h.b16 %v4156
    %v6304 = vunpack.c.l.b16 %v4157
    %v6305 = vunpack.c.h.b16 %v4157
    %v6306 = vunpack.c.l.b16 %v4158
    %v6307 = vunpack.c.h.b16 %v4158
    %v6308 = vunpack.c.l.b16 %v4159
    %v6309 = vunpack.c.h.b16 %v4159
    %v6310 = vunpack.c.l.b16 %v4160
    %v6311 = vunpack.c.h.b16 %v4160
    %v6312 = vunpack.c.l.b16 %v4161
    %v6313 = vunpack.c.h.b16 %v4161
    %v6314 = vunpack.c.l.b16 %v4162
    %v6315 = vunpack.c.h.b16 %v4162
    %v6316 = vunpack.c.l.b16 %v4163
    %v6317 = vunpack.c.h.b16 %v4163
    %v6318 = vunpack.c.l.b16 %v4164
    %v6319 = vunpack.c.h.b16 %v4164
    %v6320 = vunpack.c.l.b16 %v4165
    %v6321 = vunpack.c.h.b16 %v4165
    %v6322 = vunpack.c.l.b16 %v4166
    %v6323 = vunpack.c.h.b16 %v4166
    %v6324 = vunpack.c.l.b16 %v4167
    %v6325 = vunpack.c.h.b16 %v4167
    %v6326 = vunpack.c.l.b16 %v4168
    %v6327 = vunpack.c.h.b16 %v4168
    %v6328 = vunpack.c.l.b16 %v4169
    %v6329 = vunpack.c.h.b16 %v4169
    %v6330 = vunpack.c.l.b16 %v4170
    %v6331 = vunpack.c.h.b16 %v4170
    %v6332 = vunpack.c.l.b16 %v4171
    %v6333 = vunpack.c.h.b16 %v4171
    %v6334 = vunpack.c.l.b16 %v4172
    %v6335 = vunpack.c.h.b16 %v4172
    %v6336 = vunpack.c.l.b16 %v4173
    %v6337 = vunpack.c.h.b16 %v4173
    %v6338 = vunpack.c.l.b16 %v4174
    %v6339 = vunpack.c.h.b16 %v4174
    %v6340 = vunpack.c.l.b16 %v4175
    %v6341 = vunpack.c.h.b16 %v4175
    %v6342 = vunpack.c.l.b16 %v4176
    %v6343 = vunpack.c.h.b16 %v4176
    %v6344 = vunpack.c.l.b16 %v4177
    %v6345 = vunpack.c.h.b16 %v4177
    %v6346 = vunpack.c.l.b16 %v4178
    %v6347 = vunpack.c.h.b16 %v4178
    %v6348 = vunpack.c.l.b16 %v4179
    %v6349 = vunpack.c.h.b16 %v4179
    %v6350 = vunpack.c.l.b16 %v4180
    %v6351 = vunpack.c.h.b16 %v4180
    %v6352 = vunpack.c.l.b16 %v4181
    %v6353 = vunpack.c.h.b16 %v4181
    %v6354 = vunpack.c.l.b16 %v4182
    %v6355 = vunpack.c.h.b16 %v4182
    %v6356 = vunpack.c.l.b16 %v4183
    %v6357 = vunpack.c.h.b16 %v4183
    %v6358 = vunpack.c.l.b16 %v4184
    %v6359 = vunpack.c.h.b16 %v4184
    %v6360 = vunpack.c.l.b16 %v4185
    %v6361 = vunpack.c.h.b16 %v4185
    %v6362 = vunpack.c.l.b16 %v4186
    %v6363 = vunpack.c.h.b16 %v4186
    %v6364 = vunpack.c.l.b16 %v4187
    %v6365 = vunpack.c.h.b16 %v4187
    %v6366 = vunpack.c.l.b16 %v4188
    %v6367 = vunpack.c.h.b16 %v4188
    %v6368 = vunpack.c.l.b16 %v4189
    %v6369 = vunpack.c.h.b16 %v4189
    %v6370 = vunpack.c.l.b16 %v4190
    %v6371 = vunpack.c.h.b16 %v4190
    %v6372 = vunpack.c.l.b16 %v4191
    %v6373 = vunpack.c.h.b16 %v4191
    %v6374 = vunpack.c.l.b16 %v4192
    %v6375 = vunpack.c.h.b16 %v4192
    %v6376 = vunpack.c.l.b16 %v4193
    %v6377 = vunpack.c.h.b16 %v4193
    %v6378 = vunpack.c.l.b16 %v4194
    %v6379 = vunpack.c.h.b16 %v4194
    %v6380 = vunpack.c.l.b16 %v4195
    %v6381 = vunpack.c.h.b16 %v4195
    %v6382 = vunpack.c.l.b16 %v4196
    %v6383 = vunpack.c.h.b16 %v4196
    %v6384 = vunpack.c.l.b16 %v4197
    %v6385 = vunpack.c.h.b16 %v4197
    %v6386 = vunpack.c.l.b16 %v4198
    %v6387 = vunpack.c.h.b16 %v4198
    %v6388 = vunpack.c.l.b16 %v4199
    %v6389 = vunpack.c.h.b16 %v4199
    %v6390 = vunpack.c.l.b16 %v4200
    %v6391 = vunpack.c.h.b16 %v4200
    %v6392 = vunpack.c.l.b16 %v4201
    %v6393 = vunpack.c.h.b16 %v4201
    %v6394 = vunpack.c.l.b16 %v4202
    %v6395 = vunpack.c.h.b16 %v4202
    %v6396 = vunpack.c.l.b16 %v4203
    %v6397 = vunpack.c.h.b16 %v4203
    %v6398 = vunpack.c.l.b16 %v4204
    %v6399 = vunpack.c.h.b16 %v4204
    %v6400 = vunpack.c.l.b16 %v4205
    %v6401 = vunpack.c.h.b16 %v4205
    %v6402 = vunpack.c.l.b16 %v4206
    %v6403 = vunpack.c.h.b16 %v4206
    %v6404 = vunpack.c.l.b16 %v4207
    %v6405 = vunpack.c.h.b16 %v4207
    %v6406 = vunpack.c.l.b16 %v4208
    %v6407 = vunpack.c.h.b16 %v4208
    %v6408 = vunpack.c.l.b16 %v4209
    %v6409 = vunpack.c.h.b16 %v4209
    %v6410 = vunpack.c.l.b16 %v4210
    %v6411 = vunpack.c.h.b16 %v4210
    %v6412 = vunpack.c.l.b16 %v4211
    %v6413 = vunpack.c.h.b16 %v4211
    %v6414 = vunpack.c.l.b16 %v4212
    %v6415 = vunpack.c.h.b16 %v4212
    %v6416 = vunpack.c.l.b16 %v4213
    %v6417 = vunpack.c.h.b16 %v4213
    %v6418 = vunpack.c.l.b16 %v4214
    %v6419 = vunpack.c.h.b16 %v4214
    %v6420 = vunpack.c.l.b16 %v4215
    %v6421 = vunpack.c.h.b16 %v4215
    %v6422 = vunpack.c.l.b16 %v4216
    %v6423 = vunpack.c.h.b16 %v4216
    %v6424 = vunpack.c.l.b16 %v4217
    %v6425 = vunpack.c.h.b16 %v4217
    %v6426 = vunpack.c.l.b16 %v4218
    %v6427 = vunpack.c.h.b16 %v4218
    %v6428 = vunpack.c.l.b16 %v4219
    %v6429 = vunpack.c.h.b16 %v4219
    %v6430 = vunpack.c.l.b16 %v4220
    %v6431 = vunpack.c.h.b16 %v4220
    %v6432 = vunpack.c.l.b16 %v4221
    %v6433 = vunpack.c.h.b16 %v4221
    %v6434 = vunpack.c.l.b16 %v4222
    %v6435 = vunpack.c.h.b16 %v4222
    %v6436 = vunpack.c.l.b16 %v4223
    %v6437 = vunpack.c.h.b16 %v4223
    %v6438 = vunpack.c.l.b16 %v4224
    %v6439 = vunpack.c.h.b16 %v4224
    %v6440 = vunpack.c.l.b16 %v4225
    %v6441 = vunpack.c.h.b16 %v4225
    %v6442 = vunpack.c.l.b16 %v4226
    %v6443 = vunpack.c.h.b16 %v4226
    %v6444 = vunpack.c.l.b16 %v4227
    %v6445 = vunpack.c.h.b16 %v4227
    %v6446 = vunpack.c.l.b16 %v4228
    %v6447 = vunpack.c.h.b16 %v4228
    %v6448 = vunpack.c.l.b16 %v4229
    %v6449 = vunpack.c.h.b16 %v4229
    %v6450 = vunpack.c.l.b16 %v4230
    %v6451 = vunpack.c.h.b16 %v4230
    %v6452 = vunpack.c.l.b16 %v4231
    %v6453 = vunpack.c.h.b16 %v4231
    %v6454 = vunpack.c.l.b16 %v4232
    %v6455 = vunpack.c.h.b16 %v4232
    %v6456 = vunpack.c.l.b16 %v4233
    %v6457 = vunpack.c.h.b16 %v4233
    %v6458 = vunpack.c.l.b16 %v4234
    %v6459 = vunpack.c.h.b16 %v4234
    %v6460 = vunpack.c.l.b16 %v4235
    %v6461 = vunpack.c.h.b16 %v4235
    %v6462 = vunpack.c.l.b16 %v4236
    %v6463 = vunpack.c.h.b16 %v4236
    %v6464 = vunpack.c.l.b16 %v4237
    %v6465 = vunpack.c.h.b16 %v4237
    %v6466 = vunpack.c.l.b16 %v4238
    %v6467 = vunpack.c.h.b16 %v4238
    %v6468 = vunpack.c.l.b16 %v4239
    %v6469 = vunpack.c.h.b16 %v4239
    %v6470 = vunpack.c.l.b16 %v4240
    %v6471 = vunpack.c.h.b16 %v4240
    %v6472 = vunpack.c.l.b16 %v4241
    %v6473 = vunpack.c.h.b16 %v4241
    %v6474 = vunpack.c.l.b16 %v4242
    %v6475 = vunpack.c.h.b16 %v4242
    %v6476 = vunpack.c.l.b16 %v4243
    %v6477 = vunpack.c.h.b16 %v4243
    %v6478 = vunpack.c.l.b16 %v4244
    %v6479 = vunpack.c.h.b16 %v4244
    %v6480 = vunpack.c.l.b16 %v4245
    %v6481 = vunpack.c.h.b16 %v4245
    %v6482 = vunpack.c.l.b16 %v4246
    %v6483 = vunpack.c.h.b16 %v4246
    %v6484 = vunpack.c.l.b16 %v4247
    %v6485 = vunpack.c.h.b16 %v4247
    %v6486 = vunpack.c.l.b16 %v4248
    %v6487 = vunpack.c.h.b16 %v4248
    %v6488 = vunpack.c.l.b16 %v4249
    %v6489 = vunpack.c.h.b16 %v4249
    %v6490 = vunpack.c.l.b16 %v4250
    %v6491 = vunpack.c.h.b16 %v4250
    %v6492 = vunpack.c.l.b16 %v4251
    %v6493 = vunpack.c.h.b16 %v4251
    %v6494 = vunpack.c.l.b16 %v4252
    %v6495 = vunpack.c.h.b16 %v4252
    %v6496 = vunpack.c.l.b16 %v4253
    %v6497 = vunpack.c.h.b16 %v4253
    %v6498 = vunpack.c.l.b16 %v4254
    %v6499 = vunpack.c.h.b16 %v4254
    %v6500 = vunpack.c.l.b16 %v4255
    %v6501 = vunpack.c.h.b16 %v4255
    %v6502 = vunpack.c.l.b16 %v4256
    %v6503 = vunpack.c.h.b16 %v4256
    %v6504 = vunpack.c.l.b16 %v4257
    %v6505 = vunpack.c.h.b16 %v4257
    %v6506 = vunpack.c.l.b16 %v4258
    %v6507 = vunpack.c.h.b16 %v4258
    %v6508 = vunpack.c.l.b16 %v4259
    %v6509 = vunpack.c.h.b16 %v4259
    %v6510 = vunpack.c.l.b16 %v4260
    %v6511 = vunpack.c.h.b16 %v4260
    %v6512 = vunpack.c.l.b16 %v4261
    %v6513 = vunpack.c.h.b16 %v4261
    %v6514 = vunpack.c.l.b16 %v4262
    %v6515 = vunpack.c.h.b16 %v4262
    %v6516 = vunpack.c.l.b16 %v4263
    %v6517 = vunpack.c.h.b16 %v4263
    %v6518 = vunpack.c.l.b16 %v4264
    %v6519 = vunpack.c.h.b16 %v4264
    %v6520 = vunpack.c.l.b16 %v4265
    %v6521 = vunpack.c.h.b16 %v4265
    %v6522 = vunpack.c.l.b16 %v4266
    %v6523 = vunpack.c.h.b16 %v4266
    %v6524 = vunpack.c.l.b16 %v4267
    %v6525 = vunpack.c.h.b16 %v4267
    %v6526 = vunpack.c.l.b16 %v4268
    %v6527 = vunpack.c.h.b16 %v4268
    %v6528 = vunpack.c.l.b16 %v4269
    %v6529 = vunpack.c.h.b16 %v4269
    %v6530 = vunpack.c.l.b16 %v4270
    %v6531 = vunpack.c.h.b16 %v4270
    %v6532 = vunpack.c.l.b16 %v4271
    %v6533 = vunpack.c.h.b16 %v4271
    %v6534 = vunpack.c.l.b16 %v4272
    %v6535 = vunpack.c.h.b16 %v4272
    %v6536 = vunpack.c.l.b16 %v4273
    %v6537 = vunpack.c.h.b16 %v4273
    %v6538 = vunpack.c.l.b16 %v4274
    %v6539 = vunpack.c.h.b16 %v4274
    %v6540 = vunpack.c.l.b16 %v4275
    %v6541 = vunpack.c.h.b16 %v4275
    %v6542 = vunpack.c.l.b16 %v4276
    %v6543 = vunpack.c.h.b16 %v4276
    %v6544 = vunpack.c.l.b16 %v4277
    %v6545 = vunpack.c.h.b16 %v4277
    %v6546 = vunpack.c.l.b16 %v4278
    %v6547 = vunpack.c.h.b16 %v4278
    %v6548 = vunpack.c.l.b16 %v4279
    %v6549 = vunpack.c.h.b16 %v4279
    %v6550 = vunpack.c.l.b16 %v4280
    %v6551 = vunpack.c.h.b16 %v4280
    %v6552 = vunpack.c.l.b16 %v4281
    %v6553 = vunpack.c.h.b16 %v4281
    %v6554 = vunpack.c.l.b16 %v4282
    %v6555 = vunpack.c.h.b16 %v4282
    %v6556 = vunpack.c.l.b16 %v4283
    %v6557 = vunpack.c.h.b16 %v4283
    %v6558 = vunpack.c.l.b16 %v4284
    %v6559 = vunpack.c.h.b16 %v4284
    %v6560 = vunpack.c.l.b16 %v4285
    %v6561 = vunpack.c.h.b16 %v4285
    %v6562 = vunpack.c.l.b16 %v4286
    %v6563 = vunpack.c.h.b16 %v4286
    %v6564 = vunpack.c.l.b16 %v4287
    %v6565 = vunpack.c.h.b16 %v4287
    %v6566 = vunpack.c.l.b16 %v4288
    %v6567 = vunpack.c.h.b16 %v4288
    %v6568 = vunpack.c.l.b16 %v4289
    %v6569 = vunpack.c.h.b16 %v4289
    %v6570 = vunpack.c.l.b16 %v4290
    %v6571 = vunpack.c.h.b16 %v4290
    %v6572 = vunpack.c.l.b16 %v4291
    %v6573 = vunpack.c.h.b16 %v4291
    %v6574 = vunpack.c.l.b16 %v4292
    %v6575 = vunpack.c.h.b16 %v4292
    %v6576 = vunpack.c.l.b16 %v4293
    %v6577 = vunpack.c.h.b16 %v4293
    %v6578 = vunpack.c.l.b16 %v4294
    %v6579 = vunpack.c.h.b16 %v4294
    %v6580 = vunpack.c.l.b16 %v4295
    %v6581 = vunpack.c.h.b16 %v4295
    %v6582 = vunpack.c.l.b16 %v4296
    %v6583 = vunpack.c.h.b16 %v4296
    %v6584 = vunpack.c.l.b16 %v4297
    %v6585 = vunpack.c.h.b16 %v4297
    %v6586 = vunpack.c.l.b16 %v4298
    %v6587 = vunpack.c.h.b16 %v4298
    %v6588 = vunpack.c.l.b16 %v4299
    %v6589 = vunpack.c.h.b16 %v4299
    %v6590 = vunpack.c.l.b16 %v4300
    %v6591 = vunpack.c.h.b16 %v4300
    %v6592 = vunpack.c.l.b16 %v4301
    %v6593 = vunpack.c.h.b16 %v4301
    %v6594 = vunpack.c.l.b16 %v4302
    %v6595 = vunpack.c.h.b16 %v4302
    %v6596 = vunpack.c.l.b16 %v4303
    %v6597 = vunpack.c.h.b16 %v4303
    %v6598 = vunpack.c.l.b16 %v4304
    %v6599 = vunpack.c.h.b16 %v4304
    %v6600 = vunpack.c.l.b16 %v4305
    %v6601 = vunpack.c.h.b16 %v4305
    %v6602 = vunpack.c.l.b16 %v4306
    %v6603 = vunpack.c.h.b16 %v4306
    %v6604 = vunpack.c.l.b16 %v4307
    %v6605 = vunpack.c.h.b16 %v4307
    %v6606 = vunpack.c.l.b16 %v4308
    %v6607 = vunpack.c.h.b16 %v4308
    %v6608 = vunpack.c.l.b16 %v4309
    %v6609 = vunpack.c.h.b16 %v4309
    %v6610 = vunpack.c.l.b16 %v4310
    %v6611 = vunpack.c.h.b16 %v4310
    %v6612 = vunpack.c.l.b16 %v4311
    %v6613 = vunpack.c.h.b16 %v4311
    %v6614 = vunpack.c.l.b16 %v4312
    %v6615 = vunpack.c.h.b16 %v4312
    %v6616 = vunpack.c.l.b16 %v4313
    %v6617 = vunpack.c.h.b16 %v4313
    %v6618 = vunpack.c.l.b16 %v4314
    %v6619 = vunpack.c.h.b16 %v4314
    %v6620 = vunpack.c.l.b16 %v4315
    %v6621 = vunpack.c.h.b16 %v4315
    %v6622 = vunpack.c.l.b16 %v4316
    %v6623 = vunpack.c.h.b16 %v4316
    %v6624 = vunpack.c.l.b16 %v4317
    %v6625 = vunpack.c.h.b16 %v4317
    %v6626 = vunpack.c.l.b16 %v4318
    %v6627 = vunpack.c.h.b16 %v4318
    %v6628 = vunpack.c.l.b16 %v4319
    %v6629 = vunpack.c.h.b16 %v4319
    %v6630 = vunpack.c.l.b16 %v4320
    %v6631 = vunpack.c.h.b16 %v4320
    %v6632 = vunpack.c.l.b16 %v4321
    %v6633 = vunpack.c.h.b16 %v4321
    %v6634 = vunpack.c.l.b16 %v4322
    %v6635 = vunpack.c.h.b16 %v4322
    %v6636 = vunpack.c.l.b16 %v4323
    %v6637 = vunpack.c.h.b16 %v4323
    %v6638 = vunpack.c.l.b16 %v4324
    %v6639 = vunpack.c.h.b16 %v4324
    %v6640 = vunpack.c.l.b16 %v4325
    %v6641 = vunpack.c.h.b16 %v4325
    %v6642 = vunpack.c.l.b16 %v4326
    %v6643 = vunpack.c.h.b16 %v4326
    %v6644 = vunpack.c.l.b16 %v4327
    %v6645 = vunpack.c.h.b16 %v4327
    %v6646 = vunpack.c.l.b16 %v4328
    %v6647 = vunpack.c.h.b16 %v4328
    %v6648 = vunpack.c.l.b16 %v4329
    %v6649 = vunpack.c.h.b16 %v4329
    %v6650 = vunpack.c.l.b16 %v4330
    %v6651 = vunpack.c.h.b16 %v4330
    %v6652 = vunpack.c.l.b16 %v4331
    %v6653 = vunpack.c.h.b16 %v4331
    %v6654 = vunpack.c.l.b16 %v4332
    %v6655 = vunpack.c.h.b16 %v4332
    %v6656 = vunpack.c.l.b16 %v4333
    %v6657 = vunpack.c.h.b16 %v4333
    %v6658 = vunpack.c.l.b16 %v4334
    %v6659 = vunpack.c.h.b16 %v4334
    %v6660 = vunpack.c.l.b16 %v4335
    %v6661 = vunpack.c.h.b16 %v4335
    %v6662 = vunpack.c.l.b16 %v4336
    %v6663 = vunpack.c.h.b16 %v4336
    %v6664 = vunpack.c.l.b16 %v4337
    %v6665 = vunpack.c.h.b16 %v4337
    %v6666 = vunpack.c.l.b16 %v4338
    %v6667 = vunpack.c.h.b16 %v4338
    %v6668 = vunpack.c.l.b16 %v4339
    %v6669 = vunpack.c.h.b16 %v4339
    %v6670 = vunpack.c.l.b16 %v4340
    %v6671 = vunpack.c.h.b16 %v4340
    %v6672 = vunpack.c.l.b16 %v4341
    %v6673 = vunpack.c.h.b16 %v4341
    %v6674 = vunpack.c.l.b16 %v4342
    %v6675 = vunpack.c.h.b16 %v4342
    %v6676 = vunpack.c.l.b16 %v4343
    %v6677 = vunpack.c.h.b16 %v4343
    %v6678 = vunpack.c.l.b16 %v4344
    %v6679 = vunpack.c.h.b16 %v4344
    %v6680 = vunpack.c.l.b16 %v4345
    %v6681 = vunpack.c.h.b16 %v4345
    %v6682 = vunpack.c.l.b16 %v4346
    %v6683 = vunpack.c.h.b16 %v4346
    %v6684 = vunpack.c.l.b16 %v4347
    %v6685 = vunpack.c.h.b16 %v4347
    %v6686 = vunpack.c.l.b16 %v4348
    %v6687 = vunpack.c.h.b16 %v4348
    %v6688 = vunpack.c.l.b16 %v4349
    %v6689 = vunpack.c.h.b16 %v4349
    %v6690 = vunpack.c.l.b16 %v4350
    %v6691 = vunpack.c.h.b16 %v4350
    %v6692 = vunpack.c.l.b16 %v4351
    %v6693 = vunpack.c.h.b16 %v4351
    %v6694 = vunpack.c.l.b16 %v4352
    %v6695 = vunpack.c.h.b16 %v4352
    %v6696 = vunpack.c.l.b16 %v4353
    %v6697 = vunpack.c.h.b16 %v4353
    %v6698 = vunpack.c.l.b16 %v4354
    %v6699 = vunpack.c.h.b16 %v4354
    %v6700 = vunpack.c.l.b16 %v4355
    %v6701 = vunpack.c.h.b16 %v4355
    %v6702 = vunpack.c.l.b16 %v4356
    %v6703 = vunpack.c.h.b16 %v4356
    %v6704 = vunpack.c.l.b16 %v4357
    %v6705 = vunpack.c.h.b16 %v4357
    %v6706 = vunpack.c.l.b16 %v4358
    %v6707 = vunpack.c.h.b16 %v4358
    %v6708 = vunpack.c.l.b16 %v4359
    %v6709 = vunpack.c.h.b16 %v4359
    %v6710 = vunpack.c.l.b16 %v4360
    %v6711 = vunpack.c.h.b16 %v4360
    %v6712 = vunpack.c.l.b16 %v4361
    %v6713 = vunpack.c.h.b16 %v4361
    %v6714 = vunpack.c.l.b16 %v4362
    %v6715 = vunpack.c.h.b16 %v4362
    %v6716 = vunpack.c.l.b16 %v4363
    %v6717 = vunpack.c.h.b16 %v4363
    %v6718 = vunpack.c.l.b16 %v4364
    %v6719 = vunpack.c.h.b16 %v4364
    %v6720 = vunpack.c.l.b16 %v4365
    %v6721 = vunpack.c.h.b16 %v4365
    %v6722 = vunpack.c.l.b16 %v4366
    %v6723 = vunpack.c.h.b16 %v4366
    %v6724 = vunpack.c.l.b16 %v4367
    %v6725 = vunpack.c.h.b16 %v4367
    %v6726 = vunpack.c.l.b16 %v4368
    %v6727 = vunpack.c.h.b16 %v4368
    %v6728 = vunpack.c.l.b16 %v4369
    %v6729 = vunpack.c.h.b16 %v4369
    %v6730 = vunpack.c.l.b16 %v4370
    %v6731 = vunpack.c.h.b16 %v4370
    %v6732 = vunpack.c.l.b16 %v4371
    %v6733 = vunpack.c.h.b16 %v4371
    %v6734 = vunpack.c.l.b16 %v4372
    %v6735 = vunpack.c.h.b16 %v4372
    %v6736 = vunpack.c.l.b16 %v4373
    %v6737 = vunpack.c.h.b16 %v4373
    %v6738 = vunpack.c.l.b16 %v4374
    %v6739 = vunpack.c.h.b16 %v4374
    %v6740 = vunpack.c.l.b16 %v4375
    %v6741 = vunpack.c.h.b16 %v4375
    %v6742 = vunpack.c.l.b16 %v4376
    %v6743 = vunpack.c.h.b16 %v4376
    %v6744 = vunpack.c.l.b16 %v4377
    %v6745 = vunpack.c.h.b16 %v4377
    %v6746 = vunpack.c.l.b16 %v4378
    %v6747 = vunpack.c.h.b16 %v4378
    %v6748 = vunpack.c.l.b16 %v4379
    %v6749 = vunpack.c.h.b16 %v4379
    %v6750 = vunpack.c.l.b16 %v4380
    %v6751 = vunpack.c.h.b16 %v4380
    %v6752 = vunpack.c.l.b16 %v4381
    %v6753 = vunpack.c.h.b16 %v4381
    %v6754 = vunpack.c.l.b16 %v4382
    %v6755 = vunpack.c.h.b16 %v4382
    %v6756 = vunpack.c.l.b16 %v4383
    %v6757 = vunpack.c.h.b16 %v4383
    %v6758 = vunpack.c.l.b16 %v4384
    %v6759 = vunpack.c.h.b16 %v4384
    %v6760 = vunpack.c.l.b16 %v4385
    %v6761 = vunpack.c.h.b16 %v4385
    %v6762 = vunpack.c.l.b16 %v4386
    %v6763 = vunpack.c.h.b16 %v4386
    %v6764 = vunpack.c.l.b16 %v4387
    %v6765 = vunpack.c.h.b16 %v4387
    %v6766 = vunpack.c.l.b16 %v4388
    %v6767 = vunpack.c.h.b16 %v4388
    %v6768 = vunpack.c.l.b16 %v4389
    %v6769 = vunpack.c.h.b16 %v4389
    %v6770 = vunpack.c.l.b16 %v4390
    %v6771 = vunpack.c.h.b16 %v4390
    %v6772 = vunpack.c.l.b16 %v4391
    %v6773 = vunpack.c.h.b16 %v4391
    %v6774 = vunpack.c.l.b16 %v4392
    %v6775 = vunpack.c.h.b16 %v4392
    %v6776 = vunpack.c.l.b16 %v4393
    %v6777 = vunpack.c.h.b16 %v4393
    %v6778 = vunpack.c.l.b16 %v4394
    %v6779 = vunpack.c.h.b16 %v4394
    %v6780 = vunpack.c.l.b16 %v4395
    %v6781 = vunpack.c.h.b16 %v4395
    %v6782 = vunpack.c.l.b16 %v4396
    %v6783 = vunpack.c.h.b16 %v4396
    %v6784 = vunpack.c.l.b16 %v4397
    %v6785 = vunpack.c.h.b16 %v4397
    %v6786 = vunpack.c.l.b16 %v4398
    %v6787 = vunpack.c.h.b16 %v4398
    %v6788 = vunpack.c.l.b16 %v4399
    %v6789 = vunpack.c.h.b16 %v4399
    %v6790 = vunpack.c.l.b16 %v4400
    %v6791 = vunpack.c.h.b16 %v4400
    %v6792 = vunpack.c.l.b16 %v4401
    %v6793 = vunpack.c.h.b16 %v4401
    %v6794 = vunpack.c.l.b16 %v4402
    %v6795 = vunpack.c.h.b16 %v4402
    %v6796 = vunpack.c.l.b16 %v4403
    %v6797 = vunpack.c.h.b16 %v4403
    %v6798 = vunpack.c.l.b16 %v4404
    %v6799 = vunpack.c.h.b16 %v4404
    %v6800 = vunpack.c.l.b16 %v4405
    %v6801 = vunpack.c.h.b16 %v4405
    %v6802 = vunpack.c.l.b16 %v4406
    %v6803 = vunpack.c.h.b16 %v4406
    %v6804 = vunpack.c.l.b16 %v4407
    %v6805 = vunpack.c.h.b16 %v4407
    %v6806 = vunpack.c.l.b16 %v4408
    %v6807 = vunpack.c.h.b16 %v4408
    %v6808 = vunpack.c.l.b16 %v4409
    %v6809 = vunpack.c.h.b16 %v4409
    %v6810 = vunpack.c.l.b16 %v4410
    %v6811 = vunpack.c.h.b16 %v4410
    %v6812 = vunpack.c.l.b16 %v4411
    %v6813 = vunpack.c.h.b16 %v4411
    %v6814 = vunpack.c.l.b16 %v4412
    %v6815 = vunpack.c.h.b16 %v4412
    %v6816 = vunpack.c.l.b16 %v4413
    %v6817 = vunpack.c.h.b16 %v4413
    %v6818 = vunpack.c.l.b16 %v4414
    %v6819 = vunpack.c.h.b16 %v4414
    %v6820 = vunpack.c.l.b16 %v4415
    %v6821 = vunpack.c.h.b16 %v4415
    %v6822 = vunpack.c.l.b16 %v4416
    %v6823 = vunpack.c.h.b16 %v4416
    %v6824 = vunpack.c.l.b16 %v4417
    %v6825 = vunpack.c.h.b16 %v4417
    %v6826 = vunpack.c.l.b16 %v4418
    %v6827 = vunpack.c.h.b16 %v4418
    %v6828 = vunpack.c.l.b16 %v4419
    %v6829 = vunpack.c.h.b16 %v4419
    %v6830 = vunpack.c.l.b16 %v4420
    %v6831 = vunpack.c.h.b16 %v4420
    %v6832 = vunpack.c.l.b16 %v4421
    %v6833 = vunpack.c.h.b16 %v4421
    %v6834 = vunpack.c.l.b16 %v4422
    %v6835 = vunpack.c.h.b16 %v4422
    %v6836 = vunpack.c.l.b16 %v4423
    %v6837 = vunpack.c.h.b16 %v4423
    %v6838 = vunpack.c.l.b16 %v4424
    %v6839 = vunpack.c.h.b16 %v4424
    %v6840 = vunpack.c.l.b16 %v4425
    %v6841 = vunpack.c.h.b16 %v4425
    %v6842 = vunpack.c.l.b16 %v4426
    %v6843 = vunpack.c.h.b16 %v4426
    %v6844 = vunpack.c.l.b16 %v4427
    %v6845 = vunpack.c.h.b16 %v4427
    %v6846 = vunpack.c.l.b16 %v4428
    %v6847 = vunpack.c.h.b16 %v4428
    %v6848 = vunpack.c.l.b16 %v4429
    %v6849 = vunpack.c.h.b16 %v4429
    %v6850 = vunpack.c.l.b16 %v4430
    %v6851 = vunpack.c.h.b16 %v4430
    %v6852 = vunpack.c.l.b16 %v4431
    %v6853 = vunpack.c.h.b16 %v4431
    %v6854 = vunpack.c.l.b16 %v4432
    %v6855 = vunpack.c.h.b16 %v4432
    %v6856 = vunpack.c.l.b16 %v4433
    %v6857 = vunpack.c.h.b16 %v4433
    %v6858 = vunpack.c.l.b16 %v4434
    %v6859 = vunpack.c.h.b16 %v4434
    %v6860 = vunpack.c.l.b16 %v4435
    %v6861 = vunpack.c.h.b16 %v4435
    %v6862 = vunpack.c.l.b16 %v4436
    %v6863 = vunpack.c.h.b16 %v4436
    %v6864 = vunpack.c.l.b16 %v4437
    %v6865 = vunpack.c.h.b16 %v4437
    %v6866 = vunpack.c.l.b16 %v4438
    %v6867 = vunpack.c.h.b16 %v4438
    %v6868 = vunpack.c.l.b16 %v4439
    %v6869 = vunpack.c.h.b16 %v4439
    %v6870 = vunpack.c.l.b16 %v4440
    %v6871 = vunpack.c.h.b16 %v4440
    %v6872 = vunpack.c.l.b16 %v4441
    %v6873 = vunpack.c.h.b16 %v4441
    %v6874 = vunpack.c.l.b16 %v4442
    %v6875 = vunpack.c.h.b16 %v4442
    %v6876 = vunpack.c.l.b16 %v4443
    %v6877 = vunpack.c.h.b16 %v4443
    %v6878 = vunpack.c.l.b16 %v4444
    %v6879 = vunpack.c.h.b16 %v4444
    %v6880 = vunpack.c.l.b16 %v4445
    %v6881 = vunpack.c.h.b16 %v4445
    %v6882 = vunpack.c.l.b16 %v4446
    %v6883 = vunpack.c.h.b16 %v4446
    %v6884 = vunpack.c.l.b16 %v4447
    %v6885 = vunpack.c.h.b16 %v4447
    %v6886 = vunpack.c.l.b16 %v4448
    %v6887 = vunpack.c.h.b16 %v4448
    %v6888 = vunpack.c.l.b16 %v4449
    %v6889 = vunpack.c.h.b16 %v4449
    %v6890 = vunpack.c.l.b16 %v4450
    %v6891 = vunpack.c.h.b16 %v4450
    %v6892 = vunpack.c.l.b16 %v4451
    %v6893 = vunpack.c.h.b16 %v4451
    %v6894 = vunpack.c.l.b16 %v4452
    %v6895 = vunpack.c.h.b16 %v4452
    %v6896 = vunpack.c.l.b16 %v4453
    %v6897 = vunpack.c.h.b16 %v4453
    %v6898 = vunpack.c.l.b16 %v4454
    %v6899 = vunpack.c.h.b16 %v4454
    %v6900 = vunpack.c.l.b16 %v4455
    %v6901 = vunpack.c.h.b16 %v4455
    %v6902 = vunpack.c.l.b16 %v4456
    %v6903 = vunpack.c.h.b16 %v4456
    %v6904 = vunpack.c.l.b16 %v4457
    %v6905 = vunpack.c.h.b16 %v4457
    %v6906 = vunpack.c.l.b16 %v4458
    %v6907 = vunpack.c.h.b16 %v4458
    %v6908 = vunpack.c.l.b16 %v4459
    %v6909 = vunpack.c.h.b16 %v4459
    %v6910 = vunpack.c.l.b16 %v4460
    %v6911 = vunpack.c.h.b16 %v4460
    %v6912 = vunpack.c.l.b16 %v4461
    %v6913 = vunpack.c.h.b16 %v4461
    %v6914 = vunpack.c.l.b16 %v4462
    %v6915 = vunpack.c.h.b16 %v4462
    %v6916 = vunpack.c.l.b16 %v4463
    %v6917 = vunpack.c.h.b16 %v4463
    %v6918 = vunpack.c.l.b16 %v4464
    %v6919 = vunpack.c.h.b16 %v4464
    %v6920 = vunpack.c.l.b16 %v4465
    %v6921 = vunpack.c.h.b16 %v4465
    %v6922 = vunpack.c.l.b16 %v4466
    %v6923 = vunpack.c.h.b16 %v4466
    %v6924 = vunpack.c.l.b16 %v4467
    %v6925 = vunpack.c.h.b16 %v4467
    %v6926 = vunpack.c.l.b16 %v4468
    %v6927 = vunpack.c.h.b16 %v4468
    %v6928 = vunpack.c.l.b16 %v4469
    %v6929 = vunpack.c.h.b16 %v4469
    %v6930 = vunpack.c.l.b16 %v4470
    %v6931 = vunpack.c.h.b16 %v4470
    %v6932 = vunpack.c.l.b16 %v4471
    %v6933 = vunpack.c.h.b16 %v4471
    %v6934 = vunpack.c.l.b16 %v4472
    %v6935 = vunpack.c.h.b16 %v4472
    %v6936 = vunpack.c.l.b16 %v4473
    %v6937 = vunpack.c.h.b16 %v4473
    %v6938 = vunpack.c.l.b16 %v4474
    %v6939 = vunpack.c.h.b16 %v4474
    %v6940 = vunpack.c.l.b16 %v4475
    %v6941 = vunpack.c.h.b16 %v4475
    %v6942 = vunpack.c.l.b16 %v4476
    %v6943 = vunpack.c.h.b16 %v4476
    %v6944 = vunpack.c.l.b16 %v4477
    %v6945 = vunpack.c.h.b16 %v4477
    %v6946 = vunpack.c.l.b16 %v4478
    %v6947 = vunpack.c.h.b16 %v4478
    %v6948 = vunpack.c.l.b16 %v4479
    %v6949 = vunpack.c.h.b16 %v4479
    %v6950 = vunpack.c.l.b16 %v4480
    %v6951 = vunpack.c.h.b16 %v4480
    %v6952 = vunpack.c.l.b16 %v4481
    %v6953 = vunpack.c.h.b16 %v4481
    %v6954 = vunpack.c.l.b16 %v4482
    %v6955 = vunpack.c.h.b16 %v4482
    %v6956 = vunpack.c.l.b16 %v4483
    %v6957 = vunpack.c.h.b16 %v4483
    %v6958 = vunpack.c.l.b16 %v4484
    %v6959 = vunpack.c.h.b16 %v4484
    %v6960 = vunpack.c.l.b16 %v4485
    %v6961 = vunpack.c.h.b16 %v4485
    %v6962 = vunpack.c.l.b16 %v4486
    %v6963 = vunpack.c.h.b16 %v4486
    %v6964 = vunpack.c.l.b16 %v4487
    %v6965 = vunpack.c.h.b16 %v4487
    %v6966 = vunpack.c.l.b16 %v4488
    %v6967 = vunpack.c.h.b16 %v4488
    %v6968 = vunpack.c.l.b16 %v4489
    %v6969 = vunpack.c.h.b16 %v4489
    %v6970 = vunpack.c.l.b16 %v4490
    %v6971 = vunpack.c.h.b16 %v4490
    %v6972 = vunpack.c.l.b16 %v4491
    %v6973 = vunpack.c.h.b16 %v4491
    %v6974 = vunpack.c.l.b16 %v4492
    %v6975 = vunpack.c.h.b16 %v4492
    %v6976 = vunpack.c.l.b16 %v4493
    %v6977 = vunpack.c.h.b16 %v4493
    %v6978 = vunpack.c.l.b16 %v4494
    %v6979 = vunpack.c.h.b16 %v4494
    %v6980 = vunpack.c.l.b16 %v4495
    %v6981 = vunpack.c.h.b16 %v4495
    %v6982 = vunpack.c.l.b16 %v4496
    %v6983 = vunpack.c.h.b16 %v4496
    %v6984 = vunpack.c.l.b16 %v4497
    %v6985 = vunpack.c.h.b16 %v4497
    %v6986 = vunpack.c.l.b16 %v4498
    %v6987 = vunpack.c.h.b16 %v4498
    %v6988 = vunpack.c.l.b16 %v4499
    %v6989 = vunpack.c.h.b16 %v4499
    %v6990 = vunpack.c.l.b16 %v4500
    %v6991 = vunpack.c.h.b16 %v4500
    %v6992 = vunpack.c.l.b16 %v4501
    %v6993 = vunpack.c.h.b16 %v4501
    %v6994 = vunpack.c.l.b16 %v4502
    %v6995 = vunpack.c.h.b16 %v4502
    %v6996 = vunpack.c.l.b16 %v4503
    %v6997 = vunpack.c.h.b16 %v4503
    %v6998 = vunpack.c.l.b16 %v4504
    %v6999 = vunpack.c.h.b16 %v4504
    %v7000 = vunpack.c.l.b16 %v4505
    %v7001 = vunpack.c.h.b16 %v4505
    %v7002 = vunpack.c.l.b16 %v4506
    %v7003 = vunpack.c.h.b16 %v4506
    %v7004 = vunpack.c.l.b16 %v4507
    %v7005 = vunpack.c.h.b16 %v4507
    %v7006 = vunpack.c.l.b16 %v4508
    %v7007 = vunpack.c.h.b16 %v4508
    %v7008 = vunpack.c.l.b16 %v4509
    %v7009 = vunpack.c.h.b16 %v4509
    %v7010 = vunpack.c.l.b16 %v4510
    %v7011 = vunpack.c.h.b16 %v4510
    %v7012 = vunpack.c.l.b16 %v4511
    %v7013 = vunpack.c.h.b16 %v4511
    %v7014 = vunpack.c.l.b16 %v4512
    %v7015 = vunpack.c.h.b16 %v4512
    %v7016 = vunpack.c.l.b16 %v4513
    %v7017 = vunpack.c.h.b16 %v4513
    %v7018 = vunpack.c.l.b16 %v4514
    %v7019 = vunpack.c.h.b16 %v4514
    %v7020 = vunpack.c.l.b16 %v4515
    %v7021 = vunpack.c.h.b16 %v4515
    %v7022 = vunpack.c.l.b16 %v4516
    %v7023 = vunpack.c.h.b16 %v4516
    %v7024 = vunpack.c.l.b16 %v4517
    %v7025 = vunpack.c.h.b16 %v4517
    %v7026 = vunpack.c.l.b16 %v4518
    %v7027 = vunpack.c.h.b16 %v4518
    %v7028 = vunpack.c.l.b16 %v4519
    %v7029 = vunpack.c.h.b16 %v4519
    %v7030 = vunpack.c.l.b16 %v4520
    %v7031 = vunpack.c.h.b16 %v4520
    %v7032 = vunpack.c.l.b16 %v4521
    %v7033 = vunpack.c.h.b16 %v4521
    %v7034 = vunpack.c.l.b16 %v4522
    %v7035 = vunpack.c.h.b16 %v4522
    %v7036 = vunpack.c.l.b16 %v4523
    %v7037 = vunpack.c.h.b16 %v4523
    %v7038 = vunpack.c.l.b16 %v4524
    %v7039 = vunpack.c.h.b16 %v4524
    %v7040 = vunpack.c.l.b16 %v4525
    %v7041 = vunpack.c.h.b16 %v4525
    %v7042 = vunpack.c.l.b16 %v4526
    %v7043 = vunpack.c.h.b16 %v4526
    %v7044 = vunpack.c.l.b16 %v4527
    %v7045 = vunpack.c.h.b16 %v4527
    %v7046 = vunpack.c.l.b16 %v4528
    %v7047 = vunpack.c.h.b16 %v4528
    %v7048 = vunpack.c.l.b16 %v4529
    %v7049 = vunpack.c.h.b16 %v4529
    %v7050 = vunpack.c.l.b16 %v4530
    %v7051 = vunpack.c.h.b16 %v4530
    %v7052 = vunpack.c.l.b16 %v4531
    %v7053 = vunpack.c.h.b16 %v4531
    %v7054 = vunpack.c.l.b16 %v4532
    %v7055 = vunpack.c.h.b16 %v4532
    %v7056 = vunpack.c.l.b16 %v4533
    %v7057 = vunpack.c.h.b16 %v4533
    %v7058 = vunpack.c.l.b16 %v4534
    %v7059 = vunpack.c.h.b16 %v4534
    %v7060 = vunpack.c.l.b16 %v4535
    %v7061 = vunpack.c.h.b16 %v4535
    %v7062 = vunpack.c.l.b16 %v4536
    %v7063 = vunpack.c.h.b16 %v4536
    %v7064 = vunpack.c.l.b16 %v4537
    %v7065 = vunpack.c.h.b16 %v4537
    %v7066 = vunpack.c.l.b16 %v4538
    %v7067 = vunpack.c.h.b16 %v4538
    %v7068 = vunpack.c.l.b16 %v4539
    %v7069 = vunpack.c.h.b16 %v4539
    %v7070 = vunpack.c.l.b16 %v4540
    %v7071 = vunpack.c.h.b16 %v4540
    %v7072 = vunpack.c.l.b16 %v4541
    %v7073 = vunpack.c.h.b16 %v4541
    %v7074 = vunpack.c.l.b16 %v4542
    %v7075 = vunpack.c.h.b16 %v4542
    %v7076 = vunpack.c.l.b16 %v4543
    %v7077 = vunpack.c.h.b16 %v4543
    %v7078 = vunpack.c.l.b16 %v4544
    %v7079 = vunpack.c.h.b16 %v4544
    %v7080 = vunpack.c.l.b16 %v4545
    %v7081 = vunpack.c.h.b16 %v4545
    %v7082 = vunpack.c.l.b16 %v4546
    %v7083 = vunpack.c.h.b16 %v4546
    %v7084 = vunpack.c.l.b16 %v4547
    %v7085 = vunpack.c.h.b16 %v4547
    %v7086 = vunpack.c.l.b16 %v4548
    %v7087 = vunpack.c.h.b16 %v4548
    %v7088 = vunpack.c.l.b16 %v4549
    %v7089 = vunpack.c.h.b16 %v4549
    %v7090 = vunpack.c.l.b16 %v4550
    %v7091 = vunpack.c.h.b16 %v4550
    %v7092 = vunpack.c.l.b16 %v4551
    %v7093 = vunpack.c.h.b16 %v4551
    %v7094 = vunpack.c.l.b16 %v4552
    %v7095 = vunpack.c.h.b16 %v4552
    %v7096 = vunpack.c.l.b16 %v4553
    %v7097 = vunpack.c.h.b16 %v4553
    %v7098 = vunpack.c.l.b16 %v4554
    %v7099 = vunpack.c.h.b16 %v4554
    %v7100 = vunpack.c.l.b16 %v4555
    %v7101 = vunpack.c.h.b16 %v4555
    %v7102 = vunpack.c.l.b16 %v4556
    %v7103 = vunpack.c.h.b16 %v4556
    %v7104 = vunpack.c.l.b16 %v4557
    %v7105 = vunpack.c.h.b16 %v4557
    %v7106 = vunpack.c.l.b16 %v4558
    %v7107 = vunpack.c.h.b16 %v4558
    %v7108 = vunpack.c.l.b16 %v4559
    %v7109 = vunpack.c.h.b16 %v4559
    %v7110 = vunpack.c.l.b16 %v4560
    %v7111 = vunpack.c.h.b16 %v4560
    %v7112 = vunpack.c.l.b16 %v4561
    %v7113 = vunpack.c.h.b16 %v4561
    %v7114 = vunpack.c.l.b16 %v4562
    %v7115 = vunpack.c.h.b16 %v4562
    %v7116 = vunpack.c.l.b16 %v4563
    %v7117 = vunpack.c.h.b16 %v4563
    %v7118 = vunpack.c.l.b16 %v4564
    %v7119 = vunpack.c.h.b16 %v4564
    %v7120 = vunpack.c.l.b16 %v4565
    %v7121 = vunpack.c.h.b16 %v4565
    %v7122 = vunpack.c.l.b16 %v4566
    %v7123 = vunpack.c.h.b16 %v4566
    %v7124 = vunpack.c.l.b16 %v4567
    %v7125 = vunpack.c.h.b16 %v4567
    %v7126 = vunpack.c.l.b16 %v4568
    %v7127 = vunpack.c.h.b16 %v4568
    %v7128 = vunpack.c.l.b16 %v4569
    %v7129 = vunpack.c.h.b16 %v4569
    %v7130 = vunpack.c.l.b16 %v4570
    %v7131 = vunpack.c.h.b16 %v4570
    %v7132 = vunpack.c.l.b16 %v4571
    %v7133 = vunpack.c.h.b16 %v4571
    %v7134 = vunpack.c.l.b16 %v4572
    %v7135 = vunpack.c.h.b16 %v4572
    %v7136 = vunpack.c.l.b16 %v4573
    %v7137 = vunpack.c.h.b16 %v4573
    %v7138 = vunpack.c.l.b16 %v4574
    %v7139 = vunpack.c.h.b16 %v4574
    %v7140 = vunpack.c.l.b16 %v4575
    %v7141 = vunpack.c.h.b16 %v4575
    %v7142 = vunpack.c.l.b16 %v4576
    %v7143 = vunpack.c.h.b16 %v4576
    %v7144 = vunpack.c.l.b16 %v4577
    %v7145 = vunpack.c.h.b16 %v4577
    %v7146 = vunpack.c.l.b16 %v4578
    %v7147 = vunpack.c.h.b16 %v4578
    %v7148 = vunpack.c.l.b16 %v4579
    %v7149 = vunpack.c.h.b16 %v4579
    %v7150 = vunpack.c.l.b16 %v4580
    %v7151 = vunpack.c.h.b16 %v4580
    %v7152 = vunpack.c.l.b16 %v4581
    %v7153 = vunpack.c.h.b16 %v4581
    %v7154 = vunpack.c.l.b16 %v4582
    %v7155 = vunpack.c.h.b16 %v4582
    %v7156 = vunpack.c.l.b16 %v4583
    %v7157 = vunpack.c.h.b16 %v4583
    %v7158 = vunpack.c.l.b16 %v4584
    %v7159 = vunpack.c.h.b16 %v4584
    %v7160 = vunpack.c.l.b16 %v4585
    %v7161 = vunpack.c.h.b16 %v4585
    %v7162 = vunpack.c.l.b16 %v4586
    %v7163 = vunpack.c.h.b16 %v4586
    %v7164 = vunpack.c.l.b16 %v4587
    %v7165 = vunpack.c.h.b16 %v4587
    %v7166 = vunpack.c.l.b16 %v4588
    %v7167 = vunpack.c.h.b16 %v4588
    %v7168 = vunpack.c.l.b16 %v4589
    %v7169 = vunpack.c.h.b16 %v4589
    %v7170 = vunpack.c.l.b16 %v4590
    %v7171 = vunpack.c.h.b16 %v4590
    %v7172 = vunpack.c.l.b16 %v4591
    %v7173 = vunpack.c.h.b16 %v4591
    %v7174 = vunpack.c.l.b16 %v4592
    %v7175 = vunpack.c.h.b16 %v4592
    %v7176 = vunpack.c.l.b16 %v4593
    %v7177 = vunpack.c.h.b16 %v4593
    %v7178 = vunpack.c.l.b16 %v4594
    %v7179 = vunpack.c.h.b16 %v4594
    %v7180 = vunpack.c.l.b16 %v4595
    %v7181 = vunpack.c.h.b16 %v4595
    %v7182 = vunpack.c.l.b16 %v4596
    %v7183 = vunpack.c.h.b16 %v4596
    %v7184 = vunpack.c.l.b16 %v4597
    %v7185 = vunpack.c.h.b16 %v4597
    %v7186 = vunpack.c.l.b16 %v4598
    %v7187 = vunpack.c.h.b16 %v4598
    %v7188 = vunpack.c.l.b16 %v4599
    %v7189 = vunpack.c.h.b16 %v4599
    %v7190 = vunpack.c.l.b16 %v4600
    %v7191 = vunpack.c.h.b16 %v4600
    %v7192 = vunpack.c.l.b16 %v4601
    %v7193 = vunpack.c.h.b16 %v4601
    %v7194 = vunpack.c.l.b16 %v4602
    %v7195 = vunpack.c.h.b16 %v4602
    %v7196 = vunpack.c.l.b16 %v4603
    %v7197 = vunpack.c.h.b16 %v4603
    %v7198 = vunpack.c.l.b16 %v4604
    %v7199 = vunpack.c.h.b16 %v4604
    %v7200 = vunpack.c.l.b16 %v4605
    %v7201 = vunpack.c.h.b16 %v4605
    %v7202 = vunpack.c.l.b16 %v4606
    %v7203 = vunpack.c.h.b16 %v4606
    %v7204 = vunpack.c.l.b16 %v4607
    %v7205 = vunpack.c.h.b16 %v4607
    %v7206 = vunpack.c.l.b16 %v4608
    %v7207 = vunpack.c.h.b16 %v4608
    %v7208 = vunpack.c.l.b16 %v4609
    %v7209 = vunpack.c.h.b16 %v4609
    %v7210 = vunpack.c.l.b16 %v4610
    %v7211 = vunpack.c.h.b16 %v4610
    %v7212 = vunpack.c.l.b16 %v4611
    %v7213 = vunpack.c.h.b16 %v4611
    %v7214 = vunpack.c.l.b16 %v4612
    %v7215 = vunpack.c.h.b16 %v4612
    %v7216 = vunpack.c.l.b16 %v4613
    %v7217 = vunpack.c.h.b16 %v4613
    %v7218 = vunpack.c.l.b16 %v4614
    %v7219 = vunpack.c.h.b16 %v4614
    %v7220 = vunpack.c.l.b16 %v4615
    %v7221 = vunpack.c.h.b16 %v4615
    %v7222 = vunpack.c.l.b16 %v4616
    %v7223 = vunpack.c.h.b16 %v4616
    %v7224 = vunpack.c.l.b16 %v4617
    %v7225 = vunpack.c.h.b16 %v4617
    %v7226 = vunpack.c.l.b16 %v4618
    %v7227 = vunpack.c.h.b16 %v4618
    %v7228 = vunpack.c.l.b16 %v4619
    %v7229 = vunpack.c.h.b16 %v4619
    %v7230 = vunpack.c.l.b16 %v4620
    %v7231 = vunpack.c.h.b16 %v4620
    %v7232 = vunpack.c.l.b16 %v4621
    %v7233 = vunpack.c.h.b16 %v4621
    %v7234 = vunpack.c.l.b16 %v4622
    %v7235 = vunpack.c.h.b16 %v4622
    %v7236 = vunpack.c.l.b16 %v4623
    %v7237 = vunpack.c.h.b16 %v4623
    %v7238 = vunpack.c.l.b16 %v4624
    %v7239 = vunpack.c.h.b16 %v4624
    %v7240 = vunpack.c.l.b16 %v4625
    %v7241 = vunpack.c.h.b16 %v4625
    %v7242 = vunpack.c.l.b16 %v4626
    %v7243 = vunpack.c.h.b16 %v4626
    %v7244 = vunpack.c.l.b16 %v4627
    %v7245 = vunpack.c.h.b16 %v4627
    %v7246 = vunpack.c.l.b16 %v4628
    %v7247 = vunpack.c.h.b16 %v4628
    %v7248 = vunpack.c.l.b16 %v4629
    %v7249 = vunpack.c.h.b16 %v4629
    %v7250 = vunpack.c.l.b16 %v4630
    %v7251 = vunpack.c.h.b16 %v4630
    %v7252 = vunpack.c.l.b16 %v4631
    %v7253 = vunpack.c.h.b16 %v4631
    %v7254 = vunpack.c.l.b16 %v4632
    %v7255 = vunpack.c.h.b16 %v4632
    %v7256 = vunpack.c.l.b16 %v4633
    %v7257 = vunpack.c.h.b16 %v4633
    %v7258 = vunpack.c.l.b16 %v4634
    %v7259 = vunpack.c.h.b16 %v4634
    %v7260 = vunpack.c.l.b16 %v4635
    %v7261 = vunpack.c.h.b16 %v4635
    %v7262 = vunpack.c.l.b16 %v4636
    %v7263 = vunpack.c.h.b16 %v4636
    %v7264 = vunpack.c.l.b16 %v4637
    %v7265 = vunpack.c.h.b16 %v4637
    %v7266 = vunpack.c.l.b16 %v4638
    %v7267 = vunpack.c.h.b16 %v4638
    %v7268 = vunpack.c.l.b16 %v4639
    %v7269 = vunpack.c.h.b16 %v4639
    %v7270 = vunpack.c.l.b16 %v4640
    %v7271 = vunpack.c.h.b16 %v4640
    %v7272 = vunpack.c.l.b16 %v4641
    %v7273 = vunpack.c.h.b16 %v4641
    %v7274 = vunpack.c.l.b16 %v4642
    %v7275 = vunpack.c.h.b16 %v4642
    %v7276 = vunpack.c.l.b16 %v4643
    %v7277 = vunpack.c.h.b16 %v4643
    %v7278 = vunpack.c.l.b16 %v4644
    %v7279 = vunpack.c.h.b16 %v4644
    %v7280 = vunpack.c.l.b16 %v4645
    %v7281 = vunpack.c.h.b16 %v4645
    %v7282 = vunpack.c.l.b16 %v4646
    %v7283 = vunpack.c.h.b16 %v4646
    %v7284 = vunpack.c.l.b16 %v4647
    %v7285 = vunpack.c.h.b16 %v4647
    %v7286 = vunpack.c.l.b16 %v4648
    %v7287 = vunpack.c.h.b16 %v4648
    %v7288 = vunpack.c.l.b16 %v4649
    %v7289 = vunpack.c.h.b16 %v4649
    %v7290 = vunpack.c.l.b16 %v4650
    %v7291 = vunpack.c.h.b16 %v4650
    %v7292 = vunpack.c.l.b16 %v4651
    %v7293 = vunpack.c.h.b16 %v4651
    %v7294 = vunpack.c.l.b16 %v4652
    %v7295 = vunpack.c.h.b16 %v4652
    %v7296 = vunpack.c.l.b16 %v4653
    %v7297 = vunpack.c.h.b16 %v4653
    %v7298 = vunpack.c.l.b16 %v4654
    %v7299 = vunpack.c.h.b16 %v4654
    %v7300 = vunpack.c.l.b16 %v4655
    %v7301 = vunpack.c.h.b16 %v4655
    %v7302 = vunpack.c.l.b16 %v4656
    %v7303 = vunpack.c.h.b16 %v4656
    %v7304 = vunpack.c.l.b16 %v4657
    %v7305 = vunpack.c.h.b16 %v4657
    %v7306 = vunpack.c.l.b16 %v4658
    %v7307 = vunpack.c.h.b16 %v4658
    %v7308 = vunpack.c.l.b16 %v4659
    %v7309 = vunpack.c.h.b16 %v4659
    %v7310 = vunpack.c.l.b16 %v4660
    %v7311 = vunpack.c.h.b16 %v4660
    %v7312 = vunpack.c.l.b16 %v4661
    %v7313 = vunpack.c.h.b16 %v4661
    %v7314 = vunpack.c.l.b16 %v4662
    %v7315 = vunpack.c.h.b16 %v4662
    %v7316 = vunpack.c.l.b16 %v4663
    %v7317 = vunpack.c.h.b16 %v4663
    %v7318 = vunpack.c.l.b16 %v4664
    %v7319 = vunpack.c.h.b16 %v4664
    %v7320 = vunpack.c.l.b16 %v4665
    %v7321 = vunpack.c.h.b16 %v4665
    %v7322 = vunpack.c.l.b16 %v4666
    %v7323 = vunpack.c.h.b16 %v4666
    %v7324 = vunpack.c.l.b16 %v4667
    %v7325 = vunpack.c.h.b16 %v4667
    %v7326 = vunpack.c.l.b16 %v4668
    %v7327 = vunpack.c.h.b16 %v4668
    %v7328 = vunpack.c.l.b16 %v4669
    %v7329 = vunpack.c.h.b16 %v4669
    %v7330 = vunpack.c.l.b16 %v4670
    %v7331 = vunpack.c.h.b16 %v4670
    %v7332 = vunpack.c.l.b16 %v4671
    %v7333 = vunpack.c.h.b16 %v4671
    %v7334 = vunpack.c.l.b16 %v4672
    %v7335 = vunpack.c.h.b16 %v4672
    %v7336 = vunpack.c.l.b16 %v4673
    %v7337 = vunpack.c.h.b16 %v4673
    %v7338 = vunpack.c.l.b16 %v4674
    %v7339 = vunpack.c.h.b16 %v4674
    %v7340 = vunpack.c.l.b16 %v4675
    %v7341 = vunpack.c.h.b16 %v4675
    %v7342 = vunpack.c.l.b16 %v4676
    %v7343 = vunpack.c.h.b16 %v4676
    %v7344 = vunpack.c.l.b16 %v4677
    %v7345 = vunpack.c.h.b16 %v4677
    %v7346 = vunpack.c.l.b16 %v4678
    %v7347 = vunpack.c.h.b16 %v4678
    %v7348 = vunpack.c.l.b16 %v4679
    %v7349 = vunpack.c.h.b16 %v4679
    %v7350 = vunpack.c.l.b16 %v4680
    %v7351 = vunpack.c.h.b16 %v4680
    %v7352 = vunpack.c.l.b16 %v4681
    %v7353 = vunpack.c.h.b16 %v4681
    %v7354 = vunpack.c.l.b16 %v4682
    %v7355 = vunpack.c.h.b16 %v4682
    %v7356 = vunpack.c.l.b16 %v4683
    %v7357 = vunpack.c.h.b16 %v4683
    %v7358 = vunpack.c.l.b16 %v4684
    %v7359 = vunpack.c.h.b16 %v4684
    %v7360 = vunpack.c.l.b16 %v4685
    %v7361 = vunpack.c.h.b16 %v4685
    %v7362 = vunpack.c.l.b16 %v4686
    %v7363 = vunpack.c.h.b16 %v4686
    %v7364 = vunpack.c.l.b16 %v4687
    %v7365 = vunpack.c.h.b16 %v4687
    %v7366 = vunpack.c.l.b16 %v4688
    %v7367 = vunpack.c.h.b16 %v4688
    %v7368 = vunpack.c.l.b16 %v4689
    %v7369 = vunpack.c.h.b16 %v4689
    %v7370 = vunpack.c.l.b16 %v4690
    %v7371 = vunpack.c.h.b16 %v4690
    %v7372 = vunpack.c.l.b16 %v4691
    %v7373 = vunpack.c.h.b16 %v4691
    %v7374 = vunpack.c.l.b16 %v4692
    %v7375 = vunpack.c.h.b16 %v4692
    %v7376 = vunpack.c.l.b16 %v4693
    %v7377 = vunpack.c.h.b16 %v4693
    %v7378 = vunpack.c.l.b16 %v4694
    %v7379 = vunpack.c.h.b16 %v4694
    %v7380 = vunpack.c.l.b16 %v4695
    %v7381 = vunpack.c.h.b16 %v4695
    %v7382 = vunpack.c.l.b16 %v4696
    %v7383 = vunpack.c.h.b16 %v4696
    %v7384 = vunpack.c.l.b16 %v4697
    %v7385 = vunpack.c.h.b16 %v4697
    %v7386 = vpack.c.b16 %v5598, %v5594
    %v7387 = vpack.c.b16 %v5599, %v5595
    %v7388 = vpack.c.b16 %v5600, %v5596
    %v7389 = vpack.c.b16 %v5601, %v5597
    %v7390 = vpack.c.b16 %v5606, %v5602
    %v7391 = vpack.c.b16 %v5607, %v5603
    %v7392 = vpack.c.b16 %v5608, %v5604
    %v7393 = vpack.c.b16 %v5609, %v5605
    %v7394 = vpack.c.b16 %v5614, %v5610
    %v7395 = vpack.c.b16 %v5615, %v5611
    %v7396 = vpack.c.b16 %v5616, %v5612
    %v7397 = vpack.c.b16 %v5617, %v5613
    %v7398 = vpack.c.b16 %v5622, %v5618
    %v7399 = vpack.c.b16 %v5623, %v5619
    %v7400 = vpack.c.b16 %v5624, %v5620
    %v7401 = vpack.c.b16 %v5625, %v5621
    %v7402 = vpack.c.b16 %v5630, %v5626
    %v7403 = vpack.c.b16 %v5631, %v5627
    %v7404 = vpack.c.b16 %v5632, %v5628
    %v7405 = vpack.c.b16 %v5633, %v5629
    %v7406 = vpack.c.b16 %v5638, %v5634
    %v7407 = vpack.c.b16 %v5639, %v5635
    %v7408 = vpack.c.b16 %v5640, %v5636
    %v7409 = vpack.c.b16 %v5641, %v5637
    %v7410 = vpack.c.b16 %v5646, %v5642
    %v7411 = vpack.c.b16 %v5647, %v5643
    %v7412 = vpack.c.b16 %v5648, %v5644
    %v7413 = vpack.c.b16 %v5649, %v5645
    %v7414 = vpack.c.b16 %v5654, %v5650
    %v7415 = vpack.c.b16 %v5655, %v5651
    %v7416 = vpack.c.b16 %v5656, %v5652
    %v7417 = vpack.c.b16 %v5657, %v5653
    %v7418 = vpack.c.b16 %v5662, %v5658
    %v7419 = vpack.c.b16 %v5663, %v5659
    %v7420 = vpack.c.b16 %v5664, %v5660
    %v7421 = vpack.c.b16 %v5665, %v5661
    %v7422 = vpack.c.b16 %v5670, %v5666
    %v7423 = vpack.c.b16 %v5671, %v5667
    %v7424 = vpack.c.b16 %v5672, %v5668
    %v7425 = vpack.c.b16 %v5673, %v5669
    %v7426 = vpack.c.b16 %v5678, %v5674
    %v7427 = vpack.c.b16 %v5679, %v5675
    %v7428 = vpack.c.b16 %v5680, %v5676
    %v7429 = vpack.c.b16 %v5681, %v5677
    %v7430 = vpack.c.b16 %v5686, %v5682
    %v7431 = vpack.c.b16 %v5687, %v5683
    %v7432 = vpack.c.b16 %v5688, %v5684
    %v7433 = vpack.c.b16 %v5689, %v5685
    %v7434 = vpack.c.b16 %v5694, %v5690
    %v7435 = vpack.c.b16 %v5695, %v5691
    %v7436 = vpack.c.b16 %v5696, %v5692
    %v7437 = vpack.c.b16 %v5697, %v5693
    %v7438 = vpack.c.b16 %v5702, %v5698
    %v7439 = vpack.c.b16 %v5703, %v5699
    %v7440 = vpack.c.b16 %v5704, %v5700
    %v7441 = vpack.c.b16 %v5705, %v5701
    %v7442 = vpack.c.b16 %v5710, %v5706
    %v7443 = vpack.c.b16 %v5711, %v5707
    %v7444 = vpack.c.b16 %v5712, %v5708
    %v7445 = vpack.c.b16 %v5713, %v5709
    %v7446 = vpack.c.b16 %v5718, %v5714
    %v7447 = vpack.c.b16 %v5719, %v5715
    %v7448 = vpack.c.b16 %v5720, %v5716
    %v7449 = vpack.c.b16 %v5721, %v5717
    %v7450 = vpack.c.b16 %v5726, %v5722
    %v7451 = vpack.c.b16 %v5727, %v5723
    %v7452 = vpack.c.b16 %v5728, %v5724
    %v7453 = vpack.c.b16 %v5729, %v5725
    %v7454 = vpack.c.b16 %v5734, %v5730
    %v7455 = vpack.c.b16 %v5735, %v5731
    %v7456 = vpack.c.b16 %v5736, %v5732
    %v7457 = vpack.c.b16 %v5737, %v5733
    %v7458 = vpack.c.b16 %v5742, %v5738
    %v7459 = vpack.c.b16 %v5743, %v5739
    %v7460 = vpack.c.b16 %v5744, %v5740
    %v7461 = vpack.c.b16 %v5745, %v5741
    %v7462 = vpack.c.b16 %v5750, %v5746
    %v7463 = vpack.c.b16 %v5751, %v5747
    %v7464 = vpack.c.b16 %v5752, %v5748
    %v7465 = vpack.c.b16 %v5753, %v5749
    %v7466 = vpack.c.b16 %v5758, %v5754
    %v7467 = vpack.c.b16 %v5759, %v5755
    %v7468 = vpack.c.b16 %v5760, %v5756
    %v7469 = vpack.c.b16 %v5761, %v5757
    %v7470 = vpack.c.b16 %v5766, %v5762
    %v7471 = vpack.c.b16 %v5767, %v5763
    %v7472 = vpack.c.b16 %v5768, %v5764
    %v7473 = vpack.c.b16 %v5769, %v5765
    %v7474 = vpack.c.b16 %v5774, %v5770
    %v7475 = vpack.c.b16 %v5775, %v5771
    %v7476 = vpack.c.b16 %v5776, %v5772
    %v7477 = vpack.c.b16 %v5777, %v5773
    %v7478 = vpack.c.b16 %v5782, %v5778
    %v7479 = vpack.c.b16 %v5783, %v5779
    %v7480 = vpack.c.b16 %v5784, %v5780
    %v7481 = vpack.c.b16 %v5785, %v5781
    %v7482 = vpack.c.b16 %v5790, %v5786
    %v7483 = vpack.c.b16 %v5791, %v5787
    %v7484 = vpack.c.b16 %v5792, %v5788
    %v7485 = vpack.c.b16 %v5793, %v5789
    %v7486 = vpack.c.b16 %v5798, %v5794
    %v7487 = vpack.c.b16 %v5799, %v5795
    %v7488 = vpack.c.b16 %v5800, %v5796
    %v7489 = vpack.c.b16 %v5801, %v5797
    %v7490 = vpack.c.b16 %v5806, %v5802
    %v7491 = vpack.c.b16 %v5807, %v5803
    %v7492 = vpack.c.b16 %v5808, %v5804
    %v7493 = vpack.c.b16 %v5809, %v5805
    %v7494 = vpack.c.b16 %v5814, %v5810
    %v7495 = vpack.c.b16 %v5815, %v5811
    %v7496 = vpack.c.b16 %v5816, %v5812
    %v7497 = vpack.c.b16 %v5817, %v5813
    %v7498 = vpack.c.b16 %v5822, %v5818
    %v7499 = vpack.c.b16 %v5823, %v5819
    %v7500 = vpack.c.b16 %v5824, %v5820
    %v7501 = vpack.c.b16 %v5825, %v5821
    %v7502 = vpack.c.b16 %v5830, %v5826
    %v7503 = vpack.c.b16 %v5831, %v5827
    %v7504 = vpack.c.b16 %v5832, %v5828
    %v7505 = vpack.c.b16 %v5833, %v5829
    %v7506 = vpack.c.b16 %v5838, %v5834
    %v7507 = vpack.c.b16 %v5839, %v5835
    %v7508 = vpack.c.b16 %v5840, %v5836
    %v7509 = vpack.c.b16 %v5841, %v5837
    %v7510 = vpack.c.b16 %v5846, %v5842
    %v7511 = vpack.c.b16 %v5847, %v5843
    %v7512 = vpack.c.b16 %v5848, %v5844
    %v7513 = vpack.c.b16 %v5849, %v5845
    %v7514 = vpack.c.b16 %v5854, %v5850
    %v7515 = vpack.c.b16 %v5855, %v5851
    %v7516 = vpack.c.b16 %v5856, %v5852
    %v7517 = vpack.c.b16 %v5857, %v5853
    %v7518 = vpack.c.b16 %v5862, %v5858
    %v7519 = vpack.c.b16 %v5863, %v5859
    %v7520 = vpack.c.b16 %v5864, %v5860
    %v7521 = vpack.c.b16 %v5865, %v5861
    %v7522 = vpack.c.b16 %v5870, %v5866
    %v7523 = vpack.c.b16 %v5871, %v5867
    %v7524 = vpack.c.b16 %v5872, %v5868
    %v7525 = vpack.c.b16 %v5873, %v5869
    %v7526 = vpack.c.b16 %v5878, %v5874
    %v7527 = vpack.c.b16 %v5879, %v5875
    %v7528 = vpack.c.b16 %v5880, %v5876
    %v7529 = vpack.c.b16 %v5881, %v5877
    %v7530 = vpack.c.b16 %v5886, %v5882
    %v7531 = vpack.c.b16 %v5887, %v5883
    %v7532 = vpack.c.b16 %v5888, %v5884
    %v7533 = vpack.c.b16 %v5889, %v5885
    %v7534 = vpack.c.b16 %v5894, %v5890
    %v7535 = vpack.c.b16 %v5895, %v5891
    %v7536 = vpack.c.b16 %v5896, %v5892
    %v7537 = vpack.c.b16 %v5897, %v5893
    %v7538 = vpack.c.b16 %v5902, %v5898
    %v7539 = vpack.c.b16 %v5903, %v5899
    %v7540 = vpack.c.b16 %v5904, %v5900
    %v7541 = vpack.c.b16 %v5905, %v5901
    %v7542 = vpack.c.b16 %v5910, %v5906
    %v7543 = vpack.c.b16 %v5911, %v5907
    %v7544 = vpack.c.b16 %v5912, %v5908
    %v7545 = vpack.c.b16 %v5913, %v5909
    %v7546 = vpack.c.b16 %v5918, %v5914
    %v7547 = vpack.c.b16 %v5919, %v5915
    %v7548 = vpack.c.b16 %v5920, %v5916
    %v7549 = vpack.c.b16 %v5921, %v5917
    %v7550 = vpack.c.b16 %v5926, %v5922
    %v7551 = vpack.c.b16 %v5927, %v5923
    %v7552 = vpack.c.b16 %v5928, %v5924
    %v7553 = vpack.c.b16 %v5929, %v5925
    %v7554 = vpack.c.b16 %v5934, %v5930
    %v7555 = vpack.c.b16 %v5935, %v5931
    %v7556 = vpack.c.b16 %v5936, %v5932
    %v7557 = vpack.c.b16 %v5937, %v5933
    %v7558 = vpack.c.b16 %v5942, %v5938
    %v7559 = vpack.c.b16 %v5943, %v5939
    %v7560 = vpack.c.b16 %v5944, %v5940
    %v7561 = vpack.c.b16 %v5945, %v5941
    %v7562 = vpack.c.b16 %v5950, %v5946
    %v7563 = vpack.c.b16 %v5951, %v5947
    %v7564 = vpack.c.b16 %v5952, %v5948
    %v7565 = vpack.c.b16 %v5953, %v5949
    %v7566 = vpack.c.b16 %v5958, %v5954
    %v7567 = vpack.c.b16 %v5959, %v5955
    %v7568 = vpack.c.b16 %v5960, %v5956
    %v7569 = vpack.c.b16 %v5961, %v5957
    %v7570 = vpack.c.b16 %v5966, %v5962
    %v7571 = vpack.c.b16 %v5967, %v5963
    %v7572 = vpack.c.b16 %v5968, %v5964
    %v7573 = vpack.c.b16 %v5969, %v5965
    %v7574 = vpack.c.b16 %v5974, %v5970
    %v7575 = vpack.c.b16 %v5975, %v5971
    %v7576 = vpack.c.b16 %v5976, %v5972
    %v7577 = vpack.c.b16 %v5977, %v5973
    %v7578 = vpack.c.b16 %v5982, %v5978
    %v7579 = vpack.c.b16 %v5983, %v5979
    %v7580 = vpack.c.b16 %v5984, %v5980
    %v7581 = vpack.c.b16 %v5985, %v5981
    %v7582 = vpack.c.b16 %v5990, %v5986
    %v7583 = vpack.c.b16 %v5991, %v5987
    %v7584 = vpack.c.b16 %v5992, %v5988
    %v7585 = vpack.c.b16 %v5993, %v5989
    %v7586 = vpack.c.b16 %v5998, %v5994
    %v7587 = vpack.c.b16 %v5999, %v5995
    %v7588 = vpack.c.b16 %v6000, %v5996
    %v7589 = vpack.c.b16 %v6001, %v5997
    %v7590 = vpack.c.b16 %v6006, %v6002
    %v7591 = vpack.c.b16 %v6007, %v6003
    %v7592 = vpack.c.b16 %v6008, %v6004
    %v7593 = vpack.c.b16 %v6009, %v6005
    %v7594 = vpack.c.b16 %v6014, %v6010
    %v7595 = vpack.c.b16 %v6015, %v6011
    %v7596 = vpack.c.b16 %v6016, %v6012
    %v7597 = vpack.c.b16 %v6017, %v6013
    %v7598 = vpack.c.b16 %v6022, %v6018
    %v7599 = vpack.c.b16 %v6023, %v6019
    %v7600 = vpack.c.b16 %v6024, %v6020
    %v7601 = vpack.c.b16 %v6025, %v6021
    %v7602 = vpack.c.b16 %v6030, %v6026
    %v7603 = vpack.c.b16 %v6031, %v6027
    %v7604 = vpack.c.b16 %v6032, %v6028
    %v7605 = vpack.c.b16 %v6033, %v6029
    %v7606 = vpack.c.b16 %v6038, %v6034
    %v7607 = vpack.c.b16 %v6039, %v6035
    %v7608 = vpack.c.b16 %v6040, %v6036
    %v7609 = vpack.c.b16 %v6041, %v6037
    %v7610 = vpack.c.b16 %v6046, %v6042
    %v7611 = vpack.c.b16 %v6047, %v6043
    %v7612 = vpack.c.b16 %v6048, %v6044
    %v7613 = vpack.c.b16 %v6049, %v6045
    %v7614 = vpack.c.b16 %v6054, %v6050
    %v7615 = vpack.c.b16 %v6055, %v6051
    %v7616 = vpack.c.b16 %v6056, %v6052
    %v7617 = vpack.c.b16 %v6057, %v6053
    %v7618 = vpack.c.b16 %v6062, %v6058
    %v7619 = vpack.c.b16 %v6063, %v6059
    %v7620 = vpack.c.b16 %v6064, %v6060
    %v7621 = vpack.c.b16 %v6065, %v6061
    %v7622 = vpack.c.b16 %v6070, %v6066
    %v7623 = vpack.c.b16 %v6071, %v6067
    %v7624 = vpack.c.b16 %v6072, %v6068
    %v7625 = vpack.c.b16 %v6073, %v6069
    %v7626 = vpack.c.b16 %v6078, %v6074
    %v7627 = vpack.c.b16 %v6079, %v6075
    %v7628 = vpack.c.b16 %v6080, %v6076
    %v7629 = vpack.c.b16 %v6081, %v6077
    %v7630 = vpack.c.b16 %v6086, %v6082
    %v7631 = vpack.c.b16 %v6087, %v6083
    %v7632 = vpack.c.b16 %v6088, %v6084
    %v7633 = vpack.c.b16 %v6089, %v6085
    %v7634 = vpack.c.b16 %v6094, %v6090
    %v7635 = vpack.c.b16 %v6095, %v6091
    %v7636 = vpack.c.b16 %v6096, %v6092
    %v7637 = vpack.c.b16 %v6097, %v6093
    %v7638 = vpack.c.b16 %v6102, %v6098
    %v7639 = vpack.c.b16 %v6103, %v6099
    %v7640 = vpack.c.b16 %v6104, %v6100
    %v7641 = vpack.c.b16 %v6105, %v6101
    %v7642 = vpack.c.b16 %v6110, %v6106
    %v7643 = vpack.c.b16 %v6111, %v6107
    %v7644 = vpack.c.b16 %v6112, %v6108
    %v7645 = vpack.c.b16 %v6113, %v6109
    %v7646 = vpack.c.b16 %v6118, %v6114
    %v7647 = vpack.c.b16 %v6119, %v6115
    %v7648 = vpack.c.b16 %v6120, %v6116
    %v7649 = vpack.c.b16 %v6121, %v6117
    %v7650 = vpack.c.b16 %v6126, %v6122
    %v7651 = vpack.c.b16 %v6127, %v6123
    %v7652 = vpack.c.b16 %v6128, %v6124
    %v7653 = vpack.c.b16 %v6129, %v6125
    %v7654 = vpack.c.b16 %v6134, %v6130
    %v7655 = vpack.c.b16 %v6135, %v6131
    %v7656 = vpack.c.b16 %v6136, %v6132
    %v7657 = vpack.c.b16 %v6137, %v6133
    %v7658 = vpack.c.b16 %v6142, %v6138
    %v7659 = vpack.c.b16 %v6143, %v6139
    %v7660 = vpack.c.b16 %v6144, %v6140
    %v7661 = vpack.c.b16 %v6145, %v6141
    %v7662 = vpack.c.b16 %v6150, %v6146
    %v7663 = vpack.c.b16 %v6151, %v6147
    %v7664 = vpack.c.b16 %v6152, %v6148
    %v7665 = vpack.c.b16 %v6153, %v6149
    %v7666 = vpack.c.b16 %v6158, %v6154
    %v7667 = vpack.c.b16 %v6159, %v6155
    %v7668 = vpack.c.b16 %v6160, %v6156
    %v7669 = vpack.c.b16 %v6161, %v6157
    %v7670 = vpack.c.b16 %v6166, %v6162
    %v7671 = vpack.c.b16 %v6167, %v6163
    %v7672 = vpack.c.b16 %v6168, %v6164
    %v7673 = vpack.c.b16 %v6169, %v6165
    %v7674 = vpack.c.b16 %v6174, %v6170
    %v7675 = vpack.c.b16 %v6175, %v6171
    %v7676 = vpack.c.b16 %v6176, %v6172
    %v7677 = vpack.c.b16 %v6177, %v6173
    %v7678 = vpack.c.b16 %v6182, %v6178
    %v7679 = vpack.c.b16 %v6183, %v6179
    %v7680 = vpack.c.b16 %v6184, %v6180
    %v7681 = vpack.c.b16 %v6185, %v6181
    %v7682 = vpack.c.b16 %v6190, %v6186
    %v7683 = vpack.c.b16 %v6191, %v6187
    %v7684 = vpack.c.b16 %v6192, %v6188
    %v7685 = vpack.c.b16 %v6193, %v6189
    %v7686 = vpack.c.b16 %v6198, %v6194
    %v7687 = vpack.c.b16 %v6199, %v6195
    %v7688 = vpack.c.b16 %v6200, %v6196
    %v7689 = vpack.c.b16 %v6201, %v6197
    %v7690 = vpack.c.b16 %v6206, %v6202
    %v7691 = vpack.c.b16 %v6207, %v6203
    %v7692 = vpack.c.b16 %v6208, %v6204
    %v7693 = vpack.c.b16 %v6209, %v6205
    %v7694 = vpack.c.b16 %v6214, %v6210
    %v7695 = vpack.c.b16 %v6215, %v6211
    %v7696 = vpack.c.b16 %v6216, %v6212
    %v7697 = vpack.c.b16 %v6217, %v6213
    %v7698 = vpack.c.b16 %v6222, %v6218
    %v7699 = vpack.c.b16 %v6223, %v6219
    %v7700 = vpack.c.b16 %v6224, %v6220
    %v7701 = vpack.c.b16 %v6225, %v6221
    %v7702 = vpack.c.b16 %v6230, %v6226
    %v7703 = vpack.c.b16 %v6231, %v6227
    %v7704 = vpack.c.b16 %v6232, %v6228
    %v7705 = vpack.c.b16 %v6233, %v6229
    %v7706 = vpack.c.b16 %v6238, %v6234
    %v7707 = vpack.c.b16 %v6239, %v6235
    %v7708 = vpack.c.b16 %v6240, %v6236
    %v7709 = vpack.c.b16 %v6241, %v6237
    %v7710 = vpack.c.b16 %v6246, %v6242
    %v7711 = vpack.c.b16 %v6247, %v6243
    %v7712 = vpack.c.b16 %v6248, %v6244
    %v7713 = vpack.c.b16 %v6249, %v6245
    %v7714 = vpack.c.b16 %v6254, %v6250
    %v7715 = vpack.c.b16 %v6255, %v6251
    %v7716 = vpack.c.b16 %v6256, %v6252
    %v7717 = vpack.c.b16 %v6257, %v6253
    %v7718 = vpack.c.b16 %v6262, %v6258
    %v7719 = vpack.c.b16 %v6263, %v6259
    %v7720 = vpack.c.b16 %v6264, %v6260
    %v7721 = vpack.c.b16 %v6265, %v6261
    %v7722 = vpack.c.b16 %v6270, %v6266
    %v7723 = vpack.c.b16 %v6271, %v6267
    %v7724 = vpack.c.b16 %v6272, %v6268
    %v7725 = vpack.c.b16 %v6273, %v6269
    %v7726 = vpack.c.b16 %v6278, %v6274
    %v7727 = vpack.c.b16 %v6279, %v6275
    %v7728 = vpack.c.b16 %v6280, %v6276
    %v7729 = vpack.c.b16 %v6281, %v6277
    %v7730 = vpack.c.b16 %v6286, %v6282
    %v7731 = vpack.c.b16 %v6287, %v6283
    %v7732 = vpack.c.b16 %v6288, %v6284
    %v7733 = vpack.c.b16 %v6289, %v6285
    %v7734 = vpack.c.b16 %v6294, %v6290
    %v7735 = vpack.c.b16 %v6295, %v6291
    %v7736 = vpack.c.b16 %v6296, %v6292
    %v7737 = vpack.c.b16 %v6297, %v6293
    %v7738 = vpack.c.b16 %v6302, %v6298
    %v7739 = vpack.c.b16 %v6303, %v6299
    %v7740 = vpack.c.b16 %v6304, %v6300
    %v7741 = vpack.c.b16 %v6305, %v6301
    %v7742 = vpack.c.b16 %v6310, %v6306
    %v7743 = vpack.c.b16 %v6311, %v6307
    %v7744 = vpack.c.b16 %v6312, %v6308
    %v7745 = vpack.c.b16 %v6313, %v6309
    %v7746 = vpack.c.b16 %v6318, %v6314
    %v7747 = vpack.c.b16 %v6319, %v6315
    %v7748 = vpack.c.b16 %v6320, %v6316
    %v7749 = vpack.c.b16 %v6321, %v6317
    %v7750 = vpack.c.b16 %v6326, %v6322
    %v7751 = vpack.c.b16 %v6327, %v6323
    %v7752 = vpack.c.b16 %v6328, %v6324
    %v7753 = vpack.c.b16 %v6329, %v6325
    %v7754 = vpack.c.b16 %v6334, %v6330
    %v7755 = vpack.c.b16 %v6335, %v6331
    %v7756 = vpack.c.b16 %v6336, %v6332
    %v7757 = vpack.c.b16 %v6337, %v6333
    %v7758 = vpack.c.b16 %v6342, %v6338
    %v7759 = vpack.c.b16 %v6343, %v6339
    %v7760 = vpack.c.b16 %v6344, %v6340
    %v7761 = vpack.c.b16 %v6345, %v6341
    %v7762 = vpack.c.b16 %v6350, %v6346
    %v7763 = vpack.c.b16 %v6351, %v6347
    %v7764 = vpack.c.b16 %v6352, %v6348
    %v7765 = vpack.c.b16 %v6353, %v6349
    %v7766 = vpack.c.b16 %v6358, %v6354
    %v7767 = vpack.c.b16 %v6359, %v6355
    %v7768 = vpack.c.b16 %v6360, %v6356
    %v7769 = vpack.c.b16 %v6361, %v6357
    %v7770 = vpack.c.b16 %v6366, %v6362
    %v7771 = vpack.c.b16 %v6367, %v6363
    %v7772 = vpack.c.b16 %v6368, %v6364
    %v7773 = vpack.c.b16 %v6369, %v6365
    %v7774 = vpack.c.b16 %v6374, %v6370
    %v7775 = vpack.c.b16 %v6375, %v6371
    %v7776 = vpack.c.b16 %v6376, %v6372
    %v7777 = vpack.c.b16 %v6377, %v6373
    %v7778 = vpack.c.b16 %v6382, %v6378
    %v7779 = vpack.c.b16 %v6383, %v6379
    %v7780 = vpack.c.b16 %v6384, %v6380
    %v7781 = vpack.c.b16 %v6385, %v6381
    %v7782 = vpack.c.b16 %v6390, %v6386
    %v7783 = vpack.c.b16 %v6391, %v6387
    %v7784 = vpack.c.b16 %v6392, %v6388
    %v7785 = vpack.c.b16 %v6393, %v6389
    %v7786 = vpack.c.b16 %v6398, %v6394
    %v7787 = vpack.c.b16 %v6399, %v6395
    %v7788 = vpack.c.b16 %v6400, %v6396
    %v7789 = vpack.c.b16 %v6401, %v6397
    %v7790 = vpack.c.b16 %v6406, %v6402
    %v7791 = vpack.c.b16 %v6407, %v6403
    %v7792 = vpack.c.b16 %v6408, %v6404
    %v7793 = vpack.c.b16 %v6409, %v6405
    %v7794 = vpack.c.b16 %v6414, %v6410
    %v7795 = vpack.c.b16 %v6415, %v6411
    %v7796 = vpack.c.b16 %v6416, %v6412
    %v7797 = vpack.c.b16 %v6417, %v6413
    %v7798 = vpack.c.b16 %v6422, %v6418
    %v7799 = vpack.c.b16 %v6423, %v6419
    %v7800 = vpack.c.b16 %v6424, %v6420
    %v7801 = vpack.c.b16 %v6425, %v6421
    %v7802 = vpack.c.b16 %v6430, %v6426
    %v7803 = vpack.c.b16 %v6431, %v6427
    %v7804 = vpack.c.b16 %v6432, %v6428
    %v7805 = vpack.c.b16 %v6433, %v6429
    %v7806 = vpack.c.b16 %v6438, %v6434
    %v7807 = vpack.c.b16 %v6439, %v6435
    %v7808 = vpack.c.b16 %v6440, %v6436
    %v7809 = vpack.c.b16 %v6441, %v6437
    %v7810 = vpack.c.b16 %v6446, %v6442
    %v7811 = vpack.c.b16 %v6447, %v6443
    %v7812 = vpack.c.b16 %v6448, %v6444
    %v7813 = vpack.c.b16 %v6449, %v6445
    %v7814 = vpack.c.b16 %v6454, %v6450
    %v7815 = vpack.c.b16 %v6455, %v6451
    %v7816 = vpack.c.b16 %v6456, %v6452
    %v7817 = vpack.c.b16 %v6457, %v6453
    %v7818 = vpack.c.b16 %v6462, %v6458
    %v7819 = vpack.c.b16 %v6463, %v6459
    %v7820 = vpack.c.b16 %v6464, %v6460
    %v7821 = vpack.c.b16 %v6465, %v6461
    %v7822 = vpack.c.b16 %v6470, %v6466
    %v7823 = vpack.c.b16 %v6471, %v6467
    %v7824 = vpack.c.b16 %v6472, %v6468
    %v7825 = vpack.c.b16 %v6473, %v6469
    %v7826 = vpack.c.b16 %v6478, %v6474
    %v7827 = vpack.c.b16 %v6479, %v6475
    %v7828 = vpack.c.b16 %v6480, %v6476
    %v7829 = vpack.c.b16 %v6481, %v6477
    %v7830 = vpack.c.b16 %v6486, %v6482
    %v7831 = vpack.c.b16 %v6487, %v6483
    %v7832 = vpack.c.b16 %v6488, %v6484
    %v7833 = vpack.c.b16 %v6489, %v6485
    %v7834 = vpack.c.b16 %v6494, %v6490
    %v7835 = vpack.c.b16 %v6495, %v6491
    %v7836 = vpack.c.b16 %v6496, %v6492
    %v7837 = vpack.c.b16 %v6497, %v6493
    %v7838 = vpack.c.b16 %v6502, %v6498
    %v7839 = vpack.c.b16 %v6503, %v6499
    %v7840 = vpack.c.b16 %v6504, %v6500
    %v7841 = vpack.c.b16 %v6505, %v6501
    %v7842 = vpack.c.b16 %v6510, %v6506
    %v7843 = vpack.c.b16 %v6511, %v6507
    %v7844 = vpack.c.b16 %v6512, %v6508
    %v7845 = vpack.c.b16 %v6513, %v6509
    %v7846 = vpack.c.b16 %v6518, %v6514
    %v7847 = vpack.c.b16 %v6519, %v6515
    %v7848 = vpack.c.b16 %v6520, %v6516
    %v7849 = vpack.c.b16 %v6521, %v6517
    %v7850 = vpack.c.b16 %v6526, %v6522
    %v7851 = vpack.c.b16 %v6527, %v6523
    %v7852 = vpack.c.b16 %v6528, %v6524
    %v7853 = vpack.c.b16 %v6529, %v6525
    %v7854 = vpack.c.b16 %v6534, %v6530
    %v7855 = vpack.c.b16 %v6535, %v6531
    %v7856 = vpack.c.b16 %v6536, %v6532
    %v7857 = vpack.c.b16 %v6537, %v6533
    %v7858 = vpack.c.b16 %v6542, %v6538
    %v7859 = vpack.c.b16 %v6543, %v6539
    %v7860 = vpack.c.b16 %v6544, %v6540
    %v7861 = vpack.c.b16 %v6545, %v6541
    %v7862 = vpack.c.b16 %v6550, %v6546
    %v7863 = vpack.c.b16 %v6551, %v6547
    %v7864 = vpack.c.b16 %v6552, %v6548
    %v7865 = vpack.c.b16 %v6553, %v6549
    %v7866 = vpack.c.b16 %v6558, %v6554
    %v7867 = vpack.c.b16 %v6559, %v6555
    %v7868 = vpack.c.b16 %v6560, %v6556
    %v7869 = vpack.c.b16 %v6561, %v6557
    %v7870 = vpack.c.b16 %v6566, %v6562
    %v7871 = vpack.c.b16 %v6567, %v6563
    %v7872 = vpack.c.b16 %v6568, %v6564
    %v7873 = vpack.c.b16 %v6569, %v6565
    %v7874 = vpack.c.b16 %v6574, %v6570
    %v7875 = vpack.c.b16 %v6575, %v6571
    %v7876 = vpack.c.b16 %v6576, %v6572
    %v7877 = vpack.c.b16 %v6577, %v6573
    %v7878 = vpack.c.b16 %v6582, %v6578
    %v7879 = vpack.c.b16 %v6583, %v6579
    %v7880 = vpack.c.b16 %v6584, %v6580
    %v7881 = vpack.c.b16 %v6585, %v6581
    %v7882 = vpack.c.b16 %v6590, %v6586
    %v7883 = vpack.c.b16 %v6591, %v6587
    %v7884 = vpack.c.b16 %v6592, %v6588
    %v7885 = vpack.c.b16 %v6593, %v6589
    %v7886 = vpack.c.b16 %v6598, %v6594
    %v7887 = vpack.c.b16 %v6599, %v6595
    %v7888 = vpack.c.b16 %v6600, %v6596
    %v7889 = vpack.c.b16 %v6601, %v6597
    %v7890 = vpack.c.b16 %v6606, %v6602
    %v7891 = vpack.c.b16 %v6607, %v6603
    %v7892 = vpack.c.b16 %v6608, %v6604
    %v7893 = vpack.c.b16 %v6609, %v6605
    %v7894 = vpack.c.b16 %v6614, %v6610
    %v7895 = vpack.c.b16 %v6615, %v6611
    %v7896 = vpack.c.b16 %v6616, %v6612
    %v7897 = vpack.c.b16 %v6617, %v6613
    %v7898 = vpack.c.b16 %v6622, %v6618
    %v7899 = vpack.c.b16 %v6623, %v6619
    %v7900 = vpack.c.b16 %v6624, %v6620
    %v7901 = vpack.c.b16 %v6625, %v6621
    %v7902 = vpack.c.b16 %v6630, %v6626
    %v7903 = vpack.c.b16 %v6631, %v6627
    %v7904 = vpack.c.b16 %v6632, %v6628
    %v7905 = vpack.c.b16 %v6633, %v6629
    %v7906 = vpack.c.b16 %v6638, %v6634
    %v7907 = vpack.c.b16 %v6639, %v6635
    %v7908 = vpack.c.b16 %v6640, %v6636
    %v7909 = vpack.c.b16 %v6641, %v6637
    %v7910 = vpack.c.b16 %v6646, %v6642
    %v7911 = vpack.c.b16 %v6647, %v6643
    %v7912 = vpack.c.b16 %v6648, %v6644
    %v7913 = vpack.c.b16 %v6649, %v6645
    %v7914 = vpack.c.b16 %v6654, %v6650
    %v7915 = vpack.c.b16 %v6655, %v6651
    %v7916 = vpack.c.b16 %v6656, %v6652
    %v7917 = vpack.c.b16 %v6657, %v6653
    %v7918 = vpack.c.b16 %v6662, %v6658
    %v7919 = vpack.c.b16 %v6663, %v6659
    %v7920 = vpack.c.b16 %v6664, %v6660
    %v7921 = vpack.c.b16 %v6665, %v6661
    %v7922 = vpack.c.b16 %v6670, %v6666
    %v7923 = vpack.c.b16 %v6671, %v6667
    %v7924 = vpack.c.b16 %v6672, %v6668
    %v7925 = vpack.c.b16 %v6673, %v6669
    %v7926 = vpack.c.b16 %v6678, %v6674
    %v7927 = vpack.c.b16 %v6679, %v6675
    %v7928 = vpack.c.b16 %v6680, %v6676
    %v7929 = vpack.c.b16 %v6681, %v6677
    %v7930 = vpack.c.b16 %v6686, %v6682
    %v7931 = vpack.c.b16 %v6687, %v6683
    %v7932 = vpack.c.b16 %v6688, %v6684
    %v7933 = vpack.c.b16 %v6689, %v6685
    %v7934 = vpack.c.b16 %v6694, %v6690
    %v7935 = vpack.c.b16 %v6695, %v6691
    %v7936 = vpack.c.b16 %v6696, %v6692
    %v7937 = vpack.c.b16 %v6697, %v6693
    %v7938 = vpack.c.b16 %v6702, %v6698
    %v7939 = vpack.c.b16 %v6703, %v6699
    %v7940 = vpack.c.b16 %v6704, %v6700
    %v7941 = vpack.c.b16 %v6705, %v6701
    %v7942 = vpack.c.b16 %v6710, %v6706
    %v7943 = vpack.c.b16 %v6711, %v6707
    %v7944 = vpack.c.b16 %v6712, %v6708
    %v7945 = vpack.c.b16 %v6713, %v6709
    %v7946 = vpack.c.b16 %v6718, %v6714
    %v7947 = vpack.c.b16 %v6719, %v6715
    %v7948 = vpack.c.b16 %v6720, %v6716
    %v7949 = vpack.c.b16 %v6721, %v6717
    %v7950 = vpack.c.b16 %v6726, %v6722
    %v7951 = vpack.c.b16 %v6727, %v6723
    %v7952 = vpack.c.b16 %v6728, %v6724
    %v7953 = vpack.c.b16 %v6729, %v6725
    %v7954 = vpack.c.b16 %v6734, %v6730
    %v7955 = vpack.c.b16 %v6735, %v6731
    %v7956 = vpack.c.b16 %v6736, %v6732
    %v7957 = vpack.c.b16 %v6737, %v6733
    %v7958 = vpack.c.b16 %v6742, %v6738
    %v7959 = vpack.c.b16 %v6743, %v6739
    %v7960 = vpack.c.b16 %v6744, %v6740
    %v7961 = vpack.c.b16 %v6745, %v6741
    %v7962 = vpack.c.b16 %v6750, %v6746
    %v7963 = vpack.c.b16 %v6751, %v6747
    %v7964 = vpack.c.b16 %v6752, %v6748
    %v7965 = vpack.c.b16 %v6753, %v6749
    %v7966 = vpack.c.b16 %v6758, %v6754
    %v7967 = vpack.c.b16 %v6759, %v6755
    %v7968 = vpack.c.b16 %v6760, %v6756
    %v7969 = vpack.c.b16 %v6761, %v6757
    %v7970 = vpack.c.b16 %v6766, %v6762
    %v7971 = vpack.c.b16 %v6767, %v6763
    %v7972 = vpack.c.b16 %v6768, %v6764
    %v7973 = vpack.c.b16 %v6769, %v6765
    %v7974 = vpack.c.b16 %v6774, %v6770
    %v7975 = vpack.c.b16 %v6775, %v6771
    %v7976 = vpack.c.b16 %v6776, %v6772
    %v7977 = vpack.c.b16 %v6777, %v6773
    %v7978 = vpack.c.b16 %v6782, %v6778
    %v7979 = vpack.c.b16 %v6783, %v6779
    %v7980 = vpack.c.b16 %v6784, %v6780
    %v7981 = vpack.c.b16 %v6785, %v6781
    %v7982 = vpack.c.b16 %v6790, %v6786
    %v7983 = vpack.c.b16 %v6791, %v6787
    %v7984 = vpack.c.b16 %v6792, %v6788
    %v7985 = vpack.c.b16 %v6793, %v6789
    %v7986 = vpack.c.b16 %v6798, %v6794
    %v7987 = vpack.c.b16 %v6799, %v6795
    %v7988 = vpack.c.b16 %v6800, %v6796
    %v7989 = vpack.c.b16 %v6801, %v6797
    %v7990 = vpack.c.b16 %v6806, %v6802
    %v7991 = vpack.c.b16 %v6807, %v6803
    %v7992 = vpack.c.b16 %v6808, %v6804
    %v7993 = vpack.c.b16 %v6809, %v6805
    %v7994 = vpack.c.b16 %v6814, %v6810
    %v7995 = vpack.c.b16 %v6815, %v6811
    %v7996 = vpack.c.b16 %v6816, %v6812
    %v7997 = vpack.c.b16 %v6817, %v6813
    %v7998 = vpack.c.b16 %v6822, %v6818
    %v7999 = vpack.c.b16 %v6823, %v6819
    %v8000 = vpack.c.b16 %v6824, %v6820
    %v8001 = vpack.c.b16 %v6825, %v6821
    %v8002 = vpack.c.b16 %v6830, %v6826
    %v8003 = vpack.c.b16 %v6831, %v6827
    %v8004 = vpack.c.b16 %v6832, %v6828
    %v8005 = vpack.c.b16 %v6833, %v6829
    %v8006 = vpack.c.b16 %v6838, %v6834
    %v8007 = vpack.c.b16 %v6839, %v6835
    %v8008 = vpack.c.b16 %v6840, %v6836
    %v8009 = vpack.c.b16 %v6841, %v6837
    %v8010 = vpack.c.b16 %v6846, %v6842
    %v8011 = vpack.c.b16 %v6847, %v6843
    %v8012 = vpack.c.b16 %v6848, %v6844
    %v8013 = vpack.c.b16 %v6849, %v6845
    %v8014 = vpack.c.b16 %v6854, %v6850
    %v8015 = vpack.c.b16 %v6855, %v6851
    %v8016 = vpack.c.b16 %v6856, %v6852
    %v8017 = vpack.c.b16 %v6857, %v6853
    %v8018 = vpack.c.b16 %v6862, %v6858
    %v8019 = vpack.c.b16 %v6863, %v6859
    %v8020 = vpack.c.b16 %v6864, %v6860
    %v8021 = vpack.c.b16 %v6865, %v6861
    %v8022 = vpack.c.b16 %v6870, %v6866
    %v8023 = vpack.c.b16 %v6871, %v6867
    %v8024 = vpack.c.b16 %v6872, %v6868
    %v8025 = vpack.c.b16 %v6873, %v6869
    %v8026 = vpack.c.b16 %v6878, %v6874
    %v8027 = vpack.c.b16 %v6879, %v6875
    %v8028 = vpack.c.b16 %v6880, %v6876
    %v8029 = vpack.c.b16 %v6881, %v6877
    %v8030 = vpack.c.b16 %v6886, %v6882
    %v8031 = vpack.c.b16 %v6887, %v6883
    %v8032 = vpack.c.b16 %v6888, %v6884
    %v8033 = vpack.c.b16 %v6889, %v6885
    %v8034 = vpack.c.b16 %v6894, %v6890
    %v8035 = vpack.c.b16 %v6895, %v6891
    %v8036 = vpack.c.b16 %v6896, %v6892
    %v8037 = vpack.c.b16 %v6897, %v6893
    %v8038 = vpack.c.b16 %v6902, %v6898
    %v8039 = vpack.c.b16 %v6903, %v6899
    %v8040 = vpack.c.b16 %v6904, %v6900
    %v8041 = vpack.c.b16 %v6905, %v6901
    %v8042 = vpack.c.b16 %v6910, %v6906
    %v8043 = vpack.c.b16 %v6911, %v6907
    %v8044 = vpack.c.b16 %v6912, %v6908
    %v8045 = vpack.c.b16 %v6913, %v6909
    %v8046 = vpack.c.b16 %v6918, %v6914
    %v8047 = vpack.c.b16 %v6919, %v6915
    %v8048 = vpack.c.b16 %v6920, %v6916
    %v8049 = vpack.c.b16 %v6921, %v6917
    %v8050 = vpack.c.b16 %v6926, %v6922
    %v8051 = vpack.c.b16 %v6927, %v6923
    %v8052 = vpack.c.b16 %v6928, %v6924
    %v8053 = vpack.c.b16 %v6929, %v6925
    %v8054 = vpack.c.b16 %v6934, %v6930
    %v8055 = vpack.c.b16 %v6935, %v6931
    %v8056 = vpack.c.b16 %v6936, %v6932
    %v8057 = vpack.c.b16 %v6937, %v6933
    %v8058 = vpack.c.b16 %v6942, %v6938
    %v8059 = vpack.c.b16 %v6943, %v6939
    %v8060 = vpack.c.b16 %v6944, %v6940
    %v8061 = vpack.c.b16 %v6945, %v6941
    %v8062 = vpack.c.b16 %v6950, %v6946
    %v8063 = vpack.c.b16 %v6951, %v6947
    %v8064 = vpack.c.b16 %v6952, %v6948
    %v8065 = vpack.c.b16 %v6953, %v6949
    %v8066 = vpack.c.b16 %v6958, %v6954
    %v8067 = vpack.c.b16 %v6959, %v6955
    %v8068 = vpack.c.b16 %v6960, %v6956
    %v8069 = vpack.c.b16 %v6961, %v6957
    %v8070 = vpack.c.b16 %v6966, %v6962
    %v8071 = vpack.c.b16 %v6967, %v6963
    %v8072 = vpack.c.b16 %v6968, %v6964
    %v8073 = vpack.c.b16 %v6969, %v6965
    %v8074 = vpack.c.b16 %v6974, %v6970
    %v8075 = vpack.c.b16 %v6975, %v6971
    %v8076 = vpack.c.b16 %v6976, %v6972
    %v8077 = vpack.c.b16 %v6977, %v6973
    %v8078 = vpack.c.b16 %v6982, %v6978
    %v8079 = vpack.c.b16 %v6983, %v6979
    %v8080 = vpack.c.b16 %v6984, %v6980
    %v8081 = vpack.c.b16 %v6985, %v6981
    %v8082 = vpack.c.b16 %v6990, %v6986
    %v8083 = vpack.c.b16 %v6991, %v6987
    %v8084 = vpack.c.b16 %v6992, %v6988
    %v8085 = vpack.c.b16 %v6993, %v6989
    %v8086 = vpack.c.b16 %v6998, %v6994
    %v8087 = vpack.c.b16 %v6999, %v6995
    %v8088 = vpack.c.b16 %v7000, %v6996
    %v8089 = vpack.c.b16 %v7001, %v6997
    %v8090 = vpack.c.b16 %v7006, %v7002
    %v8091 = vpack.c.b16 %v7007, %v7003
    %v8092 = vpack.c.b16 %v7008, %v7004
    %v8093 = vpack.c.b16 %v7009, %v7005
    %v8094 = vpack.c.b16 %v7014, %v7010
    %v8095 = vpack.c.b16 %v7015, %v7011
    %v8096 = vpack.c.b16 %v7016, %v7012
    %v8097 = vpack.c.b16 %v7017, %v7013
    %v8098 = vpack.c.b16 %v7022, %v7018
    %v8099 = vpack.c.b16 %v7023, %v7019
    %v8100 = vpack.c.b16 %v7024, %v7020
    %v8101 = vpack.c.b16 %v7025, %v7021
    %v8102 = vpack.c.b16 %v7030, %v7026
    %v8103 = vpack.c.b16 %v7031, %v7027
    %v8104 = vpack.c.b16 %v7032, %v7028
    %v8105 = vpack.c.b16 %v7033, %v7029
    %v8106 = vpack.c.b16 %v7038, %v7034
    %v8107 = vpack.c.b16 %v7039, %v7035
    %v8108 = vpack.c.b16 %v7040, %v7036
    %v8109 = vpack.c.b16 %v7041, %v7037
    %v8110 = vpack.c.b16 %v7046, %v7042
    %v8111 = vpack.c.b16 %v7047, %v7043
    %v8112 = vpack.c.b16 %v7048, %v7044
    %v8113 = vpack.c.b16 %v7049, %v7045
    %v8114 = vpack.c.b16 %v7054, %v7050
    %v8115 = vpack.c.b16 %v7055, %v7051
    %v8116 = vpack.c.b16 %v7056, %v7052
    %v8117 = vpack.c.b16 %v7057, %v7053
    %v8118 = vpack.c.b16 %v7062, %v7058
    %v8119 = vpack.c.b16 %v7063, %v7059
    %v8120 = vpack.c.b16 %v7064, %v7060
    %v8121 = vpack.c.b16 %v7065, %v7061
    %v8122 = vpack.c.b16 %v7070, %v7066
    %v8123 = vpack.c.b16 %v7071, %v7067
    %v8124 = vpack.c.b16 %v7072, %v7068
    %v8125 = vpack.c.b16 %v7073, %v7069
    %v8126 = vpack.c.b16 %v7078, %v7074
    %v8127 = vpack.c.b16 %v7079, %v7075
    %v8128 = vpack.c.b16 %v7080, %v7076
    %v8129 = vpack.c.b16 %v7081, %v7077
    %v8130 = vpack.c.b16 %v7086, %v7082
    %v8131 = vpack.c.b16 %v7087, %v7083
    %v8132 = vpack.c.b16 %v7088, %v7084
    %v8133 = vpack.c.b16 %v7089, %v7085
    %v8134 = vpack.c.b16 %v7094, %v7090
    %v8135 = vpack.c.b16 %v7095, %v7091
    %v8136 = vpack.c.b16 %v7096, %v7092
    %v8137 = vpack.c.b16 %v7097, %v7093
    %v8138 = vpack.c.b16 %v7102, %v7098
    %v8139 = vpack.c.b16 %v7103, %v7099
    %v8140 = vpack.c.b16 %v7104, %v7100
    %v8141 = vpack.c.b16 %v7105, %v7101
    %v8142 = vpack.c.b16 %v7110, %v7106
    %v8143 = vpack.c.b16 %v7111, %v7107
    %v8144 = vpack.c.b16 %v7112, %v7108
    %v8145 = vpack.c.b16 %v7113, %v7109
    %v8146 = vpack.c.b16 %v7118, %v7114
    %v8147 = vpack.c.b16 %v7119, %v7115
    %v8148 = vpack.c.b16 %v7120, %v7116
    %v8149 = vpack.c.b16 %v7121, %v7117
    %v8150 = vpack.c.b16 %v7126, %v7122
    %v8151 = vpack.c.b16 %v7127, %v7123
    %v8152 = vpack.c.b16 %v7128, %v7124
    %v8153 = vpack.c.b16 %v7129, %v7125
    %v8154 = vpack.c.b16 %v7134, %v7130
    %v8155 = vpack.c.b16 %v7135, %v7131
    %v8156 = vpack.c.b16 %v7136, %v7132
    %v8157 = vpack.c.b16 %v7137, %v7133
    %v8158 = vpack.c.b16 %v7142, %v7138
    %v8159 = vpack.c.b16 %v7143, %v7139
    %v8160 = vpack.c.b16 %v7144, %v7140
    %v8161 = vpack.c.b16 %v7145, %v7141
    %v8162 = vpack.c.b16 %v7150, %v7146
    %v8163 = vpack.c.b16 %v7151, %v7147
    %v8164 = vpack.c.b16 %v7152, %v7148
    %v8165 = vpack.c.b16 %v7153, %v7149
    %v8166 = vpack.c.b16 %v7158, %v7154
    %v8167 = vpack.c.b16 %v7159, %v7155
    %v8168 = vpack.c.b16 %v7160, %v7156
    %v8169 = vpack.c.b16 %v7161, %v7157
    %v8170 = vpack.c.b16 %v7166, %v7162
    %v8171 = vpack.c.b16 %v7167, %v7163
    %v8172 = vpack.c.b16 %v7168, %v7164
    %v8173 = vpack.c.b16 %v7169, %v7165
    %v8174 = vpack.c.b16 %v7174, %v7170
    %v8175 = vpack.c.b16 %v7175, %v7171
    %v8176 = vpack.c.b16 %v7176, %v7172
    %v8177 = vpack.c.b16 %v7177, %v7173
    %v8178 = vpack.c.b16 %v7182, %v7178
    %v8179 = vpack.c.b16 %v7183, %v7179
    %v8180 = vpack.c.b16 %v7184, %v7180
    %v8181 = vpack.c.b16 %v7185, %v7181
    %v8182 = vpack.c.b16 %v7190, %v7186
    %v8183 = vpack.c.b16 %v7191, %v7187
    %v8184 = vpack.c.b16 %v7192, %v7188
    %v8185 = vpack.c.b16 %v7193, %v7189
    %v8186 = vpack.c.b16 %v7198, %v7194
    %v8187 = vpack.c.b16 %v7199, %v7195
    %v8188 = vpack.c.b16 %v7200, %v7196
    %v8189 = vpack.c.b16 %v7201, %v7197
    %v8190 = vpack.c.b16 %v7206, %v7202
    %v8191 = vpack.c.b16 %v7207, %v7203
    %v8192 = vpack.c.b16 %v7208, %v7204
    %v8193 = vpack.c.b16 %v7209, %v7205
    %v8194 = vpack.c.b16 %v7214, %v7210
    %v8195 = vpack.c.b16 %v7215, %v7211
    %v8196 = vpack.c.b16 %v7216, %v7212
    %v8197 = vpack.c.b16 %v7217, %v7213
    %v8198 = vpack.c.b16 %v7222, %v7218
    %v8199 = vpack.c.b16 %v7223, %v7219
    %v8200 = vpack.c.b16 %v7224, %v7220
    %v8201 = vpack.c.b16 %v7225, %v7221
    %v8202 = vpack.c.b16 %v7230, %v7226
    %v8203 = vpack.c.b16 %v7231, %v7227
    %v8204 = vpack.c.b16 %v7232, %v7228
    %v8205 = vpack.c.b16 %v7233, %v7229
    %v8206 = vpack.c.b16 %v7238, %v7234
    %v8207 = vpack.c.b16 %v7239, %v7235
    %v8208 = vpack.c.b16 %v7240, %v7236
    %v8209 = vpack.c.b16 %v7241, %v7237
    %v8210 = vpack.c.b16 %v7246, %v7242
    %v8211 = vpack.c.b16 %v7247, %v7243
    %v8212 = vpack.c.b16 %v7248, %v7244
    %v8213 = vpack.c.b16 %v7249, %v7245
    %v8214 = vpack.c.b16 %v7254, %v7250
    %v8215 = vpack.c.b16 %v7255, %v7251
    %v8216 = vpack.c.b16 %v7256, %v7252
    %v8217 = vpack.c.b16 %v7257, %v7253
    %v8218 = vpack.c.b16 %v7262, %v7258
    %v8219 = vpack.c.b16 %v7263, %v7259
    %v8220 = vpack.c.b16 %v7264, %v7260
    %v8221 = vpack.c.b16 %v7265, %v7261
    %v8222 = vpack.c.b16 %v7270, %v7266
    %v8223 = vpack.c.b16 %v7271, %v7267
    %v8224 = vpack.c.b16 %v7272, %v7268
    %v8225 = vpack.c.b16 %v7273, %v7269
    %v8226 = vpack.c.b16 %v7278, %v7274
    %v8227 = vpack.c.b16 %v7279, %v7275
    %v8228 = vpack.c.b16 %v7280, %v7276
    %v8229 = vpack.c.b16 %v7281, %v7277
    %v8230 = vpack.c.b16 %v7286, %v7282
    %v8231 = vpack.c.b16 %v7287, %v7283
    %v8232 = vpack.c.b16 %v7288, %v7284
    %v8233 = vpack.c.b16 %v7289, %v7285
    %v8234 = vpack.c.b16 %v7294, %v7290
    %v8235 = vpack.c.b16 %v7295, %v7291
    %v8236 = vpack.c.b16 %v7296, %v7292
    %v8237 = vpack.c.b16 %v7297, %v7293
    %v8238 = vpack.c.b16 %v7302, %v7298
    %v8239 = vpack.c.b16 %v7303, %v7299
    %v8240 = vpack.c.b16 %v7304, %v7300
    %v8241 = vpack.c.b16 %v7305, %v7301
    %v8242 = vpack.c.b16 %v7310, %v7306
    %v8243 = vpack.c.b16 %v7311, %v7307
    %v8244 = vpack.c.b16 %v7312, %v7308
    %v8245 = vpack.c.b16 %v7313, %v7309
    %v8246 = vpack.c.b16 %v7318, %v7314
    %v8247 = vpack.c.b16 %v7319, %v7315
    %v8248 = vpack.c.b16 %v7320, %v7316
    %v8249 = vpack.c.b16 %v7321, %v7317
    %v8250 = vpack.c.b16 %v7326, %v7322
    %v8251 = vpack.c.b16 %v7327, %v7323
    %v8252 = vpack.c.b16 %v7328, %v7324
    %v8253 = vpack.c.b16 %v7329, %v7325
    %v8254 = vpack.c.b16 %v7334, %v7330
    %v8255 = vpack.c.b16 %v7335, %v7331
    %v8256 = vpack.c.b16 %v7336, %v7332
    %v8257 = vpack.c.b16 %v7337, %v7333
    %v8258 = vpack.c.b16 %v7342, %v7338
    %v8259 = vpack.c.b16 %v7343, %v7339
    %v8260 = vpack.c.b16 %v7344, %v7340
    %v8261 = vpack.c.b16 %v7345, %v7341
    %v8262 = vpack.c.b16 %v7350, %v7346
    %v8263 = vpack.c.b16 %v7351, %v7347
    %v8264 = vpack.c.b16 %v7352, %v7348
    %v8265 = vpack.c.b16 %v7353, %v7349
    %v8266 = vpack.c.b16 %v7358, %v7354
    %v8267 = vpack.c.b16 %v7359, %v7355
    %v8268 = vpack.c.b16 %v7360, %v7356
    %v8269 = vpack.c.b16 %v7361, %v7357
    %v8270 = vpack.c.b16 %v7366, %v7362
    %v8271 = vpack.c.b16 %v7367, %v7363
    %v8272 = vpack.c.b16 %v7368, %v7364
    %v8273 = vpack.c.b16 %v7369, %v7365
    %v8274 = vpack.c.b16 %v7374, %v7370
    %v8275 = vpack.c.b16 %v7375, %v7371
    %v8276 = vpack.c.b16 %v7376, %v7372
    %v8277 = vpack.c.b16 %v7377, %v7373
    %v8278 = vpack.c.b16 %v7382, %v7378
    %v8279 = vpack.c.b16 %v7383, %v7379
    %v8280 = vpack.c.b16 %v7384, %v7380
    %v8281 = vpack.c.b16 %v7385, %v7381
    %9178 = vmatpush.bf16.msra.mxu0 %v7414
    %9179 = vmatpush.bf16.msra.mxu0 %v7410
    %9180 = vmatpush.bf16.msra.mxu0 %v7406
    %9181 = vmatpush.bf16.msra.mxu0 %v7402
    %9182 = vmatpush.bf16.msra.mxu0 %v7398
    %9183 = vmatpush.bf16.msra.mxu0 %v7394
    %9184 = vmatpush.bf16.msra.mxu0 %v7390
    %9185 = vmatpush.bf16.msra.mxu0 %v7386
    %9186 = vmatmul.bf16.gmra.mxu0 %v3774
    %v9187 = vpop.f32.mrf.mxu0
    %v9188 = vadd.f32 0.0, %v9187
    %v9189 = vpop.f32.mrf.mxu0
    %9190 = vdwg.mxu0
    %9191 = vmatpush.bf16.msra.mxu0 %v7446
    %9192 = vmatpush.bf16.msra.mxu0 %v7442
    %9193 = vmatpush.bf16.msra.mxu0 %v7438
    %9194 = vmatpush.bf16.msra.mxu0 %v7434
    %9195 = vmatpush.bf16.msra.mxu0 %v7430
    %9196 = vmatpush.bf16.msra.mxu0 %v7426
    %9197 = vmatpush.bf16.msra.mxu0 %v7422
    %9198 = vmatpush.bf16.msra.mxu0 %v7418
    %9199 = vmatmul.bf16.gmra.mxu0 %v3775
    %v9200 = vpop.f32.mrf.mxu0
    %v9201 = vadd.f32 %v9188, %v9200
    %v9202 = vpop.f32.mrf.mxu0
    %9203 = vdwg.mxu0
    %9204 = vmatpush.bf16.msra.mxu0 %v7478
    %9205 = vmatpush.bf16.msra.mxu0 %v7474
    %9206 = vmatpush.bf16.msra.mxu0 %v7470
    %9207 = vmatpush.bf16.msra.mxu0 %v7466
    %9208 = vmatpush.bf16.msra.mxu0 %v7462
    %9209 = vmatpush.bf16.msra.mxu0 %v7458
    %9210 = vmatpush.bf16.msra.mxu0 %v7454
    %9211 = vmatpush.bf16.msra.mxu0 %v7450
    %9212 = vmatmul.bf16.gmra.mxu0 %v3776
    %v9213 = vpop.f32.mrf.mxu0
    %v9214 = vadd.f32 %v9201, %v9213
    %v9215 = vpop.f32.mrf.mxu0
    %9216 = vdwg.mxu0
    %9217 = vmatpush.bf16.msra.mxu0 %v7510
    %9218 = vmatpush.bf16.msra.mxu0 %v7506
    %9219 = vmatpush.bf16.msra.mxu0 %v7502
    %9220 = vmatpush.bf16.msra.mxu0 %v7498
    %9221 = vmatpush.bf16.msra.mxu0 %v7494
    %9222 = vmatpush.bf16.msra.mxu0 %v7490
    %9223 = vmatpush.bf16.msra.mxu0 %v7486
    %9224 = vmatpush.bf16.msra.mxu0 %v7482
    %9225 = vmatmul.bf16.gmra.mxu0 %v3777
    %v9226 = vpop.f32.mrf.mxu0
    %v9227 = vadd.f32 %v9214, %v9226
    %v9228 = vpop.f32.mrf.mxu0
    %9229 = vdwg.mxu0
    %9230 = vmatpush.bf16.msra.mxu0 %v7542
    %9231 = vmatpush.bf16.msra.mxu0 %v7538
    %9232 = vmatpush.bf16.msra.mxu0 %v7534
    %9233 = vmatpush.bf16.msra.mxu0 %v7530
    %9234 = vmatpush.bf16.msra.mxu0 %v7526
    %9235 = vmatpush.bf16.msra.mxu0 %v7522
    %9236 = vmatpush.bf16.msra.mxu0 %v7518
    %9237 = vmatpush.bf16.msra.mxu0 %v7514
    %9238 = vmatmul.bf16.gmra.mxu0 %v3778
    %v9239 = vpop.f32.mrf.mxu0
    %v9240 = vadd.f32 %v9227, %v9239
    %v9241 = vpop.f32.mrf.mxu0
    %9242 = vdwg.mxu0
    %9243 = vmatpush.bf16.msra.mxu0 %v7574
    %9244 = vmatpush.bf16.msra.mxu0 %v7570
    %9245 = vmatpush.bf16.msra.mxu0 %v7566
    %9246 = vmatpush.bf16.msra.mxu0 %v7562
    %9247 = vmatpush.bf16.msra.mxu0 %v7558
    %9248 = vmatpush.bf16.msra.mxu0 %v7554
    %9249 = vmatpush.bf16.msra.mxu0 %v7550
    %9250 = vmatpush.bf16.msra.mxu0 %v7546
    %9251 = vmatmul.bf16.gmra.mxu0 %v3779
    %v9252 = vpop.f32.mrf.mxu0
    %v9253 = vadd.f32 %v9240, %v9252
    %v9254 = vpop.f32.mrf.mxu0
    %9255 = vdwg.mxu0
    %9256 = vmatpush.bf16.msra.mxu0 %v7606
    %9257 = vmatpush.bf16.msra.mxu0 %v7602
    %9258 = vmatpush.bf16.msra.mxu0 %v7598
    %9259 = vmatpush.bf16.msra.mxu0 %v7594
    %9260 = vmatpush.bf16.msra.mxu0 %v7590
    %9261 = vmatpush.bf16.msra.mxu0 %v7586
    %9262 = vmatpush.bf16.msra.mxu0 %v7582
    %9263 = vmatpush.bf16.msra.mxu0 %v7578
    %9264 = vmatmul.bf16.gmra.mxu0 %v3780
    %v9265 = vpop.f32.mrf.mxu0
    %v9266 = vadd.f32 %v9253, %v9265
    %v9267 = vpop.f32.mrf.mxu0
    %9268 = vdwg.mxu0
    %9269 = vmatpush.bf16.msra.mxu0 %v7638
    %9270 = vmatpush.bf16.msra.mxu0 %v7634
    %9271 = vmatpush.bf16.msra.mxu0 %v7630
    %9272 = vmatpush.bf16.msra.mxu0 %v7626
    %9273 = vmatpush.bf16.msra.mxu0 %v7622
    %9274 = vmatpush.bf16.msra.mxu0 %v7618
    %9275 = vmatpush.bf16.msra.mxu0 %v7614
    %9276 = vmatpush.bf16.msra.mxu0 %v7610
    %9277 = vmatmul.bf16.gmra.mxu0 %v3781
    %v9278 = vpop.f32.mrf.mxu0
    %v9279 = vadd.f32 %v9266, %v9278
    %v9280 = vpop.f32.mrf.mxu0
    %9281 = vdwg.mxu0
    %9282 = vmatpush.bf16.msra.mxu0 %v7670
    %9283 = vmatpush.bf16.msra.mxu0 %v7666
    %9284 = vmatpush.bf16.msra.mxu0 %v7662
    %9285 = vmatpush.bf16.msra.mxu0 %v7658
    %9286 = vmatpush.bf16.msra.mxu0 %v7654
    %9287 = vmatpush.bf16.msra.mxu0 %v7650
    %9288 = vmatpush.bf16.msra.mxu0 %v7646
    %9289 = vmatpush.bf16.msra.mxu0 %v7642
    %9290 = vmatmul.bf16.gmra.mxu0 %v3782
    %v9291 = vpop.f32.mrf.mxu0
    %v9292 = vadd.f32 %v9279, %v9291
    %v9293 = vpop.f32.mrf.mxu0
    %9294 = vdwg.mxu0
    %9295 = vmatpush.bf16.msra.mxu0 %v7702
    %9296 = vmatpush.bf16.msra.mxu0 %v7698
    %9297 = vmatpush.bf16.msra.mxu0 %v7694
    %9298 = vmatpush.bf16.msra.mxu0 %v7690
    %9299 = vmatpush.bf16.msra.mxu0 %v7686
    %9300 = vmatpush.bf16.msra.mxu0 %v7682
    %9301 = vmatpush.bf16.msra.mxu0 %v7678
    %9302 = vmatpush.bf16.msra.mxu0 %v7674
    %9303 = vmatmul.bf16.gmra.mxu0 %v3783
    %v9304 = vpop.f32.mrf.mxu0
    %v9305 = vadd.f32 %v9292, %v9304
    %v9306 = vpop.f32.mrf.mxu0
    %9307 = vdwg.mxu0
    %9308 = vmatpush.bf16.msra.mxu0 %v7734
    %9309 = vmatpush.bf16.msra.mxu0 %v7730
    %9310 = vmatpush.bf16.msra.mxu0 %v7726
    %9311 = vmatpush.bf16.msra.mxu0 %v7722
    %9312 = vmatpush.bf16.msra.mxu0 %v7718
    %9313 = vmatpush.bf16.msra.mxu0 %v7714
    %9314 = vmatpush.bf16.msra.mxu0 %v7710
    %9315 = vmatpush.bf16.msra.mxu0 %v7706
    %9316 = vmatmul.bf16.gmra.mxu0 %v3784
    %v9317 = vpop.f32.mrf.mxu0
    %v9318 = vadd.f32 %v9305, %v9317
    %v9319 = vpop.f32.mrf.mxu0
    %9320 = vdwg.mxu0
    %9321 = vmatpush.bf16.msra.mxu0 %v7766
    %9322 = vmatpush.bf16.msra.mxu0 %v7762
    %9323 = vmatpush.bf16.msra.mxu0 %v7758
    %9324 = vmatpush.bf16.msra.mxu0 %v7754
    %9325 = vmatpush.bf16.msra.mxu0 %v7750
    %9326 = vmatpush.bf16.msra.mxu0 %v7746
    %9327 = vmatpush.bf16.msra.mxu0 %v7742
    %9328 = vmatpush.bf16.msra.mxu0 %v7738
    %9329 = vmatmul.bf16.gmra.mxu0 %v3785
    %v9330 = vpop.f32.mrf.mxu0
    %v9331 = vadd.f32 %v9318, %v9330
    %v9332 = vpop.f32.mrf.mxu0
    %9333 = vdwg.mxu0
    %9334 = vmatpush.bf16.msra.mxu0 %v7798
    %9335 = vmatpush.bf16.msra.mxu0 %v7794
    %9336 = vmatpush.bf16.msra.mxu0 %v7790
    %9337 = vmatpush.bf16.msra.mxu0 %v7786
    %9338 = vmatpush.bf16.msra.mxu0 %v7782
    %9339 = vmatpush.bf16.msra.mxu0 %v7778
    %9340 = vmatpush.bf16.msra.mxu0 %v7774
    %9341 = vmatpush.bf16.msra.mxu0 %v7770
    %9342 = vmatmul.bf16.gmra.mxu0 %v3786
    %v9343 = vpop.f32.mrf.mxu0
    %v9344 = vadd.f32 %v9331, %v9343
    %v9345 = vpop.f32.mrf.mxu0
    %9346 = vdwg.mxu0
    %9347 = vmatpush.bf16.msra.mxu0 %v7830
    %9348 = vmatpush.bf16.msra.mxu0 %v7826
    %9349 = vmatpush.bf16.msra.mxu0 %v7822
    %9350 = vmatpush.bf16.msra.mxu0 %v7818
    %9351 = vmatpush.bf16.msra.mxu0 %v7814
    %9352 = vmatpush.bf16.msra.mxu0 %v7810
    %9353 = vmatpush.bf16.msra.mxu0 %v7806
    %9354 = vmatpush.bf16.msra.mxu0 %v7802
    %9355 = vmatmul.bf16.gmra.mxu0 %v3787
    %v9356 = vpop.f32.mrf.mxu0
    %v9357 = vadd.f32 %v9344, %v9356
    %v9358 = vpop.f32.mrf.mxu0
    %9359 = vdwg.mxu0
    %9360 = vmatpush.bf16.msra.mxu0 %v7862
    %9361 = vmatpush.bf16.msra.mxu0 %v7858
    %9362 = vmatpush.bf16.msra.mxu0 %v7854
    %9363 = vmatpush.bf16.msra.mxu0 %v7850
    %9364 = vmatpush.bf16.msra.mxu0 %v7846
    %9365 = vmatpush.bf16.msra.mxu0 %v7842
    %9366 = vmatpush.bf16.msra.mxu0 %v7838
    %9367 = vmatpush.bf16.msra.mxu0 %v7834
    %9368 = vmatmul.bf16.gmra.mxu0 %v3788
    %v9369 = vpop.f32.mrf.mxu0
    %v9370 = vadd.f32 %v9357, %v9369
    %v9371 = vpop.f32.mrf.mxu0
    %9372 = vdwg.mxu0
    %9373 = vmatpush.bf16.msra.mxu0 %v7894
    %9374 = vmatpush.bf16.msra.mxu0 %v7890
    %9375 = vmatpush.bf16.msra.mxu0 %v7886
    %9376 = vmatpush.bf16.msra.mxu0 %v7882
    %9377 = vmatpush.bf16.msra.mxu0 %v7878
    %9378 = vmatpush.bf16.msra.mxu0 %v7874
    %9379 = vmatpush.bf16.msra.mxu0 %v7870
    %9380 = vmatpush.bf16.msra.mxu0 %v7866
    %9381 = vmatmul.bf16.gmra.mxu0 %v3789
    %v9382 = vpop.f32.mrf.mxu0
    %v9383 = vadd.f32 %v9370, %v9382
    %v9384 = vpop.f32.mrf.mxu0
    %9385 = vdwg.mxu0
    %9386 = vmatpush.bf16.msra.mxu0 %v7926
    %9387 = vmatpush.bf16.msra.mxu0 %v7922
    %9388 = vmatpush.bf16.msra.mxu0 %v7918
    %9389 = vmatpush.bf16.msra.mxu0 %v7914
    %9390 = vmatpush.bf16.msra.mxu0 %v7910
    %9391 = vmatpush.bf16.msra.mxu0 %v7906
    %9392 = vmatpush.bf16.msra.mxu0 %v7902
    %9393 = vmatpush.bf16.msra.mxu0 %v7898
    %9394 = vmatmul.bf16.gmra.mxu0 %v3790
    %v9395 = vpop.f32.mrf.mxu0
    %v9396 = vadd.f32 %v9383, %v9395
    %v9397 = vpop.f32.mrf.mxu0
    %9398 = vdwg.mxu0
    %9399 = vmatpush.bf16.msra.mxu0 %v7958
    %9400 = vmatpush.bf16.msra.mxu0 %v7954
    %9401 = vmatpush.bf16.msra.mxu0 %v7950
    %9402 = vmatpush.bf16.msra.mxu0 %v7946
    %9403 = vmatpush.bf16.msra.mxu0 %v7942
    %9404 = vmatpush.bf16.msra.mxu0 %v7938
    %9405 = vmatpush.bf16.msra.mxu0 %v7934
    %9406 = vmatpush.bf16.msra.mxu0 %v7930
    %9407 = vmatmul.bf16.gmra.mxu0 %v3791
    %v9408 = vpop.f32.mrf.mxu0
    %v9409 = vadd.f32 %v9396, %v9408
    %v9410 = vpop.f32.mrf.mxu0
    %9411 = vdwg.mxu0
    %9412 = vmatpush.bf16.msra.mxu0 %v7990
    %9413 = vmatpush.bf16.msra.mxu0 %v7986
    %9414 = vmatpush.bf16.msra.mxu0 %v7982
    %9415 = vmatpush.bf16.msra.mxu0 %v7978
    %9416 = vmatpush.bf16.msra.mxu0 %v7974
    %9417 = vmatpush.bf16.msra.mxu0 %v7970
    %9418 = vmatpush.bf16.msra.mxu0 %v7966
    %9419 = vmatpush.bf16.msra.mxu0 %v7962
    %9420 = vmatmul.bf16.gmra.mxu0 %v3792
    %v9421 = vpop.f32.mrf.mxu0
    %v9422 = vadd.f32 %v9409, %v9421
    %v9423 = vpop.f32.mrf.mxu0
    %9424 = vdwg.mxu0
    %9425 = vmatpush.bf16.msra.mxu0 %v8022
    %9426 = vmatpush.bf16.msra.mxu0 %v8018
    %9427 = vmatpush.bf16.msra.mxu0 %v8014
    %9428 = vmatpush.bf16.msra.mxu0 %v8010
    %9429 = vmatpush.bf16.msra.mxu0 %v8006
    %9430 = vmatpush.bf16.msra.mxu0 %v8002
    %9431 = vmatpush.bf16.msra.mxu0 %v7998
    %9432 = vmatpush.bf16.msra.mxu0 %v7994
    %9433 = vmatmul.bf16.gmra.mxu0 %v3793
    %v9434 = vpop.f32.mrf.mxu0
    %v9435 = vadd.f32 %v9422, %v9434
    %v9436 = vpop.f32.mrf.mxu0
    %9437 = vdwg.mxu0
    %9438 = vmatpush.bf16.msra.mxu0 %v8054
    %9439 = vmatpush.bf16.msra.mxu0 %v8050
    %9440 = vmatpush.bf16.msra.mxu0 %v8046
    %9441 = vmatpush.bf16.msra.mxu0 %v8042
    %9442 = vmatpush.bf16.msra.mxu0 %v8038
    %9443 = vmatpush.bf16.msra.mxu0 %v8034
    %9444 = vmatpush.bf16.msra.mxu0 %v8030
    %9445 = vmatpush.bf16.msra.mxu0 %v8026
    %9446 = vmatmul.bf16.gmra.mxu0 %v3794
    %v9447 = vpop.f32.mrf.mxu0
    %v9448 = vadd.f32 %v9435, %v9447
    %v9449 = vpop.f32.mrf.mxu0
    %9450 = vdwg.mxu0
    %9451 = vmatpush.bf16.msra.mxu0 %v8086
    %9452 = vmatpush.bf16.msra.mxu0 %v8082
    %9453 = vmatpush.bf16.msra.mxu0 %v8078
    %9454 = vmatpush.bf16.msra.mxu0 %v8074
    %9455 = vmatpush.bf16.msra.mxu0 %v8070
    %9456 = vmatpush.bf16.msra.mxu0 %v8066
    %9457 = vmatpush.bf16.msra.mxu0 %v8062
    %9458 = vmatpush.bf16.msra.mxu0 %v8058
    %9459 = vmatmul.bf16.gmra.mxu0 %v3795
    %v9460 = vpop.f32.mrf.mxu0
    %v9461 = vadd.f32 %v9448, %v9460
    %v9462 = vpop.f32.mrf.mxu0
    %9463 = vdwg.mxu0
    %9464 = vmatpush.bf16.msra.mxu0 %v8118
    %9465 = vmatpush.bf16.msra.mxu0 %v8114
    %9466 = vmatpush.bf16.msra.mxu0 %v8110
    %9467 = vmatpush.bf16.msra.mxu0 %v8106
    %9468 = vmatpush.bf16.msra.mxu0 %v8102
    %9469 = vmatpush.bf16.msra.mxu0 %v8098
    %9470 = vmatpush.bf16.msra.mxu0 %v8094
    %9471 = vmatpush.bf16.msra.mxu0 %v8090
    %9472 = vmatmul.bf16.gmra.mxu0 %v3796
    %v9473 = vpop.f32.mrf.mxu0
    %v9474 = vadd.f32 %v9461, %v9473
    %v9475 = vpop.f32.mrf.mxu0
    %9476 = vdwg.mxu0
    %9477 = vmatpush.bf16.msra.mxu0 %v8150
    %9478 = vmatpush.bf16.msra.mxu0 %v8146
    %9479 = vmatpush.bf16.msra.mxu0 %v8142
    %9480 = vmatpush.bf16.msra.mxu0 %v8138
    %9481 = vmatpush.bf16.msra.mxu0 %v8134
    %9482 = vmatpush.bf16.msra.mxu0 %v8130
    %9483 = vmatpush.bf16.msra.mxu0 %v8126
    %9484 = vmatpush.bf16.msra.mxu0 %v8122
    %9485 = vmatmul.bf16.gmra.mxu0 %v3797
    %v9486 = vpop.f32.mrf.mxu0
    %v9487 = vadd.f32 %v9474, %v9486
    %v9488 = vpop.f32.mrf.mxu0
    %9489 = vdwg.mxu0
    %9490 = vmatpush.bf16.msra.mxu0 %v8182
    %9491 = vmatpush.bf16.msra.mxu0 %v8178
    %9492 = vmatpush.bf16.msra.mxu0 %v8174
    %9493 = vmatpush.bf16.msra.mxu0 %v8170
    %9494 = vmatpush.bf16.msra.mxu0 %v8166
    %9495 = vmatpush.bf16.msra.mxu0 %v8162
    %9496 = vmatpush.bf16.msra.mxu0 %v8158
    %9497 = vmatpush.bf16.msra.mxu0 %v8154
    %9498 = vmatmul.bf16.gmra.mxu0 %v3798
    %v9499 = vpop.f32.mrf.mxu0
    %v9500 = vadd.f32 %v9487, %v9499
    %v9501 = vpop.f32.mrf.mxu0
    %9502 = vdwg.mxu0
    %9503 = vmatpush.bf16.msra.mxu0 %v8214
    %9504 = vmatpush.bf16.msra.mxu0 %v8210
    %9505 = vmatpush.bf16.msra.mxu0 %v8206
    %9506 = vmatpush.bf16.msra.mxu0 %v8202
    %9507 = vmatpush.bf16.msra.mxu0 %v8198
    %9508 = vmatpush.bf16.msra.mxu0 %v8194
    %9509 = vmatpush.bf16.msra.mxu0 %v8190
    %9510 = vmatpush.bf16.msra.mxu0 %v8186
    %9511 = vmatmul.bf16.gmra.mxu0 %v3799
    %v9512 = vpop.f32.mrf.mxu0
    %v9513 = vadd.f32 %v9500, %v9512
    %v9514 = vpop.f32.mrf.mxu0
    %9515 = vdwg.mxu0
    %9516 = vmatpush.bf16.msra.mxu0 %v8246
    %9517 = vmatpush.bf16.msra.mxu0 %v8242
    %9518 = vmatpush.bf16.msra.mxu0 %v8238
    %9519 = vmatpush.bf16.msra.mxu0 %v8234
    %9520 = vmatpush.bf16.msra.mxu0 %v8230
    %9521 = vmatpush.bf16.msra.mxu0 %v8226
    %9522 = vmatpush.bf16.msra.mxu0 %v8222
    %9523 = vmatpush.bf16.msra.mxu0 %v8218
    %9524 = vmatmul.bf16.gmra.mxu0 %v3800
    %v9525 = vpop.f32.mrf.mxu0
    %v9526 = vadd.f32 %v9513, %v9525
    %v9527 = vpop.f32.mrf.mxu0
    %9528 = vdwg.mxu0
    %9529 = vmatpush.bf16.msra.mxu0 %v8278
    %9530 = vmatpush.bf16.msra.mxu0 %v8274
    %9531 = vmatpush.bf16.msra.mxu0 %v8270
    %9532 = vmatpush.bf16.msra.mxu0 %v8266
    %9533 = vmatpush.bf16.msra.mxu0 %v8262
    %9534 = vmatpush.bf16.msra.mxu0 %v8258
    %9535 = vmatpush.bf16.msra.mxu0 %v8254
    %9536 = vmatpush.bf16.msra.mxu0 %v8250
    %9537 = vmatmul.bf16.gmra.mxu0 %v3801
    %v9538 = vpop.f32.mrf.mxu0
    %v9539 = vadd.f32 %v9526, %v9538
    %v9540 = vpop.f32.mrf.mxu0
    %9541 = vdwg.mxu0
    %9542 = vmatpush.bf16.msra.mxu0 %v7415
    %9543 = vmatpush.bf16.msra.mxu0 %v7411
    %9544 = vmatpush.bf16.msra.mxu0 %v7407
    %9545 = vmatpush.bf16.msra.mxu0 %v7403
    %9546 = vmatpush.bf16.msra.mxu0 %v7399
    %9547 = vmatpush.bf16.msra.mxu0 %v7395
    %9548 = vmatpush.bf16.msra.mxu0 %v7391
    %9549 = vmatpush.bf16.msra.mxu0 %v7387
    %9550 = vmatmul.bf16.gmra.mxu0 %v3774
    %v9551 = vpop.f32.mrf.mxu0
    %v9552 = vadd.f32 0.0, %v9551
    %v9553 = vpop.f32.mrf.mxu0
    %9554 = vdwg.mxu0
    %9555 = vmatpush.bf16.msra.mxu0 %v7447
    %9556 = vmatpush.bf16.msra.mxu0 %v7443
    %9557 = vmatpush.bf16.msra.mxu0 %v7439
    %9558 = vmatpush.bf16.msra.mxu0 %v7435
    %9559 = vmatpush.bf16.msra.mxu0 %v7431
    %9560 = vmatpush.bf16.msra.mxu0 %v7427
    %9561 = vmatpush.bf16.msra.mxu0 %v7423
    %9562 = vmatpush.bf16.msra.mxu0 %v7419
    %9563 = vmatmul.bf16.gmra.mxu0 %v3775
    %v9564 = vpop.f32.mrf.mxu0
    %v9565 = vadd.f32 %v9552, %v9564
    %v9566 = vpop.f32.mrf.mxu0
    %9567 = vdwg.mxu0
    %9568 = vmatpush.bf16.msra.mxu0 %v7479
    %9569 = vmatpush.bf16.msra.mxu0 %v7475
    %9570 = vmatpush.bf16.msra.mxu0 %v7471
    %9571 = vmatpush.bf16.msra.mxu0 %v7467
    %9572 = vmatpush.bf16.msra.mxu0 %v7463
    %9573 = vmatpush.bf16.msra.mxu0 %v7459
    %9574 = vmatpush.bf16.msra.mxu0 %v7455
    %9575 = vmatpush.bf16.msra.mxu0 %v7451
    %9576 = vmatmul.bf16.gmra.mxu0 %v3776
    %v9577 = vpop.f32.mrf.mxu0
    %v9578 = vadd.f32 %v9565, %v9577
    %v9579 = vpop.f32.mrf.mxu0
    %9580 = vdwg.mxu0
    %9581 = vmatpush.bf16.msra.mxu0 %v7511
    %9582 = vmatpush.bf16.msra.mxu0 %v7507
    %9583 = vmatpush.bf16.msra.mxu0 %v7503
    %9584 = vmatpush.bf16.msra.mxu0 %v7499
    %9585 = vmatpush.bf16.msra.mxu0 %v7495
    %9586 = vmatpush.bf16.msra.mxu0 %v7491
    %9587 = vmatpush.bf16.msra.mxu0 %v7487
    %9588 = vmatpush.bf16.msra.mxu0 %v7483
    %9589 = vmatmul.bf16.gmra.mxu0 %v3777
    %v9590 = vpop.f32.mrf.mxu0
    %v9591 = vadd.f32 %v9578, %v9590
    %v9592 = vpop.f32.mrf.mxu0
    %9593 = vdwg.mxu0
    %9594 = vmatpush.bf16.msra.mxu0 %v7543
    %9595 = vmatpush.bf16.msra.mxu0 %v7539
    %9596 = vmatpush.bf16.msra.mxu0 %v7535
    %9597 = vmatpush.bf16.msra.mxu0 %v7531
    %9598 = vmatpush.bf16.msra.mxu0 %v7527
    %9599 = vmatpush.bf16.msra.mxu0 %v7523
    %9600 = vmatpush.bf16.msra.mxu0 %v7519
    %9601 = vmatpush.bf16.msra.mxu0 %v7515
    %9602 = vmatmul.bf16.gmra.mxu0 %v3778
    %v9603 = vpop.f32.mrf.mxu0
    %v9604 = vadd.f32 %v9591, %v9603
    %v9605 = vpop.f32.mrf.mxu0
    %9606 = vdwg.mxu0
    %9607 = vmatpush.bf16.msra.mxu0 %v7575
    %9608 = vmatpush.bf16.msra.mxu0 %v7571
    %9609 = vmatpush.bf16.msra.mxu0 %v7567
    %9610 = vmatpush.bf16.msra.mxu0 %v7563
    %9611 = vmatpush.bf16.msra.mxu0 %v7559
    %9612 = vmatpush.bf16.msra.mxu0 %v7555
    %9613 = vmatpush.bf16.msra.mxu0 %v7551
    %9614 = vmatpush.bf16.msra.mxu0 %v7547
    %9615 = vmatmul.bf16.gmra.mxu0 %v3779
    %v9616 = vpop.f32.mrf.mxu0
    %v9617 = vadd.f32 %v9604, %v9616
    %v9618 = vpop.f32.mrf.mxu0
    %9619 = vdwg.mxu0
    %9620 = vmatpush.bf16.msra.mxu0 %v7607
    %9621 = vmatpush.bf16.msra.mxu0 %v7603
    %9622 = vmatpush.bf16.msra.mxu0 %v7599
    %9623 = vmatpush.bf16.msra.mxu0 %v7595
    %9624 = vmatpush.bf16.msra.mxu0 %v7591
    %9625 = vmatpush.bf16.msra.mxu0 %v7587
    %9626 = vmatpush.bf16.msra.mxu0 %v7583
    %9627 = vmatpush.bf16.msra.mxu0 %v7579
    %9628 = vmatmul.bf16.gmra.mxu0 %v3780
    %v9629 = vpop.f32.mrf.mxu0
    %v9630 = vadd.f32 %v9617, %v9629
    %v9631 = vpop.f32.mrf.mxu0
    %9632 = vdwg.mxu0
    %9633 = vmatpush.bf16.msra.mxu0 %v7639
    %9634 = vmatpush.bf16.msra.mxu0 %v7635
    %9635 = vmatpush.bf16.msra.mxu0 %v7631
    %9636 = vmatpush.bf16.msra.mxu0 %v7627
    %9637 = vmatpush.bf16.msra.mxu0 %v7623
    %9638 = vmatpush.bf16.msra.mxu0 %v7619
    %9639 = vmatpush.bf16.msra.mxu0 %v7615
    %9640 = vmatpush.bf16.msra.mxu0 %v7611
    %9641 = vmatmul.bf16.gmra.mxu0 %v3781
    %v9642 = vpop.f32.mrf.mxu0
    %v9643 = vadd.f32 %v9630, %v9642
    %v9644 = vpop.f32.mrf.mxu0
    %9645 = vdwg.mxu0
    %9646 = vmatpush.bf16.msra.mxu0 %v7671
    %9647 = vmatpush.bf16.msra.mxu0 %v7667
    %9648 = vmatpush.bf16.msra.mxu0 %v7663
    %9649 = vmatpush.bf16.msra.mxu0 %v7659
    %9650 = vmatpush.bf16.msra.mxu0 %v7655
    %9651 = vmatpush.bf16.msra.mxu0 %v7651
    %9652 = vmatpush.bf16.msra.mxu0 %v7647
    %9653 = vmatpush.bf16.msra.mxu0 %v7643
    %9654 = vmatmul.bf16.gmra.mxu0 %v3782
    %v9655 = vpop.f32.mrf.mxu0
    %v9656 = vadd.f32 %v9643, %v9655
    %v9657 = vpop.f32.mrf.mxu0
    %9658 = vdwg.mxu0
    %9659 = vmatpush.bf16.msra.mxu0 %v7703
    %9660 = vmatpush.bf16.msra.mxu0 %v7699
    %9661 = vmatpush.bf16.msra.mxu0 %v7695
    %9662 = vmatpush.bf16.msra.mxu0 %v7691
    %9663 = vmatpush.bf16.msra.mxu0 %v7687
    %9664 = vmatpush.bf16.msra.mxu0 %v7683
    %9665 = vmatpush.bf16.msra.mxu0 %v7679
    %9666 = vmatpush.bf16.msra.mxu0 %v7675
    %9667 = vmatmul.bf16.gmra.mxu0 %v3783
    %v9668 = vpop.f32.mrf.mxu0
    %v9669 = vadd.f32 %v9656, %v9668
    %v9670 = vpop.f32.mrf.mxu0
    %9671 = vdwg.mxu0
    %9672 = vmatpush.bf16.msra.mxu0 %v7735
    %9673 = vmatpush.bf16.msra.mxu0 %v7731
    %9674 = vmatpush.bf16.msra.mxu0 %v7727
    %9675 = vmatpush.bf16.msra.mxu0 %v7723
    %9676 = vmatpush.bf16.msra.mxu0 %v7719
    %9677 = vmatpush.bf16.msra.mxu0 %v7715
    %9678 = vmatpush.bf16.msra.mxu0 %v7711
    %9679 = vmatpush.bf16.msra.mxu0 %v7707
    %9680 = vmatmul.bf16.gmra.mxu0 %v3784
    %v9681 = vpop.f32.mrf.mxu0
    %v9682 = vadd.f32 %v9669, %v9681
    %v9683 = vpop.f32.mrf.mxu0
    %9684 = vdwg.mxu0
    %9685 = vmatpush.bf16.msra.mxu0 %v7767
    %9686 = vmatpush.bf16.msra.mxu0 %v7763
    %9687 = vmatpush.bf16.msra.mxu0 %v7759
    %9688 = vmatpush.bf16.msra.mxu0 %v7755
    %9689 = vmatpush.bf16.msra.mxu0 %v7751
    %9690 = vmatpush.bf16.msra.mxu0 %v7747
    %9691 = vmatpush.bf16.msra.mxu0 %v7743
    %9692 = vmatpush.bf16.msra.mxu0 %v7739
    %9693 = vmatmul.bf16.gmra.mxu0 %v3785
    %v9694 = vpop.f32.mrf.mxu0
    %v9695 = vadd.f32 %v9682, %v9694
    %v9696 = vpop.f32.mrf.mxu0
    %9697 = vdwg.mxu0
    %9698 = vmatpush.bf16.msra.mxu0 %v7799
    %9699 = vmatpush.bf16.msra.mxu0 %v7795
    %9700 = vmatpush.bf16.msra.mxu0 %v7791
    %9701 = vmatpush.bf16.msra.mxu0 %v7787
    %9702 = vmatpush.bf16.msra.mxu0 %v7783
    %9703 = vmatpush.bf16.msra.mxu0 %v7779
    %9704 = vmatpush.bf16.msra.mxu0 %v7775
    %9705 = vmatpush.bf16.msra.mxu0 %v7771
    %9706 = vmatmul.bf16.gmra.mxu0 %v3786
    %v9707 = vpop.f32.mrf.mxu0
    %v9708 = vadd.f32 %v9695, %v9707
    %v9709 = vpop.f32.mrf.mxu0
    %9710 = vdwg.mxu0
    %9711 = vmatpush.bf16.msra.mxu0 %v7831
    %9712 = vmatpush.bf16.msra.mxu0 %v7827
    %9713 = vmatpush.bf16.msra.mxu0 %v7823
    %9714 = vmatpush.bf16.msra.mxu0 %v7819
    %9715 = vmatpush.bf16.msra.mxu0 %v7815
    %9716 = vmatpush.bf16.msra.mxu0 %v7811
    %9717 = vmatpush.bf16.msra.mxu0 %v7807
    %9718 = vmatpush.bf16.msra.mxu0 %v7803
    %9719 = vmatmul.bf16.gmra.mxu0 %v3787
    %v9720 = vpop.f32.mrf.mxu0
    %v9721 = vadd.f32 %v9708, %v9720
    %v9722 = vpop.f32.mrf.mxu0
    %9723 = vdwg.mxu0
    %9724 = vmatpush.bf16.msra.mxu0 %v7863
    %9725 = vmatpush.bf16.msra.mxu0 %v7859
    %9726 = vmatpush.bf16.msra.mxu0 %v7855
    %9727 = vmatpush.bf16.msra.mxu0 %v7851
    %9728 = vmatpush.bf16.msra.mxu0 %v7847
    %9729 = vmatpush.bf16.msra.mxu0 %v7843
    %9730 = vmatpush.bf16.msra.mxu0 %v7839
    %9731 = vmatpush.bf16.msra.mxu0 %v7835
    %9732 = vmatmul.bf16.gmra.mxu0 %v3788
    %v9733 = vpop.f32.mrf.mxu0
    %v9734 = vadd.f32 %v9721, %v9733
    %v9735 = vpop.f32.mrf.mxu0
    %9736 = vdwg.mxu0
    %9737 = vmatpush.bf16.msra.mxu0 %v7895
    %9738 = vmatpush.bf16.msra.mxu0 %v7891
    %9739 = vmatpush.bf16.msra.mxu0 %v7887
    %9740 = vmatpush.bf16.msra.mxu0 %v7883
    %9741 = vmatpush.bf16.msra.mxu0 %v7879
    %9742 = vmatpush.bf16.msra.mxu0 %v7875
    %9743 = vmatpush.bf16.msra.mxu0 %v7871
    %9744 = vmatpush.bf16.msra.mxu0 %v7867
    %9745 = vmatmul.bf16.gmra.mxu0 %v3789
    %v9746 = vpop.f32.mrf.mxu0
    %v9747 = vadd.f32 %v9734, %v9746
    %v9748 = vpop.f32.mrf.mxu0
    %9749 = vdwg.mxu0
    %9750 = vmatpush.bf16.msra.mxu0 %v7927
    %9751 = vmatpush.bf16.msra.mxu0 %v7923
    %9752 = vmatpush.bf16.msra.mxu0 %v7919
    %9753 = vmatpush.bf16.msra.mxu0 %v7915
    %9754 = vmatpush.bf16.msra.mxu0 %v7911
    %9755 = vmatpush.bf16.msra.mxu0 %v7907
    %9756 = vmatpush.bf16.msra.mxu0 %v7903
    %9757 = vmatpush.bf16.msra.mxu0 %v7899
    %9758 = vmatmul.bf16.gmra.mxu0 %v3790
    %v9759 = vpop.f32.mrf.mxu0
    %v9760 = vadd.f32 %v9747, %v9759
    %v9761 = vpop.f32.mrf.mxu0
    %9762 = vdwg.mxu0
    %9763 = vmatpush.bf16.msra.mxu0 %v7959
    %9764 = vmatpush.bf16.msra.mxu0 %v7955
    %9765 = vmatpush.bf16.msra.mxu0 %v7951
    %9766 = vmatpush.bf16.msra.mxu0 %v7947
    %9767 = vmatpush.bf16.msra.mxu0 %v7943
    %9768 = vmatpush.bf16.msra.mxu0 %v7939
    %9769 = vmatpush.bf16.msra.mxu0 %v7935
    %9770 = vmatpush.bf16.msra.mxu0 %v7931
    %9771 = vmatmul.bf16.gmra.mxu0 %v3791
    %v9772 = vpop.f32.mrf.mxu0
    %v9773 = vadd.f32 %v9760, %v9772
    %v9774 = vpop.f32.mrf.mxu0
    %9775 = vdwg.mxu0
    %9776 = vmatpush.bf16.msra.mxu0 %v7991
    %9777 = vmatpush.bf16.msra.mxu0 %v7987
    %9778 = vmatpush.bf16.msra.mxu0 %v7983
    %9779 = vmatpush.bf16.msra.mxu0 %v7979
    %9780 = vmatpush.bf16.msra.mxu0 %v7975
    %9781 = vmatpush.bf16.msra.mxu0 %v7971
    %9782 = vmatpush.bf16.msra.mxu0 %v7967
    %9783 = vmatpush.bf16.msra.mxu0 %v7963
    %9784 = vmatmul.bf16.gmra.mxu0 %v3792
    %v9785 = vpop.f32.mrf.mxu0
    %v9786 = vadd.f32 %v9773, %v9785
    %v9787 = vpop.f32.mrf.mxu0
    %9788 = vdwg.mxu0
    %9789 = vmatpush.bf16.msra.mxu0 %v8023
    %9790 = vmatpush.bf16.msra.mxu0 %v8019
    %9791 = vmatpush.bf16.msra.mxu0 %v8015
    %9792 = vmatpush.bf16.msra.mxu0 %v8011
    %9793 = vmatpush.bf16.msra.mxu0 %v8007
    %9794 = vmatpush.bf16.msra.mxu0 %v8003
    %9795 = vmatpush.bf16.msra.mxu0 %v7999
    %9796 = vmatpush.bf16.msra.mxu0 %v7995
    %9797 = vmatmul.bf16.gmra.mxu0 %v3793
    %v9798 = vpop.f32.mrf.mxu0
    %v9799 = vadd.f32 %v9786, %v9798
    %v9800 = vpop.f32.mrf.mxu0
    %9801 = vdwg.mxu0
    %9802 = vmatpush.bf16.msra.mxu0 %v8055
    %9803 = vmatpush.bf16.msra.mxu0 %v8051
    %9804 = vmatpush.bf16.msra.mxu0 %v8047
    %9805 = vmatpush.bf16.msra.mxu0 %v8043
    %9806 = vmatpush.bf16.msra.mxu0 %v8039
    %9807 = vmatpush.bf16.msra.mxu0 %v8035
    %9808 = vmatpush.bf16.msra.mxu0 %v8031
    %9809 = vmatpush.bf16.msra.mxu0 %v8027
    %9810 = vmatmul.bf16.gmra.mxu0 %v3794
    %v9811 = vpop.f32.mrf.mxu0
    %v9812 = vadd.f32 %v9799, %v9811
    %v9813 = vpop.f32.mrf.mxu0
    %9814 = vdwg.mxu0
    %9815 = vmatpush.bf16.msra.mxu0 %v8087
    %9816 = vmatpush.bf16.msra.mxu0 %v8083
    %9817 = vmatpush.bf16.msra.mxu0 %v8079
    %9818 = vmatpush.bf16.msra.mxu0 %v8075
    %9819 = vmatpush.bf16.msra.mxu0 %v8071
    %9820 = vmatpush.bf16.msra.mxu0 %v8067
    %9821 = vmatpush.bf16.msra.mxu0 %v8063
    %9822 = vmatpush.bf16.msra.mxu0 %v8059
    %9823 = vmatmul.bf16.gmra.mxu0 %v3795
    %v9824 = vpop.f32.mrf.mxu0
    %v9825 = vadd.f32 %v9812, %v9824
    %v9826 = vpop.f32.mrf.mxu0
    %9827 = vdwg.mxu0
    %9828 = vmatpush.bf16.msra.mxu0 %v8119
    %9829 = vmatpush.bf16.msra.mxu0 %v8115
    %9830 = vmatpush.bf16.msra.mxu0 %v8111
    %9831 = vmatpush.bf16.msra.mxu0 %v8107
    %9832 = vmatpush.bf16.msra.mxu0 %v8103
    %9833 = vmatpush.bf16.msra.mxu0 %v8099
    %9834 = vmatpush.bf16.msra.mxu0 %v8095
    %9835 = vmatpush.bf16.msra.mxu0 %v8091
    %9836 = vmatmul.bf16.gmra.mxu0 %v3796
    %v9837 = vpop.f32.mrf.mxu0
    %v9838 = vadd.f32 %v9825, %v9837
    %v9839 = vpop.f32.mrf.mxu0
    %9840 = vdwg.mxu0
    %9841 = vmatpush.bf16.msra.mxu0 %v8151
    %9842 = vmatpush.bf16.msra.mxu0 %v8147
    %9843 = vmatpush.bf16.msra.mxu0 %v8143
    %9844 = vmatpush.bf16.msra.mxu0 %v8139
    %9845 = vmatpush.bf16.msra.mxu0 %v8135
    %9846 = vmatpush.bf16.msra.mxu0 %v8131
    %9847 = vmatpush.bf16.msra.mxu0 %v8127
    %9848 = vmatpush.bf16.msra.mxu0 %v8123
    %9849 = vmatmul.bf16.gmra.mxu0 %v3797
    %v9850 = vpop.f32.mrf.mxu0
    %v9851 = vadd.f32 %v9838, %v9850
    %v9852 = vpop.f32.mrf.mxu0
    %9853 = vdwg.mxu0
    %9854 = vmatpush.bf16.msra.mxu0 %v8183
    %9855 = vmatpush.bf16.msra.mxu0 %v8179
    %9856 = vmatpush.bf16.msra.mxu0 %v8175
    %9857 = vmatpush.bf16.msra.mxu0 %v8171
    %9858 = vmatpush.bf16.msra.mxu0 %v8167
    %9859 = vmatpush.bf16.msra.mxu0 %v8163
    %9860 = vmatpush.bf16.msra.mxu0 %v8159
    %9861 = vmatpush.bf16.msra.mxu0 %v8155
    %9862 = vmatmul.bf16.gmra.mxu0 %v3798
    %v9863 = vpop.f32.mrf.mxu0
    %v9864 = vadd.f32 %v9851, %v9863
    %v9865 = vpop.f32.mrf.mxu0
    %9866 = vdwg.mxu0
    %9867 = vmatpush.bf16.msra.mxu0 %v8215
    %9868 = vmatpush.bf16.msra.mxu0 %v8211
    %9869 = vmatpush.bf16.msra.mxu0 %v8207
    %9870 = vmatpush.bf16.msra.mxu0 %v8203
    %9871 = vmatpush.bf16.msra.mxu0 %v8199
    %9872 = vmatpush.bf16.msra.mxu0 %v8195
    %9873 = vmatpush.bf16.msra.mxu0 %v8191
    %9874 = vmatpush.bf16.msra.mxu0 %v8187
    %9875 = vmatmul.bf16.gmra.mxu0 %v3799
    %v9876 = vpop.f32.mrf.mxu0
    %v9877 = vadd.f32 %v9864, %v9876
    %v9878 = vpop.f32.mrf.mxu0
    %9879 = vdwg.mxu0
    %9880 = vmatpush.bf16.msra.mxu0 %v8247
    %9881 = vmatpush.bf16.msra.mxu0 %v8243
    %9882 = vmatpush.bf16.msra.mxu0 %v8239
    %9883 = vmatpush.bf16.msra.mxu0 %v8235
    %9884 = vmatpush.bf16.msra.mxu0 %v8231
    %9885 = vmatpush.bf16.msra.mxu0 %v8227
    %9886 = vmatpush.bf16.msra.mxu0 %v8223
    %9887 = vmatpush.bf16.msra.mxu0 %v8219
    %9888 = vmatmul.bf16.gmra.mxu0 %v3800
    %v9889 = vpop.f32.mrf.mxu0
    %v9890 = vadd.f32 %v9877, %v9889
    %v9891 = vpop.f32.mrf.mxu0
    %9892 = vdwg.mxu0
    %9893 = vmatpush.bf16.msra.mxu0 %v8279
    %9894 = vmatpush.bf16.msra.mxu0 %v8275
    %9895 = vmatpush.bf16.msra.mxu0 %v8271
    %9896 = vmatpush.bf16.msra.mxu0 %v8267
    %9897 = vmatpush.bf16.msra.mxu0 %v8263
    %9898 = vmatpush.bf16.msra.mxu0 %v8259
    %9899 = vmatpush.bf16.msra.mxu0 %v8255
    %9900 = vmatpush.bf16.msra.mxu0 %v8251
    %9901 = vmatmul.bf16.gmra.mxu0 %v3801
    %v9902 = vpop.f32.mrf.mxu0
    %v9903 = vadd.f32 %v9890, %v9902
    %v9904 = vpop.f32.mrf.mxu0
    %9905 = vdwg.mxu0
    %9906 = vmatpush.bf16.msra.mxu0 %v7416
    %9907 = vmatpush.bf16.msra.mxu0 %v7412
    %9908 = vmatpush.bf16.msra.mxu0 %v7408
    %9909 = vmatpush.bf16.msra.mxu0 %v7404
    %9910 = vmatpush.bf16.msra.mxu0 %v7400
    %9911 = vmatpush.bf16.msra.mxu0 %v7396
    %9912 = vmatpush.bf16.msra.mxu0 %v7392
    %9913 = vmatpush.bf16.msra.mxu0 %v7388
    %9914 = vmatmul.bf16.gmra.mxu0 %v3774
    %v9915 = vpop.f32.mrf.mxu0
    %v9916 = vadd.f32 0.0, %v9915
    %v9917 = vpop.f32.mrf.mxu0
    %9918 = vdwg.mxu0
    %9919 = vmatpush.bf16.msra.mxu0 %v7448
    %9920 = vmatpush.bf16.msra.mxu0 %v7444
    %9921 = vmatpush.bf16.msra.mxu0 %v7440
    %9922 = vmatpush.bf16.msra.mxu0 %v7436
    %9923 = vmatpush.bf16.msra.mxu0 %v7432
    %9924 = vmatpush.bf16.msra.mxu0 %v7428
    %9925 = vmatpush.bf16.msra.mxu0 %v7424
    %9926 = vmatpush.bf16.msra.mxu0 %v7420
    %9927 = vmatmul.bf16.gmra.mxu0 %v3775
    %v9928 = vpop.f32.mrf.mxu0
    %v9929 = vadd.f32 %v9916, %v9928
    %v9930 = vpop.f32.mrf.mxu0
    %9931 = vdwg.mxu0
    %9932 = vmatpush.bf16.msra.mxu0 %v7480
    %9933 = vmatpush.bf16.msra.mxu0 %v7476
    %9934 = vmatpush.bf16.msra.mxu0 %v7472
    %9935 = vmatpush.bf16.msra.mxu0 %v7468
    %9936 = vmatpush.bf16.msra.mxu0 %v7464
    %9937 = vmatpush.bf16.msra.mxu0 %v7460
    %9938 = vmatpush.bf16.msra.mxu0 %v7456
    %9939 = vmatpush.bf16.msra.mxu0 %v7452
    %9940 = vmatmul.bf16.gmra.mxu0 %v3776
    %v9941 = vpop.f32.mrf.mxu0
    %v9942 = vadd.f32 %v9929, %v9941
    %v9943 = vpop.f32.mrf.mxu0
    %9944 = vdwg.mxu0
    %9945 = vmatpush.bf16.msra.mxu0 %v7512
    %9946 = vmatpush.bf16.msra.mxu0 %v7508
    %9947 = vmatpush.bf16.msra.mxu0 %v7504
    %9948 = vmatpush.bf16.msra.mxu0 %v7500
    %9949 = vmatpush.bf16.msra.mxu0 %v7496
    %9950 = vmatpush.bf16.msra.mxu0 %v7492
    %9951 = vmatpush.bf16.msra.mxu0 %v7488
    %9952 = vmatpush.bf16.msra.mxu0 %v7484
    %9953 = vmatmul.bf16.gmra.mxu0 %v3777
    %v9954 = vpop.f32.mrf.mxu0
    %v9955 = vadd.f32 %v9942, %v9954
    %v9956 = vpop.f32.mrf.mxu0
    %9957 = vdwg.mxu0
    %9958 = vmatpush.bf16.msra.mxu0 %v7544
    %9959 = vmatpush.bf16.msra.mxu0 %v7540
    %9960 = vmatpush.bf16.msra.mxu0 %v7536
    %9961 = vmatpush.bf16.msra.mxu0 %v7532
    %9962 = vmatpush.bf16.msra.mxu0 %v7528
    %9963 = vmatpush.bf16.msra.mxu0 %v7524
    %9964 = vmatpush.bf16.msra.mxu0 %v7520
    %9965 = vmatpush.bf16.msra.mxu0 %v7516
    %9966 = vmatmul.bf16.gmra.mxu0 %v3778
    %v9967 = vpop.f32.mrf.mxu0
    %v9968 = vadd.f32 %v9955, %v9967
    %v9969 = vpop.f32.mrf.mxu0
    %9970 = vdwg.mxu0
    %9971 = vmatpush.bf16.msra.mxu0 %v7576
    %9972 = vmatpush.bf16.msra.mxu0 %v7572
    %9973 = vmatpush.bf16.msra.mxu0 %v7568
    %9974 = vmatpush.bf16.msra.mxu0 %v7564
    %9975 = vmatpush.bf16.msra.mxu0 %v7560
    %9976 = vmatpush.bf16.msra.mxu0 %v7556
    %9977 = vmatpush.bf16.msra.mxu0 %v7552
    %9978 = vmatpush.bf16.msra.mxu0 %v7548
    %9979 = vmatmul.bf16.gmra.mxu0 %v3779
    %v9980 = vpop.f32.mrf.mxu0
    %v9981 = vadd.f32 %v9968, %v9980
    %v9982 = vpop.f32.mrf.mxu0
    %9983 = vdwg.mxu0
    %9984 = vmatpush.bf16.msra.mxu0 %v7608
    %9985 = vmatpush.bf16.msra.mxu0 %v7604
    %9986 = vmatpush.bf16.msra.mxu0 %v7600
    %9987 = vmatpush.bf16.msra.mxu0 %v7596
    %9988 = vmatpush.bf16.msra.mxu0 %v7592
    %9989 = vmatpush.bf16.msra.mxu0 %v7588
    %9990 = vmatpush.bf16.msra.mxu0 %v7584
    %9991 = vmatpush.bf16.msra.mxu0 %v7580
    %9992 = vmatmul.bf16.gmra.mxu0 %v3780
    %v9993 = vpop.f32.mrf.mxu0
    %v9994 = vadd.f32 %v9981, %v9993
    %v9995 = vpop.f32.mrf.mxu0
    %9996 = vdwg.mxu0
    %9997 = vmatpush.bf16.msra.mxu0 %v7640
    %9998 = vmatpush.bf16.msra.mxu0 %v7636
    %9999 = vmatpush.bf16.msra.mxu0 %v7632
    %10000 = vmatpush.bf16.msra.mxu0 %v7628
    %10001 = vmatpush.bf16.msra.mxu0 %v7624
    %10002 = vmatpush.bf16.msra.mxu0 %v7620
    %10003 = vmatpush.bf16.msra.mxu0 %v7616
    %10004 = vmatpush.bf16.msra.mxu0 %v7612
    %10005 = vmatmul.bf16.gmra.mxu0 %v3781
    %v10006 = vpop.f32.mrf.mxu0
    %v10007 = vadd.f32 %v9994, %v10006
    %v10008 = vpop.f32.mrf.mxu0
    %10009 = vdwg.mxu0
    %10010 = vmatpush.bf16.msra.mxu0 %v7672
    %10011 = vmatpush.bf16.msra.mxu0 %v7668
    %10012 = vmatpush.bf16.msra.mxu0 %v7664
    %10013 = vmatpush.bf16.msra.mxu0 %v7660
    %10014 = vmatpush.bf16.msra.mxu0 %v7656
    %10015 = vmatpush.bf16.msra.mxu0 %v7652
    %10016 = vmatpush.bf16.msra.mxu0 %v7648
    %10017 = vmatpush.bf16.msra.mxu0 %v7644
    %10018 = vmatmul.bf16.gmra.mxu0 %v3782
    %v10019 = vpop.f32.mrf.mxu0
    %v10020 = vadd.f32 %v10007, %v10019
    %v10021 = vpop.f32.mrf.mxu0
    %10022 = vdwg.mxu0
    %10023 = vmatpush.bf16.msra.mxu0 %v7704
    %10024 = vmatpush.bf16.msra.mxu0 %v7700
    %10025 = vmatpush.bf16.msra.mxu0 %v7696
    %10026 = vmatpush.bf16.msra.mxu0 %v7692
    %10027 = vmatpush.bf16.msra.mxu0 %v7688
    %10028 = vmatpush.bf16.msra.mxu0 %v7684
    %10029 = vmatpush.bf16.msra.mxu0 %v7680
    %10030 = vmatpush.bf16.msra.mxu0 %v7676
    %10031 = vmatmul.bf16.gmra.mxu0 %v3783
    %v10032 = vpop.f32.mrf.mxu0
    %v10033 = vadd.f32 %v10020, %v10032
    %v10034 = vpop.f32.mrf.mxu0
    %10035 = vdwg.mxu0
    %10036 = vmatpush.bf16.msra.mxu0 %v7736
    %10037 = vmatpush.bf16.msra.mxu0 %v7732
    %10038 = vmatpush.bf16.msra.mxu0 %v7728
    %10039 = vmatpush.bf16.msra.mxu0 %v7724
    %10040 = vmatpush.bf16.msra.mxu0 %v7720
    %10041 = vmatpush.bf16.msra.mxu0 %v7716
    %10042 = vmatpush.bf16.msra.mxu0 %v7712
    %10043 = vmatpush.bf16.msra.mxu0 %v7708
    %10044 = vmatmul.bf16.gmra.mxu0 %v3784
    %v10045 = vpop.f32.mrf.mxu0
    %v10046 = vadd.f32 %v10033, %v10045
    %v10047 = vpop.f32.mrf.mxu0
    %10048 = vdwg.mxu0
    %10049 = vmatpush.bf16.msra.mxu0 %v7768
    %10050 = vmatpush.bf16.msra.mxu0 %v7764
    %10051 = vmatpush.bf16.msra.mxu0 %v7760
    %10052 = vmatpush.bf16.msra.mxu0 %v7756
    %10053 = vmatpush.bf16.msra.mxu0 %v7752
    %10054 = vmatpush.bf16.msra.mxu0 %v7748
    %10055 = vmatpush.bf16.msra.mxu0 %v7744
    %10056 = vmatpush.bf16.msra.mxu0 %v7740
    %10057 = vmatmul.bf16.gmra.mxu0 %v3785
    %v10058 = vpop.f32.mrf.mxu0
    %v10059 = vadd.f32 %v10046, %v10058
    %v10060 = vpop.f32.mrf.mxu0
    %10061 = vdwg.mxu0
    %10062 = vmatpush.bf16.msra.mxu0 %v7800
    %10063 = vmatpush.bf16.msra.mxu0 %v7796
    %10064 = vmatpush.bf16.msra.mxu0 %v7792
    %10065 = vmatpush.bf16.msra.mxu0 %v7788
    %10066 = vmatpush.bf16.msra.mxu0 %v7784
    %10067 = vmatpush.bf16.msra.mxu0 %v7780
    %10068 = vmatpush.bf16.msra.mxu0 %v7776
    %10069 = vmatpush.bf16.msra.mxu0 %v7772
    %10070 = vmatmul.bf16.gmra.mxu0 %v3786
    %v10071 = vpop.f32.mrf.mxu0
    %v10072 = vadd.f32 %v10059, %v10071
    %v10073 = vpop.f32.mrf.mxu0
    %10074 = vdwg.mxu0
    %10075 = vmatpush.bf16.msra.mxu0 %v7832
    %10076 = vmatpush.bf16.msra.mxu0 %v7828
    %10077 = vmatpush.bf16.msra.mxu0 %v7824
    %10078 = vmatpush.bf16.msra.mxu0 %v7820
    %10079 = vmatpush.bf16.msra.mxu0 %v7816
    %10080 = vmatpush.bf16.msra.mxu0 %v7812
    %10081 = vmatpush.bf16.msra.mxu0 %v7808
    %10082 = vmatpush.bf16.msra.mxu0 %v7804
    %10083 = vmatmul.bf16.gmra.mxu0 %v3787
    %v10084 = vpop.f32.mrf.mxu0
    %v10085 = vadd.f32 %v10072, %v10084
    %v10086 = vpop.f32.mrf.mxu0
    %10087 = vdwg.mxu0
    %10088 = vmatpush.bf16.msra.mxu0 %v7864
    %10089 = vmatpush.bf16.msra.mxu0 %v7860
    %10090 = vmatpush.bf16.msra.mxu0 %v7856
    %10091 = vmatpush.bf16.msra.mxu0 %v7852
    %10092 = vmatpush.bf16.msra.mxu0 %v7848
    %10093 = vmatpush.bf16.msra.mxu0 %v7844
    %10094 = vmatpush.bf16.msra.mxu0 %v7840
    %10095 = vmatpush.bf16.msra.mxu0 %v7836
    %10096 = vmatmul.bf16.gmra.mxu0 %v3788
    %v10097 = vpop.f32.mrf.mxu0
    %v10098 = vadd.f32 %v10085, %v10097
    %v10099 = vpop.f32.mrf.mxu0
    %10100 = vdwg.mxu0
    %10101 = vmatpush.bf16.msra.mxu0 %v7896
    %10102 = vmatpush.bf16.msra.mxu0 %v7892
    %10103 = vmatpush.bf16.msra.mxu0 %v7888
    %10104 = vmatpush.bf16.msra.mxu0 %v7884
    %10105 = vmatpush.bf16.msra.mxu0 %v7880
    %10106 = vmatpush.bf16.msra.mxu0 %v7876
    %10107 = vmatpush.bf16.msra.mxu0 %v7872
    %10108 = vmatpush.bf16.msra.mxu0 %v7868
    %10109 = vmatmul.bf16.gmra.mxu0 %v3789
    %v10110 = vpop.f32.mrf.mxu0
    %v10111 = vadd.f32 %v10098, %v10110
    %v10112 = vpop.f32.mrf.mxu0
    %10113 = vdwg.mxu0
    %10114 = vmatpush.bf16.msra.mxu0 %v7928
    %10115 = vmatpush.bf16.msra.mxu0 %v7924
    %10116 = vmatpush.bf16.msra.mxu0 %v7920
    %10117 = vmatpush.bf16.msra.mxu0 %v7916
    %10118 = vmatpush.bf16.msra.mxu0 %v7912
    %10119 = vmatpush.bf16.msra.mxu0 %v7908
    %10120 = vmatpush.bf16.msra.mxu0 %v7904
    %10121 = vmatpush.bf16.msra.mxu0 %v7900
    %10122 = vmatmul.bf16.gmra.mxu0 %v3790
    %v10123 = vpop.f32.mrf.mxu0
    %v10124 = vadd.f32 %v10111, %v10123
    %v10125 = vpop.f32.mrf.mxu0
    %10126 = vdwg.mxu0
    %10127 = vmatpush.bf16.msra.mxu0 %v7960
    %10128 = vmatpush.bf16.msra.mxu0 %v7956
    %10129 = vmatpush.bf16.msra.mxu0 %v7952
    %10130 = vmatpush.bf16.msra.mxu0 %v7948
    %10131 = vmatpush.bf16.msra.mxu0 %v7944
    %10132 = vmatpush.bf16.msra.mxu0 %v7940
    %10133 = vmatpush.bf16.msra.mxu0 %v7936
    %10134 = vmatpush.bf16.msra.mxu0 %v7932
    %10135 = vmatmul.bf16.gmra.mxu0 %v3791
    %v10136 = vpop.f32.mrf.mxu0
    %v10137 = vadd.f32 %v10124, %v10136
    %v10138 = vpop.f32.mrf.mxu0
    %10139 = vdwg.mxu0
    %10140 = vmatpush.bf16.msra.mxu0 %v7992
    %10141 = vmatpush.bf16.msra.mxu0 %v7988
    %10142 = vmatpush.bf16.msra.mxu0 %v7984
    %10143 = vmatpush.bf16.msra.mxu0 %v7980
    %10144 = vmatpush.bf16.msra.mxu0 %v7976
    %10145 = vmatpush.bf16.msra.mxu0 %v7972
    %10146 = vmatpush.bf16.msra.mxu0 %v7968
    %10147 = vmatpush.bf16.msra.mxu0 %v7964
    %10148 = vmatmul.bf16.gmra.mxu0 %v3792
    %v10149 = vpop.f32.mrf.mxu0
    %v10150 = vadd.f32 %v10137, %v10149
    %v10151 = vpop.f32.mrf.mxu0
    %10152 = vdwg.mxu0
    %10153 = vmatpush.bf16.msra.mxu0 %v8024
    %10154 = vmatpush.bf16.msra.mxu0 %v8020
    %10155 = vmatpush.bf16.msra.mxu0 %v8016
    %10156 = vmatpush.bf16.msra.mxu0 %v8012
    %10157 = vmatpush.bf16.msra.mxu0 %v8008
    %10158 = vmatpush.bf16.msra.mxu0 %v8004
    %10159 = vmatpush.bf16.msra.mxu0 %v8000
    %10160 = vmatpush.bf16.msra.mxu0 %v7996
    %10161 = vmatmul.bf16.gmra.mxu0 %v3793
    %v10162 = vpop.f32.mrf.mxu0
    %v10163 = vadd.f32 %v10150, %v10162
    %v10164 = vpop.f32.mrf.mxu0
    %10165 = vdwg.mxu0
    %10166 = vmatpush.bf16.msra.mxu0 %v8056
    %10167 = vmatpush.bf16.msra.mxu0 %v8052
    %10168 = vmatpush.bf16.msra.mxu0 %v8048
    %10169 = vmatpush.bf16.msra.mxu0 %v8044
    %10170 = vmatpush.bf16.msra.mxu0 %v8040
    %10171 = vmatpush.bf16.msra.mxu0 %v8036
    %10172 = vmatpush.bf16.msra.mxu0 %v8032
    %10173 = vmatpush.bf16.msra.mxu0 %v8028
    %10174 = vmatmul.bf16.gmra.mxu0 %v3794
    %v10175 = vpop.f32.mrf.mxu0
    %v10176 = vadd.f32 %v10163, %v10175
    %v10177 = vpop.f32.mrf.mxu0
    %10178 = vdwg.mxu0
    %10179 = vmatpush.bf16.msra.mxu0 %v8088
    %10180 = vmatpush.bf16.msra.mxu0 %v8084
    %10181 = vmatpush.bf16.msra.mxu0 %v8080
    %10182 = vmatpush.bf16.msra.mxu0 %v8076
    %10183 = vmatpush.bf16.msra.mxu0 %v8072
    %10184 = vmatpush.bf16.msra.mxu0 %v8068
    %10185 = vmatpush.bf16.msra.mxu0 %v8064
    %10186 = vmatpush.bf16.msra.mxu0 %v8060
    %10187 = vmatmul.bf16.gmra.mxu0 %v3795
    %v10188 = vpop.f32.mrf.mxu0
    %v10189 = vadd.f32 %v10176, %v10188
    %v10190 = vpop.f32.mrf.mxu0
    %10191 = vdwg.mxu0
    %10192 = vmatpush.bf16.msra.mxu0 %v8120
    %10193 = vmatpush.bf16.msra.mxu0 %v8116
    %10194 = vmatpush.bf16.msra.mxu0 %v8112
    %10195 = vmatpush.bf16.msra.mxu0 %v8108
    %10196 = vmatpush.bf16.msra.mxu0 %v8104
    %10197 = vmatpush.bf16.msra.mxu0 %v8100
    %10198 = vmatpush.bf16.msra.mxu0 %v8096
    %10199 = vmatpush.bf16.msra.mxu0 %v8092
    %10200 = vmatmul.bf16.gmra.mxu0 %v3796
    %v10201 = vpop.f32.mrf.mxu0
    %v10202 = vadd.f32 %v10189, %v10201
    %v10203 = vpop.f32.mrf.mxu0
    %10204 = vdwg.mxu0
    %10205 = vmatpush.bf16.msra.mxu0 %v8152
    %10206 = vmatpush.bf16.msra.mxu0 %v8148
    %10207 = vmatpush.bf16.msra.mxu0 %v8144
    %10208 = vmatpush.bf16.msra.mxu0 %v8140
    %10209 = vmatpush.bf16.msra.mxu0 %v8136
    %10210 = vmatpush.bf16.msra.mxu0 %v8132
    %10211 = vmatpush.bf16.msra.mxu0 %v8128
    %10212 = vmatpush.bf16.msra.mxu0 %v8124
    %10213 = vmatmul.bf16.gmra.mxu0 %v3797
    %v10214 = vpop.f32.mrf.mxu0
    %v10215 = vadd.f32 %v10202, %v10214
    %v10216 = vpop.f32.mrf.mxu0
    %10217 = vdwg.mxu0
    %10218 = vmatpush.bf16.msra.mxu0 %v8184
    %10219 = vmatpush.bf16.msra.mxu0 %v8180
    %10220 = vmatpush.bf16.msra.mxu0 %v8176
    %10221 = vmatpush.bf16.msra.mxu0 %v8172
    %10222 = vmatpush.bf16.msra.mxu0 %v8168
    %10223 = vmatpush.bf16.msra.mxu0 %v8164
    %10224 = vmatpush.bf16.msra.mxu0 %v8160
    %10225 = vmatpush.bf16.msra.mxu0 %v8156
    %10226 = vmatmul.bf16.gmra.mxu0 %v3798
    %v10227 = vpop.f32.mrf.mxu0
    %v10228 = vadd.f32 %v10215, %v10227
    %v10229 = vpop.f32.mrf.mxu0
    %10230 = vdwg.mxu0
    %10231 = vmatpush.bf16.msra.mxu0 %v8216
    %10232 = vmatpush.bf16.msra.mxu0 %v8212
    %10233 = vmatpush.bf16.msra.mxu0 %v8208
    %10234 = vmatpush.bf16.msra.mxu0 %v8204
    %10235 = vmatpush.bf16.msra.mxu0 %v8200
    %10236 = vmatpush.bf16.msra.mxu0 %v8196
    %10237 = vmatpush.bf16.msra.mxu0 %v8192
    %10238 = vmatpush.bf16.msra.mxu0 %v8188
    %10239 = vmatmul.bf16.gmra.mxu0 %v3799
    %v10240 = vpop.f32.mrf.mxu0
    %v10241 = vadd.f32 %v10228, %v10240
    %v10242 = vpop.f32.mrf.mxu0
    %10243 = vdwg.mxu0
    %10244 = vmatpush.bf16.msra.mxu0 %v8248
    %10245 = vmatpush.bf16.msra.mxu0 %v8244
    %10246 = vmatpush.bf16.msra.mxu0 %v8240
    %10247 = vmatpush.bf16.msra.mxu0 %v8236
    %10248 = vmatpush.bf16.msra.mxu0 %v8232
    %10249 = vmatpush.bf16.msra.mxu0 %v8228
    %10250 = vmatpush.bf16.msra.mxu0 %v8224
    %10251 = vmatpush.bf16.msra.mxu0 %v8220
    %10252 = vmatmul.bf16.gmra.mxu0 %v3800
    %v10253 = vpop.f32.mrf.mxu0
    %v10254 = vadd.f32 %v10241, %v10253
    %v10255 = vpop.f32.mrf.mxu0
    %10256 = vdwg.mxu0
    %10257 = vmatpush.bf16.msra.mxu0 %v8280
    %10258 = vmatpush.bf16.msra.mxu0 %v8276
    %10259 = vmatpush.bf16.msra.mxu0 %v8272
    %10260 = vmatpush.bf16.msra.mxu0 %v8268
    %10261 = vmatpush.bf16.msra.mxu0 %v8264
    %10262 = vmatpush.bf16.msra.mxu0 %v8260
    %10263 = vmatpush.bf16.msra.mxu0 %v8256
    %10264 = vmatpush.bf16.msra.mxu0 %v8252
    %10265 = vmatmul.bf16.gmra.mxu0 %v3801
    %v10266 = vpop.f32.mrf.mxu0
    %v10267 = vadd.f32 %v10254, %v10266
    %v10268 = vpop.f32.mrf.mxu0
    %10269 = vdwg.mxu0
    %10270 = vmatpush.bf16.msra.mxu0 %v7417
    %10271 = vmatpush.bf16.msra.mxu0 %v7413
    %10272 = vmatpush.bf16.msra.mxu0 %v7409
    %10273 = vmatpush.bf16.msra.mxu0 %v7405
    %10274 = vmatpush.bf16.msra.mxu0 %v7401
    %10275 = vmatpush.bf16.msra.mxu0 %v7397
    %10276 = vmatpush.bf16.msra.mxu0 %v7393
    %10277 = vmatpush.bf16.msra.mxu0 %v7389
    %10278 = vmatmul.bf16.gmra.mxu0 %v3774
    %v10279 = vpop.f32.mrf.mxu0
    %v10280 = vadd.f32 0.0, %v10279
    %v10281 = vpop.f32.mrf.mxu0
    %10282 = vdwg.mxu0
    %10283 = vmatpush.bf16.msra.mxu0 %v7449
    %10284 = vmatpush.bf16.msra.mxu0 %v7445
    %10285 = vmatpush.bf16.msra.mxu0 %v7441
    %10286 = vmatpush.bf16.msra.mxu0 %v7437
    %10287 = vmatpush.bf16.msra.mxu0 %v7433
    %10288 = vmatpush.bf16.msra.mxu0 %v7429
    %10289 = vmatpush.bf16.msra.mxu0 %v7425
    %10290 = vmatpush.bf16.msra.mxu0 %v7421
    %10291 = vmatmul.bf16.gmra.mxu0 %v3775
    %v10292 = vpop.f32.mrf.mxu0
    %v10293 = vadd.f32 %v10280, %v10292
    %v10294 = vpop.f32.mrf.mxu0
    %10295 = vdwg.mxu0
    %10296 = vmatpush.bf16.msra.mxu0 %v7481
    %10297 = vmatpush.bf16.msra.mxu0 %v7477
    %10298 = vmatpush.bf16.msra.mxu0 %v7473
    %10299 = vmatpush.bf16.msra.mxu0 %v7469
    %10300 = vmatpush.bf16.msra.mxu0 %v7465
    %10301 = vmatpush.bf16.msra.mxu0 %v7461
    %10302 = vmatpush.bf16.msra.mxu0 %v7457
    %10303 = vmatpush.bf16.msra.mxu0 %v7453
    %10304 = vmatmul.bf16.gmra.mxu0 %v3776
    %v10305 = vpop.f32.mrf.mxu0
    %v10306 = vadd.f32 %v10293, %v10305
    %v10307 = vpop.f32.mrf.mxu0
    %10308 = vdwg.mxu0
    %10309 = vmatpush.bf16.msra.mxu0 %v7513
    %10310 = vmatpush.bf16.msra.mxu0 %v7509
    %10311 = vmatpush.bf16.msra.mxu0 %v7505
    %10312 = vmatpush.bf16.msra.mxu0 %v7501
    %10313 = vmatpush.bf16.msra.mxu0 %v7497
    %10314 = vmatpush.bf16.msra.mxu0 %v7493
    %10315 = vmatpush.bf16.msra.mxu0 %v7489
    %10316 = vmatpush.bf16.msra.mxu0 %v7485
    %10317 = vmatmul.bf16.gmra.mxu0 %v3777
    %v10318 = vpop.f32.mrf.mxu0
    %v10319 = vadd.f32 %v10306, %v10318
    %v10320 = vpop.f32.mrf.mxu0
    %10321 = vdwg.mxu0
    %10322 = vmatpush.bf16.msra.mxu0 %v7545
    %10323 = vmatpush.bf16.msra.mxu0 %v7541
    %10324 = vmatpush.bf16.msra.mxu0 %v7537
    %10325 = vmatpush.bf16.msra.mxu0 %v7533
    %10326 = vmatpush.bf16.msra.mxu0 %v7529
    %10327 = vmatpush.bf16.msra.mxu0 %v7525
    %10328 = vmatpush.bf16.msra.mxu0 %v7521
    %10329 = vmatpush.bf16.msra.mxu0 %v7517
    %10330 = vmatmul.bf16.gmra.mxu0 %v3778
    %v10331 = vpop.f32.mrf.mxu0
    %v10332 = vadd.f32 %v10319, %v10331
    %v10333 = vpop.f32.mrf.mxu0
    %10334 = vdwg.mxu0
    %10335 = vmatpush.bf16.msra.mxu0 %v7577
    %10336 = vmatpush.bf16.msra.mxu0 %v7573
    %10337 = vmatpush.bf16.msra.mxu0 %v7569
    %10338 = vmatpush.bf16.msra.mxu0 %v7565
    %10339 = vmatpush.bf16.msra.mxu0 %v7561
    %10340 = vmatpush.bf16.msra.mxu0 %v7557
    %10341 = vmatpush.bf16.msra.mxu0 %v7553
    %10342 = vmatpush.bf16.msra.mxu0 %v7549
    %10343 = vmatmul.bf16.gmra.mxu0 %v3779
    %v10344 = vpop.f32.mrf.mxu0
    %v10345 = vadd.f32 %v10332, %v10344
    %v10346 = vpop.f32.mrf.mxu0
    %10347 = vdwg.mxu0
    %10348 = vmatpush.bf16.msra.mxu0 %v7609
    %10349 = vmatpush.bf16.msra.mxu0 %v7605
    %10350 = vmatpush.bf16.msra.mxu0 %v7601
    %10351 = vmatpush.bf16.msra.mxu0 %v7597
    %10352 = vmatpush.bf16.msra.mxu0 %v7593
    %10353 = vmatpush.bf16.msra.mxu0 %v7589
    %10354 = vmatpush.bf16.msra.mxu0 %v7585
    %10355 = vmatpush.bf16.msra.mxu0 %v7581
    %10356 = vmatmul.bf16.gmra.mxu0 %v3780
    %v10357 = vpop.f32.mrf.mxu0
    %v10358 = vadd.f32 %v10345, %v10357
    %v10359 = vpop.f32.mrf.mxu0
    %10360 = vdwg.mxu0
    %10361 = vmatpush.bf16.msra.mxu0 %v7641
    %10362 = vmatpush.bf16.msra.mxu0 %v7637
    %10363 = vmatpush.bf16.msra.mxu0 %v7633
    %10364 = vmatpush.bf16.msra.mxu0 %v7629
    %10365 = vmatpush.bf16.msra.mxu0 %v7625
    %10366 = vmatpush.bf16.msra.mxu0 %v7621
    %10367 = vmatpush.bf16.msra.mxu0 %v7617
    %10368 = vmatpush.bf16.msra.mxu0 %v7613
    %10369 = vmatmul.bf16.gmra.mxu0 %v3781
    %v10370 = vpop.f32.mrf.mxu0
    %v10371 = vadd.f32 %v10358, %v10370
    %v10372 = vpop.f32.mrf.mxu0
    %10373 = vdwg.mxu0
    %10374 = vmatpush.bf16.msra.mxu0 %v7673
    %10375 = vmatpush.bf16.msra.mxu0 %v7669
    %10376 = vmatpush.bf16.msra.mxu0 %v7665
    %10377 = vmatpush.bf16.msra.mxu0 %v7661
    %10378 = vmatpush.bf16.msra.mxu0 %v7657
    %10379 = vmatpush.bf16.msra.mxu0 %v7653
    %10380 = vmatpush.bf16.msra.mxu0 %v7649
    %10381 = vmatpush.bf16.msra.mxu0 %v7645
    %10382 = vmatmul.bf16.gmra.mxu0 %v3782
    %v10383 = vpop.f32.mrf.mxu0
    %v10384 = vadd.f32 %v10371, %v10383
    %v10385 = vpop.f32.mrf.mxu0
    %10386 = vdwg.mxu0
    %10387 = vmatpush.bf16.msra.mxu0 %v7705
    %10388 = vmatpush.bf16.msra.mxu0 %v7701
    %10389 = vmatpush.bf16.msra.mxu0 %v7697
    %10390 = vmatpush.bf16.msra.mxu0 %v7693
    %10391 = vmatpush.bf16.msra.mxu0 %v7689
    %10392 = vmatpush.bf16.msra.mxu0 %v7685
    %10393 = vmatpush.bf16.msra.mxu0 %v7681
    %10394 = vmatpush.bf16.msra.mxu0 %v7677
    %10395 = vmatmul.bf16.gmra.mxu0 %v3783
    %v10396 = vpop.f32.mrf.mxu0
    %v10397 = vadd.f32 %v10384, %v10396
    %v10398 = vpop.f32.mrf.mxu0
    %10399 = vdwg.mxu0
    %10400 = vmatpush.bf16.msra.mxu0 %v7737
    %10401 = vmatpush.bf16.msra.mxu0 %v7733
    %10402 = vmatpush.bf16.msra.mxu0 %v7729
    %10403 = vmatpush.bf16.msra.mxu0 %v7725
    %10404 = vmatpush.bf16.msra.mxu0 %v7721
    %10405 = vmatpush.bf16.msra.mxu0 %v7717
    %10406 = vmatpush.bf16.msra.mxu0 %v7713
    %10407 = vmatpush.bf16.msra.mxu0 %v7709
    %10408 = vmatmul.bf16.gmra.mxu0 %v3784
    %v10409 = vpop.f32.mrf.mxu0
    %v10410 = vadd.f32 %v10397, %v10409
    %v10411 = vpop.f32.mrf.mxu0
    %10412 = vdwg.mxu0
    %10413 = vmatpush.bf16.msra.mxu0 %v7769
    %10414 = vmatpush.bf16.msra.mxu0 %v7765
    %10415 = vmatpush.bf16.msra.mxu0 %v7761
    %10416 = vmatpush.bf16.msra.mxu0 %v7757
    %10417 = vmatpush.bf16.msra.mxu0 %v7753
    %10418 = vmatpush.bf16.msra.mxu0 %v7749
    %10419 = vmatpush.bf16.msra.mxu0 %v7745
    %10420 = vmatpush.bf16.msra.mxu0 %v7741
    %10421 = vmatmul.bf16.gmra.mxu0 %v3785
    %v10422 = vpop.f32.mrf.mxu0
    %v10423 = vadd.f32 %v10410, %v10422
    %v10424 = vpop.f32.mrf.mxu0
    %10425 = vdwg.mxu0
    %10426 = vmatpush.bf16.msra.mxu0 %v7801
    %10427 = vmatpush.bf16.msra.mxu0 %v7797
    %10428 = vmatpush.bf16.msra.mxu0 %v7793
    %10429 = vmatpush.bf16.msra.mxu0 %v7789
    %10430 = vmatpush.bf16.msra.mxu0 %v7785
    %10431 = vmatpush.bf16.msra.mxu0 %v7781
    %10432 = vmatpush.bf16.msra.mxu0 %v7777
    %10433 = vmatpush.bf16.msra.mxu0 %v7773
    %10434 = vmatmul.bf16.gmra.mxu0 %v3786
    %v10435 = vpop.f32.mrf.mxu0
    %v10436 = vadd.f32 %v10423, %v10435
    %v10437 = vpop.f32.mrf.mxu0
    %10438 = vdwg.mxu0
    %10439 = vmatpush.bf16.msra.mxu0 %v7833
    %10440 = vmatpush.bf16.msra.mxu0 %v7829
    %10441 = vmatpush.bf16.msra.mxu0 %v7825
    %10442 = vmatpush.bf16.msra.mxu0 %v7821
    %10443 = vmatpush.bf16.msra.mxu0 %v7817
    %10444 = vmatpush.bf16.msra.mxu0 %v7813
    %10445 = vmatpush.bf16.msra.mxu0 %v7809
    %10446 = vmatpush.bf16.msra.mxu0 %v7805
    %10447 = vmatmul.bf16.gmra.mxu0 %v3787
    %v10448 = vpop.f32.mrf.mxu0
    %v10449 = vadd.f32 %v10436, %v10448
    %v10450 = vpop.f32.mrf.mxu0
    %10451 = vdwg.mxu0
    %10452 = vmatpush.bf16.msra.mxu0 %v7865
    %10453 = vmatpush.bf16.msra.mxu0 %v7861
    %10454 = vmatpush.bf16.msra.mxu0 %v7857
    %10455 = vmatpush.bf16.msra.mxu0 %v7853
    %10456 = vmatpush.bf16.msra.mxu0 %v7849
    %10457 = vmatpush.bf16.msra.mxu0 %v7845
    %10458 = vmatpush.bf16.msra.mxu0 %v7841
    %10459 = vmatpush.bf16.msra.mxu0 %v7837
    %10460 = vmatmul.bf16.gmra.mxu0 %v3788
    %v10461 = vpop.f32.mrf.mxu0
    %v10462 = vadd.f32 %v10449, %v10461
    %v10463 = vpop.f32.mrf.mxu0
    %10464 = vdwg.mxu0
    %10465 = vmatpush.bf16.msra.mxu0 %v7897
    %10466 = vmatpush.bf16.msra.mxu0 %v7893
    %10467 = vmatpush.bf16.msra.mxu0 %v7889
    %10468 = vmatpush.bf16.msra.mxu0 %v7885
    %10469 = vmatpush.bf16.msra.mxu0 %v7881
    %10470 = vmatpush.bf16.msra.mxu0 %v7877
    %10471 = vmatpush.bf16.msra.mxu0 %v7873
    %10472 = vmatpush.bf16.msra.mxu0 %v7869
    %10473 = vmatmul.bf16.gmra.mxu0 %v3789
    %v10474 = vpop.f32.mrf.mxu0
    %v10475 = vadd.f32 %v10462, %v10474
    %v10476 = vpop.f32.mrf.mxu0
    %10477 = vdwg.mxu0
    %10478 = vmatpush.bf16.msra.mxu0 %v7929
    %10479 = vmatpush.bf16.msra.mxu0 %v7925
    %10480 = vmatpush.bf16.msra.mxu0 %v7921
    %10481 = vmatpush.bf16.msra.mxu0 %v7917
    %10482 = vmatpush.bf16.msra.mxu0 %v7913
    %10483 = vmatpush.bf16.msra.mxu0 %v7909
    %10484 = vmatpush.bf16.msra.mxu0 %v7905
    %10485 = vmatpush.bf16.msra.mxu0 %v7901
    %10486 = vmatmul.bf16.gmra.mxu0 %v3790
    %v10487 = vpop.f32.mrf.mxu0
    %v10488 = vadd.f32 %v10475, %v10487
    %v10489 = vpop.f32.mrf.mxu0
    %10490 = vdwg.mxu0
    %10491 = vmatpush.bf16.msra.mxu0 %v7961
    %10492 = vmatpush.bf16.msra.mxu0 %v7957
    %10493 = vmatpush.bf16.msra.mxu0 %v7953
    %10494 = vmatpush.bf16.msra.mxu0 %v7949
    %10495 = vmatpush.bf16.msra.mxu0 %v7945
    %10496 = vmatpush.bf16.msra.mxu0 %v7941
    %10497 = vmatpush.bf16.msra.mxu0 %v7937
    %10498 = vmatpush.bf16.msra.mxu0 %v7933
    %10499 = vmatmul.bf16.gmra.mxu0 %v3791
    %v10500 = vpop.f32.mrf.mxu0
    %v10501 = vadd.f32 %v10488, %v10500
    %v10502 = vpop.f32.mrf.mxu0
    %10503 = vdwg.mxu0
    %10504 = vmatpush.bf16.msra.mxu0 %v7993
    %10505 = vmatpush.bf16.msra.mxu0 %v7989
    %10506 = vmatpush.bf16.msra.mxu0 %v7985
    %10507 = vmatpush.bf16.msra.mxu0 %v7981
    %10508 = vmatpush.bf16.msra.mxu0 %v7977
    %10509 = vmatpush.bf16.msra.mxu0 %v7973
    %10510 = vmatpush.bf16.msra.mxu0 %v7969
    %10511 = vmatpush.bf16.msra.mxu0 %v7965
    %10512 = vmatmul.bf16.gmra.mxu0 %v3792
    %v10513 = vpop.f32.mrf.mxu0
    %v10514 = vadd.f32 %v10501, %v10513
    %v10515 = vpop.f32.mrf.mxu0
    %10516 = vdwg.mxu0
    %10517 = vmatpush.bf16.msra.mxu0 %v8025
    %10518 = vmatpush.bf16.msra.mxu0 %v8021
    %10519 = vmatpush.bf16.msra.mxu0 %v8017
    %10520 = vmatpush.bf16.msra.mxu0 %v8013
    %10521 = vmatpush.bf16.msra.mxu0 %v8009
    %10522 = vmatpush.bf16.msra.mxu0 %v8005
    %10523 = vmatpush.bf16.msra.mxu0 %v8001
    %10524 = vmatpush.bf16.msra.mxu0 %v7997
    %10525 = vmatmul.bf16.gmra.mxu0 %v3793
    %v10526 = vpop.f32.mrf.mxu0
    %v10527 = vadd.f32 %v10514, %v10526
    %v10528 = vpop.f32.mrf.mxu0
    %10529 = vdwg.mxu0
    %10530 = vmatpush.bf16.msra.mxu0 %v8057
    %10531 = vmatpush.bf16.msra.mxu0 %v8053
    %10532 = vmatpush.bf16.msra.mxu0 %v8049
    %10533 = vmatpush.bf16.msra.mxu0 %v8045
    %10534 = vmatpush.bf16.msra.mxu0 %v8041
    %10535 = vmatpush.bf16.msra.mxu0 %v8037
    %10536 = vmatpush.bf16.msra.mxu0 %v8033
    %10537 = vmatpush.bf16.msra.mxu0 %v8029
    %10538 = vmatmul.bf16.gmra.mxu0 %v3794
    %v10539 = vpop.f32.mrf.mxu0
    %v10540 = vadd.f32 %v10527, %v10539
    %v10541 = vpop.f32.mrf.mxu0
    %10542 = vdwg.mxu0
    %10543 = vmatpush.bf16.msra.mxu0 %v8089
    %10544 = vmatpush.bf16.msra.mxu0 %v8085
    %10545 = vmatpush.bf16.msra.mxu0 %v8081
    %10546 = vmatpush.bf16.msra.mxu0 %v8077
    %10547 = vmatpush.bf16.msra.mxu0 %v8073
    %10548 = vmatpush.bf16.msra.mxu0 %v8069
    %10549 = vmatpush.bf16.msra.mxu0 %v8065
    %10550 = vmatpush.bf16.msra.mxu0 %v8061
    %10551 = vmatmul.bf16.gmra.mxu0 %v3795
    %v10552 = vpop.f32.mrf.mxu0
    %v10553 = vadd.f32 %v10540, %v10552
    %v10554 = vpop.f32.mrf.mxu0
    %10555 = vdwg.mxu0
    %10556 = vmatpush.bf16.msra.mxu0 %v8121
    %10557 = vmatpush.bf16.msra.mxu0 %v8117
    %10558 = vmatpush.bf16.msra.mxu0 %v8113
    %10559 = vmatpush.bf16.msra.mxu0 %v8109
    %10560 = vmatpush.bf16.msra.mxu0 %v8105
    %10561 = vmatpush.bf16.msra.mxu0 %v8101
    %10562 = vmatpush.bf16.msra.mxu0 %v8097
    %10563 = vmatpush.bf16.msra.mxu0 %v8093
    %10564 = vmatmul.bf16.gmra.mxu0 %v3796
    %v10565 = vpop.f32.mrf.mxu0
    %v10566 = vadd.f32 %v10553, %v10565
    %v10567 = vpop.f32.mrf.mxu0
    %10568 = vdwg.mxu0
    %10569 = vmatpush.bf16.msra.mxu0 %v8153
    %10570 = vmatpush.bf16.msra.mxu0 %v8149
    %10571 = vmatpush.bf16.msra.mxu0 %v8145
    %10572 = vmatpush.bf16.msra.mxu0 %v8141
    %10573 = vmatpush.bf16.msra.mxu0 %v8137
    %10574 = vmatpush.bf16.msra.mxu0 %v8133
    %10575 = vmatpush.bf16.msra.mxu0 %v8129
    %10576 = vmatpush.bf16.msra.mxu0 %v8125
    %10577 = vmatmul.bf16.gmra.mxu0 %v3797
    %v10578 = vpop.f32.mrf.mxu0
    %v10579 = vadd.f32 %v10566, %v10578
    %v10580 = vpop.f32.mrf.mxu0
    %10581 = vdwg.mxu0
    %10582 = vmatpush.bf16.msra.mxu0 %v8185
    %10583 = vmatpush.bf16.msra.mxu0 %v8181
    %10584 = vmatpush.bf16.msra.mxu0 %v8177
    %10585 = vmatpush.bf16.msra.mxu0 %v8173
    %10586 = vmatpush.bf16.msra.mxu0 %v8169
    %10587 = vmatpush.bf16.msra.mxu0 %v8165
    %10588 = vmatpush.bf16.msra.mxu0 %v8161
    %10589 = vmatpush.bf16.msra.mxu0 %v8157
    %10590 = vmatmul.bf16.gmra.mxu0 %v3798
    %v10591 = vpop.f32.mrf.mxu0
    %v10592 = vadd.f32 %v10579, %v10591
    %v10593 = vpop.f32.mrf.mxu0
    %10594 = vdwg.mxu0
    %10595 = vmatpush.bf16.msra.mxu0 %v8217
    %10596 = vmatpush.bf16.msra.mxu0 %v8213
    %10597 = vmatpush.bf16.msra.mxu0 %v8209
    %10598 = vmatpush.bf16.msra.mxu0 %v8205
    %10599 = vmatpush.bf16.msra.mxu0 %v8201
    %10600 = vmatpush.bf16.msra.mxu0 %v8197
    %10601 = vmatpush.bf16.msra.mxu0 %v8193
    %10602 = vmatpush.bf16.msra.mxu0 %v8189
    %10603 = vmatmul.bf16.gmra.mxu0 %v3799
    %v10604 = vpop.f32.mrf.mxu0
    %v10605 = vadd.f32 %v10592, %v10604
    %v10606 = vpop.f32.mrf.mxu0
    %10607 = vdwg.mxu0
    %10608 = vmatpush.bf16.msra.mxu0 %v8249
    %10609 = vmatpush.bf16.msra.mxu0 %v8245
    %10610 = vmatpush.bf16.msra.mxu0 %v8241
    %10611 = vmatpush.bf16.msra.mxu0 %v8237
    %10612 = vmatpush.bf16.msra.mxu0 %v8233
    %10613 = vmatpush.bf16.msra.mxu0 %v8229
    %10614 = vmatpush.bf16.msra.mxu0 %v8225
    %10615 = vmatpush.bf16.msra.mxu0 %v8221
    %10616 = vmatmul.bf16.gmra.mxu0 %v3800
    %v10617 = vpop.f32.mrf.mxu0
    %v10618 = vadd.f32 %v10605, %v10617
    %v10619 = vpop.f32.mrf.mxu0
    %10620 = vdwg.mxu0
    %10621 = vmatpush.bf16.msra.mxu0 %v8281
    %10622 = vmatpush.bf16.msra.mxu0 %v8277
    %10623 = vmatpush.bf16.msra.mxu0 %v8273
    %10624 = vmatpush.bf16.msra.mxu0 %v8269
    %10625 = vmatpush.bf16.msra.mxu0 %v8265
    %10626 = vmatpush.bf16.msra.mxu0 %v8261
    %10627 = vmatpush.bf16.msra.mxu0 %v8257
    %10628 = vmatpush.bf16.msra.mxu0 %v8253
    %10629 = vmatmul.bf16.gmra.mxu0 %v3801
    %v10630 = vpop.f32.mrf.mxu0
    %v10631 = vadd.f32 %v10618, %v10630
    %v10632 = vpop.f32.mrf.mxu0
    %10633 = vdwg.mxu0
    %v10634 = vadd.f32 %v3708, %v9539
    %v10635 = vadd.f32 %v3728, %v9903
    %v10636 = vadd.f32 %v3748, %v10267
    %v10637 = vadd.f32 %v3768, %v10631
    %v10638 = vmax.f32 %v10634, 0.0
    %v10639 = vmax.f32 %v10635, 0.0
    %v10640 = vmax.f32 %v10636, 0.0
    %v10641 = vmax.f32 %v10637, 0.0
    %v10642 = vpack.c.bf16 %v10638, %v10638
    %v10643 = vpack.c.bf16 %v10639, %v10639
    %v10644 = vpack.c.bf16 %v10640, %v10640
    %v10645 = vpack.c.bf16 %v10641, %v10641
    %v10646 = vld [vmem:[#allocation26] sm:$0xff]
    %v10647 = vld [vmem:[#allocation26 + $0x8] sm:$0xff]
    %v10648 = vld [vmem:[#allocation26 + $0x10] sm:$0xff]
    %v10649 = vld [vmem:[#allocation26 + $0x18] sm:$0xff]
    %v10650 = vld [vmem:[#allocation26 + $0x20] sm:$0xff]
    %v10651 = vld [vmem:[#allocation26 + $0x28] sm:$0xff]
    %v10652 = vld [vmem:[#allocation26 + $0x30] sm:$0xff]
    %v10653 = vld [vmem:[#allocation26 + $0x38] sm:$0xff]
    %v10654 = vld [vmem:[#allocation26 + $0x40] sm:$0xff]
    %v10655 = vld [vmem:[#allocation26 + $0x48] sm:$0xff]
    %v10656 = vld [vmem:[#allocation26 + $0x50] sm:$0xff]
    %v10657 = vld [vmem:[#allocation26 + $0x58] sm:$0xff]
    %v10658 = vld [vmem:[#allocation26 + $0x60] sm:$0xff]
    %v10659 = vld [vmem:[#allocation26 + $0x68] sm:$0xff]
    %v10660 = vld [vmem:[#allocation26 + $0x70] sm:$0xff]
    %v10661 = vld [vmem:[#allocation26 + $0x78] sm:$0xff]
    %v10662 = vld [vmem:[#allocation26 + $0x80] sm:$0xff]
    %v10663 = vld [vmem:[#allocation26 + $0x88] sm:$0xff]
    %v10664 = vld [vmem:[#allocation26 + $0x90] sm:$0xff]
    %v10665 = vld [vmem:[#allocation26 + $0x98] sm:$0xff]
    %v10666 = vld [vmem:[#allocation26 + $0xa0] sm:$0xff]
    %v10667 = vld [vmem:[#allocation26 + $0xa8] sm:$0xff]
    %v10668 = vld [vmem:[#allocation26 + $0xb0] sm:$0xff]
    %v10669 = vld [vmem:[#allocation26 + $0xb8] sm:$0xff]
    %v10670 = vld [vmem:[#allocation26 + $0xc0] sm:$0xff]
    %v10671 = vld [vmem:[#allocation26 + $0xc8] sm:$0xff]
    %v10672 = vld [vmem:[#allocation26 + $0xd0] sm:$0xff]
    %v10673 = vld [vmem:[#allocation26 + $0xd8] sm:$0xff]
    %v10674 = vld [vmem:[#allocation26 + $0xe0] sm:$0xff]
    %v10675 = vld [vmem:[#allocation26 + $0xe8] sm:$0xff]
    %v10676 = vld [vmem:[#allocation26 + $0xf0] sm:$0xff]
    %v10677 = vld [vmem:[#allocation26 + $0xf8] sm:$0xff]
    %v10678 = vld [vmem:[#allocation26 + $0x100] sm:$0xff]
    %v10679 = vld [vmem:[#allocation26 + $0x108] sm:$0xff]
    %v10680 = vld [vmem:[#allocation26 + $0x110] sm:$0xff]
    %v10681 = vld [vmem:[#allocation26 + $0x118] sm:$0xff]
    %v10682 = vld [vmem:[#allocation26 + $0x120] sm:$0xff]
    %v10683 = vld [vmem:[#allocation26 + $0x128] sm:$0xff]
    %v10684 = vld [vmem:[#allocation26 + $0x130] sm:$0xff]
    %v10685 = vld [vmem:[#allocation26 + $0x138] sm:$0xff]
    %v10686 = vld [vmem:[#allocation26 + $0x140] sm:$0xff]
    %v10687 = vld [vmem:[#allocation26 + $0x148] sm:$0xff]
    %v10688 = vld [vmem:[#allocation26 + $0x150] sm:$0xff]
    %v10689 = vld [vmem:[#allocation26 + $0x158] sm:$0xff]
    %v10690 = vld [vmem:[#allocation26 + $0x160] sm:$0xff]
    %v10691 = vld [vmem:[#allocation26 + $0x168] sm:$0xff]
    %v10692 = vld [vmem:[#allocation26 + $0x170] sm:$0xff]
    %v10693 = vld [vmem:[#allocation26 + $0x178] sm:$0xff]
    %v10694 = vld [vmem:[#allocation26 + $0x180] sm:$0xff]
    %v10695 = vld [vmem:[#allocation26 + $0x188] sm:$0xff]
    %v10696 = vld [vmem:[#allocation26 + $0x190] sm:$0xff]
    %v10697 = vld [vmem:[#allocation26 + $0x198] sm:$0xff]
    %v10698 = vld [vmem:[#allocation26 + $0x1a0] sm:$0xff]
    %v10699 = vld [vmem:[#allocation26 + $0x1a8] sm:$0xff]
    %v10700 = vld [vmem:[#allocation26 + $0x1b0] sm:$0xff]
    %v10701 = vld [vmem:[#allocation26 + $0x1b8] sm:$0xff]
    %v10702 = vld [vmem:[#allocation26 + $0x1c0] sm:$0xff]
    %v10703 = vld [vmem:[#allocation26 + $0x1c8] sm:$0xff]
    %v10704 = vld [vmem:[#allocation26 + $0x1d0] sm:$0xff]
    %v10705 = vld [vmem:[#allocation26 + $0x1d8] sm:$0xff]
    %v10706 = vld [vmem:[#allocation26 + $0x1e0] sm:$0xff]
    %v10707 = vld [vmem:[#allocation26 + $0x1e8] sm:$0xff]
    %v10708 = vld [vmem:[#allocation26 + $0x1f0] sm:$0xff]
    %v10709 = vld [vmem:[#allocation26 + $0x1f8] sm:$0xff]
    %v10710 = vld [vmem:[#allocation26 + $0x200] sm:$0xff]
    %v10711 = vld [vmem:[#allocation26 + $0x208] sm:$0xff]
    %v10712 = vld [vmem:[#allocation26 + $0x210] sm:$0xff]
    %v10713 = vld [vmem:[#allocation26 + $0x218] sm:$0xff]
    %v10714 = vld [vmem:[#allocation26 + $0x220] sm:$0xff]
    %v10715 = vld [vmem:[#allocation26 + $0x228] sm:$0xff]
    %v10716 = vld [vmem:[#allocation26 + $0x230] sm:$0xff]
    %v10717 = vld [vmem:[#allocation26 + $0x238] sm:$0xff]
    %v10718 = vld [vmem:[#allocation26 + $0x240] sm:$0xff]
    %v10719 = vld [vmem:[#allocation26 + $0x248] sm:$0xff]
    %v10720 = vld [vmem:[#allocation26 + $0x250] sm:$0xff]
    %v10721 = vld [vmem:[#allocation26 + $0x258] sm:$0xff]
    %v10722 = vld [vmem:[#allocation26 + $0x260] sm:$0xff]
    %v10723 = vld [vmem:[#allocation26 + $0x268] sm:$0xff]
    %v10724 = vld [vmem:[#allocation26 + $0x270] sm:$0xff]
    %v10725 = vld [vmem:[#allocation26 + $0x278] sm:$0xff]
    %v10726 = vld [vmem:[#allocation26 + $0x280] sm:$0xff]
    %v10727 = vld [vmem:[#allocation26 + $0x288] sm:$0xff]
    %v10728 = vld [vmem:[#allocation26 + $0x290] sm:$0xff]
    %v10729 = vld [vmem:[#allocation26 + $0x298] sm:$0xff]
    %v10730 = vld [vmem:[#allocation26 + $0x2a0] sm:$0xff]
    %v10731 = vld [vmem:[#allocation26 + $0x2a8] sm:$0xff]
    %v10732 = vld [vmem:[#allocation26 + $0x2b0] sm:$0xff]
    %v10733 = vld [vmem:[#allocation26 + $0x2b8] sm:$0xff]
    %v10734 = vld [vmem:[#allocation26 + $0x2c0] sm:$0xff]
    %v10735 = vld [vmem:[#allocation26 + $0x2c8] sm:$0xff]
    %v10736 = vld [vmem:[#allocation26 + $0x2d0] sm:$0xff]
    %v10737 = vld [vmem:[#allocation26 + $0x2d8] sm:$0xff]
    %v10738 = vld [vmem:[#allocation26 + $0x2e0] sm:$0xff]
    %v10739 = vld [vmem:[#allocation26 + $0x2e8] sm:$0xff]
    %v10740 = vld [vmem:[#allocation26 + $0x2f0] sm:$0xff]
    %v10741 = vld [vmem:[#allocation26 + $0x2f8] sm:$0xff]
    %v10742 = vld [vmem:[#allocation26 + $0x300] sm:$0xff]
    %v10743 = vld [vmem:[#allocation26 + $0x308] sm:$0xff]
    %v10744 = vld [vmem:[#allocation26 + $0x310] sm:$0xff]
    %v10745 = vld [vmem:[#allocation26 + $0x318] sm:$0xff]
    %v10746 = vld [vmem:[#allocation26 + $0x320] sm:$0xff]
    %v10747 = vld [vmem:[#allocation26 + $0x328] sm:$0xff]
    %v10748 = vld [vmem:[#allocation26 + $0x330] sm:$0xff]
    %v10749 = vld [vmem:[#allocation26 + $0x338] sm:$0xff]
    %v10750 = vld [vmem:[#allocation26 + $0x340] sm:$0xff]
    %v10751 = vld [vmem:[#allocation26 + $0x348] sm:$0xff]
    %v10752 = vld [vmem:[#allocation26 + $0x350] sm:$0xff]
    %v10753 = vld [vmem:[#allocation26 + $0x358] sm:$0xff]
    %v10754 = vld [vmem:[#allocation26 + $0x360] sm:$0xff]
    %v10755 = vld [vmem:[#allocation26 + $0x368] sm:$0xff]
    %v10756 = vld [vmem:[#allocation26 + $0x370] sm:$0xff]
    %v10757 = vld [vmem:[#allocation26 + $0x378] sm:$0xff]
    %v10758 = vld [vmem:[#allocation26 + $0x380] sm:$0xff]
    %v10759 = vld [vmem:[#allocation26 + $0x388] sm:$0xff]
    %v10760 = vld [vmem:[#allocation26 + $0x390] sm:$0xff]
    %v10761 = vld [vmem:[#allocation26 + $0x398] sm:$0xff]
    %v10762 = vld [vmem:[#allocation26 + $0x3a0] sm:$0xff]
    %v10763 = vld [vmem:[#allocation26 + $0x3a8] sm:$0xff]
    %v10764 = vld [vmem:[#allocation26 + $0x3b0] sm:$0xff]
    %v10765 = vld [vmem:[#allocation26 + $0x3b8] sm:$0xff]
    %v10766 = vld [vmem:[#allocation26 + $0x3c0] sm:$0xff]
    %v10767 = vld [vmem:[#allocation26 + $0x3c8] sm:$0xff]
    %v10768 = vld [vmem:[#allocation26 + $0x3d0] sm:$0xff]
    %v10769 = vld [vmem:[#allocation26 + $0x3d8] sm:$0xff]
    %v10770 = vld [vmem:[#allocation26 + $0x3e0] sm:$0xff]
    %v10771 = vld [vmem:[#allocation26 + $0x3e8] sm:$0xff]
    %v10772 = vld [vmem:[#allocation26 + $0x3f0] sm:$0xff]
    %v10773 = vld [vmem:[#allocation26 + $0x3f8] sm:$0xff]
    %v10774 = vld [vmem:[#allocation28] sm:$0xf]
    %v10776 = vperm.slane %v10774, 0
    %v10777 = vperm.slane %v10774, 1
    %v10778 = vperm.slane %v10774, 2
    %v10779 = vperm.slane %v10774, 3
    %v10912 = vunpack.c.l.b16 %v10646
    %v10913 = vunpack.c.h.b16 %v10646
    %v10914 = vunpack.c.l.b16 %v10647
    %v10915 = vunpack.c.h.b16 %v10647
    %v10916 = vunpack.c.l.b16 %v10648
    %v10917 = vunpack.c.h.b16 %v10648
    %v10918 = vunpack.c.l.b16 %v10649
    %v10919 = vunpack.c.h.b16 %v10649
    %v10920 = vunpack.c.l.b16 %v10650
    %v10921 = vunpack.c.h.b16 %v10650
    %v10922 = vunpack.c.l.b16 %v10651
    %v10923 = vunpack.c.h.b16 %v10651
    %v10924 = vunpack.c.l.b16 %v10652
    %v10925 = vunpack.c.h.b16 %v10652
    %v10926 = vunpack.c.l.b16 %v10653
    %v10927 = vunpack.c.h.b16 %v10653
    %v10928 = vunpack.c.l.b16 %v10654
    %v10929 = vunpack.c.h.b16 %v10654
    %v10930 = vunpack.c.l.b16 %v10655
    %v10931 = vunpack.c.h.b16 %v10655
    %v10932 = vunpack.c.l.b16 %v10656
    %v10933 = vunpack.c.h.b16 %v10656
    %v10934 = vunpack.c.l.b16 %v10657
    %v10935 = vunpack.c.h.b16 %v10657
    %v10936 = vunpack.c.l.b16 %v10658
    %v10937 = vunpack.c.h.b16 %v10658
    %v10938 = vunpack.c.l.b16 %v10659
    %v10939 = vunpack.c.h.b16 %v10659
    %v10940 = vunpack.c.l.b16 %v10660
    %v10941 = vunpack.c.h.b16 %v10660
    %v10942 = vunpack.c.l.b16 %v10661
    %v10943 = vunpack.c.h.b16 %v10661
    %v10944 = vunpack.c.l.b16 %v10662
    %v10945 = vunpack.c.h.b16 %v10662
    %v10946 = vunpack.c.l.b16 %v10663
    %v10947 = vunpack.c.h.b16 %v10663
    %v10948 = vunpack.c.l.b16 %v10664
    %v10949 = vunpack.c.h.b16 %v10664
    %v10950 = vunpack.c.l.b16 %v10665
    %v10951 = vunpack.c.h.b16 %v10665
    %v10952 = vunpack.c.l.b16 %v10666
    %v10953 = vunpack.c.h.b16 %v10666
    %v10954 = vunpack.c.l.b16 %v10667
    %v10955 = vunpack.c.h.b16 %v10667
    %v10956 = vunpack.c.l.b16 %v10668
    %v10957 = vunpack.c.h.b16 %v10668
    %v10958 = vunpack.c.l.b16 %v10669
    %v10959 = vunpack.c.h.b16 %v10669
    %v10960 = vunpack.c.l.b16 %v10670
    %v10961 = vunpack.c.h.b16 %v10670
    %v10962 = vunpack.c.l.b16 %v10671
    %v10963 = vunpack.c.h.b16 %v10671
    %v10964 = vunpack.c.l.b16 %v10672
    %v10965 = vunpack.c.h.b16 %v10672
    %v10966 = vunpack.c.l.b16 %v10673
    %v10967 = vunpack.c.h.b16 %v10673
    %v10968 = vunpack.c.l.b16 %v10674
    %v10969 = vunpack.c.h.b16 %v10674
    %v10970 = vunpack.c.l.b16 %v10675
    %v10971 = vunpack.c.h.b16 %v10675
    %v10972 = vunpack.c.l.b16 %v10676
    %v10973 = vunpack.c.h.b16 %v10676
    %v10974 = vunpack.c.l.b16 %v10677
    %v10975 = vunpack.c.h.b16 %v10677
    %v10976 = vunpack.c.l.b16 %v10678
    %v10977 = vunpack.c.h.b16 %v10678
    %v10978 = vunpack.c.l.b16 %v10679
    %v10979 = vunpack.c.h.b16 %v10679
    %v10980 = vunpack.c.l.b16 %v10680
    %v10981 = vunpack.c.h.b16 %v10680
    %v10982 = vunpack.c.l.b16 %v10681
    %v10983 = vunpack.c.h.b16 %v10681
    %v10984 = vunpack.c.l.b16 %v10682
    %v10985 = vunpack.c.h.b16 %v10682
    %v10986 = vunpack.c.l.b16 %v10683
    %v10987 = vunpack.c.h.b16 %v10683
    %v10988 = vunpack.c.l.b16 %v10684
    %v10989 = vunpack.c.h.b16 %v10684
    %v10990 = vunpack.c.l.b16 %v10685
    %v10991 = vunpack.c.h.b16 %v10685
    %v10992 = vunpack.c.l.b16 %v10686
    %v10993 = vunpack.c.h.b16 %v10686
    %v10994 = vunpack.c.l.b16 %v10687
    %v10995 = vunpack.c.h.b16 %v10687
    %v10996 = vunpack.c.l.b16 %v10688
    %v10997 = vunpack.c.h.b16 %v10688
    %v10998 = vunpack.c.l.b16 %v10689
    %v10999 = vunpack.c.h.b16 %v10689
    %v11000 = vunpack.c.l.b16 %v10690
    %v11001 = vunpack.c.h.b16 %v10690
    %v11002 = vunpack.c.l.b16 %v10691
    %v11003 = vunpack.c.h.b16 %v10691
    %v11004 = vunpack.c.l.b16 %v10692
    %v11005 = vunpack.c.h.b16 %v10692
    %v11006 = vunpack.c.l.b16 %v10693
    %v11007 = vunpack.c.h.b16 %v10693
    %v11008 = vunpack.c.l.b16 %v10694
    %v11009 = vunpack.c.h.b16 %v10694
    %v11010 = vunpack.c.l.b16 %v10695
    %v11011 = vunpack.c.h.b16 %v10695
    %v11012 = vunpack.c.l.b16 %v10696
    %v11013 = vunpack.c.h.b16 %v10696
    %v11014 = vunpack.c.l.b16 %v10697
    %v11015 = vunpack.c.h.b16 %v10697
    %v11016 = vunpack.c.l.b16 %v10698
    %v11017 = vunpack.c.h.b16 %v10698
    %v11018 = vunpack.c.l.b16 %v10699
    %v11019 = vunpack.c.h.b16 %v10699
    %v11020 = vunpack.c.l.b16 %v10700
    %v11021 = vunpack.c.h.b16 %v10700
    %v11022 = vunpack.c.l.b16 %v10701
    %v11023 = vunpack.c.h.b16 %v10701
    %v11024 = vunpack.c.l.b16 %v10702
    %v11025 = vunpack.c.h.b16 %v10702
    %v11026 = vunpack.c.l.b16 %v10703
    %v11027 = vunpack.c.h.b16 %v10703
    %v11028 = vunpack.c.l.b16 %v10704
    %v11029 = vunpack.c.h.b16 %v10704
    %v11030 = vunpack.c.l.b16 %v10705
    %v11031 = vunpack.c.h.b16 %v10705
    %v11032 = vunpack.c.l.b16 %v10706
    %v11033 = vunpack.c.h.b16 %v10706
    %v11034 = vunpack.c.l.b16 %v10707
    %v11035 = vunpack.c.h.b16 %v10707
    %v11036 = vunpack.c.l.b16 %v10708
    %v11037 = vunpack.c.h.b16 %v10708
    %v11038 = vunpack.c.l.b16 %v10709
    %v11039 = vunpack.c.h.b16 %v10709
    %v11040 = vunpack.c.l.b16 %v10710
    %v11041 = vunpack.c.h.b16 %v10710
    %v11042 = vunpack.c.l.b16 %v10711
    %v11043 = vunpack.c.h.b16 %v10711
    %v11044 = vunpack.c.l.b16 %v10712
    %v11045 = vunpack.c.h.b16 %v10712
    %v11046 = vunpack.c.l.b16 %v10713
    %v11047 = vunpack.c.h.b16 %v10713
    %v11048 = vunpack.c.l.b16 %v10714
    %v11049 = vunpack.c.h.b16 %v10714
    %v11050 = vunpack.c.l.b16 %v10715
    %v11051 = vunpack.c.h.b16 %v10715
    %v11052 = vunpack.c.l.b16 %v10716
    %v11053 = vunpack.c.h.b16 %v10716
    %v11054 = vunpack.c.l.b16 %v10717
    %v11055 = vunpack.c.h.b16 %v10717
    %v11056 = vunpack.c.l.b16 %v10718
    %v11057 = vunpack.c.h.b16 %v10718
    %v11058 = vunpack.c.l.b16 %v10719
    %v11059 = vunpack.c.h.b16 %v10719
    %v11060 = vunpack.c.l.b16 %v10720
    %v11061 = vunpack.c.h.b16 %v10720
    %v11062 = vunpack.c.l.b16 %v10721
    %v11063 = vunpack.c.h.b16 %v10721
    %v11064 = vunpack.c.l.b16 %v10722
    %v11065 = vunpack.c.h.b16 %v10722
    %v11066 = vunpack.c.l.b16 %v10723
    %v11067 = vunpack.c.h.b16 %v10723
    %v11068 = vunpack.c.l.b16 %v10724
    %v11069 = vunpack.c.h.b16 %v10724
    %v11070 = vunpack.c.l.b16 %v10725
    %v11071 = vunpack.c.h.b16 %v10725
    %v11072 = vunpack.c.l.b16 %v10726
    %v11073 = vunpack.c.h.b16 %v10726
    %v11074 = vunpack.c.l.b16 %v10727
    %v11075 = vunpack.c.h.b16 %v10727
    %v11076 = vunpack.c.l.b16 %v10728
    %v11077 = vunpack.c.h.b16 %v10728
    %v11078 = vunpack.c.l.b16 %v10729
    %v11079 = vunpack.c.h.b16 %v10729
    %v11080 = vunpack.c.l.b16 %v10730
    %v11081 = vunpack.c.h.b16 %v10730
    %v11082 = vunpack.c.l.b16 %v10731
    %v11083 = vunpack.c.h.b16 %v10731
    %v11084 = vunpack.c.l.b16 %v10732
    %v11085 = vunpack.c.h.b16 %v10732
    %v11086 = vunpack.c.l.b16 %v10733
    %v11087 = vunpack.c.h.b16 %v10733
    %v11088 = vunpack.c.l.b16 %v10734
    %v11089 = vunpack.c.h.b16 %v10734
    %v11090 = vunpack.c.l.b16 %v10735
    %v11091 = vunpack.c.h.b16 %v10735
    %v11092 = vunpack.c.l.b16 %v10736
    %v11093 = vunpack.c.h.b16 %v10736
    %v11094 = vunpack.c.l.b16 %v10737
    %v11095 = vunpack.c.h.b16 %v10737
    %v11096 = vunpack.c.l.b16 %v10738
    %v11097 = vunpack.c.h.b16 %v10738
    %v11098 = vunpack.c.l.b16 %v10739
    %v11099 = vunpack.c.h.b16 %v10739
    %v11100 = vunpack.c.l.b16 %v10740
    %v11101 = vunpack.c.h.b16 %v10740
    %v11102 = vunpack.c.l.b16 %v10741
    %v11103 = vunpack.c.h.b16 %v10741
    %v11104 = vunpack.c.l.b16 %v10742
    %v11105 = vunpack.c.h.b16 %v10742
    %v11106 = vunpack.c.l.b16 %v10743
    %v11107 = vunpack.c.h.b16 %v10743
    %v11108 = vunpack.c.l.b16 %v10744
    %v11109 = vunpack.c.h.b16 %v10744
    %v11110 = vunpack.c.l.b16 %v10745
    %v11111 = vunpack.c.h.b16 %v10745
    %v11112 = vunpack.c.l.b16 %v10746
    %v11113 = vunpack.c.h.b16 %v10746
    %v11114 = vunpack.c.l.b16 %v10747
    %v11115 = vunpack.c.h.b16 %v10747
    %v11116 = vunpack.c.l.b16 %v10748
    %v11117 = vunpack.c.h.b16 %v10748
    %v11118 = vunpack.c.l.b16 %v10749
    %v11119 = vunpack.c.h.b16 %v10749
    %v11120 = vunpack.c.l.b16 %v10750
    %v11121 = vunpack.c.h.b16 %v10750
    %v11122 = vunpack.c.l.b16 %v10751
    %v11123 = vunpack.c.h.b16 %v10751
    %v11124 = vunpack.c.l.b16 %v10752
    %v11125 = vunpack.c.h.b16 %v10752
    %v11126 = vunpack.c.l.b16 %v10753
    %v11127 = vunpack.c.h.b16 %v10753
    %v11128 = vunpack.c.l.b16 %v10754
    %v11129 = vunpack.c.h.b16 %v10754
    %v11130 = vunpack.c.l.b16 %v10755
    %v11131 = vunpack.c.h.b16 %v10755
    %v11132 = vunpack.c.l.b16 %v10756
    %v11133 = vunpack.c.h.b16 %v10756
    %v11134 = vunpack.c.l.b16 %v10757
    %v11135 = vunpack.c.h.b16 %v10757
    %v11136 = vunpack.c.l.b16 %v10758
    %v11137 = vunpack.c.h.b16 %v10758
    %v11138 = vunpack.c.l.b16 %v10759
    %v11139 = vunpack.c.h.b16 %v10759
    %v11140 = vunpack.c.l.b16 %v10760
    %v11141 = vunpack.c.h.b16 %v10760
    %v11142 = vunpack.c.l.b16 %v10761
    %v11143 = vunpack.c.h.b16 %v10761
    %v11144 = vunpack.c.l.b16 %v10762
    %v11145 = vunpack.c.h.b16 %v10762
    %v11146 = vunpack.c.l.b16 %v10763
    %v11147 = vunpack.c.h.b16 %v10763
    %v11148 = vunpack.c.l.b16 %v10764
    %v11149 = vunpack.c.h.b16 %v10764
    %v11150 = vunpack.c.l.b16 %v10765
    %v11151 = vunpack.c.h.b16 %v10765
    %v11152 = vunpack.c.l.b16 %v10766
    %v11153 = vunpack.c.h.b16 %v10766
    %v11154 = vunpack.c.l.b16 %v10767
    %v11155 = vunpack.c.h.b16 %v10767
    %v11156 = vunpack.c.l.b16 %v10768
    %v11157 = vunpack.c.h.b16 %v10768
    %v11158 = vunpack.c.l.b16 %v10769
    %v11159 = vunpack.c.h.b16 %v10769
    %v11160 = vunpack.c.l.b16 %v10770
    %v11161 = vunpack.c.h.b16 %v10770
    %v11162 = vunpack.c.l.b16 %v10771
    %v11163 = vunpack.c.h.b16 %v10771
    %v11164 = vunpack.c.l.b16 %v10772
    %v11165 = vunpack.c.h.b16 %v10772
    %v11166 = vunpack.c.l.b16 %v10773
    %v11167 = vunpack.c.h.b16 %v10773
    %v11168 = vpack.c.b16 %v10916, %v10912
    %v11169 = vpack.c.b16 %v10917, %v10913
    %v11170 = vpack.c.b16 %v10918, %v10914
    %v11171 = vpack.c.b16 %v10919, %v10915
    %v11172 = vpack.c.b16 %v10924, %v10920
    %v11173 = vpack.c.b16 %v10925, %v10921
    %v11174 = vpack.c.b16 %v10926, %v10922
    %v11175 = vpack.c.b16 %v10927, %v10923
    %v11176 = vpack.c.b16 %v10932, %v10928
    %v11177 = vpack.c.b16 %v10933, %v10929
    %v11178 = vpack.c.b16 %v10934, %v10930
    %v11179 = vpack.c.b16 %v10935, %v10931
    %v11180 = vpack.c.b16 %v10940, %v10936
    %v11181 = vpack.c.b16 %v10941, %v10937
    %v11182 = vpack.c.b16 %v10942, %v10938
    %v11183 = vpack.c.b16 %v10943, %v10939
    %v11184 = vpack.c.b16 %v10948, %v10944
    %v11185 = vpack.c.b16 %v10949, %v10945
    %v11186 = vpack.c.b16 %v10950, %v10946
    %v11187 = vpack.c.b16 %v10951, %v10947
    %v11188 = vpack.c.b16 %v10956, %v10952
    %v11189 = vpack.c.b16 %v10957, %v10953
    %v11190 = vpack.c.b16 %v10958, %v10954
    %v11191 = vpack.c.b16 %v10959, %v10955
    %v11192 = vpack.c.b16 %v10964, %v10960
    %v11193 = vpack.c.b16 %v10965, %v10961
    %v11194 = vpack.c.b16 %v10966, %v10962
    %v11195 = vpack.c.b16 %v10967, %v10963
    %v11196 = vpack.c.b16 %v10972, %v10968
    %v11197 = vpack.c.b16 %v10973, %v10969
    %v11198 = vpack.c.b16 %v10974, %v10970
    %v11199 = vpack.c.b16 %v10975, %v10971
    %v11200 = vpack.c.b16 %v10980, %v10976
    %v11201 = vpack.c.b16 %v10981, %v10977
    %v11202 = vpack.c.b16 %v10982, %v10978
    %v11203 = vpack.c.b16 %v10983, %v10979
    %v11204 = vpack.c.b16 %v10988, %v10984
    %v11205 = vpack.c.b16 %v10989, %v10985
    %v11206 = vpack.c.b16 %v10990, %v10986
    %v11207 = vpack.c.b16 %v10991, %v10987
    %v11208 = vpack.c.b16 %v10996, %v10992
    %v11209 = vpack.c.b16 %v10997, %v10993
    %v11210 = vpack.c.b16 %v10998, %v10994
    %v11211 = vpack.c.b16 %v10999, %v10995
    %v11212 = vpack.c.b16 %v11004, %v11000
    %v11213 = vpack.c.b16 %v11005, %v11001
    %v11214 = vpack.c.b16 %v11006, %v11002
    %v11215 = vpack.c.b16 %v11007, %v11003
    %v11216 = vpack.c.b16 %v11012, %v11008
    %v11217 = vpack.c.b16 %v11013, %v11009
    %v11218 = vpack.c.b16 %v11014, %v11010
    %v11219 = vpack.c.b16 %v11015, %v11011
    %v11220 = vpack.c.b16 %v11020, %v11016
    %v11221 = vpack.c.b16 %v11021, %v11017
    %v11222 = vpack.c.b16 %v11022, %v11018
    %v11223 = vpack.c.b16 %v11023, %v11019
    %v11224 = vpack.c.b16 %v11028, %v11024
    %v11225 = vpack.c.b16 %v11029, %v11025
    %v11226 = vpack.c.b16 %v11030, %v11026
    %v11227 = vpack.c.b16 %v11031, %v11027
    %v11228 = vpack.c.b16 %v11036, %v11032
    %v11229 = vpack.c.b16 %v11037, %v11033
    %v11230 = vpack.c.b16 %v11038, %v11034
    %v11231 = vpack.c.b16 %v11039, %v11035
    %v11232 = vpack.c.b16 %v11044, %v11040
    %v11233 = vpack.c.b16 %v11045, %v11041
    %v11234 = vpack.c.b16 %v11046, %v11042
    %v11235 = vpack.c.b16 %v11047, %v11043
    %v11236 = vpack.c.b16 %v11052, %v11048
    %v11237 = vpack.c.b16 %v11053, %v11049
    %v11238 = vpack.c.b16 %v11054, %v11050
    %v11239 = vpack.c.b16 %v11055, %v11051
    %v11240 = vpack.c.b16 %v11060, %v11056
    %v11241 = vpack.c.b16 %v11061, %v11057
    %v11242 = vpack.c.b16 %v11062, %v11058
    %v11243 = vpack.c.b16 %v11063, %v11059
    %v11244 = vpack.c.b16 %v11068, %v11064
    %v11245 = vpack.c.b16 %v11069, %v11065
    %v11246 = vpack.c.b16 %v11070, %v11066
    %v11247 = vpack.c.b16 %v11071, %v11067
    %v11248 = vpack.c.b16 %v11076, %v11072
    %v11249 = vpack.c.b16 %v11077, %v11073
    %v11250 = vpack.c.b16 %v11078, %v11074
    %v11251 = vpack.c.b16 %v11079, %v11075
    %v11252 = vpack.c.b16 %v11084, %v11080
    %v11253 = vpack.c.b16 %v11085, %v11081
    %v11254 = vpack.c.b16 %v11086, %v11082
    %v11255 = vpack.c.b16 %v11087, %v11083
    %v11256 = vpack.c.b16 %v11092, %v11088
    %v11257 = vpack.c.b16 %v11093, %v11089
    %v11258 = vpack.c.b16 %v11094, %v11090
    %v11259 = vpack.c.b16 %v11095, %v11091
    %v11260 = vpack.c.b16 %v11100, %v11096
    %v11261 = vpack.c.b16 %v11101, %v11097
    %v11262 = vpack.c.b16 %v11102, %v11098
    %v11263 = vpack.c.b16 %v11103, %v11099
    %v11264 = vpack.c.b16 %v11108, %v11104
    %v11265 = vpack.c.b16 %v11109, %v11105
    %v11266 = vpack.c.b16 %v11110, %v11106
    %v11267 = vpack.c.b16 %v11111, %v11107
    %v11268 = vpack.c.b16 %v11116, %v11112
    %v11269 = vpack.c.b16 %v11117, %v11113
    %v11270 = vpack.c.b16 %v11118, %v11114
    %v11271 = vpack.c.b16 %v11119, %v11115
    %v11272 = vpack.c.b16 %v11124, %v11120
    %v11273 = vpack.c.b16 %v11125, %v11121
    %v11274 = vpack.c.b16 %v11126, %v11122
    %v11275 = vpack.c.b16 %v11127, %v11123
    %v11276 = vpack.c.b16 %v11132, %v11128
    %v11277 = vpack.c.b16 %v11133, %v11129
    %v11278 = vpack.c.b16 %v11134, %v11130
    %v11279 = vpack.c.b16 %v11135, %v11131
    %v11280 = vpack.c.b16 %v11140, %v11136
    %v11281 = vpack.c.b16 %v11141, %v11137
    %v11282 = vpack.c.b16 %v11142, %v11138
    %v11283 = vpack.c.b16 %v11143, %v11139
    %v11284 = vpack.c.b16 %v11148, %v11144
    %v11285 = vpack.c.b16 %v11149, %v11145
    %v11286 = vpack.c.b16 %v11150, %v11146
    %v11287 = vpack.c.b16 %v11151, %v11147
    %v11288 = vpack.c.b16 %v11156, %v11152
    %v11289 = vpack.c.b16 %v11157, %v11153
    %v11290 = vpack.c.b16 %v11158, %v11154
    %v11291 = vpack.c.b16 %v11159, %v11155
    %v11292 = vpack.c.b16 %v11164, %v11160
    %v11293 = vpack.c.b16 %v11165, %v11161
    %v11294 = vpack.c.b16 %v11166, %v11162
    %v11295 = vpack.c.b16 %v11167, %v11163
    %11424 = vmatpush.bf16.msra.mxu0 %v11196
    %11425 = vmatpush.bf16.msra.mxu0 %v11192
    %11426 = vmatpush.bf16.msra.mxu0 %v11188
    %11427 = vmatpush.bf16.msra.mxu0 %v11184
    %11428 = vmatpush.bf16.msra.mxu0 %v11180
    %11429 = vmatpush.bf16.msra.mxu0 %v11176
    %11430 = vmatpush.bf16.msra.mxu0 %v11172
    %11431 = vmatpush.bf16.msra.mxu0 %v11168
    %11432 = vmatmul.bf16.gmra.mxu0 %v10642
    %v11433 = vpop.f32.mrf.mxu0
    %v11434 = vadd.f32 %v10776, %v11433
    %v11435 = vpop.f32.mrf.mxu0
    %11436 = vdwg.mxu0
    %11437 = vmatpush.bf16.msra.mxu0 %v11228
    %11438 = vmatpush.bf16.msra.mxu0 %v11224
    %11439 = vmatpush.bf16.msra.mxu0 %v11220
    %11440 = vmatpush.bf16.msra.mxu0 %v11216
    %11441 = vmatpush.bf16.msra.mxu0 %v11212
    %11442 = vmatpush.bf16.msra.mxu0 %v11208
    %11443 = vmatpush.bf16.msra.mxu0 %v11204
    %11444 = vmatpush.bf16.msra.mxu0 %v11200
    %11445 = vmatmul.bf16.gmra.mxu0 %v10643
    %v11446 = vpop.f32.mrf.mxu0
    %v11447 = vadd.f32 %v11434, %v11446
    %v11448 = vpop.f32.mrf.mxu0
    %11449 = vdwg.mxu0
    %11450 = vmatpush.bf16.msra.mxu0 %v11260
    %11451 = vmatpush.bf16.msra.mxu0 %v11256
    %11452 = vmatpush.bf16.msra.mxu0 %v11252
    %11453 = vmatpush.bf16.msra.mxu0 %v11248
    %11454 = vmatpush.bf16.msra.mxu0 %v11244
    %11455 = vmatpush.bf16.msra.mxu0 %v11240
    %11456 = vmatpush.bf16.msra.mxu0 %v11236
    %11457 = vmatpush.bf16.msra.mxu0 %v11232
    %11458 = vmatmul.bf16.gmra.mxu0 %v10644
    %v11459 = vpop.f32.mrf.mxu0
    %v11460 = vadd.f32 %v11447, %v11459
    %v11461 = vpop.f32.mrf.mxu0
    %11462 = vdwg.mxu0
    %11463 = vmatpush.bf16.msra.mxu0 %v11292
    %11464 = vmatpush.bf16.msra.mxu0 %v11288
    %11465 = vmatpush.bf16.msra.mxu0 %v11284
    %11466 = vmatpush.bf16.msra.mxu0 %v11280
    %11467 = vmatpush.bf16.msra.mxu0 %v11276
    %11468 = vmatpush.bf16.msra.mxu0 %v11272
    %11469 = vmatpush.bf16.msra.mxu0 %v11268
    %11470 = vmatpush.bf16.msra.mxu0 %v11264
    %11471 = vmatmul.bf16.gmra.mxu0 %v10645
    %v11472 = vpop.f32.mrf.mxu0
    %v11473 = vadd.f32 %v11460, %v11472
    %v11474 = vpop.f32.mrf.mxu0
    %11475 = vdwg.mxu0
    %11476 = vmatpush.bf16.msra.mxu0 %v11197
    %11477 = vmatpush.bf16.msra.mxu0 %v11193
    %11478 = vmatpush.bf16.msra.mxu0 %v11189
    %11479 = vmatpush.bf16.msra.mxu0 %v11185
    %11480 = vmatpush.bf16.msra.mxu0 %v11181
    %11481 = vmatpush.bf16.msra.mxu0 %v11177
    %11482 = vmatpush.bf16.msra.mxu0 %v11173
    %11483 = vmatpush.bf16.msra.mxu0 %v11169
    %11484 = vmatmul.bf16.gmra.mxu0 %v10642
    %v11485 = vpop.f32.mrf.mxu0
    %v11486 = vadd.f32 %v10777, %v11485
    %v11487 = vpop.f32.mrf.mxu0
    %11488 = vdwg.mxu0
    %11489 = vmatpush.bf16.msra.mxu0 %v11229
    %11490 = vmatpush.bf16.msra.mxu0 %v11225
    %11491 = vmatpush.bf16.msra.mxu0 %v11221
    %11492 = vmatpush.bf16.msra.mxu0 %v11217
    %11493 = vmatpush.bf16.msra.mxu0 %v11213
    %11494 = vmatpush.bf16.msra.mxu0 %v11209
    %11495 = vmatpush.bf16.msra.mxu0 %v11205
    %11496 = vmatpush.bf16.msra.mxu0 %v11201
    %11497 = vmatmul.bf16.gmra.mxu0 %v10643
    %v11498 = vpop.f32.mrf.mxu0
    %v11499 = vadd.f32 %v11486, %v11498
    %v11500 = vpop.f32.mrf.mxu0
    %11501 = vdwg.mxu0
    %11502 = vmatpush.bf16.msra.mxu0 %v11261
    %11503 = vmatpush.bf16.msra.mxu0 %v11257
    %11504 = vmatpush.bf16.msra.mxu0 %v11253
    %11505 = vmatpush.bf16.msra.mxu0 %v11249
    %11506 = vmatpush.bf16.msra.mxu0 %v11245
    %11507 = vmatpush.bf16.msra.mxu0 %v11241
    %11508 = vmatpush.bf16.msra.mxu0 %v11237
    %11509 = vmatpush.bf16.msra.mxu0 %v11233
    %11510 = vmatmul.bf16.gmra.mxu0 %v10644
    %v11511 = vpop.f32.mrf.mxu0
    %v11512 = vadd.f32 %v11499, %v11511
    %v11513 = vpop.f32.mrf.mxu0
    %11514 = vdwg.mxu0
    %11515 = vmatpush.bf16.msra.mxu0 %v11293
    %11516 = vmatpush.bf16.msra.mxu0 %v11289
    %11517 = vmatpush.bf16.msra.mxu0 %v11285
    %11518 = vmatpush.bf16.msra.mxu0 %v11281
    %11519 = vmatpush.bf16.msra.mxu0 %v11277
    %11520 = vmatpush.bf16.msra.mxu0 %v11273
    %11521 = vmatpush.bf16.msra.mxu0 %v11269
    %11522 = vmatpush.bf16.msra.mxu0 %v11265
    %11523 = vmatmul.bf16.gmra.mxu0 %v10645
    %v11524 = vpop.f32.mrf.mxu0
    %v11525 = vadd.f32 %v11512, %v11524
    %v11526 = vpop.f32.mrf.mxu0
    %11527 = vdwg.mxu0
    %11528 = vmatpush.bf16.msra.mxu0 %v11198
    %11529 = vmatpush.bf16.msra.mxu0 %v11194
    %11530 = vmatpush.bf16.msra.mxu0 %v11190
    %11531 = vmatpush.bf16.msra.mxu0 %v11186
    %11532 = vmatpush.bf16.msra.mxu0 %v11182
    %11533 = vmatpush.bf16.msra.mxu0 %v11178
    %11534 = vmatpush.bf16.msra.mxu0 %v11174
    %11535 = vmatpush.bf16.msra.mxu0 %v11170
    %11536 = vmatmul.bf16.gmra.mxu0 %v10642
    %v11537 = vpop.f32.mrf.mxu0
    %v11538 = vadd.f32 %v10778, %v11537
    %v11539 = vpop.f32.mrf.mxu0
    %11540 = vdwg.mxu0
    %11541 = vmatpush.bf16.msra.mxu0 %v11230
    %11542 = vmatpush.bf16.msra.mxu0 %v11226
    %11543 = vmatpush.bf16.msra.mxu0 %v11222
    %11544 = vmatpush.bf16.msra.mxu0 %v11218
    %11545 = vmatpush.bf16.msra.mxu0 %v11214
    %11546 = vmatpush.bf16.msra.mxu0 %v11210
    %11547 = vmatpush.bf16.msra.mxu0 %v11206
    %11548 = vmatpush.bf16.msra.mxu0 %v11202
    %11549 = vmatmul.bf16.gmra.mxu0 %v10643
    %v11550 = vpop.f32.mrf.mxu0
    %v11551 = vadd.f32 %v11538, %v11550
    %v11552 = vpop.f32.mrf.mxu0
    %11553 = vdwg.mxu0
    %11554 = vmatpush.bf16.msra.mxu0 %v11262
    %11555 = vmatpush.bf16.msra.mxu0 %v11258
    %11556 = vmatpush.bf16.msra.mxu0 %v11254
    %11557 = vmatpush.bf16.msra.mxu0 %v11250
    %11558 = vmatpush.bf16.msra.mxu0 %v11246
    %11559 = vmatpush.bf16.msra.mxu0 %v11242
    %11560 = vmatpush.bf16.msra.mxu0 %v11238
    %11561 = vmatpush.bf16.msra.mxu0 %v11234
    %11562 = vmatmul.bf16.gmra.mxu0 %v10644
    %v11563 = vpop.f32.mrf.mxu0
    %v11564 = vadd.f32 %v11551, %v11563
    %v11565 = vpop.f32.mrf.mxu0
    %11566 = vdwg.mxu0
    %11567 = vmatpush.bf16.msra.mxu0 %v11294
    %11568 = vmatpush.bf16.msra.mxu0 %v11290
    %11569 = vmatpush.bf16.msra.mxu0 %v11286
    %11570 = vmatpush.bf16.msra.mxu0 %v11282
    %11571 = vmatpush.bf16.msra.mxu0 %v11278
    %11572 = vmatpush.bf16.msra.mxu0 %v11274
    %11573 = vmatpush.bf16.msra.mxu0 %v11270
    %11574 = vmatpush.bf16.msra.mxu0 %v11266
    %11575 = vmatmul.bf16.gmra.mxu0 %v10645
    %v11576 = vpop.f32.mrf.mxu0
    %v11577 = vadd.f32 %v11564, %v11576
    %v11578 = vpop.f32.mrf.mxu0
    %11579 = vdwg.mxu0
    %11580 = vmatpush.bf16.msra.mxu0 %v11199
    %11581 = vmatpush.bf16.msra.mxu0 %v11195
    %11582 = vmatpush.bf16.msra.mxu0 %v11191
    %11583 = vmatpush.bf16.msra.mxu0 %v11187
    %11584 = vmatpush.bf16.msra.mxu0 %v11183
    %11585 = vmatpush.bf16.msra.mxu0 %v11179
    %11586 = vmatpush.bf16.msra.mxu0 %v11175
    %11587 = vmatpush.bf16.msra.mxu0 %v11171
    %11588 = vmatmul.bf16.gmra.mxu0 %v10642
    %v11589 = vpop.f32.mrf.mxu0
    %v11590 = vadd.f32 %v10779, %v11589
    %v11591 = vpop.f32.mrf.mxu0
    %11592 = vdwg.mxu0
    %11593 = vmatpush.bf16.msra.mxu0 %v11231
    %11594 = vmatpush.bf16.msra.mxu0 %v11227
    %11595 = vmatpush.bf16.msra.mxu0 %v11223
    %11596 = vmatpush.bf16.msra.mxu0 %v11219
    %11597 = vmatpush.bf16.msra.mxu0 %v11215
    %11598 = vmatpush.bf16.msra.mxu0 %v11211
    %11599 = vmatpush.bf16.msra.mxu0 %v11207
    %11600 = vmatpush.bf16.msra.mxu0 %v11203
    %11601 = vmatmul.bf16.gmra.mxu0 %v10643
    %v11602 = vpop.f32.mrf.mxu0
    %v11603 = vadd.f32 %v11590, %v11602
    %v11604 = vpop.f32.mrf.mxu0
    %11605 = vdwg.mxu0
    %11606 = vmatpush.bf16.msra.mxu0 %v11263
    %11607 = vmatpush.bf16.msra.mxu0 %v11259
    %11608 = vmatpush.bf16.msra.mxu0 %v11255
    %11609 = vmatpush.bf16.msra.mxu0 %v11251
    %11610 = vmatpush.bf16.msra.mxu0 %v11247
    %11611 = vmatpush.bf16.msra.mxu0 %v11243
    %11612 = vmatpush.bf16.msra.mxu0 %v11239
    %11613 = vmatpush.bf16.msra.mxu0 %v11235
    %11614 = vmatmul.bf16.gmra.mxu0 %v10644
    %v11615 = vpop.f32.mrf.mxu0
    %v11616 = vadd.f32 %v11603, %v11615
    %v11617 = vpop.f32.mrf.mxu0
    %11618 = vdwg.mxu0
    %11619 = vmatpush.bf16.msra.mxu0 %v11295
    %11620 = vmatpush.bf16.msra.mxu0 %v11291
    %11621 = vmatpush.bf16.msra.mxu0 %v11287
    %11622 = vmatpush.bf16.msra.mxu0 %v11283
    %11623 = vmatpush.bf16.msra.mxu0 %v11279
    %11624 = vmatpush.bf16.msra.mxu0 %v11275
    %11625 = vmatpush.bf16.msra.mxu0 %v11271
    %11626 = vmatpush.bf16.msra.mxu0 %v11267
    %11627 = vmatmul.bf16.gmra.mxu0 %v10645
    %v11628 = vpop.f32.mrf.mxu0
    %v11629 = vadd.f32 %v11616, %v11628
    %v11630 = vpop.f32.mrf.mxu0
    %11631 = vdwg.mxu0
    %v11632 = vmax.f32 %v11473, 0.0
    %v11633 = vmax.f32 %v11525, 0.0
    %v11634 = vmax.f32 %v11577, 0.0
    %v11635 = vmax.f32 %v11629, 0.0
    %v11640 = vrot.slane %v11633, 6
    %v11641 = vrot.slane %v11634, 4
    %v11642 = vrot.slane %v11635, 2
    %vm11643 = vcmask 1041408
    %v11644 = vsel %vm11643, %v11632, %v11640
    %vm11645 = vcmask 1045508
    %v11646 = vsel %vm11645, %v11641, %v11642
    %v11647 = vsel %vm3093, %v11644, %v11646
    %11649 = vst [vmem:[#allocation29] sm:$0xff] %v11647
    // Predicated region
    $region146: #{topdown_forward.1} parent=1 // pred_check
      _
    $region147: #{topdown_forward.1} parent=1 // pred_check_branch
      %11651 = sbr.rel (0) target = $region149
    $region148: #{topdown_forward.1} parent=1 // pred_region
      %11653 = vsyncadd [#allocation7], 0
      %s11655 = sshll.u32 [#allocation29], 4
      %s11656 = int_to_ptr.vmem [resolvable:$true] %s11655
      %s11657 = sshll.u32 %s21, 4
      %s11658 = int_to_ptr.hbm [resolvable:$true] %s11657
      %11660 = dma.vmem_to_hbm [thread:$0]  %s11656, 128, %s11658, [#allocation7]
    $region149: #{topdown_forward.1} parent=1 // pred_fallthru
      _
    // Predicated region
    $region150: #{topdown_forward.1} parent=1 // pred_check
      _
    $region151: #{topdown_forward.1} parent=1 // pred_check_branch
      %11662 = sbr.rel (0) target = $region153
    $region152: #{topdown_forward.1} parent=1 // pred_region
      %11664 = dma.done [#allocation7], 128
    $region153: #{topdown_forward.1} parent=1 // pred_fallthru
      _
    %11665 = vsyncpa [#allocation6], 1
    %11666 = vsyncpa [#allocation9], 1
    %11667 = vsyncpa [#allocation12], 1
    %11668 = vsyncpa [#allocation15], 1
    %11669 = vsyncpa [#allocation18], 1
    %11670 = vsyncpa [#allocation21], 1
    %11671 = vsyncpa [#allocation24], 1
    %11672 = vsyncpa [#allocation27], 1
    %11673 = vsyncpa [#allocation7], 1
  %11674 = vsyncmov [#allocation3]
  %s11675 = vpop.sfrf %11674
  %p11676 = scmp.eq.s32.totalorder %s11675, 0
  %p11677 = pneg %p11676
  %11679 = shalt.err (%p11677)

</llo_original>
